<compile_context>
chip_gen: v7x
topology: tpu7x:2x2x1
jax: 0.10.0
libtpu: 0.0.40
codegen_flags: <defaults>
</compile_context>

<pallas_src>
import math

import jax
import jax.numpy as jnp
from jax.experimental import pallas as pl
from jax.experimental.pallas import tpu as pltpu

NEG_SLOPE = 0.2


def _leaky(x):
    # f32 in, f32 out — keeps elementwise work off bf16 paths (v5e-safe).
    return jnp.where(x >= 0, x, NEG_SLOPE * x)


# ---------------------------------------------------------------------------
# Pallas kernels
# ---------------------------------------------------------------------------
def _gemm_bias_lrelu_kernel(x_ref, w_ref, b_ref, o_ref):
    # out(Cout, M) = lrelu(W(Cout,K) @ X(K,M) + b(Cout,1)); lane dim = M (big).
    acc = jnp.dot(w_ref[...], x_ref[...], preferred_element_type=jnp.float32)
    acc = acc + b_ref[...]
    o_ref[...] = _leaky(acc).astype(o_ref.dtype)


def _upmerge_kernel(x_ref, sc_ref, wt_ref, w1_ref, w2_ref, bt_ref, b1_ref, o_ref):
    # Fused: ConvTranspose2d(2,2) + LeakyReLU + concat(up, skip) + 1x1 conv
    # + LeakyReLU, computed per 2x2 phase (a, b) so the upsampled tensor never
    # leaves VMEM.  Valid only because kernel == stride (non-overlapping).
    #   x_ref : (c0, M)      low-res input (M = N*H*W), bf16
    #   sc_ref: (4, c1, M)   skip connection pre-sliced per phase ab=a*2+b, bf16
    #   wt_ref: (4, c1, c0)  convT weight per phase, bf16
    #   w1/w2 : (c1, c1)     1x1 merge weight for up / skip branch, bf16
    #   bt/b1 : (c1, 1)      convT / merge bias, f32
    #   o_ref : (4, c1, M)   merge output per phase, bf16
    x = x_ref[...]
    w1 = w1_ref[...]
    w2 = w2_ref[...]
    bt = bt_ref[...]
    b1 = b1_ref[...]
    for ab in range(4):
        up = jnp.dot(wt_ref[ab], x, preferred_element_type=jnp.float32) + bt
        up = _leaky(up).astype(jnp.bfloat16)
        acc = jnp.dot(w1, up, preferred_element_type=jnp.float32)
        acc = acc + jnp.dot(w2, sc_ref[ab], preferred_element_type=jnp.float32)
        acc = acc + b1
        o_ref[ab] = _leaky(acc).astype(o_ref.dtype)


# ---------------------------------------------------------------------------
# pallas_call wrappers (single grid step, everything resident in VMEM)
# ---------------------------------------------------------------------------
def gemm_bias_lrelu(x, w, b):
    """leaky_relu(w @ x + b). w:(Cout,K) bf16, x:(K,M) bf16, b:(Cout,1) f32 -> (Cout,M) bf16."""
    Cout, K = w.shape
    K2, M = x.shape
    assert K == K2 and b.shape == (Cout, 1)
    return pl.pallas_call(
        _gemm_bias_lrelu_kernel,
        out_shape=jax.ShapeDtypeStruct((Cout, M), jnp.bfloat16),
        grid_spec=pltpu.PrefetchScalarGridSpec(
            num_scalar_prefetch=0,
            grid=(1,),
            in_specs=[
                pl.BlockSpec((K, M), lambda i: (0, 0)),
                pl.BlockSpec((Cout, K), lambda i: (0, 0)),
                pl.BlockSpec((Cout, 1), lambda i: (0, 0)),
            ],
            out_specs=pl.BlockSpec((Cout, M), lambda i: (0, 0)),
        ),
        compiler_params=pltpu.CompilerParams(dimension_semantics=("arbitrary",)),
    )(x, w, b)


def upmerge_lrelu(x, sc4, wt, w1, w2, bt, b1):
    """Fused convT(2,2)+lrelu+concat+1x1conv+lrelu.  Returns (4, c1, M) bf16."""
    c0, M = x.shape
    four, c1, M2 = sc4.shape
    assert four == 4 and M == M2
    assert wt.shape == (4, c1, c0) and w1.shape == (c1, c1) and w2.shape == (c1, c1)
    assert bt.shape == (c1, 1) and b1.shape == (c1, 1)
    return pl.pallas_call(
        _upmerge_kernel,
        out_shape=jax.ShapeDtypeStruct((4, c1, M), jnp.bfloat16),
        grid_spec=pltpu.PrefetchScalarGridSpec(
            num_scalar_prefetch=0,
            grid=(1,),
            in_specs=[
                pl.BlockSpec((c0, M), lambda i: (0, 0)),
                pl.BlockSpec((4, c1, M), lambda i: (0, 0, 0)),
                pl.BlockSpec((4, c1, c0), lambda i: (0, 0, 0)),
                pl.BlockSpec((c1, c1), lambda i: (0, 0)),
                pl.BlockSpec((c1, c1), lambda i: (0, 0)),
                pl.BlockSpec((c1, 1), lambda i: (0, 0)),
                pl.BlockSpec((c1, 1), lambda i: (0, 0)),
            ],
            out_specs=pl.BlockSpec((4, c1, M), lambda i: (0, 0, 0)),
        ),
        compiler_params=pltpu.CompilerParams(dimension_semantics=("arbitrary",)),
    )(x, sc4, wt, w1, w2, bt, b1)


# ---------------------------------------------------------------------------
# Conv layers (channel-major (C, N, H, W) activations, bf16)
# ---------------------------------------------------------------------------
def _conv_lrelu(x, p, stride, padding):
    """x: (Cin,N,H,W) bf16.  p['w']: (Cout, KH*KW*Cin) bf16, p['b']: (Cout,1) f32."""
    Cin, N, H, W = x.shape
    Cout, KKC = p["w"].shape
    KH = KW = math.isqrt(KKC // Cin)
    assert KH * KW * Cin == KKC, "square kernels only"
    pt, pb, p_l, p_r = padding
    sh, sw = stride
    if max(padding) > 0:
        x = jnp.pad(x, ((0, 0), (0, 0), (pt, pb), (p_l, p_r)))
    Hp, Wp = H + pt + pb, W + p_l + p_r
    OH = (Hp - KH) // sh + 1
    OW = (Wp - KW) // sw + 1
    # TODO(synk): move this im2col in-kernel (implicit GEMM over a VMEM-resident
    # padded tile) for large H/W; at 16x16 the patch tensor is a few hundred KB.
    shifts = [x[:, :, kh:kh + (OH - 1) * sh + 1:sh, kw:kw + (OW - 1) * sw + 1:sw]
              for kh in range(KH) for kw in range(KW)]
    pat = jnp.concatenate(shifts, axis=0).reshape(KKC, N * OH * OW)
    out = gemm_bias_lrelu(pat, p["w"], p["b"])
    return out.reshape(Cout, N, OH, OW)


def _same_padding(H, W, KH, KW, sh, sw):
    # TF-style "same" padding, matching same_padding_conv in the PyTorch module.
    OH = -(-H // sh)
    OW = -(-W // sw)
    ph = max((OH - 1) * sh + KH - H, 0)
    pw = max((OW - 1) * sw + KW - W, 0)
    return (ph // 2, ph - ph // 2, pw // 2, pw - pw // 2)


def _same_conv_lrelu(x, p, stride):
    Cin, N, H, W = x.shape
    Cout, KKC = p["w"].shape
    KH = KW = math.isqrt(KKC // Cin)
    pad = _same_padding(H, W, KH, KW, stride[0], stride[1])
    return _conv_lrelu(x, p, stride, pad)


# ---------------------------------------------------------------------------
# Parameter init (deterministic, synthetic) — GEMM-layout bf16 weights baked here
# ---------------------------------------------------------------------------
def _conv_params(key, cout, cin, kh, kw):
    k1, k2 = jax.random.split(key)
    fan_in = cin * kh * kw
    w = jax.random.normal(k1, (cout, cin, kh, kw), jnp.float32) / math.sqrt(fan_in)
    b = 0.01 * jax.random.normal(k2, (cout,), jnp.float32)
    # column order = (kh, kw, ci), matching the im2col row order above
    wmat = jnp.transpose(w, (0, 2, 3, 1)).reshape(cout, kh * kw * cin)
    return {"w": wmat.astype(jnp.bfloat16), "b": b.reshape(cout, 1)}


def _upsample_params(key, c0, c1):
    k1, k2, k3, k4, k5, k6 = jax.random.split(key, 6)
    # ConvTranspose2d(c0, c1, 2, 2): weight (c0, c1, 2, 2); kernel == stride.
    wt = jax.random.normal(k1, (c0, c1, 2, 2), jnp.float32) / math.sqrt(4 * c0)
    bt = 0.01 * jax.random.normal(k2, (c1,), jnp.float32)
    wt_all = jnp.transpose(wt, (2, 3, 1, 0)).reshape(4, c1, c0)  # [a*2+b, co, ci]
    # 1x1 merge: Conv2d(2*c1, c1, 1); concat order is cat([up, skip], channel),
    # so columns [:c1] hit the up branch and [c1:] the skip branch.
    wm = jax.random.normal(k3, (c1, 2 * c1), jnp.float32) / math.sqrt(2 * c1)
    bm = 0.01 * jax.random.normal(k4, (c1,), jnp.float32)
    return {
        "wt": wt_all.astype(jnp.bfloat16),
        "bt": bt.reshape(c1, 1),
        "w1": wm[:, :c1].astype(jnp.bfloat16),
        "w2": wm[:, c1:].astype(jnp.bfloat16),
        "b1": bm.reshape(c1, 1),
        "merge3": [_conv_params(k5, c1, c1, 3, 3),
                   _conv_params(k6, c1, c1, 3, 3)],
    }


def init_feature_extractor(key, C):
    keys = iter(jax.random.split(key, 32))
    p = {}
    p["down_0"] = [_conv_params(next(keys), C[0], 32, 3, 3)]
    for i in range(1, 4):
        p[f"down_{i}"] = [
            _conv_params(next(keys), C[i], C[i - 1], 4, 4),
            _conv_params(next(keys), C[i], C[i], 3, 3),
        ]
    p["down_4"] = [_conv_params(next(keys), C[4], C[3], 4, 4)] + \
                  [_conv_params(next(keys), C[4], C[4], 3, 3) for _ in range(3)]
    for lvl, (c0, c1) in zip((3, 2, 1, 0),
                             ((C[4], C[3]), (C[3], C[2]), (C[2], C[1]), (C[1], C[0]))):
        p[f"up_{lvl}"] = _upsample_params(next(keys), c0, c1)
    return p


# ---------------------------------------------------------------------------
# Forward pass
# ---------------------------------------------------------------------------
def _down_block(plist, x, first_stride2):
    idx = 0
    if first_stride2:
        x = _same_conv_lrelu(x, plist[0], (2, 2))
        idx = 1
    for p in plist[idx:]:
        x = _conv_lrelu(x, p, (1, 1), (1, 1, 1, 1))
    return x


def _upsample_block(p, x, sc):
    # x: (c0, N, H, W) low-res, sc: (c1, N, 2H, 2W) skip connection.
    c0, N, H, W = x.shape
    c1 = sc.shape[0]
    M = N * H * W
    # Pre-slice the skip per 2x2 phase so the kernel sees plain 2-D GEMM operands.
    sc4 = jnp.stack([sc[:, :, a::2, b::2] for a in (0, 1) for b in (0, 1)],
                    axis=0).reshape(4, c1, M)
    y4 = upmerge_lrelu(x.reshape(c0, M), sc4, p["wt"], p["w1"], p["w2"],
                       p["bt"], p["b1"])                       # (4, c1, M)
    # De-interleave the 2x2 phases back to spatial layout for the 3x3 convs.
    y = y4.reshape(2, 2, c1, N, H, W)
    y = jnp.transpose(y, (2, 3, 4, 0, 5, 1)).reshape(c1, N, 2 * H, 2 * W)
    for pc in p["merge3"]:
        y = _conv_lrelu(y, pc, (1, 1), (1, 1, 1, 1))
    return y


def feature_extractor_forward(params, x_nchw):
    # NCHW -> channel-major (C, N, H, W) bf16: GEMM outputs are then lane-dense
    # on the flattened spatial axis and the final NCHW conversion is one transpose.
    x = jnp.transpose(x_nchw, (1, 0, 2, 3)).astype(jnp.bfloat16)
    x0 = _down_block(params["down_0"], x, first_stride2=False)
    x1 = _down_block(params["down_1"], x0, first_stride2=True)
    x2 = _down_block(params["down_2"], x1, first_stride2=True)
    x3 = _down_block(params["down_3"], x2, first_stride2=True)
    o0 = _down_block(params["down_4"], x3, first_stride2=True)
    o1 = _upsample_block(params["up_3"], o0, x3)
    o2 = _upsample_block(params["up_2"], o1, x2)
    o3 = _upsample_block(params["up_1"], o2, x1)
    o4 = _upsample_block(params["up_0"], o3, x0)
    to_nchw = lambda t: jnp.transpose(t, (1, 0, 2, 3)).astype(jnp.float32)
    return tuple(to_nchw(t) for t in (o4, o3, o2, o1, o0))


# ---------------------------------------------------------------------------
if __name__ == "__main__":
    C = [8, 16, 16, 24, 32]
    B, Cin, H, W = 2, 32, 16, 16   # module's first conv expects 32 input channels

    key = jax.random.PRNGKey(0)
    kx, kp = jax.random.split(key)
    x = jax.random.normal(kx, (B, Cin, H, W), jnp.float32)
    params = init_feature_extractor(kp, C)

    fwd = jax.jit(feature_extractor_forward)
    outs = fwd(params, x)
    outs = tuple(jax.block_until_ready(o) for o in outs)

    expected = [
        (B, C[0], H, W),
        (B, C[1], H // 2, W // 2),
        (B, C[2], H // 4, W // 4),
        (B, C[3], H // 8, W // 8),
        (B, C[4], H // 16, W // 16),
    ]
    for o, e in zip(outs, expected):
        assert o.shape == e, (o.shape, e)
        assert o.dtype == jnp.float32
        assert bool(jnp.all(jnp.isfinite(o)))

    print("KERNEL_OK")
</pallas_src>

<mosaic_0001>
module attributes {stable_mosaic.version = 11 : i64} {
  func.func @_gemm_bias_lrelu_kernel(%arg0: i32, %arg1: memref<288x512xbf16, #tpu.memory_space<vmem>>, %arg2: memref<8x288xbf16, #tpu.memory_space<vmem>>, %arg3: memref<8x1xf32, #tpu.memory_space<vmem>>, %arg4: memref<8x512xbf16, #tpu.memory_space<vmem>>) attributes {dimension_semantics = [#tpu.dimension_semantics<arbitrary>], iteration_bounds = array<i64: 1>, scalar_prefetch = 0 : i64, scratch_operands = 0 : i64, tpu.core_type = #tpu.core_type<tc>, window_params = [{pipeline_mode = #tpu.pipeline_mode<synchronous>, transform_indices = @transform_0, window_bounds = array<i64: 288, 512>}, {pipeline_mode = #tpu.pipeline_mode<synchronous>, transform_indices = @transform_1, window_bounds = array<i64: 8, 288>}, {pipeline_mode = #tpu.pipeline_mode<synchronous>, transform_indices = @transform_2, window_bounds = array<i64: 8, 1>}, {pipeline_mode = #tpu.pipeline_mode<synchronous>, transform_indices = @transform_3, window_bounds = array<i64: 8, 512>}]} {
    %c0 = arith.constant 0 : index
    %c0_0 = arith.constant 0 : index
    %0 = vector.load %arg2[%c0, %c0_0] : memref<8x288xbf16, #tpu.memory_space<vmem>>, vector<8x288xbf16>
    %c0_1 = arith.constant 0 : index
    %c0_2 = arith.constant 0 : index
    %1 = vector.load %arg1[%c0_1, %c0_2] : memref<288x512xbf16, #tpu.memory_space<vmem>>, vector<288x512xbf16>
    %cst = arith.constant dense<0.000000e+00> : vector<8x512xf32>
    %2 = tpu.matmul %0, %1, %cst {dimension_numbers = #tpu.dot_dimension_numbers<[1], [0], [0], [1], [0, 0, 1, 1], [], []>} : vector<8x288xbf16>, vector<288x512xbf16>, vector<8x512xf32> -> vector<8x512xf32>
    %c0_3 = arith.constant 0 : index
    %c0_4 = arith.constant 0 : index
    %3 = vector.load %arg3[%c0_3, %c0_4] : memref<8x1xf32, #tpu.memory_space<vmem>>, vector<8x1xf32>
    %4 = vector.broadcast %3 : vector<8x1xf32> to vector<8x512xf32>
    %5 = arith.addf %2, %4 : vector<8x512xf32>
    %cst_5 = arith.constant 0.000000e+00 : f32
    %6 = vector.broadcast %cst_5 : f32 to vector<8x512xf32>
    %7 = arith.cmpf oge, %5, %6 : vector<8x512xf32>
    %cst_6 = arith.constant 2.000000e-01 : f32
    %8 = vector.broadcast %cst_6 : f32 to vector<8x512xf32>
    %9 = arith.mulf %8, %5 : vector<8x512xf32>
    %10 = arith.select %7, %5, %9 : vector<8x512xi1>, vector<8x512xf32>
    %11 = arith.truncf %10 : vector<8x512xf32> to vector<8x512xbf16>
    %c0_7 = arith.constant 0 : index
    %c0_8 = arith.constant 0 : index
    %12 = vector.load %arg4[%c0_7, %c0_8] : memref<8x512xbf16, #tpu.memory_space<vmem>>, vector<8x512xbf16>
    tpu.vector_store %arg4[%c0_7, %c0_8], %11 {strides = array<i32>} : memref<8x512xbf16, #tpu.memory_space<vmem>>, vector<8x512xbf16>,
    return
  }
  func.func @transform_0(%arg0: i32) -> (i32, i32) {
    %c0_i32 = arith.constant 0 : i32
    %c0_i32_0 = arith.constant 0 : i32
    %c0_i32_1 = arith.constant 0 : i32
    return %c0_i32, %c0_i32_0 : i32, i32
  }
  func.func @transform_1(%arg0: i32) -> (i32, i32) {
    %c0_i32 = arith.constant 0 : i32
    %c0_i32_0 = arith.constant 0 : i32
    %c0_i32_1 = arith.constant 0 : i32
    return %c0_i32, %c0_i32_0 : i32, i32
  }
  func.func @transform_2(%arg0: i32) -> (i32, i32) {
    %c0_i32 = arith.constant 0 : i32
    %c0_i32_0 = arith.constant 0 : i32
    %c0_i32_1 = arith.constant 0 : i32
    return %c0_i32, %c0_i32_0 : i32, i32
  }
  func.func @transform_3(%arg0: i32) -> (i32, i32) {
    %c0_i32 = arith.constant 0 : i32
    %c0_i32_0 = arith.constant 0 : i32
    %c0_i32_1 = arith.constant 0 : i32
    return %c0_i32, %c0_i32_0 : i32, i32
  }
}

module attributes {stable_mosaic.version = 11 : i64} {
  func.func @_gemm_bias_lrelu_kernel(%arg0: i32, %arg1: memref<128x128xbf16, #tpu.memory_space<vmem>>, %arg2: memref<16x128xbf16, #tpu.memory_space<vmem>>, %arg3: memref<16x1xf32, #tpu.memory_space<vmem>>, %arg4: memref<16x128xbf16, #tpu.memory_space<vmem>>) attributes {dimension_semantics = [#tpu.dimension_semantics<arbitrary>], iteration_bounds = array<i64: 1>, scalar_prefetch = 0 : i64, scratch_operands = 0 : i64, tpu.core_type = #tpu.core_type<tc>, window_params = [{pipeline_mode = #tpu.pipeline_mode<synchronous>, transform_indices = @transform_0, window_bounds = array<i64: 128, 128>}, {pipeline_mode = #tpu.pipeline_mode<synchronous>, transform_indices = @transform_1, window_bounds = array<i64: 16, 128>}, {pipeline_mode = #tpu.pipeline_mode<synchronous>, transform_indices = @transform_2, window_bounds = array<i64: 16, 1>}, {pipeline_mode = #tpu.pipeline_mode<synchronous>, transform_indices = @transform_3, window_bounds = array<i64: 16, 128>}]} {
    %c0 = arith.constant 0 : index
    %c0_0 = arith.constant 0 : index
    %0 = vector.load %arg2[%c0, %c0_0] : memref<16x128xbf16, #tpu.memory_space<vmem>>, vector<16x128xbf16>
    %c0_1 = arith.constant 0 : index
    %c0_2 = arith.constant 0 : index
    %1 = vector.load %arg1[%c0_1, %c0_2] : memref<128x128xbf16, #tpu.memory_space<vmem>>, vector<128x128xbf16>
    %cst = arith.constant dense<0.000000e+00> : vector<16x128xf32>
    %2 = tpu.matmul %0, %1, %cst {dimension_numbers = #tpu.dot_dimension_numbers<[1], [0], [0], [1], [0, 0, 1, 1], [], []>} : vector<16x128xbf16>, vector<128x128xbf16>, vector<16x128xf32> -> vector<16x128xf32>
    %c0_3 = arith.constant 0 : index
    %c0_4 = arith.constant 0 : index
    %3 = vector.load %arg3[%c0_3, %c0_4] : memref<16x1xf32, #tpu.memory_space<vmem>>, vector<16x1xf32>
    %4 = vector.broadcast %3 : vector<16x1xf32> to vector<16x128xf32>
    %5 = arith.addf %2, %4 : vector<16x128xf32>
    %cst_5 = arith.constant 0.000000e+00 : f32
    %6 = vector.broadcast %cst_5 : f32 to vector<16x128xf32>
    %7 = arith.cmpf oge, %5, %6 : vector<16x128xf32>
    %cst_6 = arith.constant 2.000000e-01 : f32
    %8 = vector.broadcast %cst_6 : f32 to vector<16x128xf32>
    %9 = arith.mulf %8, %5 : vector<16x128xf32>
    %10 = arith.select %7, %5, %9 : vector<16x128xi1>, vector<16x128xf32>
    %11 = arith.truncf %10 : vector<16x128xf32> to vector<16x128xbf16>
    %c0_7 = arith.constant 0 : index
    %c0_8 = arith.constant 0 : index
    %12 = vector.load %arg4[%c0_7, %c0_8] : memref<16x128xbf16, #tpu.memory_space<vmem>>, vector<16x128xbf16>
    tpu.vector_store %arg4[%c0_7, %c0_8], %11 {strides = array<i32>} : memref<16x128xbf16, #tpu.memory_space<vmem>>, vector<16x128xbf16>,
    return
  }
  func.func @transform_0(%arg0: i32) -> (i32, i32) {
    %c0_i32 = arith.constant 0 : i32
    %c0_i32_0 = arith.constant 0 : i32
    %c0_i32_1 = arith.constant 0 : i32
    return %c0_i32, %c0_i32_0 : i32, i32
  }
  func.func @transform_1(%arg0: i32) -> (i32, i32) {
    %c0_i32 = arith.constant 0 : i32
    %c0_i32_0 = arith.constant 0 : i32
    %c0_i32_1 = arith.constant 0 : i32
    return %c0_i32, %c0_i32_0 : i32, i32
  }
  func.func @transform_2(%arg0: i32) -> (i32, i32) {
    %c0_i32 = arith.constant 0 : i32
    %c0_i32_0 = arith.constant 0 : i32
    %c0_i32_1 = arith.constant 0 : i32
    return %c0_i32, %c0_i32_0 : i32, i32
  }
  func.func @transform_3(%arg0: i32) -> (i32, i32) {
    %c0_i32 = arith.constant 0 : i32
    %c0_i32_0 = arith.constant 0 : i32
    %c0_i32_1 = arith.constant 0 : i32
    return %c0_i32, %c0_i32_0 : i32, i32
  }
}

module attributes {stable_mosaic.version = 11 : i64} {
  func.func @_gemm_bias_lrelu_kernel(%arg0: i32, %arg1: memref<144x128xbf16, #tpu.memory_space<vmem>>, %arg2: memref<16x144xbf16, #tpu.memory_space<vmem>>, %arg3: memref<16x1xf32, #tpu.memory_space<vmem>>, %arg4: memref<16x128xbf16, #tpu.memory_space<vmem>>) attributes {dimension_semantics = [#tpu.dimension_semantics<arbitrary>], iteration_bounds = array<i64: 1>, scalar_prefetch = 0 : i64, scratch_operands = 0 : i64, tpu.core_type = #tpu.core_type<tc>, window_params = [{pipeline_mode = #tpu.pipeline_mode<synchronous>, transform_indices = @transform_0, window_bounds = array<i64: 144, 128>}, {pipeline_mode = #tpu.pipeline_mode<synchronous>, transform_indices = @transform_1, window_bounds = array<i64: 16, 144>}, {pipeline_mode = #tpu.pipeline_mode<synchronous>, transform_indices = @transform_2, window_bounds = array<i64: 16, 1>}, {pipeline_mode = #tpu.pipeline_mode<synchronous>, transform_indices = @transform_3, window_bounds = array<i64: 16, 128>}]} {
    %c0 = arith.constant 0 : index
    %c0_0 = arith.constant 0 : index
    %0 = vector.load %arg2[%c0, %c0_0] : memref<16x144xbf16, #tpu.memory_space<vmem>>, vector<16x144xbf16>
    %c0_1 = arith.constant 0 : index
    %c0_2 = arith.constant 0 : index
    %1 = vector.load %arg1[%c0_1, %c0_2] : memref<144x128xbf16, #tpu.memory_space<vmem>>, vector<144x128xbf16>
    %cst = arith.constant dense<0.000000e+00> : vector<16x128xf32>
    %2 = tpu.matmul %0, %1, %cst {dimension_numbers = #tpu.dot_dimension_numbers<[1], [0], [0], [1], [0, 0, 1, 1], [], []>} : vector<16x144xbf16>, vector<144x128xbf16>, vector<16x128xf32> -> vector<16x128xf32>
    %c0_3 = arith.constant 0 : index
    %c0_4 = arith.constant 0 : index
    %3 = vector.load %arg3[%c0_3, %c0_4] : memref<16x1xf32, #tpu.memory_space<vmem>>, vector<16x1xf32>
    %4 = vector.broadcast %3 : vector<16x1xf32> to vector<16x128xf32>
    %5 = arith.addf %2, %4 : vector<16x128xf32>
    %cst_5 = arith.constant 0.000000e+00 : f32
    %6 = vector.broadcast %cst_5 : f32 to vector<16x128xf32>
    %7 = arith.cmpf oge, %5, %6 : vector<16x128xf32>
    %cst_6 = arith.constant 2.000000e-01 : f32
    %8 = vector.broadcast %cst_6 : f32 to vector<16x128xf32>
    %9 = arith.mulf %8, %5 : vector<16x128xf32>
    %10 = arith.select %7, %5, %9 : vector<16x128xi1>, vector<16x128xf32>
    %11 = arith.truncf %10 : vector<16x128xf32> to vector<16x128xbf16>
    %c0_7 = arith.constant 0 : index
    %c0_8 = arith.constant 0 : index
    %12 = vector.load %arg4[%c0_7, %c0_8] : memref<16x128xbf16, #tpu.memory_space<vmem>>, vector<16x128xbf16>
    tpu.vector_store %arg4[%c0_7, %c0_8], %11 {strides = array<i32>} : memref<16x128xbf16, #tpu.memory_space<vmem>>, vector<16x128xbf16>,
    return
  }
  func.func @transform_0(%arg0: i32) -> (i32, i32) {
    %c0_i32 = arith.constant 0 : i32
    %c0_i32_0 = arith.constant 0 : i32
    %c0_i32_1 = arith.constant 0 : i32
    return %c0_i32, %c0_i32_0 : i32, i32
  }
  func.func @transform_1(%arg0: i32) -> (i32, i32) {
    %c0_i32 = arith.constant 0 : i32
    %c0_i32_0 = arith.constant 0 : i32
    %c0_i32_1 = arith.constant 0 : i32
    return %c0_i32, %c0_i32_0 : i32, i32
  }
  func.func @transform_2(%arg0: i32) -> (i32, i32) {
    %c0_i32 = arith.constant 0 : i32
    %c0_i32_0 = arith.constant 0 : i32
    %c0_i32_1 = arith.constant 0 : i32
    return %c0_i32, %c0_i32_0 : i32, i32
  }
  func.func @transform_3(%arg0: i32) -> (i32, i32) {
    %c0_i32 = arith.constant 0 : i32
    %c0_i32_0 = arith.constant 0 : i32
    %c0_i32_1 = arith.constant 0 : i32
    return %c0_i32, %c0_i32_0 : i32, i32
  }
}

module attributes {stable_mosaic.version = 11 : i64} {
  func.func @_gemm_bias_lrelu_kernel(%arg0: i32, %arg1: memref<256x32xbf16, #tpu.memory_space<vmem>>, %arg2: memref<16x256xbf16, #tpu.memory_space<vmem>>, %arg3: memref<16x1xf32, #tpu.memory_space<vmem>>, %arg4: memref<16x32xbf16, #tpu.memory_space<vmem>>) attributes {dimension_semantics = [#tpu.dimension_semantics<arbitrary>], iteration_bounds = array<i64: 1>, scalar_prefetch = 0 : i64, scratch_operands = 0 : i64, tpu.core_type = #tpu.core_type<tc>, window_params = [{pipeline_mode = #tpu.pipeline_mode<synchronous>, transform_indices = @transform_0, window_bounds = array<i64: 256, 32>}, {pipeline_mode = #tpu.pipeline_mode<synchronous>, transform_indices = @transform_1, window_bounds = array<i64: 16, 256>}, {pipeline_mode = #tpu.pipeline_mode<synchronous>, transform_indices = @transform_2, window_bounds = array<i64: 16, 1>}, {pipeline_mode = #tpu.pipeline_mode<synchronous>, transform_indices = @transform_3, window_bounds = array<i64: 16, 32>}]} {
    %c0 = arith.constant 0 : index
    %c0_0 = arith.constant 0 : index
    %0 = vector.load %arg2[%c0, %c0_0] : memref<16x256xbf16, #tpu.memory_space<vmem>>, vector<16x256xbf16>
    %c0_1 = arith.constant 0 : index
    %c0_2 = arith.constant 0 : index
    %1 = vector.load %arg1[%c0_1, %c0_2] : memref<256x32xbf16, #tpu.memory_space<vmem>>, vector<256x32xbf16>
    %cst = arith.constant dense<0.000000e+00> : vector<16x32xf32>
    %2 = tpu.matmul %0, %1, %cst {dimension_numbers = #tpu.dot_dimension_numbers<[1], [0], [0], [1], [0, 0, 1, 1], [], []>} : vector<16x256xbf16>, vector<256x32xbf16>, vector<16x32xf32> -> vector<16x32xf32>
    %c0_3 = arith.constant 0 : index
    %c0_4 = arith.constant 0 : index
    %3 = vector.load %arg3[%c0_3, %c0_4] : memref<16x1xf32, #tpu.memory_space<vmem>>, vector<16x1xf32>
    %4 = vector.broadcast %3 : vector<16x1xf32> to vector<16x32xf32>
    %5 = arith.addf %2, %4 : vector<16x32xf32>
    %cst_5 = arith.constant 0.000000e+00 : f32
    %6 = vector.broadcast %cst_5 : f32 to vector<16x32xf32>
    %7 = arith.cmpf oge, %5, %6 : vector<16x32xf32>
    %cst_6 = arith.constant 2.000000e-01 : f32
    %8 = vector.broadcast %cst_6 : f32 to vector<16x32xf32>
    %9 = arith.mulf %8, %5 : vector<16x32xf32>
    %10 = arith.select %7, %5, %9 : vector<16x32xi1>, vector<16x32xf32>
    %11 = arith.truncf %10 : vector<16x32xf32> to vector<16x32xbf16>
    %c0_7 = arith.constant 0 : index
    %c0_8 = arith.constant 0 : index
    %12 = vector.load %arg4[%c0_7, %c0_8] : memref<16x32xbf16, #tpu.memory_space<vmem>>, vector<16x32xbf16>
    tpu.vector_store %arg4[%c0_7, %c0_8], %11 {strides = array<i32>} : memref<16x32xbf16, #tpu.memory_space<vmem>>, vector<16x32xbf16>,
    return
  }
  func.func @transform_0(%arg0: i32) -> (i32, i32) {
    %c0_i32 = arith.constant 0 : i32
    %c0_i32_0 = arith.constant 0 : i32
    %c0_i32_1 = arith.constant 0 : i32
    return %c0_i32, %c0_i32_0 : i32, i32
  }
  func.func @transform_1(%arg0: i32) -> (i32, i32) {
    %c0_i32 = arith.constant 0 : i32
    %c0_i32_0 = arith.constant 0 : i32
    %c0_i32_1 = arith.constant 0 : i32
    return %c0_i32, %c0_i32_0 : i32, i32
  }
  func.func @transform_2(%arg0: i32) -> (i32, i32) {
    %c0_i32 = arith.constant 0 : i32
    %c0_i32_0 = arith.constant 0 : i32
    %c0_i32_1 = arith.constant 0 : i32
    return %c0_i32, %c0_i32_0 : i32, i32
  }
  func.func @transform_3(%arg0: i32) -> (i32, i32) {
    %c0_i32 = arith.constant 0 : i32
    %c0_i32_0 = arith.constant 0 : i32
    %c0_i32_1 = arith.constant 0 : i32
    return %c0_i32, %c0_i32_0 : i32, i32
  }
}

module attributes {stable_mosaic.version = 11 : i64} {
  func.func @_gemm_bias_lrelu_kernel(%arg0: i32, %arg1: memref<144x32xbf16, #tpu.memory_space<vmem>>, %arg2: memref<16x144xbf16, #tpu.memory_space<vmem>>, %arg3: memref<16x1xf32, #tpu.memory_space<vmem>>, %arg4: memref<16x32xbf16, #tpu.memory_space<vmem>>) attributes {dimension_semantics = [#tpu.dimension_semantics<arbitrary>], iteration_bounds = array<i64: 1>, scalar_prefetch = 0 : i64, scratch_operands = 0 : i64, tpu.core_type = #tpu.core_type<tc>, window_params = [{pipeline_mode = #tpu.pipeline_mode<synchronous>, transform_indices = @transform_0, window_bounds = array<i64: 144, 32>}, {pipeline_mode = #tpu.pipeline_mode<synchronous>, transform_indices = @transform_1, window_bounds = array<i64: 16, 144>}, {pipeline_mode = #tpu.pipeline_mode<synchronous>, transform_indices = @transform_2, window_bounds = array<i64: 16, 1>}, {pipeline_mode = #tpu.pipeline_mode<synchronous>, transform_indices = @transform_3, window_bounds = array<i64: 16, 32>}]} {
    %c0 = arith.constant 0 : index
    %c0_0 = arith.constant 0 : index
    %0 = vector.load %arg2[%c0, %c0_0] : memref<16x144xbf16, #tpu.memory_space<vmem>>, vector<16x144xbf16>
    %c0_1 = arith.constant 0 : index
    %c0_2 = arith.constant 0 : index
    %1 = vector.load %arg1[%c0_1, %c0_2] : memref<144x32xbf16, #tpu.memory_space<vmem>>, vector<144x32xbf16>
    %cst = arith.constant dense<0.000000e+00> : vector<16x32xf32>
    %2 = tpu.matmul %0, %1, %cst {dimension_numbers = #tpu.dot_dimension_numbers<[1], [0], [0], [1], [0, 0, 1, 1], [], []>} : vector<16x144xbf16>, vector<144x32xbf16>, vector<16x32xf32> -> vector<16x32xf32>
    %c0_3 = arith.constant 0 : index
    %c0_4 = arith.constant 0 : index
    %3 = vector.load %arg3[%c0_3, %c0_4] : memref<16x1xf32, #tpu.memory_space<vmem>>, vector<16x1xf32>
    %4 = vector.broadcast %3 : vector<16x1xf32> to vector<16x32xf32>
    %5 = arith.addf %2, %4 : vector<16x32xf32>
    %cst_5 = arith.constant 0.000000e+00 : f32
    %6 = vector.broadcast %cst_5 : f32 to vector<16x32xf32>
    %7 = arith.cmpf oge, %5, %6 : vector<16x32xf32>
    %cst_6 = arith.constant 2.000000e-01 : f32
    %8 = vector.broadcast %cst_6 : f32 to vector<16x32xf32>
    %9 = arith.mulf %8, %5 : vector<16x32xf32>
    %10 = arith.select %7, %5, %9 : vector<16x32xi1>, vector<16x32xf32>
    %11 = arith.truncf %10 : vector<16x32xf32> to vector<16x32xbf16>
    %c0_7 = arith.constant 0 : index
    %c0_8 = arith.constant 0 : index
    %12 = vector.load %arg4[%c0_7, %c0_8] : memref<16x32xbf16, #tpu.memory_space<vmem>>, vector<16x32xbf16>
    tpu.vector_store %arg4[%c0_7, %c0_8], %11 {strides = array<i32>} : memref<16x32xbf16, #tpu.memory_space<vmem>>, vector<16x32xbf16>,
    return
  }
  func.func @transform_0(%arg0: i32) -> (i32, i32) {
    %c0_i32 = arith.constant 0 : i32
    %c0_i32_0 = arith.constant 0 : i32
    %c0_i32_1 = arith.constant 0 : i32
    return %c0_i32, %c0_i32_0 : i32, i32
  }
  func.func @transform_1(%arg0: i32) -> (i32, i32) {
    %c0_i32 = arith.constant 0 : i32
    %c0_i32_0 = arith.constant 0 : i32
    %c0_i32_1 = arith.constant 0 : i32
    return %c0_i32, %c0_i32_0 : i32, i32
  }
  func.func @transform_2(%arg0: i32) -> (i32, i32) {
    %c0_i32 = arith.constant 0 : i32
    %c0_i32_0 = arith.constant 0 : i32
    %c0_i32_1 = arith.constant 0 : i32
    return %c0_i32, %c0_i32_0 : i32, i32
  }
  func.func @transform_3(%arg0: i32) -> (i32, i32) {
    %c0_i32 = arith.constant 0 : i32
    %c0_i32_0 = arith.constant 0 : i32
    %c0_i32_1 = arith.constant 0 : i32
    return %c0_i32, %c0_i32_0 : i32, i32
  }
}

module attributes {stable_mosaic.version = 11 : i64} {
  func.func @_gemm_bias_lrelu_kernel(%arg0: i32, %arg1: memref<256x8xbf16, #tpu.memory_space<vmem>>, %arg2: memref<24x256xbf16, #tpu.memory_space<vmem>>, %arg3: memref<24x1xf32, #tpu.memory_space<vmem>>, %arg4: memref<24x8xbf16, #tpu.memory_space<vmem>>) attributes {dimension_semantics = [#tpu.dimension_semantics<arbitrary>], iteration_bounds = array<i64: 1>, scalar_prefetch = 0 : i64, scratch_operands = 0 : i64, tpu.core_type = #tpu.core_type<tc>, window_params = [{pipeline_mode = #tpu.pipeline_mode<synchronous>, transform_indices = @transform_0, window_bounds = array<i64: 256, 8>}, {pipeline_mode = #tpu.pipeline_mode<synchronous>, transform_indices = @transform_1, window_bounds = array<i64: 24, 256>}, {pipeline_mode = #tpu.pipeline_mode<synchronous>, transform_indices = @transform_2, window_bounds = array<i64: 24, 1>}, {pipeline_mode = #tpu.pipeline_mode<synchronous>, transform_indices = @transform_3, window_bounds = array<i64: 24, 8>}]} {
    %c0 = arith.constant 0 : index
    %c0_0 = arith.constant 0 : index
    %0 = vector.load %arg2[%c0, %c0_0] : memref<24x256xbf16, #tpu.memory_space<vmem>>, vector<24x256xbf16>
    %c0_1 = arith.constant 0 : index
    %c0_2 = arith.constant 0 : index
    %1 = vector.load %arg1[%c0_1, %c0_2] : memref<256x8xbf16, #tpu.memory_space<vmem>>, vector<256x8xbf16>
    %cst = arith.constant dense<0.000000e+00> : vector<24x8xf32>
    %2 = tpu.matmul %0, %1, %cst {dimension_numbers = #tpu.dot_dimension_numbers<[1], [0], [0], [1], [0, 0, 1, 1], [], []>} : vector<24x256xbf16>, vector<256x8xbf16>, vector<24x8xf32> -> vector<24x8xf32>
    %c0_3 = arith.constant 0 : index
    %c0_4 = arith.constant 0 : index
    %3 = vector.load %arg3[%c0_3, %c0_4] : memref<24x1xf32, #tpu.memory_space<vmem>>, vector<24x1xf32>
    %4 = vector.broadcast %3 : vector<24x1xf32> to vector<24x8xf32>
    %5 = arith.addf %2, %4 : vector<24x8xf32>
    %cst_5 = arith.constant 0.000000e+00 : f32
    %6 = vector.broadcast %cst_5 : f32 to vector<24x8xf32>
    %7 = arith.cmpf oge, %5, %6 : vector<24x8xf32>
    %cst_6 = arith.constant 2.000000e-01 : f32
    %8 = vector.broadcast %cst_6 : f32 to vector<24x8xf32>
    %9 = arith.mulf %8, %5 : vector<24x8xf32>
    %10 = arith.select %7, %5, %9 : vector<24x8xi1>, vector<24x8xf32>
    %11 = arith.truncf %10 : vector<24x8xf32> to vector<24x8xbf16>
    %c0_7 = arith.constant 0 : index
    %c0_8 = arith.constant 0 : index
    %12 = vector.load %arg4[%c0_7, %c0_8] : memref<24x8xbf16, #tpu.memory_space<vmem>>, vector<24x8xbf16>
    tpu.vector_store %arg4[%c0_7, %c0_8], %11 {strides = array<i32>} : memref<24x8xbf16, #tpu.memory_space<vmem>>, vector<24x8xbf16>,
    return
  }
  func.func @transform_0(%arg0: i32) -> (i32, i32) {
    %c0_i32 = arith.constant 0 : i32
    %c0_i32_0 = arith.constant 0 : i32
    %c0_i32_1 = arith.constant 0 : i32
    return %c0_i32, %c0_i32_0 : i32, i32
  }
  func.func @transform_1(%arg0: i32) -> (i32, i32) {
    %c0_i32 = arith.constant 0 : i32
    %c0_i32_0 = arith.constant 0 : i32
    %c0_i32_1 = arith.constant 0 : i32
    return %c0_i32, %c0_i32_0 : i32, i32
  }
  func.func @transform_2(%arg0: i32) -> (i32, i32) {
    %c0_i32 = arith.constant 0 : i32
    %c0_i32_0 = arith.constant 0 : i32
    %c0_i32_1 = arith.constant 0 : i32
    return %c0_i32, %c0_i32_0 : i32, i32
  }
  func.func @transform_3(%arg0: i32) -> (i32, i32) {
    %c0_i32 = arith.constant 0 : i32
    %c0_i32_0 = arith.constant 0 : i32
    %c0_i32_1 = arith.constant 0 : i32
    return %c0_i32, %c0_i32_0 : i32, i32
  }
}

module attributes {stable_mosaic.version = 11 : i64} {
  func.func @_gemm_bias_lrelu_kernel(%arg0: i32, %arg1: memref<216x8xbf16, #tpu.memory_space<vmem>>, %arg2: memref<24x216xbf16, #tpu.memory_space<vmem>>, %arg3: memref<24x1xf32, #tpu.memory_space<vmem>>, %arg4: memref<24x8xbf16, #tpu.memory_space<vmem>>) attributes {dimension_semantics = [#tpu.dimension_semantics<arbitrary>], iteration_bounds = array<i64: 1>, scalar_prefetch = 0 : i64, scratch_operands = 0 : i64, tpu.core_type = #tpu.core_type<tc>, window_params = [{pipeline_mode = #tpu.pipeline_mode<synchronous>, transform_indices = @transform_0, window_bounds = array<i64: 216, 8>}, {pipeline_mode = #tpu.pipeline_mode<synchronous>, transform_indices = @transform_1, window_bounds = array<i64: 24, 216>}, {pipeline_mode = #tpu.pipeline_mode<synchronous>, transform_indices = @transform_2, window_bounds = array<i64: 24, 1>}, {pipeline_mode = #tpu.pipeline_mode<synchronous>, transform_indices = @transform_3, window_bounds = array<i64: 24, 8>}]} {
    %c0 = arith.constant 0 : index
    %c0_0 = arith.constant 0 : index
    %0 = vector.load %arg2[%c0, %c0_0] : memref<24x216xbf16, #tpu.memory_space<vmem>>, vector<24x216xbf16>
    %c0_1 = arith.constant 0 : index
    %c0_2 = arith.constant 0 : index
    %1 = vector.load %arg1[%c0_1, %c0_2] : memref<216x8xbf16, #tpu.memory_space<vmem>>, vector<216x8xbf16>
    %cst = arith.constant dense<0.000000e+00> : vector<24x8xf32>
    %2 = tpu.matmul %0, %1, %cst {dimension_numbers = #tpu.dot_dimension_numbers<[1], [0], [0], [1], [0, 0, 1, 1], [], []>} : vector<24x216xbf16>, vector<216x8xbf16>, vector<24x8xf32> -> vector<24x8xf32>
    %c0_3 = arith.constant 0 : index
    %c0_4 = arith.constant 0 : index
    %3 = vector.load %arg3[%c0_3, %c0_4] : memref<24x1xf32, #tpu.memory_space<vmem>>, vector<24x1xf32>
    %4 = vector.broadcast %3 : vector<24x1xf32> to vector<24x8xf32>
    %5 = arith.addf %2, %4 : vector<24x8xf32>
    %cst_5 = arith.constant 0.000000e+00 : f32
    %6 = vector.broadcast %cst_5 : f32 to vector<24x8xf32>
    %7 = arith.cmpf oge, %5, %6 : vector<24x8xf32>
    %cst_6 = arith.constant 2.000000e-01 : f32
    %8 = vector.broadcast %cst_6 : f32 to vector<24x8xf32>
    %9 = arith.mulf %8, %5 : vector<24x8xf32>
    %10 = arith.select %7, %5, %9 : vector<24x8xi1>, vector<24x8xf32>
    %11 = arith.truncf %10 : vector<24x8xf32> to vector<24x8xbf16>
    %c0_7 = arith.constant 0 : index
    %c0_8 = arith.constant 0 : index
    %12 = vector.load %arg4[%c0_7, %c0_8] : memref<24x8xbf16, #tpu.memory_space<vmem>>, vector<24x8xbf16>
    tpu.vector_store %arg4[%c0_7, %c0_8], %11 {strides = array<i32>} : memref<24x8xbf16, #tpu.memory_space<vmem>>, vector<24x8xbf16>,
    return
  }
  func.func @transform_0(%arg0: i32) -> (i32, i32) {
    %c0_i32 = arith.constant 0 : i32
    %c0_i32_0 = arith.constant 0 : i32
    %c0_i32_1 = arith.constant 0 : i32
    return %c0_i32, %c0_i32_0 : i32, i32
  }
  func.func @transform_1(%arg0: i32) -> (i32, i32) {
    %c0_i32 = arith.constant 0 : i32
    %c0_i32_0 = arith.constant 0 : i32
    %c0_i32_1 = arith.constant 0 : i32
    return %c0_i32, %c0_i32_0 : i32, i32
  }
  func.func @transform_2(%arg0: i32) -> (i32, i32) {
    %c0_i32 = arith.constant 0 : i32
    %c0_i32_0 = arith.constant 0 : i32
    %c0_i32_1 = arith.constant 0 : i32
    return %c0_i32, %c0_i32_0 : i32, i32
  }
  func.func @transform_3(%arg0: i32) -> (i32, i32) {
    %c0_i32 = arith.constant 0 : i32
    %c0_i32_0 = arith.constant 0 : i32
    %c0_i32_1 = arith.constant 0 : i32
    return %c0_i32, %c0_i32_0 : i32, i32
  }
}

module attributes {stable_mosaic.version = 11 : i64} {
  func.func @_gemm_bias_lrelu_kernel(%arg0: i32, %arg1: memref<384x2xbf16, #tpu.memory_space<vmem>>, %arg2: memref<32x384xbf16, #tpu.memory_space<vmem>>, %arg3: memref<32x1xf32, #tpu.memory_space<vmem>>, %arg4: memref<32x2xbf16, #tpu.memory_space<vmem>>) attributes {dimension_semantics = [#tpu.dimension_semantics<arbitrary>], iteration_bounds = array<i64: 1>, scalar_prefetch = 0 : i64, scratch_operands = 0 : i64, tpu.core_type = #tpu.core_type<tc>, window_params = [{pipeline_mode = #tpu.pipeline_mode<synchronous>, transform_indices = @transform_0, window_bounds = array<i64: 384, 2>}, {pipeline_mode = #tpu.pipeline_mode<synchronous>, transform_indices = @transform_1, window_bounds = array<i64: 32, 384>}, {pipeline_mode = #tpu.pipeline_mode<synchronous>, transform_indices = @transform_2, window_bounds = array<i64: 32, 1>}, {pipeline_mode = #tpu.pipeline_mode<synchronous>, transform_indices = @transform_3, window_bounds = array<i64: 32, 2>}]} {
    %c0 = arith.constant 0 : index
    %c0_0 = arith.constant 0 : index
    %0 = vector.load %arg2[%c0, %c0_0] : memref<32x384xbf16, #tpu.memory_space<vmem>>, vector<32x384xbf16>
    %c0_1 = arith.constant 0 : index
    %c0_2 = arith.constant 0 : index
    %1 = vector.load %arg1[%c0_1, %c0_2] : memref<384x2xbf16, #tpu.memory_space<vmem>>, vector<384x2xbf16>
    %cst = arith.constant dense<0.000000e+00> : vector<32x2xf32>
    %2 = tpu.matmul %0, %1, %cst {dimension_numbers = #tpu.dot_dimension_numbers<[1], [0], [0], [1], [0, 0, 1, 1], [], []>} : vector<32x384xbf16>, vector<384x2xbf16>, vector<32x2xf32> -> vector<32x2xf32>
    %c0_3 = arith.constant 0 : index
    %c0_4 = arith.constant 0 : index
    %3 = vector.load %arg3[%c0_3, %c0_4] : memref<32x1xf32, #tpu.memory_space<vmem>>, vector<32x1xf32>
    %4 = vector.broadcast %3 : vector<32x1xf32> to vector<32x2xf32>
    %5 = arith.addf %2, %4 : vector<32x2xf32>
    %cst_5 = arith.constant 0.000000e+00 : f32
    %6 = vector.broadcast %cst_5 : f32 to vector<32x2xf32>
    %7 = arith.cmpf oge, %5, %6 : vector<32x2xf32>
    %cst_6 = arith.constant 2.000000e-01 : f32
    %8 = vector.broadcast %cst_6 : f32 to vector<32x2xf32>
    %9 = arith.mulf %8, %5 : vector<32x2xf32>
    %10 = arith.select %7, %5, %9 : vector<32x2xi1>, vector<32x2xf32>
    %11 = arith.truncf %10 : vector<32x2xf32> to vector<32x2xbf16>
    %c0_7 = arith.constant 0 : index
    %c0_8 = arith.constant 0 : index
    %12 = vector.load %arg4[%c0_7, %c0_8] : memref<32x2xbf16, #tpu.memory_space<vmem>>, vector<32x2xbf16>
    tpu.vector_store %arg4[%c0_7, %c0_8], %11 {strides = array<i32>} : memref<32x2xbf16, #tpu.memory_space<vmem>>, vector<32x2xbf16>,
    return
  }
  func.func @transform_0(%arg0: i32) -> (i32, i32) {
    %c0_i32 = arith.constant 0 : i32
    %c0_i32_0 = arith.constant 0 : i32
    %c0_i32_1 = arith.constant 0 : i32
    return %c0_i32, %c0_i32_0 : i32, i32
  }
  func.func @transform_1(%arg0: i32) -> (i32, i32) {
    %c0_i32 = arith.constant 0 : i32
    %c0_i32_0 = arith.constant 0 : i32
    %c0_i32_1 = arith.constant 0 : i32
    return %c0_i32, %c0_i32_0 : i32, i32
  }
  func.func @transform_2(%arg0: i32) -> (i32, i32) {
    %c0_i32 = arith.constant 0 : i32
    %c0_i32_0 = arith.constant 0 : i32
    %c0_i32_1 = arith.constant 0 : i32
    return %c0_i32, %c0_i32_0 : i32, i32
  }
  func.func @transform_3(%arg0: i32) -> (i32, i32) {
    %c0_i32 = arith.constant 0 : i32
    %c0_i32_0 = arith.constant 0 : i32
    %c0_i32_1 = arith.constant 0 : i32
    return %c0_i32, %c0_i32_0 : i32, i32
  }
}

module attributes {stable_mosaic.version = 11 : i64} {
  func.func @_upmerge_kernel(%arg0: i32, %arg1: memref<32x2xbf16, #tpu.memory_space<vmem>>, %arg2: memref<4x24x2xbf16, #tpu.memory_space<vmem>>, %arg3: memref<4x24x32xbf16, #tpu.memory_space<vmem>>, %arg4: memref<24x24xbf16, #tpu.memory_space<vmem>>, %arg5: memref<24x24xbf16, #tpu.memory_space<vmem>>, %arg6: memref<24x1xf32, #tpu.memory_space<vmem>>, %arg7: memref<24x1xf32, #tpu.memory_space<vmem>>, %arg8: memref<4x24x2xbf16, #tpu.memory_space<vmem>>) attributes {dimension_semantics = [#tpu.dimension_semantics<arbitrary>], iteration_bounds = array<i64: 1>, scalar_prefetch = 0 : i64, scratch_operands = 0 : i64, tpu.core_type = #tpu.core_type<tc>, window_params = [{pipeline_mode = #tpu.pipeline_mode<synchronous>, transform_indices = @transform_0, window_bounds = array<i64: 32, 2>}, {pipeline_mode = #tpu.pipeline_mode<synchronous>, transform_indices = @transform_1, window_bounds = array<i64: 4, 24, 2>}, {pipeline_mode = #tpu.pipeline_mode<synchronous>, transform_indices = @transform_2, window_bounds = array<i64: 4, 24, 32>}, {pipeline_mode = #tpu.pipeline_mode<synchronous>, transform_indices = @transform_3, window_bounds = array<i64: 24, 24>}, {pipeline_mode = #tpu.pipeline_mode<synchronous>, transform_indices = @transform_4, window_bounds = array<i64: 24, 24>}, {pipeline_mode = #tpu.pipeline_mode<synchronous>, transform_indices = @transform_5, window_bounds = array<i64: 24, 1>}, {pipeline_mode = #tpu.pipeline_mode<synchronous>, transform_indices = @transform_6, window_bounds = array<i64: 24, 1>}, {pipeline_mode = #tpu.pipeline_mode<synchronous>, transform_indices = @transform_7, window_bounds = array<i64: 4, 24, 2>}]} {
    %c0 = arith.constant 0 : index
    %c0_0 = arith.constant 0 : index
    %0 = vector.load %arg1[%c0, %c0_0] : memref<32x2xbf16, #tpu.memory_space<vmem>>, vector<32x2xbf16>
    %c0_1 = arith.constant 0 : index
    %c0_2 = arith.constant 0 : index
    %1 = vector.load %arg4[%c0_1, %c0_2] : memref<24x24xbf16, #tpu.memory_space<vmem>>, vector<24x24xbf16>
    %c0_3 = arith.constant 0 : index
    %c0_4 = arith.constant 0 : index
    %2 = vector.load %arg5[%c0_3, %c0_4] : memref<24x24xbf16, #tpu.memory_space<vmem>>, vector<24x24xbf16>
    %c0_5 = arith.constant 0 : index
    %c0_6 = arith.constant 0 : index
    %3 = vector.load %arg6[%c0_5, %c0_6] : memref<24x1xf32, #tpu.memory_space<vmem>>, vector<24x1xf32>
    %c0_7 = arith.constant 0 : index
    %c0_8 = arith.constant 0 : index
    %4 = vector.load %arg7[%c0_7, %c0_8] : memref<24x1xf32, #tpu.memory_space<vmem>>, vector<24x1xf32>
    %c0_9 = arith.constant 0 : index
    %c0_10 = arith.constant 0 : index
    %c0_11 = arith.constant 0 : index
    %5 = vector.load %arg3[%c0_9, %c0_10, %c0_11] : memref<4x24x32xbf16, #tpu.memory_space<vmem>>, vector<1x24x32xbf16>
    %6 = vector.shape_cast %5 : vector<1x24x32xbf16> to vector<24x32xbf16>
    %cst = arith.constant dense<0.000000e+00> : vector<24x2xf32>
    %7 = tpu.matmul %6, %0, %cst {dimension_numbers = #tpu.dot_dimension_numbers<[1], [0], [0], [1], [0, 0, 1, 1], [], []>} : vector<24x32xbf16>, vector<32x2xbf16>, vector<24x2xf32> -> vector<24x2xf32>
    %8 = vector.broadcast %3 : vector<24x1xf32> to vector<24x2xf32>
    %9 = arith.addf %7, %8 : vector<24x2xf32>
    %cst_12 = arith.constant 0.000000e+00 : f32
    %10 = vector.broadcast %cst_12 : f32 to vector<24x2xf32>
    %11 = arith.cmpf oge, %9, %10 : vector<24x2xf32>
    %cst_13 = arith.constant 2.000000e-01 : f32
    %12 = vector.broadcast %cst_13 : f32 to vector<24x2xf32>
    %13 = arith.mulf %12, %9 : vector<24x2xf32>
    %14 = arith.select %11, %9, %13 : vector<24x2xi1>, vector<24x2xf32>
    %15 = arith.truncf %14 : vector<24x2xf32> to vector<24x2xbf16>
    %cst_14 = arith.constant dense<0.000000e+00> : vector<24x2xf32>
    %16 = tpu.matmul %1, %15, %cst_14 {dimension_numbers = #tpu.dot_dimension_numbers<[1], [0], [0], [1], [0, 0, 1, 1], [], []>} : vector<24x24xbf16>, vector<24x2xbf16>, vector<24x2xf32> -> vector<24x2xf32>
    %c0_15 = arith.constant 0 : index
    %c0_16 = arith.constant 0 : index
    %c0_17 = arith.constant 0 : index
    %17 = vector.load %arg2[%c0_15, %c0_16, %c0_17] : memref<4x24x2xbf16, #tpu.memory_space<vmem>>, vector<1x24x2xbf16>
    %18 = vector.shape_cast %17 : vector<1x24x2xbf16> to vector<24x2xbf16>
    %cst_18 = arith.constant dense<0.000000e+00> : vector<24x2xf32>
    %19 = tpu.matmul %2, %18, %cst_18 {dimension_numbers = #tpu.dot_dimension_numbers<[1], [0], [0], [1], [0, 0, 1, 1], [], []>} : vector<24x24xbf16>, vector<24x2xbf16>, vector<24x2xf32> -> vector<24x2xf32>
    %20 = arith.addf %16, %19 : vector<24x2xf32>
    %21 = vector.broadcast %4 : vector<24x1xf32> to vector<24x2xf32>
    %22 = arith.addf %20, %21 : vector<24x2xf32>
    %cst_19 = arith.constant 0.000000e+00 : f32
    %23 = vector.broadcast %cst_19 : f32 to vector<24x2xf32>
    %24 = arith.cmpf oge, %22, %23 : vector<24x2xf32>
    %cst_20 = arith.constant 2.000000e-01 : f32
    %25 = vector.broadcast %cst_20 : f32 to vector<24x2xf32>
    %26 = arith.mulf %25, %22 : vector<24x2xf32>
    %27 = arith.select %24, %22, %26 : vector<24x2xi1>, vector<24x2xf32>
    %28 = arith.truncf %27 : vector<24x2xf32> to vector<24x2xbf16>
    %c0_21 = arith.constant 0 : index
    %c0_22 = arith.constant 0 : index
    %c0_23 = arith.constant 0 : index
    %29 = vector.load %arg8[%c0_21, %c0_22, %c0_23] : memref<4x24x2xbf16, #tpu.memory_space<vmem>>, vector<1x24x2xbf16>
    %30 = vector.shape_cast %29 : vector<1x24x2xbf16> to vector<24x2xbf16>
    %31 = vector.shape_cast %28 : vector<24x2xbf16> to vector<1x24x2xbf16>
    tpu.vector_store %arg8[%c0_21, %c0_22, %c0_23], %31 {strides = array<i32>} : memref<4x24x2xbf16, #tpu.memory_space<vmem>>, vector<1x24x2xbf16>,
    %c1 = arith.constant 1 : index
    %c0_24 = arith.constant 0 : index
    %c0_25 = arith.constant 0 : index
    %32 = vector.load %arg3[%c1, %c0_24, %c0_25] : memref<4x24x32xbf16, #tpu.memory_space<vmem>>, vector<1x24x32xbf16>
    %33 = vector.shape_cast %32 : vector<1x24x32xbf16> to vector<24x32xbf16>
    %cst_26 = arith.constant dense<0.000000e+00> : vector<24x2xf32>
    %34 = tpu.matmul %33, %0, %cst_26 {dimension_numbers = #tpu.dot_dimension_numbers<[1], [0], [0], [1], [0, 0, 1, 1], [], []>} : vector<24x32xbf16>, vector<32x2xbf16>, vector<24x2xf32> -> vector<24x2xf32>
    %35 = vector.broadcast %3 : vector<24x1xf32> to vector<24x2xf32>
    %36 = arith.addf %34, %35 : vector<24x2xf32>
    %cst_27 = arith.constant 0.000000e+00 : f32
    %37 = vector.broadcast %cst_27 : f32 to vector<24x2xf32>
    %38 = arith.cmpf oge, %36, %37 : vector<24x2xf32>
    %cst_28 = arith.constant 2.000000e-01 : f32
    %39 = vector.broadcast %cst_28 : f32 to vector<24x2xf32>
    %40 = arith.mulf %39, %36 : vector<24x2xf32>
    %41 = arith.select %38, %36, %40 : vector<24x2xi1>, vector<24x2xf32>
    %42 = arith.truncf %41 : vector<24x2xf32> to vector<24x2xbf16>
    %cst_29 = arith.constant dense<0.000000e+00> : vector<24x2xf32>
    %43 = tpu.matmul %1, %42, %cst_29 {dimension_numbers = #tpu.dot_dimension_numbers<[1], [0], [0], [1], [0, 0, 1, 1], [], []>} : vector<24x24xbf16>, vector<24x2xbf16>, vector<24x2xf32> -> vector<24x2xf32>
    %c1_30 = arith.constant 1 : index
    %c0_31 = arith.constant 0 : index
    %c0_32 = arith.constant 0 : index
    %44 = vector.load %arg2[%c1_30, %c0_31, %c0_32] : memref<4x24x2xbf16, #tpu.memory_space<vmem>>, vector<1x24x2xbf16>
    %45 = vector.shape_cast %44 : vector<1x24x2xbf16> to vector<24x2xbf16>
    %cst_33 = arith.constant dense<0.000000e+00> : vector<24x2xf32>
    %46 = tpu.matmul %2, %45, %cst_33 {dimension_numbers = #tpu.dot_dimension_numbers<[1], [0], [0], [1], [0, 0, 1, 1], [], []>} : vector<24x24xbf16>, vector<24x2xbf16>, vector<24x2xf32> -> vector<24x2xf32>
    %47 = arith.addf %43, %46 : vector<24x2xf32>
    %48 = vector.broadcast %4 : vector<24x1xf32> to vector<24x2xf32>
    %49 = arith.addf %47, %48 : vector<24x2xf32>
    %cst_34 = arith.constant 0.000000e+00 : f32
    %50 = vector.broadcast %cst_34 : f32 to vector<24x2xf32>
    %51 = arith.cmpf oge, %49, %50 : vector<24x2xf32>
    %cst_35 = arith.constant 2.000000e-01 : f32
    %52 = vector.broadcast %cst_35 : f32 to vector<24x2xf32>
    %53 = arith.mulf %52, %49 : vector<24x2xf32>
    %54 = arith.select %51, %49, %53 : vector<24x2xi1>, vector<24x2xf32>
    %55 = arith.truncf %54 : vector<24x2xf32> to vector<24x2xbf16>
    %c1_36 = arith.constant 1 : index
    %c0_37 = arith.constant 0 : index
    %c0_38 = arith.constant 0 : index
    %56 = vector.load %arg8[%c1_36, %c0_37, %c0_38] : memref<4x24x2xbf16, #tpu.memory_space<vmem>>, vector<1x24x2xbf16>
    %57 = vector.shape_cast %56 : vector<1x24x2xbf16> to vector<24x2xbf16>
    %58 = vector.shape_cast %55 : vector<24x2xbf16> to vector<1x24x2xbf16>
    tpu.vector_store %arg8[%c1_36, %c0_37, %c0_38], %58 {strides = array<i32>} : memref<4x24x2xbf16, #tpu.memory_space<vmem>>, vector<1x24x2xbf16>,
    %c2 = arith.constant 2 : index
    %c0_39 = arith.constant 0 : index
    %c0_40 = arith.constant 0 : index
    %59 = vector.load %arg3[%c2, %c0_39, %c0_40] : memref<4x24x32xbf16, #tpu.memory_space<vmem>>, vector<1x24x32xbf16>
    %60 = vector.shape_cast %59 : vector<1x24x32xbf16> to vector<24x32xbf16>
    %cst_41 = arith.constant dense<0.000000e+00> : vector<24x2xf32>
    %61 = tpu.matmul %60, %0, %cst_41 {dimension_numbers = #tpu.dot_dimension_numbers<[1], [0], [0], [1], [0, 0, 1, 1], [], []>} : vector<24x32xbf16>, vector<32x2xbf16>, vector<24x2xf32> -> vector<24x2xf32>
    %62 = vector.broadcast %3 : vector<24x1xf32> to vector<24x2xf32>
    %63 = arith.addf %61, %62 : vector<24x2xf32>
    %cst_42 = arith.constant 0.000000e+00 : f32
    %64 = vector.broadcast %cst_42 : f32 to vector<24x2xf32>
    %65 = arith.cmpf oge, %63, %64 : vector<24x2xf32>
    %cst_43 = arith.constant 2.000000e-01 : f32
    %66 = vector.broadcast %cst_43 : f32 to vector<24x2xf32>
    %67 = arith.mulf %66, %63 : vector<24x2xf32>
    %68 = arith.select %65, %63, %67 : vector<24x2xi1>, vector<24x2xf32>
    %69 = arith.truncf %68 : vector<24x2xf32> to vector<24x2xbf16>
    %cst_44 = arith.constant dense<0.000000e+00> : vector<24x2xf32>
    %70 = tpu.matmul %1, %69, %cst_44 {dimension_numbers = #tpu.dot_dimension_numbers<[1], [0], [0], [1], [0, 0, 1, 1], [], []>} : vector<24x24xbf16>, vector<24x2xbf16>, vector<24x2xf32> -> vector<24x2xf32>
    %c2_45 = arith.constant 2 : index
    %c0_46 = arith.constant 0 : index
    %c0_47 = arith.constant 0 : index
    %71 = vector.load %arg2[%c2_45, %c0_46, %c0_47] : memref<4x24x2xbf16, #tpu.memory_space<vmem>>, vector<1x24x2xbf16>
    %72 = vector.shape_cast %71 : vector<1x24x2xbf16> to vector<24x2xbf16>
    %cst_48 = arith.constant dense<0.000000e+00> : vector<24x2xf32>
    %73 = tpu.matmul %2, %72, %cst_48 {dimension_numbers = #tpu.dot_dimension_numbers<[1], [0], [0], [1], [0, 0, 1, 1], [], []>} : vector<24x24xbf16>, vector<24x2xbf16>, vector<24x2xf32> -> vector<24x2xf32>
    %74 = arith.addf %70, %73 : vector<24x2xf32>
    %75 = vector.broadcast %4 : vector<24x1xf32> to vector<24x2xf32>
    %76 = arith.addf %74, %75 : vector<24x2xf32>
    %cst_49 = arith.constant 0.000000e+00 : f32
    %77 = vector.broadcast %cst_49 : f32 to vector<24x2xf32>
    %78 = arith.cmpf oge, %76, %77 : vector<24x2xf32>
    %cst_50 = arith.constant 2.000000e-01 : f32
    %79 = vector.broadcast %cst_50 : f32 to vector<24x2xf32>
    %80 = arith.mulf %79, %76 : vector<24x2xf32>
    %81 = arith.select %78, %76, %80 : vector<24x2xi1>, vector<24x2xf32>
    %82 = arith.truncf %81 : vector<24x2xf32> to vector<24x2xbf16>
    %c2_51 = arith.constant 2 : index
    %c0_52 = arith.constant 0 : index
    %c0_53 = arith.constant 0 : index
    %83 = vector.load %arg8[%c2_51, %c0_52, %c0_53] : memref<4x24x2xbf16, #tpu.memory_space<vmem>>, vector<1x24x2xbf16>
    %84 = vector.shape_cast %83 : vector<1x24x2xbf16> to vector<24x2xbf16>
    %85 = vector.shape_cast %82 : vector<24x2xbf16> to vector<1x24x2xbf16>
    tpu.vector_store %arg8[%c2_51, %c0_52, %c0_53], %85 {strides = array<i32>} : memref<4x24x2xbf16, #tpu.memory_space<vmem>>, vector<1x24x2xbf16>,
    %c3 = arith.constant 3 : index
    %c0_54 = arith.constant 0 : index
    %c0_55 = arith.constant 0 : index
    %86 = vector.load %arg3[%c3, %c0_54, %c0_55] : memref<4x24x32xbf16, #tpu.memory_space<vmem>>, vector<1x24x32xbf16>
    %87 = vector.shape_cast %86 : vector<1x24x32xbf16> to vector<24x32xbf16>
    %cst_56 = arith.constant dense<0.000000e+00> : vector<24x2xf32>
    %88 = tpu.matmul %87, %0, %cst_56 {dimension_numbers = #tpu.dot_dimension_numbers<[1], [0], [0], [1], [0, 0, 1, 1], [], []>} : vector<24x32xbf16>, vector<32x2xbf16>, vector<24x2xf32> -> vector<24x2xf32>
    %89 = vector.broadcast %3 : vector<24x1xf32> to vector<24x2xf32>
    %90 = arith.addf %88, %89 : vector<24x2xf32>
    %cst_57 = arith.constant 0.000000e+00 : f32
    %91 = vector.broadcast %cst_57 : f32 to vector<24x2xf32>
    %92 = arith.cmpf oge, %90, %91 : vector<24x2xf32>
    %cst_58 = arith.constant 2.000000e-01 : f32
    %93 = vector.broadcast %cst_58 : f32 to vector<24x2xf32>
    %94 = arith.mulf %93, %90 : vector<24x2xf32>
    %95 = arith.select %92, %90, %94 : vector<24x2xi1>, vector<24x2xf32>
    %96 = arith.truncf %95 : vector<24x2xf32> to vector<24x2xbf16>
    %cst_59 = arith.constant dense<0.000000e+00> : vector<24x2xf32>
    %97 = tpu.matmul %1, %96, %cst_59 {dimension_numbers = #tpu.dot_dimension_numbers<[1], [0], [0], [1], [0, 0, 1, 1], [], []>} : vector<24x24xbf16>, vector<24x2xbf16>, vector<24x2xf32> -> vector<24x2xf32>
    %c3_60 = arith.constant 3 : index
    %c0_61 = arith.constant 0 : index
    %c0_62 = arith.constant 0 : index
    %98 = vector.load %arg2[%c3_60, %c0_61, %c0_62] : memref<4x24x2xbf16, #tpu.memory_space<vmem>>, vector<1x24x2xbf16>
    %99 = vector.shape_cast %98 : vector<1x24x2xbf16> to vector<24x2xbf16>
    %cst_63 = arith.constant dense<0.000000e+00> : vector<24x2xf32>
    %100 = tpu.matmul %2, %99, %cst_63 {dimension_numbers = #tpu.dot_dimension_numbers<[1], [0], [0], [1], [0, 0, 1, 1], [], []>} : vector<24x24xbf16>, vector<24x2xbf16>, vector<24x2xf32> -> vector<24x2xf32>
    %101 = arith.addf %97, %100 : vector<24x2xf32>
    %102 = vector.broadcast %4 : vector<24x1xf32> to vector<24x2xf32>
    %103 = arith.addf %101, %102 : vector<24x2xf32>
    %cst_64 = arith.constant 0.000000e+00 : f32
    %104 = vector.broadcast %cst_64 : f32 to vector<24x2xf32>
    %105 = arith.cmpf oge, %103, %104 : vector<24x2xf32>
    %cst_65 = arith.constant 2.000000e-01 : f32
    %106 = vector.broadcast %cst_65 : f32 to vector<24x2xf32>
    %107 = arith.mulf %106, %103 : vector<24x2xf32>
    %108 = arith.select %105, %103, %107 : vector<24x2xi1>, vector<24x2xf32>
    %109 = arith.truncf %108 : vector<24x2xf32> to vector<24x2xbf16>
    %c3_66 = arith.constant 3 : index
    %c0_67 = arith.constant 0 : index
    %c0_68 = arith.constant 0 : index
    %110 = vector.load %arg8[%c3_66, %c0_67, %c0_68] : memref<4x24x2xbf16, #tpu.memory_space<vmem>>, vector<1x24x2xbf16>
    %111 = vector.shape_cast %110 : vector<1x24x2xbf16> to vector<24x2xbf16>
    %112 = vector.shape_cast %109 : vector<24x2xbf16> to vector<1x24x2xbf16>
    tpu.vector_store %arg8[%c3_66, %c0_67, %c0_68], %112 {strides = array<i32>} : memref<4x24x2xbf16, #tpu.memory_space<vmem>>, vector<1x24x2xbf16>,
    return
  }
  func.func @transform_0(%arg0: i32) -> (i32, i32) {
    %c0_i32 = arith.constant 0 : i32
    %c0_i32_0 = arith.constant 0 : i32
    %c0_i32_1 = arith.constant 0 : i32
    return %c0_i32, %c0_i32_0 : i32, i32
  }
  func.func @transform_1(%arg0: i32) -> (i32, i32, i32) {
    %c0_i32 = arith.constant 0 : i32
    %c0_i32_0 = arith.constant 0 : i32
    %c0_i32_1 = arith.constant 0 : i32
    %c0_i32_2 = arith.constant 0 : i32
    return %c0_i32, %c0_i32_0, %c0_i32_1 : i32, i32, i32
  }
  func.func @transform_2(%arg0: i32) -> (i32, i32, i32) {
    %c0_i32 = arith.constant 0 : i32
    %c0_i32_0 = arith.constant 0 : i32
    %c0_i32_1 = arith.constant 0 : i32
    %c0_i32_2 = arith.constant 0 : i32
    return %c0_i32, %c0_i32_0, %c0_i32_1 : i32, i32, i32
  }
  func.func @transform_3(%arg0: i32) -> (i32, i32) {
    %c0_i32 = arith.constant 0 : i32
    %c0_i32_0 = arith.constant 0 : i32
    %c0_i32_1 = arith.constant 0 : i32
    return %c0_i32, %c0_i32_0 : i32, i32
  }
  func.func @transform_4(%arg0: i32) -> (i32, i32) {
    %c0_i32 = arith.constant 0 : i32
    %c0_i32_0 = arith.constant 0 : i32
    %c0_i32_1 = arith.constant 0 : i32
    return %c0_i32, %c0_i32_0 : i32, i32
  }
  func.func @transform_5(%arg0: i32) -> (i32, i32) {
    %c0_i32 = arith.constant 0 : i32
    %c0_i32_0 = arith.constant 0 : i32
    %c0_i32_1 = arith.constant 0 : i32
    return %c0_i32, %c0_i32_0 : i32, i32
  }
  func.func @transform_6(%arg0: i32) -> (i32, i32) {
    %c0_i32 = arith.constant 0 : i32
    %c0_i32_0 = arith.constant 0 : i32
    %c0_i32_1 = arith.constant 0 : i32
    return %c0_i32, %c0_i32_0 : i32, i32
  }
  func.func @transform_7(%arg0: i32) -> (i32, i32, i32) {
    %c0_i32 = arith.constant 0 : i32
    %c0_i32_0 = arith.constant 0 : i32
    %c0_i32_1 = arith.constant 0 : i32
    %c0_i32_2 = arith.constant 0 : i32
    return %c0_i32, %c0_i32_0, %c0_i32_1 : i32, i32, i32
  }
}

module attributes {stable_mosaic.version = 11 : i64} {
  func.func @_gemm_bias_lrelu_kernel(%arg0: i32, %arg1: memref<288x2xbf16, #tpu.memory_space<vmem>>, %arg2: memref<32x288xbf16, #tpu.memory_space<vmem>>, %arg3: memref<32x1xf32, #tpu.memory_space<vmem>>, %arg4: memref<32x2xbf16, #tpu.memory_space<vmem>>) attributes {dimension_semantics = [#tpu.dimension_semantics<arbitrary>], iteration_bounds = array<i64: 1>, scalar_prefetch = 0 : i64, scratch_operands = 0 : i64, tpu.core_type = #tpu.core_type<tc>, window_params = [{pipeline_mode = #tpu.pipeline_mode<synchronous>, transform_indices = @transform_0, window_bounds = array<i64: 288, 2>}, {pipeline_mode = #tpu.pipeline_mode<synchronous>, transform_indices = @transform_1, window_bounds = array<i64: 32, 288>}, {pipeline_mode = #tpu.pipeline_mode<synchronous>, transform_indices = @transform_2, window_bounds = array<i64: 32, 1>}, {pipeline_mode = #tpu.pipeline_mode<synchronous>, transform_indices = @transform_3, window_bounds = array<i64: 32, 2>}]} {
    %c0 = arith.constant 0 : index
    %c0_0 = arith.constant 0 : index
    %0 = vector.load %arg2[%c0, %c0_0] : memref<32x288xbf16, #tpu.memory_space<vmem>>, vector<32x288xbf16>
    %c0_1 = arith.constant 0 : index
    %c0_2 = arith.constant 0 : index
    %1 = vector.load %arg1[%c0_1, %c0_2] : memref<288x2xbf16, #tpu.memory_space<vmem>>, vector<288x2xbf16>
    %cst = arith.constant dense<0.000000e+00> : vector<32x2xf32>
    %2 = tpu.matmul %0, %1, %cst {dimension_numbers = #tpu.dot_dimension_numbers<[1], [0], [0], [1], [0, 0, 1, 1], [], []>} : vector<32x288xbf16>, vector<288x2xbf16>, vector<32x2xf32> -> vector<32x2xf32>
    %c0_3 = arith.constant 0 : index
    %c0_4 = arith.constant 0 : index
    %3 = vector.load %arg3[%c0_3, %c0_4] : memref<32x1xf32, #tpu.memory_space<vmem>>, vector<32x1xf32>
    %4 = vector.broadcast %3 : vector<32x1xf32> to vector<32x2xf32>
    %5 = arith.addf %2, %4 : vector<32x2xf32>
    %cst_5 = arith.constant 0.000000e+00 : f32
    %6 = vector.broadcast %cst_5 : f32 to vector<32x2xf32>
    %7 = arith.cmpf oge, %5, %6 : vector<32x2xf32>
    %cst_6 = arith.constant 2.000000e-01 : f32
    %8 = vector.broadcast %cst_6 : f32 to vector<32x2xf32>
    %9 = arith.mulf %8, %5 : vector<32x2xf32>
    %10 = arith.select %7, %5, %9 : vector<32x2xi1>, vector<32x2xf32>
    %11 = arith.truncf %10 : vector<32x2xf32> to vector<32x2xbf16>
    %c0_7 = arith.constant 0 : index
    %c0_8 = arith.constant 0 : index
    %12 = vector.load %arg4[%c0_7, %c0_8] : memref<32x2xbf16, #tpu.memory_space<vmem>>, vector<32x2xbf16>
    tpu.vector_store %arg4[%c0_7, %c0_8], %11 {strides = array<i32>} : memref<32x2xbf16, #tpu.memory_space<vmem>>, vector<32x2xbf16>,
    return
  }
  func.func @transform_0(%arg0: i32) -> (i32, i32) {
    %c0_i32 = arith.constant 0 : i32
    %c0_i32_0 = arith.constant 0 : i32
    %c0_i32_1 = arith.constant 0 : i32
    return %c0_i32, %c0_i32_0 : i32, i32
  }
  func.func @transform_1(%arg0: i32) -> (i32, i32) {
    %c0_i32 = arith.constant 0 : i32
    %c0_i32_0 = arith.constant 0 : i32
    %c0_i32_1 = arith.constant 0 : i32
    return %c0_i32, %c0_i32_0 : i32, i32
  }
  func.func @transform_2(%arg0: i32) -> (i32, i32) {
    %c0_i32 = arith.constant 0 : i32
    %c0_i32_0 = arith.constant 0 : i32
    %c0_i32_1 = arith.constant 0 : i32
    return %c0_i32, %c0_i32_0 : i32, i32
  }
  func.func @transform_3(%arg0: i32) -> (i32, i32) {
    %c0_i32 = arith.constant 0 : i32
    %c0_i32_0 = arith.constant 0 : i32
    %c0_i32_1 = arith.constant 0 : i32
    return %c0_i32, %c0_i32_0 : i32, i32
  }
}

module attributes {stable_mosaic.version = 11 : i64} {
  func.func @_upmerge_kernel(%arg0: i32, %arg1: memref<24x8xbf16, #tpu.memory_space<vmem>>, %arg2: memref<4x16x8xbf16, #tpu.memory_space<vmem>>, %arg3: memref<4x16x24xbf16, #tpu.memory_space<vmem>>, %arg4: memref<16x16xbf16, #tpu.memory_space<vmem>>, %arg5: memref<16x16xbf16, #tpu.memory_space<vmem>>, %arg6: memref<16x1xf32, #tpu.memory_space<vmem>>, %arg7: memref<16x1xf32, #tpu.memory_space<vmem>>, %arg8: memref<4x16x8xbf16, #tpu.memory_space<vmem>>) attributes {dimension_semantics = [#tpu.dimension_semantics<arbitrary>], iteration_bounds = array<i64: 1>, scalar_prefetch = 0 : i64, scratch_operands = 0 : i64, tpu.core_type = #tpu.core_type<tc>, window_params = [{pipeline_mode = #tpu.pipeline_mode<synchronous>, transform_indices = @transform_0, window_bounds = array<i64: 24, 8>}, {pipeline_mode = #tpu.pipeline_mode<synchronous>, transform_indices = @transform_1, window_bounds = array<i64: 4, 16, 8>}, {pipeline_mode = #tpu.pipeline_mode<synchronous>, transform_indices = @transform_2, window_bounds = array<i64: 4, 16, 24>}, {pipeline_mode = #tpu.pipeline_mode<synchronous>, transform_indices = @transform_3, window_bounds = array<i64: 16, 16>}, {pipeline_mode = #tpu.pipeline_mode<synchronous>, transform_indices = @transform_4, window_bounds = array<i64: 16, 16>}, {pipeline_mode = #tpu.pipeline_mode<synchronous>, transform_indices = @transform_5, window_bounds = array<i64: 16, 1>}, {pipeline_mode = #tpu.pipeline_mode<synchronous>, transform_indices = @transform_6, window_bounds = array<i64: 16, 1>}, {pipeline_mode = #tpu.pipeline_mode<synchronous>, transform_indices = @transform_7, window_bounds = array<i64: 4, 16, 8>}]} {
    %c0 = arith.constant 0 : index
    %c0_0 = arith.constant 0 : index
    %0 = vector.load %arg1[%c0, %c0_0] : memref<24x8xbf16, #tpu.memory_space<vmem>>, vector<24x8xbf16>
    %c0_1 = arith.constant 0 : index
    %c0_2 = arith.constant 0 : index
    %1 = vector.load %arg4[%c0_1, %c0_2] : memref<16x16xbf16, #tpu.memory_space<vmem>>, vector<16x16xbf16>
    %c0_3 = arith.constant 0 : index
    %c0_4 = arith.constant 0 : index
    %2 = vector.load %arg5[%c0_3, %c0_4] : memref<16x16xbf16, #tpu.memory_space<vmem>>, vector<16x16xbf16>
    %c0_5 = arith.constant 0 : index
    %c0_6 = arith.constant 0 : index
    %3 = vector.load %arg6[%c0_5, %c0_6] : memref<16x1xf32, #tpu.memory_space<vmem>>, vector<16x1xf32>
    %c0_7 = arith.constant 0 : index
    %c0_8 = arith.constant 0 : index
    %4 = vector.load %arg7[%c0_7, %c0_8] : memref<16x1xf32, #tpu.memory_space<vmem>>, vector<16x1xf32>
    %c0_9 = arith.constant 0 : index
    %c0_10 = arith.constant 0 : index
    %c0_11 = arith.constant 0 : index
    %5 = vector.load %arg3[%c0_9, %c0_10, %c0_11] : memref<4x16x24xbf16, #tpu.memory_space<vmem>>, vector<1x16x24xbf16>
    %6 = vector.shape_cast %5 : vector<1x16x24xbf16> to vector<16x24xbf16>
    %cst = arith.constant dense<0.000000e+00> : vector<16x8xf32>
    %7 = tpu.matmul %6, %0, %cst {dimension_numbers = #tpu.dot_dimension_numbers<[1], [0], [0], [1], [0, 0, 1, 1], [], []>} : vector<16x24xbf16>, vector<24x8xbf16>, vector<16x8xf32> -> vector<16x8xf32>
    %8 = vector.broadcast %3 : vector<16x1xf32> to vector<16x8xf32>
    %9 = arith.addf %7, %8 : vector<16x8xf32>
    %cst_12 = arith.constant 0.000000e+00 : f32
    %10 = vector.broadcast %cst_12 : f32 to vector<16x8xf32>
    %11 = arith.cmpf oge, %9, %10 : vector<16x8xf32>
    %cst_13 = arith.constant 2.000000e-01 : f32
    %12 = vector.broadcast %cst_13 : f32 to vector<16x8xf32>
    %13 = arith.mulf %12, %9 : vector<16x8xf32>
    %14 = arith.select %11, %9, %13 : vector<16x8xi1>, vector<16x8xf32>
    %15 = arith.truncf %14 : vector<16x8xf32> to vector<16x8xbf16>
    %cst_14 = arith.constant dense<0.000000e+00> : vector<16x8xf32>
    %16 = tpu.matmul %1, %15, %cst_14 {dimension_numbers = #tpu.dot_dimension_numbers<[1], [0], [0], [1], [0, 0, 1, 1], [], []>} : vector<16x16xbf16>, vector<16x8xbf16>, vector<16x8xf32> -> vector<16x8xf32>
    %c0_15 = arith.constant 0 : index
    %c0_16 = arith.constant 0 : index
    %c0_17 = arith.constant 0 : index
    %17 = vector.load %arg2[%c0_15, %c0_16, %c0_17] : memref<4x16x8xbf16, #tpu.memory_space<vmem>>, vector<1x16x8xbf16>
    %18 = vector.shape_cast %17 : vector<1x16x8xbf16> to vector<16x8xbf16>
    %cst_18 = arith.constant dense<0.000000e+00> : vector<16x8xf32>
    %19 = tpu.matmul %2, %18, %cst_18 {dimension_numbers = #tpu.dot_dimension_numbers<[1], [0], [0], [1], [0, 0, 1, 1], [], []>} : vector<16x16xbf16>, vector<16x8xbf16>, vector<16x8xf32> -> vector<16x8xf32>
    %20 = arith.addf %16, %19 : vector<16x8xf32>
    %21 = vector.broadcast %4 : vector<16x1xf32> to vector<16x8xf32>
    %22 = arith.addf %20, %21 : vector<16x8xf32>
    %cst_19 = arith.constant 0.000000e+00 : f32
    %23 = vector.broadcast %cst_19 : f32 to vector<16x8xf32>
    %24 = arith.cmpf oge, %22, %23 : vector<16x8xf32>
    %cst_20 = arith.constant 2.000000e-01 : f32
    %25 = vector.broadcast %cst_20 : f32 to vector<16x8xf32>
    %26 = arith.mulf %25, %22 : vector<16x8xf32>
    %27 = arith.select %24, %22, %26 : vector<16x8xi1>, vector<16x8xf32>
    %28 = arith.truncf %27 : vector<16x8xf32> to vector<16x8xbf16>
    %c0_21 = arith.constant 0 : index
    %c0_22 = arith.constant 0 : index
    %c0_23 = arith.constant 0 : index
    %29 = vector.load %arg8[%c0_21, %c0_22, %c0_23] : memref<4x16x8xbf16, #tpu.memory_space<vmem>>, vector<1x16x8xbf16>
    %30 = vector.shape_cast %29 : vector<1x16x8xbf16> to vector<16x8xbf16>
    %31 = vector.shape_cast %28 : vector<16x8xbf16> to vector<1x16x8xbf16>
    tpu.vector_store %arg8[%c0_21, %c0_22, %c0_23], %31 {strides = array<i32>} : memref<4x16x8xbf16, #tpu.memory_space<vmem>>, vector<1x16x8xbf16>,
    %c1 = arith.constant 1 : index
    %c0_24 = arith.constant 0 : index
    %c0_25 = arith.constant 0 : index
    %32 = vector.load %arg3[%c1, %c0_24, %c0_25] : memref<4x16x24xbf16, #tpu.memory_space<vmem>>, vector<1x16x24xbf16>
    %33 = vector.shape_cast %32 : vector<1x16x24xbf16> to vector<16x24xbf16>
    %cst_26 = arith.constant dense<0.000000e+00> : vector<16x8xf32>
    %34 = tpu.matmul %33, %0, %cst_26 {dimension_numbers = #tpu.dot_dimension_numbers<[1], [0], [0], [1], [0, 0, 1, 1], [], []>} : vector<16x24xbf16>, vector<24x8xbf16>, vector<16x8xf32> -> vector<16x8xf32>
    %35 = vector.broadcast %3 : vector<16x1xf32> to vector<16x8xf32>
    %36 = arith.addf %34, %35 : vector<16x8xf32>
    %cst_27 = arith.constant 0.000000e+00 : f32
    %37 = vector.broadcast %cst_27 : f32 to vector<16x8xf32>
    %38 = arith.cmpf oge, %36, %37 : vector<16x8xf32>
    %cst_28 = arith.constant 2.000000e-01 : f32
    %39 = vector.broadcast %cst_28 : f32 to vector<16x8xf32>
    %40 = arith.mulf %39, %36 : vector<16x8xf32>
    %41 = arith.select %38, %36, %40 : vector<16x8xi1>, vector<16x8xf32>
    %42 = arith.truncf %41 : vector<16x8xf32> to vector<16x8xbf16>
    %cst_29 = arith.constant dense<0.000000e+00> : vector<16x8xf32>
    %43 = tpu.matmul %1, %42, %cst_29 {dimension_numbers = #tpu.dot_dimension_numbers<[1], [0], [0], [1], [0, 0, 1, 1], [], []>} : vector<16x16xbf16>, vector<16x8xbf16>, vector<16x8xf32> -> vector<16x8xf32>
    %c1_30 = arith.constant 1 : index
    %c0_31 = arith.constant 0 : index
    %c0_32 = arith.constant 0 : index
    %44 = vector.load %arg2[%c1_30, %c0_31, %c0_32] : memref<4x16x8xbf16, #tpu.memory_space<vmem>>, vector<1x16x8xbf16>
    %45 = vector.shape_cast %44 : vector<1x16x8xbf16> to vector<16x8xbf16>
    %cst_33 = arith.constant dense<0.000000e+00> : vector<16x8xf32>
    %46 = tpu.matmul %2, %45, %cst_33 {dimension_numbers = #tpu.dot_dimension_numbers<[1], [0], [0], [1], [0, 0, 1, 1], [], []>} : vector<16x16xbf16>, vector<16x8xbf16>, vector<16x8xf32> -> vector<16x8xf32>
    %47 = arith.addf %43, %46 : vector<16x8xf32>
    %48 = vector.broadcast %4 : vector<16x1xf32> to vector<16x8xf32>
    %49 = arith.addf %47, %48 : vector<16x8xf32>
    %cst_34 = arith.constant 0.000000e+00 : f32
    %50 = vector.broadcast %cst_34 : f32 to vector<16x8xf32>
    %51 = arith.cmpf oge, %49, %50 : vector<16x8xf32>
    %cst_35 = arith.constant 2.000000e-01 : f32
    %52 = vector.broadcast %cst_35 : f32 to vector<16x8xf32>
    %53 = arith.mulf %52, %49 : vector<16x8xf32>
    %54 = arith.select %51, %49, %53 : vector<16x8xi1>, vector<16x8xf32>
    %55 = arith.truncf %54 : vector<16x8xf32> to vector<16x8xbf16>
    %c1_36 = arith.constant 1 : index
    %c0_37 = arith.constant 0 : index
    %c0_38 = arith.constant 0 : index
    %56 = vector.load %arg8[%c1_36, %c0_37, %c0_38] : memref<4x16x8xbf16, #tpu.memory_space<vmem>>, vector<1x16x8xbf16>
    %57 = vector.shape_cast %56 : vector<1x16x8xbf16> to vector<16x8xbf16>
    %58 = vector.shape_cast %55 : vector<16x8xbf16> to vector<1x16x8xbf16>
    tpu.vector_store %arg8[%c1_36, %c0_37, %c0_38], %58 {strides = array<i32>} : memref<4x16x8xbf16, #tpu.memory_space<vmem>>, vector<1x16x8xbf16>,
    %c2 = arith.constant 2 : index
    %c0_39 = arith.constant 0 : index
    %c0_40 = arith.constant 0 : index
    %59 = vector.load %arg3[%c2, %c0_39, %c0_40] : memref<4x16x24xbf16, #tpu.memory_space<vmem>>, vector<1x16x24xbf16>
    %60 = vector.shape_cast %59 : vector<1x16x24xbf16> to vector<16x24xbf16>
    %cst_41 = arith.constant dense<0.000000e+00> : vector<16x8xf32>
    %61 = tpu.matmul %60, %0, %cst_41 {dimension_numbers = #tpu.dot_dimension_numbers<[1], [0], [0], [1], [0, 0, 1, 1], [], []>} : vector<16x24xbf16>, vector<24x8xbf16>, vector<16x8xf32> -> vector<16x8xf32>
    %62 = vector.broadcast %3 : vector<16x1xf32> to vector<16x8xf32>
    %63 = arith.addf %61, %62 : vector<16x8xf32>
    %cst_42 = arith.constant 0.000000e+00 : f32
    %64 = vector.broadcast %cst_42 : f32 to vector<16x8xf32>
    %65 = arith.cmpf oge, %63, %64 : vector<16x8xf32>
    %cst_43 = arith.constant 2.000000e-01 : f32
    %66 = vector.broadcast %cst_43 : f32 to vector<16x8xf32>
    %67 = arith.mulf %66, %63 : vector<16x8xf32>
    %68 = arith.select %65, %63, %67 : vector<16x8xi1>, vector<16x8xf32>
    %69 = arith.truncf %68 : vector<16x8xf32> to vector<16x8xbf16>
    %cst_44 = arith.constant dense<0.000000e+00> : vector<16x8xf32>
    %70 = tpu.matmul %1, %69, %cst_44 {dimension_numbers = #tpu.dot_dimension_numbers<[1], [0], [0], [1], [0, 0, 1, 1], [], []>} : vector<16x16xbf16>, vector<16x8xbf16>, vector<16x8xf32> -> vector<16x8xf32>
    %c2_45 = arith.constant 2 : index
    %c0_46 = arith.constant 0 : index
    %c0_47 = arith.constant 0 : index
    %71 = vector.load %arg2[%c2_45, %c0_46, %c0_47] : memref<4x16x8xbf16, #tpu.memory_space<vmem>>, vector<1x16x8xbf16>
    %72 = vector.shape_cast %71 : vector<1x16x8xbf16> to vector<16x8xbf16>
    %cst_48 = arith.constant dense<0.000000e+00> : vector<16x8xf32>
    %73 = tpu.matmul %2, %72, %cst_48 {dimension_numbers = #tpu.dot_dimension_numbers<[1], [0], [0], [1], [0, 0, 1, 1], [], []>} : vector<16x16xbf16>, vector<16x8xbf16>, vector<16x8xf32> -> vector<16x8xf32>
    %74 = arith.addf %70, %73 : vector<16x8xf32>
    %75 = vector.broadcast %4 : vector<16x1xf32> to vector<16x8xf32>
    %76 = arith.addf %74, %75 : vector<16x8xf32>
    %cst_49 = arith.constant 0.000000e+00 : f32
    %77 = vector.broadcast %cst_49 : f32 to vector<16x8xf32>
    %78 = arith.cmpf oge, %76, %77 : vector<16x8xf32>
    %cst_50 = arith.constant 2.000000e-01 : f32
    %79 = vector.broadcast %cst_50 : f32 to vector<16x8xf32>
    %80 = arith.mulf %79, %76 : vector<16x8xf32>
    %81 = arith.select %78, %76, %80 : vector<16x8xi1>, vector<16x8xf32>
    %82 = arith.truncf %81 : vector<16x8xf32> to vector<16x8xbf16>
    %c2_51 = arith.constant 2 : index
    %c0_52 = arith.constant 0 : index
    %c0_53 = arith.constant 0 : index
    %83 = vector.load %arg8[%c2_51, %c0_52, %c0_53] : memref<4x16x8xbf16, #tpu.memory_space<vmem>>, vector<1x16x8xbf16>
    %84 = vector.shape_cast %83 : vector<1x16x8xbf16> to vector<16x8xbf16>
    %85 = vector.shape_cast %82 : vector<16x8xbf16> to vector<1x16x8xbf16>
    tpu.vector_store %arg8[%c2_51, %c0_52, %c0_53], %85 {strides = array<i32>} : memref<4x16x8xbf16, #tpu.memory_space<vmem>>, vector<1x16x8xbf16>,
    %c3 = arith.constant 3 : index
    %c0_54 = arith.constant 0 : index
    %c0_55 = arith.constant 0 : index
    %86 = vector.load %arg3[%c3, %c0_54, %c0_55] : memref<4x16x24xbf16, #tpu.memory_space<vmem>>, vector<1x16x24xbf16>
    %87 = vector.shape_cast %86 : vector<1x16x24xbf16> to vector<16x24xbf16>
    %cst_56 = arith.constant dense<0.000000e+00> : vector<16x8xf32>
    %88 = tpu.matmul %87, %0, %cst_56 {dimension_numbers = #tpu.dot_dimension_numbers<[1], [0], [0], [1], [0, 0, 1, 1], [], []>} : vector<16x24xbf16>, vector<24x8xbf16>, vector<16x8xf32> -> vector<16x8xf32>
    %89 = vector.broadcast %3 : vector<16x1xf32> to vector<16x8xf32>
    %90 = arith.addf %88, %89 : vector<16x8xf32>
    %cst_57 = arith.constant 0.000000e+00 : f32
    %91 = vector.broadcast %cst_57 : f32 to vector<16x8xf32>
    %92 = arith.cmpf oge, %90, %91 : vector<16x8xf32>
    %cst_58 = arith.constant 2.000000e-01 : f32
    %93 = vector.broadcast %cst_58 : f32 to vector<16x8xf32>
    %94 = arith.mulf %93, %90 : vector<16x8xf32>
    %95 = arith.select %92, %90, %94 : vector<16x8xi1>, vector<16x8xf32>
    %96 = arith.truncf %95 : vector<16x8xf32> to vector<16x8xbf16>
    %cst_59 = arith.constant dense<0.000000e+00> : vector<16x8xf32>
    %97 = tpu.matmul %1, %96, %cst_59 {dimension_numbers = #tpu.dot_dimension_numbers<[1], [0], [0], [1], [0, 0, 1, 1], [], []>} : vector<16x16xbf16>, vector<16x8xbf16>, vector<16x8xf32> -> vector<16x8xf32>
    %c3_60 = arith.constant 3 : index
    %c0_61 = arith.constant 0 : index
    %c0_62 = arith.constant 0 : index
    %98 = vector.load %arg2[%c3_60, %c0_61, %c0_62] : memref<4x16x8xbf16, #tpu.memory_space<vmem>>, vector<1x16x8xbf16>
    %99 = vector.shape_cast %98 : vector<1x16x8xbf16> to vector<16x8xbf16>
    %cst_63 = arith.constant dense<0.000000e+00> : vector<16x8xf32>
    %100 = tpu.matmul %2, %99, %cst_63 {dimension_numbers = #tpu.dot_dimension_numbers<[1], [0], [0], [1], [0, 0, 1, 1], [], []>} : vector<16x16xbf16>, vector<16x8xbf16>, vector<16x8xf32> -> vector<16x8xf32>
    %101 = arith.addf %97, %100 : vector<16x8xf32>
    %102 = vector.broadcast %4 : vector<16x1xf32> to vector<16x8xf32>
    %103 = arith.addf %101, %102 : vector<16x8xf32>
    %cst_64 = arith.constant 0.000000e+00 : f32
    %104 = vector.broadcast %cst_64 : f32 to vector<16x8xf32>
    %105 = arith.cmpf oge, %103, %104 : vector<16x8xf32>
    %cst_65 = arith.constant 2.000000e-01 : f32
    %106 = vector.broadcast %cst_65 : f32 to vector<16x8xf32>
    %107 = arith.mulf %106, %103 : vector<16x8xf32>
    %108 = arith.select %105, %103, %107 : vector<16x8xi1>, vector<16x8xf32>
    %109 = arith.truncf %108 : vector<16x8xf32> to vector<16x8xbf16>
    %c3_66 = arith.constant 3 : index
    %c0_67 = arith.constant 0 : index
    %c0_68 = arith.constant 0 : index
    %110 = vector.load %arg8[%c3_66, %c0_67, %c0_68] : memref<4x16x8xbf16, #tpu.memory_space<vmem>>, vector<1x16x8xbf16>
    %111 = vector.shape_cast %110 : vector<1x16x8xbf16> to vector<16x8xbf16>
    %112 = vector.shape_cast %109 : vector<16x8xbf16> to vector<1x16x8xbf16>
    tpu.vector_store %arg8[%c3_66, %c0_67, %c0_68], %112 {strides = array<i32>} : memref<4x16x8xbf16, #tpu.memory_space<vmem>>, vector<1x16x8xbf16>,
    return
  }
  func.func @transform_0(%arg0: i32) -> (i32, i32) {
    %c0_i32 = arith.constant 0 : i32
    %c0_i32_0 = arith.constant 0 : i32
    %c0_i32_1 = arith.constant 0 : i32
    return %c0_i32, %c0_i32_0 : i32, i32
  }
  func.func @transform_1(%arg0: i32) -> (i32, i32, i32) {
    %c0_i32 = arith.constant 0 : i32
    %c0_i32_0 = arith.constant 0 : i32
    %c0_i32_1 = arith.constant 0 : i32
    %c0_i32_2 = arith.constant 0 : i32
    return %c0_i32, %c0_i32_0, %c0_i32_1 : i32, i32, i32
  }
  func.func @transform_2(%arg0: i32) -> (i32, i32, i32) {
    %c0_i32 = arith.constant 0 : i32
    %c0_i32_0 = arith.constant 0 : i32
    %c0_i32_1 = arith.constant 0 : i32
    %c0_i32_2 = arith.constant 0 : i32
    return %c0_i32, %c0_i32_0, %c0_i32_1 : i32, i32, i32
  }
  func.func @transform_3(%arg0: i32) -> (i32, i32) {
    %c0_i32 = arith.constant 0 : i32
    %c0_i32_0 = arith.constant 0 : i32
    %c0_i32_1 = arith.constant 0 : i32
    return %c0_i32, %c0_i32_0 : i32, i32
  }
  func.func @transform_4(%arg0: i32) -> (i32, i32) {
    %c0_i32 = arith.constant 0 : i32
    %c0_i32_0 = arith.constant 0 : i32
    %c0_i32_1 = arith.constant 0 : i32
    return %c0_i32, %c0_i32_0 : i32, i32
  }
  func.func @transform_5(%arg0: i32) -> (i32, i32) {
    %c0_i32 = arith.constant 0 : i32
    %c0_i32_0 = arith.constant 0 : i32
    %c0_i32_1 = arith.constant 0 : i32
    return %c0_i32, %c0_i32_0 : i32, i32
  }
  func.func @transform_6(%arg0: i32) -> (i32, i32) {
    %c0_i32 = arith.constant 0 : i32
    %c0_i32_0 = arith.constant 0 : i32
    %c0_i32_1 = arith.constant 0 : i32
    return %c0_i32, %c0_i32_0 : i32, i32
  }
  func.func @transform_7(%arg0: i32) -> (i32, i32, i32) {
    %c0_i32 = arith.constant 0 : i32
    %c0_i32_0 = arith.constant 0 : i32
    %c0_i32_1 = arith.constant 0 : i32
    %c0_i32_2 = arith.constant 0 : i32
    return %c0_i32, %c0_i32_0, %c0_i32_1 : i32, i32, i32
  }
}

module attributes {stable_mosaic.version = 11 : i64} {
  func.func @_upmerge_kernel(%arg0: i32, %arg1: memref<16x32xbf16, #tpu.memory_space<vmem>>, %arg2: memref<4x16x32xbf16, #tpu.memory_space<vmem>>, %arg3: memref<4x16x16xbf16, #tpu.memory_space<vmem>>, %arg4: memref<16x16xbf16, #tpu.memory_space<vmem>>, %arg5: memref<16x16xbf16, #tpu.memory_space<vmem>>, %arg6: memref<16x1xf32, #tpu.memory_space<vmem>>, %arg7: memref<16x1xf32, #tpu.memory_space<vmem>>, %arg8: memref<4x16x32xbf16, #tpu.memory_space<vmem>>) attributes {dimension_semantics = [#tpu.dimension_semantics<arbitrary>], iteration_bounds = array<i64: 1>, scalar_prefetch = 0 : i64, scratch_operands = 0 : i64, tpu.core_type = #tpu.core_type<tc>, window_params = [{pipeline_mode = #tpu.pipeline_mode<synchronous>, transform_indices = @transform_0, window_bounds = array<i64: 16, 32>}, {pipeline_mode = #tpu.pipeline_mode<synchronous>, transform_indices = @transform_1, window_bounds = array<i64: 4, 16, 32>}, {pipeline_mode = #tpu.pipeline_mode<synchronous>, transform_indices = @transform_2, window_bounds = array<i64: 4, 16, 16>}, {pipeline_mode = #tpu.pipeline_mode<synchronous>, transform_indices = @transform_3, window_bounds = array<i64: 16, 16>}, {pipeline_mode = #tpu.pipeline_mode<synchronous>, transform_indices = @transform_4, window_bounds = array<i64: 16, 16>}, {pipeline_mode = #tpu.pipeline_mode<synchronous>, transform_indices = @transform_5, window_bounds = array<i64: 16, 1>}, {pipeline_mode = #tpu.pipeline_mode<synchronous>, transform_indices = @transform_6, window_bounds = array<i64: 16, 1>}, {pipeline_mode = #tpu.pipeline_mode<synchronous>, transform_indices = @transform_7, window_bounds = array<i64: 4, 16, 32>}]} {
    %c0 = arith.constant 0 : index
    %c0_0 = arith.constant 0 : index
    %0 = vector.load %arg1[%c0, %c0_0] : memref<16x32xbf16, #tpu.memory_space<vmem>>, vector<16x32xbf16>
    %c0_1 = arith.constant 0 : index
    %c0_2 = arith.constant 0 : index
    %1 = vector.load %arg4[%c0_1, %c0_2] : memref<16x16xbf16, #tpu.memory_space<vmem>>, vector<16x16xbf16>
    %c0_3 = arith.constant 0 : index
    %c0_4 = arith.constant 0 : index
    %2 = vector.load %arg5[%c0_3, %c0_4] : memref<16x16xbf16, #tpu.memory_space<vmem>>, vector<16x16xbf16>
    %c0_5 = arith.constant 0 : index
    %c0_6 = arith.constant 0 : index
    %3 = vector.load %arg6[%c0_5, %c0_6] : memref<16x1xf32, #tpu.memory_space<vmem>>, vector<16x1xf32>
    %c0_7 = arith.constant 0 : index
    %c0_8 = arith.constant 0 : index
    %4 = vector.load %arg7[%c0_7, %c0_8] : memref<16x1xf32, #tpu.memory_space<vmem>>, vector<16x1xf32>
    %c0_9 = arith.constant 0 : index
    %c0_10 = arith.constant 0 : index
    %c0_11 = arith.constant 0 : index
    %5 = vector.load %arg3[%c0_9, %c0_10, %c0_11] : memref<4x16x16xbf16, #tpu.memory_space<vmem>>, vector<1x16x16xbf16>
    %6 = vector.shape_cast %5 : vector<1x16x16xbf16> to vector<16x16xbf16>
    %cst = arith.constant dense<0.000000e+00> : vector<16x32xf32>
    %7 = tpu.matmul %6, %0, %cst {dimension_numbers = #tpu.dot_dimension_numbers<[1], [0], [0], [1], [0, 0, 1, 1], [], []>} : vector<16x16xbf16>, vector<16x32xbf16>, vector<16x32xf32> -> vector<16x32xf32>
    %8 = vector.broadcast %3 : vector<16x1xf32> to vector<16x32xf32>
    %9 = arith.addf %7, %8 : vector<16x32xf32>
    %cst_12 = arith.constant 0.000000e+00 : f32
    %10 = vector.broadcast %cst_12 : f32 to vector<16x32xf32>
    %11 = arith.cmpf oge, %9, %10 : vector<16x32xf32>
    %cst_13 = arith.constant 2.000000e-01 : f32
    %12 = vector.broadcast %cst_13 : f32 to vector<16x32xf32>
    %13 = arith.mulf %12, %9 : vector<16x32xf32>
    %14 = arith.select %11, %9, %13 : vector<16x32xi1>, vector<16x32xf32>
    %15 = arith.truncf %14 : vector<16x32xf32> to vector<16x32xbf16>
    %cst_14 = arith.constant dense<0.000000e+00> : vector<16x32xf32>
    %16 = tpu.matmul %1, %15, %cst_14 {dimension_numbers = #tpu.dot_dimension_numbers<[1], [0], [0], [1], [0, 0, 1, 1], [], []>} : vector<16x16xbf16>, vector<16x32xbf16>, vector<16x32xf32> -> vector<16x32xf32>
    %c0_15 = arith.constant 0 : index
    %c0_16 = arith.constant 0 : index
    %c0_17 = arith.constant 0 : index
    %17 = vector.load %arg2[%c0_15, %c0_16, %c0_17] : memref<4x16x32xbf16, #tpu.memory_space<vmem>>, vector<1x16x32xbf16>
    %18 = vector.shape_cast %17 : vector<1x16x32xbf16> to vector<16x32xbf16>
    %cst_18 = arith.constant dense<0.000000e+00> : vector<16x32xf32>
    %19 = tpu.matmul %2, %18, %cst_18 {dimension_numbers = #tpu.dot_dimension_numbers<[1], [0], [0], [1], [0, 0, 1, 1], [], []>} : vector<16x16xbf16>, vector<16x32xbf16>, vector<16x32xf32> -> vector<16x32xf32>
    %20 = arith.addf %16, %19 : vector<16x32xf32>
    %21 = vector.broadcast %4 : vector<16x1xf32> to vector<16x32xf32>
    %22 = arith.addf %20, %21 : vector<16x32xf32>
    %cst_19 = arith.constant 0.000000e+00 : f32
    %23 = vector.broadcast %cst_19 : f32 to vector<16x32xf32>
    %24 = arith.cmpf oge, %22, %23 : vector<16x32xf32>
    %cst_20 = arith.constant 2.000000e-01 : f32
    %25 = vector.broadcast %cst_20 : f32 to vector<16x32xf32>
    %26 = arith.mulf %25, %22 : vector<16x32xf32>
    %27 = arith.select %24, %22, %26 : vector<16x32xi1>, vector<16x32xf32>
    %28 = arith.truncf %27 : vector<16x32xf32> to vector<16x32xbf16>
    %c0_21 = arith.constant 0 : index
    %c0_22 = arith.constant 0 : index
    %c0_23 = arith.constant 0 : index
    %29 = vector.load %arg8[%c0_21, %c0_22, %c0_23] : memref<4x16x32xbf16, #tpu.memory_space<vmem>>, vector<1x16x32xbf16>
    %30 = vector.shape_cast %29 : vector<1x16x32xbf16> to vector<16x32xbf16>
    %31 = vector.shape_cast %28 : vector<16x32xbf16> to vector<1x16x32xbf16>
    tpu.vector_store %arg8[%c0_21, %c0_22, %c0_23], %31 {strides = array<i32>} : memref<4x16x32xbf16, #tpu.memory_space<vmem>>, vector<1x16x32xbf16>,
    %c1 = arith.constant 1 : index
    %c0_24 = arith.constant 0 : index
    %c0_25 = arith.constant 0 : index
    %32 = vector.load %arg3[%c1, %c0_24, %c0_25] : memref<4x16x16xbf16, #tpu.memory_space<vmem>>, vector<1x16x16xbf16>
    %33 = vector.shape_cast %32 : vector<1x16x16xbf16> to vector<16x16xbf16>
    %cst_26 = arith.constant dense<0.000000e+00> : vector<16x32xf32>
    %34 = tpu.matmul %33, %0, %cst_26 {dimension_numbers = #tpu.dot_dimension_numbers<[1], [0], [0], [1], [0, 0, 1, 1], [], []>} : vector<16x16xbf16>, vector<16x32xbf16>, vector<16x32xf32> -> vector<16x32xf32>
    %35 = vector.broadcast %3 : vector<16x1xf32> to vector<16x32xf32>
    %36 = arith.addf %34, %35 : vector<16x32xf32>
    %cst_27 = arith.constant 0.000000e+00 : f32
    %37 = vector.broadcast %cst_27 : f32 to vector<16x32xf32>
    %38 = arith.cmpf oge, %36, %37 : vector<16x32xf32>
    %cst_28 = arith.constant 2.000000e-01 : f32
    %39 = vector.broadcast %cst_28 : f32 to vector<16x32xf32>
    %40 = arith.mulf %39, %36 : vector<16x32xf32>
    %41 = arith.select %38, %36, %40 : vector<16x32xi1>, vector<16x32xf32>
    %42 = arith.truncf %41 : vector<16x32xf32> to vector<16x32xbf16>
    %cst_29 = arith.constant dense<0.000000e+00> : vector<16x32xf32>
    %43 = tpu.matmul %1, %42, %cst_29 {dimension_numbers = #tpu.dot_dimension_numbers<[1], [0], [0], [1], [0, 0, 1, 1], [], []>} : vector<16x16xbf16>, vector<16x32xbf16>, vector<16x32xf32> -> vector<16x32xf32>
    %c1_30 = arith.constant 1 : index
    %c0_31 = arith.constant 0 : index
    %c0_32 = arith.constant 0 : index
    %44 = vector.load %arg2[%c1_30, %c0_31, %c0_32] : memref<4x16x32xbf16, #tpu.memory_space<vmem>>, vector<1x16x32xbf16>
    %45 = vector.shape_cast %44 : vector<1x16x32xbf16> to vector<16x32xbf16>
    %cst_33 = arith.constant dense<0.000000e+00> : vector<16x32xf32>
    %46 = tpu.matmul %2, %45, %cst_33 {dimension_numbers = #tpu.dot_dimension_numbers<[1], [0], [0], [1], [0, 0, 1, 1], [], []>} : vector<16x16xbf16>, vector<16x32xbf16>, vector<16x32xf32> -> vector<16x32xf32>
    %47 = arith.addf %43, %46 : vector<16x32xf32>
    %48 = vector.broadcast %4 : vector<16x1xf32> to vector<16x32xf32>
    %49 = arith.addf %47, %48 : vector<16x32xf32>
    %cst_34 = arith.constant 0.000000e+00 : f32
    %50 = vector.broadcast %cst_34 : f32 to vector<16x32xf32>
    %51 = arith.cmpf oge, %49, %50 : vector<16x32xf32>
    %cst_35 = arith.constant 2.000000e-01 : f32
    %52 = vector.broadcast %cst_35 : f32 to vector<16x32xf32>
    %53 = arith.mulf %52, %49 : vector<16x32xf32>
    %54 = arith.select %51, %49, %53 : vector<16x32xi1>, vector<16x32xf32>
    %55 = arith.truncf %54 : vector<16x32xf32> to vector<16x32xbf16>
    %c1_36 = arith.constant 1 : index
    %c0_37 = arith.constant 0 : index
    %c0_38 = arith.constant 0 : index
    %56 = vector.load %arg8[%c1_36, %c0_37, %c0_38] : memref<4x16x32xbf16, #tpu.memory_space<vmem>>, vector<1x16x32xbf16>
    %57 = vector.shape_cast %56 : vector<1x16x32xbf16> to vector<16x32xbf16>
    %58 = vector.shape_cast %55 : vector<16x32xbf16> to vector<1x16x32xbf16>
    tpu.vector_store %arg8[%c1_36, %c0_37, %c0_38], %58 {strides = array<i32>} : memref<4x16x32xbf16, #tpu.memory_space<vmem>>, vector<1x16x32xbf16>,
    %c2 = arith.constant 2 : index
    %c0_39 = arith.constant 0 : index
    %c0_40 = arith.constant 0 : index
    %59 = vector.load %arg3[%c2, %c0_39, %c0_40] : memref<4x16x16xbf16, #tpu.memory_space<vmem>>, vector<1x16x16xbf16>
    %60 = vector.shape_cast %59 : vector<1x16x16xbf16> to vector<16x16xbf16>
    %cst_41 = arith.constant dense<0.000000e+00> : vector<16x32xf32>
    %61 = tpu.matmul %60, %0, %cst_41 {dimension_numbers = #tpu.dot_dimension_numbers<[1], [0], [0], [1], [0, 0, 1, 1], [], []>} : vector<16x16xbf16>, vector<16x32xbf16>, vector<16x32xf32> -> vector<16x32xf32>
    %62 = vector.broadcast %3 : vector<16x1xf32> to vector<16x32xf32>
    %63 = arith.addf %61, %62 : vector<16x32xf32>
    %cst_42 = arith.constant 0.000000e+00 : f32
    %64 = vector.broadcast %cst_42 : f32 to vector<16x32xf32>
    %65 = arith.cmpf oge, %63, %64 : vector<16x32xf32>
    %cst_43 = arith.constant 2.000000e-01 : f32
    %66 = vector.broadcast %cst_43 : f32 to vector<16x32xf32>
    %67 = arith.mulf %66, %63 : vector<16x32xf32>
    %68 = arith.select %65, %63, %67 : vector<16x32xi1>, vector<16x32xf32>
    %69 = arith.truncf %68 : vector<16x32xf32> to vector<16x32xbf16>
    %cst_44 = arith.constant dense<0.000000e+00> : vector<16x32xf32>
    %70 = tpu.matmul %1, %69, %cst_44 {dimension_numbers = #tpu.dot_dimension_numbers<[1], [0], [0], [1], [0, 0, 1, 1], [], []>} : vector<16x16xbf16>, vector<16x32xbf16>, vector<16x32xf32> -> vector<16x32xf32>
    %c2_45 = arith.constant 2 : index
    %c0_46 = arith.constant 0 : index
    %c0_47 = arith.constant 0 : index
    %71 = vector.load %arg2[%c2_45, %c0_46, %c0_47] : memref<4x16x32xbf16, #tpu.memory_space<vmem>>, vector<1x16x32xbf16>
    %72 = vector.shape_cast %71 : vector<1x16x32xbf16> to vector<16x32xbf16>
    %cst_48 = arith.constant dense<0.000000e+00> : vector<16x32xf32>
    %73 = tpu.matmul %2, %72, %cst_48 {dimension_numbers = #tpu.dot_dimension_numbers<[1], [0], [0], [1], [0, 0, 1, 1], [], []>} : vector<16x16xbf16>, vector<16x32xbf16>, vector<16x32xf32> -> vector<16x32xf32>
    %74 = arith.addf %70, %73 : vector<16x32xf32>
    %75 = vector.broadcast %4 : vector<16x1xf32> to vector<16x32xf32>
    %76 = arith.addf %74, %75 : vector<16x32xf32>
    %cst_49 = arith.constant 0.000000e+00 : f32
    %77 = vector.broadcast %cst_49 : f32 to vector<16x32xf32>
    %78 = arith.cmpf oge, %76, %77 : vector<16x32xf32>
    %cst_50 = arith.constant 2.000000e-01 : f32
    %79 = vector.broadcast %cst_50 : f32 to vector<16x32xf32>
    %80 = arith.mulf %79, %76 : vector<16x32xf32>
    %81 = arith.select %78, %76, %80 : vector<16x32xi1>, vector<16x32xf32>
    %82 = arith.truncf %81 : vector<16x32xf32> to vector<16x32xbf16>
    %c2_51 = arith.constant 2 : index
    %c0_52 = arith.constant 0 : index
    %c0_53 = arith.constant 0 : index
    %83 = vector.load %arg8[%c2_51, %c0_52, %c0_53] : memref<4x16x32xbf16, #tpu.memory_space<vmem>>, vector<1x16x32xbf16>
    %84 = vector.shape_cast %83 : vector<1x16x32xbf16> to vector<16x32xbf16>
    %85 = vector.shape_cast %82 : vector<16x32xbf16> to vector<1x16x32xbf16>
    tpu.vector_store %arg8[%c2_51, %c0_52, %c0_53], %85 {strides = array<i32>} : memref<4x16x32xbf16, #tpu.memory_space<vmem>>, vector<1x16x32xbf16>,
    %c3 = arith.constant 3 : index
    %c0_54 = arith.constant 0 : index
    %c0_55 = arith.constant 0 : index
    %86 = vector.load %arg3[%c3, %c0_54, %c0_55] : memref<4x16x16xbf16, #tpu.memory_space<vmem>>, vector<1x16x16xbf16>
    %87 = vector.shape_cast %86 : vector<1x16x16xbf16> to vector<16x16xbf16>
    %cst_56 = arith.constant dense<0.000000e+00> : vector<16x32xf32>
    %88 = tpu.matmul %87, %0, %cst_56 {dimension_numbers = #tpu.dot_dimension_numbers<[1], [0], [0], [1], [0, 0, 1, 1], [], []>} : vector<16x16xbf16>, vector<16x32xbf16>, vector<16x32xf32> -> vector<16x32xf32>
    %89 = vector.broadcast %3 : vector<16x1xf32> to vector<16x32xf32>
    %90 = arith.addf %88, %89 : vector<16x32xf32>
    %cst_57 = arith.constant 0.000000e+00 : f32
    %91 = vector.broadcast %cst_57 : f32 to vector<16x32xf32>
    %92 = arith.cmpf oge, %90, %91 : vector<16x32xf32>
    %cst_58 = arith.constant 2.000000e-01 : f32
    %93 = vector.broadcast %cst_58 : f32 to vector<16x32xf32>
    %94 = arith.mulf %93, %90 : vector<16x32xf32>
    %95 = arith.select %92, %90, %94 : vector<16x32xi1>, vector<16x32xf32>
    %96 = arith.truncf %95 : vector<16x32xf32> to vector<16x32xbf16>
    %cst_59 = arith.constant dense<0.000000e+00> : vector<16x32xf32>
    %97 = tpu.matmul %1, %96, %cst_59 {dimension_numbers = #tpu.dot_dimension_numbers<[1], [0], [0], [1], [0, 0, 1, 1], [], []>} : vector<16x16xbf16>, vector<16x32xbf16>, vector<16x32xf32> -> vector<16x32xf32>
    %c3_60 = arith.constant 3 : index
    %c0_61 = arith.constant 0 : index
    %c0_62 = arith.constant 0 : index
    %98 = vector.load %arg2[%c3_60, %c0_61, %c0_62] : memref<4x16x32xbf16, #tpu.memory_space<vmem>>, vector<1x16x32xbf16>
    %99 = vector.shape_cast %98 : vector<1x16x32xbf16> to vector<16x32xbf16>
    %cst_63 = arith.constant dense<0.000000e+00> : vector<16x32xf32>
    %100 = tpu.matmul %2, %99, %cst_63 {dimension_numbers = #tpu.dot_dimension_numbers<[1], [0], [0], [1], [0, 0, 1, 1], [], []>} : vector<16x16xbf16>, vector<16x32xbf16>, vector<16x32xf32> -> vector<16x32xf32>
    %101 = arith.addf %97, %100 : vector<16x32xf32>
    %102 = vector.broadcast %4 : vector<16x1xf32> to vector<16x32xf32>
    %103 = arith.addf %101, %102 : vector<16x32xf32>
    %cst_64 = arith.constant 0.000000e+00 : f32
    %104 = vector.broadcast %cst_64 : f32 to vector<16x32xf32>
    %105 = arith.cmpf oge, %103, %104 : vector<16x32xf32>
    %cst_65 = arith.constant 2.000000e-01 : f32
    %106 = vector.broadcast %cst_65 : f32 to vector<16x32xf32>
    %107 = arith.mulf %106, %103 : vector<16x32xf32>
    %108 = arith.select %105, %103, %107 : vector<16x32xi1>, vector<16x32xf32>
    %109 = arith.truncf %108 : vector<16x32xf32> to vector<16x32xbf16>
    %c3_66 = arith.constant 3 : index
    %c0_67 = arith.constant 0 : index
    %c0_68 = arith.constant 0 : index
    %110 = vector.load %arg8[%c3_66, %c0_67, %c0_68] : memref<4x16x32xbf16, #tpu.memory_space<vmem>>, vector<1x16x32xbf16>
    %111 = vector.shape_cast %110 : vector<1x16x32xbf16> to vector<16x32xbf16>
    %112 = vector.shape_cast %109 : vector<16x32xbf16> to vector<1x16x32xbf16>
    tpu.vector_store %arg8[%c3_66, %c0_67, %c0_68], %112 {strides = array<i32>} : memref<4x16x32xbf16, #tpu.memory_space<vmem>>, vector<1x16x32xbf16>,
    return
  }
  func.func @transform_0(%arg0: i32) -> (i32, i32) {
    %c0_i32 = arith.constant 0 : i32
    %c0_i32_0 = arith.constant 0 : i32
    %c0_i32_1 = arith.constant 0 : i32
    return %c0_i32, %c0_i32_0 : i32, i32
  }
  func.func @transform_1(%arg0: i32) -> (i32, i32, i32) {
    %c0_i32 = arith.constant 0 : i32
    %c0_i32_0 = arith.constant 0 : i32
    %c0_i32_1 = arith.constant 0 : i32
    %c0_i32_2 = arith.constant 0 : i32
    return %c0_i32, %c0_i32_0, %c0_i32_1 : i32, i32, i32
  }
  func.func @transform_2(%arg0: i32) -> (i32, i32, i32) {
    %c0_i32 = arith.constant 0 : i32
    %c0_i32_0 = arith.constant 0 : i32
    %c0_i32_1 = arith.constant 0 : i32
    %c0_i32_2 = arith.constant 0 : i32
    return %c0_i32, %c0_i32_0, %c0_i32_1 : i32, i32, i32
  }
  func.func @transform_3(%arg0: i32) -> (i32, i32) {
    %c0_i32 = arith.constant 0 : i32
    %c0_i32_0 = arith.constant 0 : i32
    %c0_i32_1 = arith.constant 0 : i32
    return %c0_i32, %c0_i32_0 : i32, i32
  }
  func.func @transform_4(%arg0: i32) -> (i32, i32) {
    %c0_i32 = arith.constant 0 : i32
    %c0_i32_0 = arith.constant 0 : i32
    %c0_i32_1 = arith.constant 0 : i32
    return %c0_i32, %c0_i32_0 : i32, i32
  }
  func.func @transform_5(%arg0: i32) -> (i32, i32) {
    %c0_i32 = arith.constant 0 : i32
    %c0_i32_0 = arith.constant 0 : i32
    %c0_i32_1 = arith.constant 0 : i32
    return %c0_i32, %c0_i32_0 : i32, i32
  }
  func.func @transform_6(%arg0: i32) -> (i32, i32) {
    %c0_i32 = arith.constant 0 : i32
    %c0_i32_0 = arith.constant 0 : i32
    %c0_i32_1 = arith.constant 0 : i32
    return %c0_i32, %c0_i32_0 : i32, i32
  }
  func.func @transform_7(%arg0: i32) -> (i32, i32, i32) {
    %c0_i32 = arith.constant 0 : i32
    %c0_i32_0 = arith.constant 0 : i32
    %c0_i32_1 = arith.constant 0 : i32
    %c0_i32_2 = arith.constant 0 : i32
    return %c0_i32, %c0_i32_0, %c0_i32_1 : i32, i32, i32
  }
}

module attributes {stable_mosaic.version = 11 : i64} {
  func.func @_upmerge_kernel(%arg0: i32, %arg1: memref<16x128xbf16, #tpu.memory_space<vmem>>, %arg2: memref<4x8x128xbf16, #tpu.memory_space<vmem>>, %arg3: memref<4x8x16xbf16, #tpu.memory_space<vmem>>, %arg4: memref<8x8xbf16, #tpu.memory_space<vmem>>, %arg5: memref<8x8xbf16, #tpu.memory_space<vmem>>, %arg6: memref<8x1xf32, #tpu.memory_space<vmem>>, %arg7: memref<8x1xf32, #tpu.memory_space<vmem>>, %arg8: memref<4x8x128xbf16, #tpu.memory_space<vmem>>) attributes {dimension_semantics = [#tpu.dimension_semantics<arbitrary>], iteration_bounds = array<i64: 1>, scalar_prefetch = 0 : i64, scratch_operands = 0 : i64, tpu.core_type = #tpu.core_type<tc>, window_params = [{pipeline_mode = #tpu.pipeline_mode<synchronous>, transform_indices = @transform_0, window_bounds = array<i64: 16, 128>}, {pipeline_mode = #tpu.pipeline_mode<synchronous>, transform_indices = @transform_1, window_bounds = array<i64: 4, 8, 128>}, {pipeline_mode = #tpu.pipeline_mode<synchronous>, transform_indices = @transform_2, window_bounds = array<i64: 4, 8, 16>}, {pipeline_mode = #tpu.pipeline_mode<synchronous>, transform_indices = @transform_3, window_bounds = array<i64: 8, 8>}, {pipeline_mode = #tpu.pipeline_mode<synchronous>, transform_indices = @transform_4, window_bounds = array<i64: 8, 8>}, {pipeline_mode = #tpu.pipeline_mode<synchronous>, transform_indices = @transform_5, window_bounds = array<i64: 8, 1>}, {pipeline_mode = #tpu.pipeline_mode<synchronous>, transform_indices = @transform_6, window_bounds = array<i64: 8, 1>}, {pipeline_mode = #tpu.pipeline_mode<synchronous>, transform_indices = @transform_7, window_bounds = array<i64: 4, 8, 128>}]} {
    %c0 = arith.constant 0 : index
    %c0_0 = arith.constant 0 : index
    %0 = vector.load %arg1[%c0, %c0_0] : memref<16x128xbf16, #tpu.memory_space<vmem>>, vector<16x128xbf16>
    %c0_1 = arith.constant 0 : index
    %c0_2 = arith.constant 0 : index
    %1 = vector.load %arg4[%c0_1, %c0_2] : memref<8x8xbf16, #tpu.memory_space<vmem>>, vector<8x8xbf16>
    %c0_3 = arith.constant 0 : index
    %c0_4 = arith.constant 0 : index
    %2 = vector.load %arg5[%c0_3, %c0_4] : memref<8x8xbf16, #tpu.memory_space<vmem>>, vector<8x8xbf16>
    %c0_5 = arith.constant 0 : index
    %c0_6 = arith.constant 0 : index
    %3 = vector.load %arg6[%c0_5, %c0_6] : memref<8x1xf32, #tpu.memory_space<vmem>>, vector<8x1xf32>
    %c0_7 = arith.constant 0 : index
    %c0_8 = arith.constant 0 : index
    %4 = vector.load %arg7[%c0_7, %c0_8] : memref<8x1xf32, #tpu.memory_space<vmem>>, vector<8x1xf32>
    %c0_9 = arith.constant 0 : index
    %c0_10 = arith.constant 0 : index
    %c0_11 = arith.constant 0 : index
    %5 = vector.load %arg3[%c0_9, %c0_10, %c0_11] : memref<4x8x16xbf16, #tpu.memory_space<vmem>>, vector<1x8x16xbf16>
    %6 = vector.shape_cast %5 : vector<1x8x16xbf16> to vector<8x16xbf16>
    %cst = arith.constant dense<0.000000e+00> : vector<8x128xf32>
    %7 = tpu.matmul %6, %0, %cst {dimension_numbers = #tpu.dot_dimension_numbers<[1], [0], [0], [1], [0, 0, 1, 1], [], []>} : vector<8x16xbf16>, vector<16x128xbf16>, vector<8x128xf32> -> vector<8x128xf32>
    %8 = vector.broadcast %3 : vector<8x1xf32> to vector<8x128xf32>
    %9 = arith.addf %7, %8 : vector<8x128xf32>
    %cst_12 = arith.constant 0.000000e+00 : f32
    %10 = vector.broadcast %cst_12 : f32 to vector<8x128xf32>
    %11 = arith.cmpf oge, %9, %10 : vector<8x128xf32>
    %cst_13 = arith.constant 2.000000e-01 : f32
    %12 = vector.broadcast %cst_13 : f32 to vector<8x128xf32>
    %13 = arith.mulf %12, %9 : vector<8x128xf32>
    %14 = arith.select %11, %9, %13 : vector<8x128xi1>, vector<8x128xf32>
    %15 = arith.truncf %14 : vector<8x128xf32> to vector<8x128xbf16>
    %cst_14 = arith.constant dense<0.000000e+00> : vector<8x128xf32>
    %16 = tpu.matmul %1, %15, %cst_14 {dimension_numbers = #tpu.dot_dimension_numbers<[1], [0], [0], [1], [0, 0, 1, 1], [], []>} : vector<8x8xbf16>, vector<8x128xbf16>, vector<8x128xf32> -> vector<8x128xf32>
    %c0_15 = arith.constant 0 : index
    %c0_16 = arith.constant 0 : index
    %c0_17 = arith.constant 0 : index
    %17 = vector.load %arg2[%c0_15, %c0_16, %c0_17] : memref<4x8x128xbf16, #tpu.memory_space<vmem>>, vector<1x8x128xbf16>
    %18 = vector.shape_cast %17 : vector<1x8x128xbf16> to vector<8x128xbf16>
    %cst_18 = arith.constant dense<0.000000e+00> : vector<8x128xf32>
    %19 = tpu.matmul %2, %18, %cst_18 {dimension_numbers = #tpu.dot_dimension_numbers<[1], [0], [0], [1], [0, 0, 1, 1], [], []>} : vector<8x8xbf16>, vector<8x128xbf16>, vector<8x128xf32> -> vector<8x128xf32>
    %20 = arith.addf %16, %19 : vector<8x128xf32>
    %21 = vector.broadcast %4 : vector<8x1xf32> to vector<8x128xf32>
    %22 = arith.addf %20, %21 : vector<8x128xf32>
    %cst_19 = arith.constant 0.000000e+00 : f32
    %23 = vector.broadcast %cst_19 : f32 to vector<8x128xf32>
    %24 = arith.cmpf oge, %22, %23 : vector<8x128xf32>
    %cst_20 = arith.constant 2.000000e-01 : f32
    %25 = vector.broadcast %cst_20 : f32 to vector<8x128xf32>
    %26 = arith.mulf %25, %22 : vector<8x128xf32>
    %27 = arith.select %24, %22, %26 : vector<8x128xi1>, vector<8x128xf32>
    %28 = arith.truncf %27 : vector<8x128xf32> to vector<8x128xbf16>
    %c0_21 = arith.constant 0 : index
    %c0_22 = arith.constant 0 : index
    %c0_23 = arith.constant 0 : index
    %29 = vector.load %arg8[%c0_21, %c0_22, %c0_23] : memref<4x8x128xbf16, #tpu.memory_space<vmem>>, vector<1x8x128xbf16>
    %30 = vector.shape_cast %29 : vector<1x8x128xbf16> to vector<8x128xbf16>
    %31 = vector.shape_cast %28 : vector<8x128xbf16> to vector<1x8x128xbf16>
    tpu.vector_store %arg8[%c0_21, %c0_22, %c0_23], %31 {strides = array<i32>} : memref<4x8x128xbf16, #tpu.memory_space<vmem>>, vector<1x8x128xbf16>,
    %c1 = arith.constant 1 : index
    %c0_24 = arith.constant 0 : index
    %c0_25 = arith.constant 0 : index
    %32 = vector.load %arg3[%c1, %c0_24, %c0_25] : memref<4x8x16xbf16, #tpu.memory_space<vmem>>, vector<1x8x16xbf16>
    %33 = vector.shape_cast %32 : vector<1x8x16xbf16> to vector<8x16xbf16>
    %cst_26 = arith.constant dense<0.000000e+00> : vector<8x128xf32>
    %34 = tpu.matmul %33, %0, %cst_26 {dimension_numbers = #tpu.dot_dimension_numbers<[1], [0], [0], [1], [0, 0, 1, 1], [], []>} : vector<8x16xbf16>, vector<16x128xbf16>, vector<8x128xf32> -> vector<8x128xf32>
    %35 = vector.broadcast %3 : vector<8x1xf32> to vector<8x128xf32>
    %36 = arith.addf %34, %35 : vector<8x128xf32>
    %cst_27 = arith.constant 0.000000e+00 : f32
    %37 = vector.broadcast %cst_27 : f32 to vector<8x128xf32>
    %38 = arith.cmpf oge, %36, %37 : vector<8x128xf32>
    %cst_28 = arith.constant 2.000000e-01 : f32
    %39 = vector.broadcast %cst_28 : f32 to vector<8x128xf32>
    %40 = arith.mulf %39, %36 : vector<8x128xf32>
    %41 = arith.select %38, %36, %40 : vector<8x128xi1>, vector<8x128xf32>
    %42 = arith.truncf %41 : vector<8x128xf32> to vector<8x128xbf16>
    %cst_29 = arith.constant dense<0.000000e+00> : vector<8x128xf32>
    %43 = tpu.matmul %1, %42, %cst_29 {dimension_numbers = #tpu.dot_dimension_numbers<[1], [0], [0], [1], [0, 0, 1, 1], [], []>} : vector<8x8xbf16>, vector<8x128xbf16>, vector<8x128xf32> -> vector<8x128xf32>
    %c1_30 = arith.constant 1 : index
    %c0_31 = arith.constant 0 : index
    %c0_32 = arith.constant 0 : index
    %44 = vector.load %arg2[%c1_30, %c0_31, %c0_32] : memref<4x8x128xbf16, #tpu.memory_space<vmem>>, vector<1x8x128xbf16>
    %45 = vector.shape_cast %44 : vector<1x8x128xbf16> to vector<8x128xbf16>
    %cst_33 = arith.constant dense<0.000000e+00> : vector<8x128xf32>
    %46 = tpu.matmul %2, %45, %cst_33 {dimension_numbers = #tpu.dot_dimension_numbers<[1], [0], [0], [1], [0, 0, 1, 1], [], []>} : vector<8x8xbf16>, vector<8x128xbf16>, vector<8x128xf32> -> vector<8x128xf32>
    %47 = arith.addf %43, %46 : vector<8x128xf32>
    %48 = vector.broadcast %4 : vector<8x1xf32> to vector<8x128xf32>
    %49 = arith.addf %47, %48 : vector<8x128xf32>
    %cst_34 = arith.constant 0.000000e+00 : f32
    %50 = vector.broadcast %cst_34 : f32 to vector<8x128xf32>
    %51 = arith.cmpf oge, %49, %50 : vector<8x128xf32>
    %cst_35 = arith.constant 2.000000e-01 : f32
    %52 = vector.broadcast %cst_35 : f32 to vector<8x128xf32>
    %53 = arith.mulf %52, %49 : vector<8x128xf32>
    %54 = arith.select %51, %49, %53 : vector<8x128xi1>, vector<8x128xf32>
    %55 = arith.truncf %54 : vector<8x128xf32> to vector<8x128xbf16>
    %c1_36 = arith.constant 1 : index
    %c0_37 = arith.constant 0 : index
    %c0_38 = arith.constant 0 : index
    %56 = vector.load %arg8[%c1_36, %c0_37, %c0_38] : memref<4x8x128xbf16, #tpu.memory_space<vmem>>, vector<1x8x128xbf16>
    %57 = vector.shape_cast %56 : vector<1x8x128xbf16> to vector<8x128xbf16>
    %58 = vector.shape_cast %55 : vector<8x128xbf16> to vector<1x8x128xbf16>
    tpu.vector_store %arg8[%c1_36, %c0_37, %c0_38], %58 {strides = array<i32>} : memref<4x8x128xbf16, #tpu.memory_space<vmem>>, vector<1x8x128xbf16>,
    %c2 = arith.constant 2 : index
    %c0_39 = arith.constant 0 : index
    %c0_40 = arith.constant 0 : index
    %59 = vector.load %arg3[%c2, %c0_39, %c0_40] : memref<4x8x16xbf16, #tpu.memory_space<vmem>>, vector<1x8x16xbf16>
    %60 = vector.shape_cast %59 : vector<1x8x16xbf16> to vector<8x16xbf16>
    %cst_41 = arith.constant dense<0.000000e+00> : vector<8x128xf32>
    %61 = tpu.matmul %60, %0, %cst_41 {dimension_numbers = #tpu.dot_dimension_numbers<[1], [0], [0], [1], [0, 0, 1, 1], [], []>} : vector<8x16xbf16>, vector<16x128xbf16>, vector<8x128xf32> -> vector<8x128xf32>
    %62 = vector.broadcast %3 : vector<8x1xf32> to vector<8x128xf32>
    %63 = arith.addf %61, %62 : vector<8x128xf32>
    %cst_42 = arith.constant 0.000000e+00 : f32
    %64 = vector.broadcast %cst_42 : f32 to vector<8x128xf32>
    %65 = arith.cmpf oge, %63, %64 : vector<8x128xf32>
    %cst_43 = arith.constant 2.000000e-01 : f32
    %66 = vector.broadcast %cst_43 : f32 to vector<8x128xf32>
    %67 = arith.mulf %66, %63 : vector<8x128xf32>
    %68 = arith.select %65, %63, %67 : vector<8x128xi1>, vector<8x128xf32>
    %69 = arith.truncf %68 : vector<8x128xf32> to vector<8x128xbf16>
    %cst_44 = arith.constant dense<0.000000e+00> : vector<8x128xf32>
    %70 = tpu.matmul %1, %69, %cst_44 {dimension_numbers = #tpu.dot_dimension_numbers<[1], [0], [0], [1], [0, 0, 1, 1], [], []>} : vector<8x8xbf16>, vector<8x128xbf16>, vector<8x128xf32> -> vector<8x128xf32>
    %c2_45 = arith.constant 2 : index
    %c0_46 = arith.constant 0 : index
    %c0_47 = arith.constant 0 : index
    %71 = vector.load %arg2[%c2_45, %c0_46, %c0_47] : memref<4x8x128xbf16, #tpu.memory_space<vmem>>, vector<1x8x128xbf16>
    %72 = vector.shape_cast %71 : vector<1x8x128xbf16> to vector<8x128xbf16>
    %cst_48 = arith.constant dense<0.000000e+00> : vector<8x128xf32>
    %73 = tpu.matmul %2, %72, %cst_48 {dimension_numbers = #tpu.dot_dimension_numbers<[1], [0], [0], [1], [0, 0, 1, 1], [], []>} : vector<8x8xbf16>, vector<8x128xbf16>, vector<8x128xf32> -> vector<8x128xf32>
    %74 = arith.addf %70, %73 : vector<8x128xf32>
    %75 = vector.broadcast %4 : vector<8x1xf32> to vector<8x128xf32>
    %76 = arith.addf %74, %75 : vector<8x128xf32>
    %cst_49 = arith.constant 0.000000e+00 : f32
    %77 = vector.broadcast %cst_49 : f32 to vector<8x128xf32>
    %78 = arith.cmpf oge, %76, %77 : vector<8x128xf32>
    %cst_50 = arith.constant 2.000000e-01 : f32
    %79 = vector.broadcast %cst_50 : f32 to vector<8x128xf32>
    %80 = arith.mulf %79, %76 : vector<8x128xf32>
    %81 = arith.select %78, %76, %80 : vector<8x128xi1>, vector<8x128xf32>
    %82 = arith.truncf %81 : vector<8x128xf32> to vector<8x128xbf16>
    %c2_51 = arith.constant 2 : index
    %c0_52 = arith.constant 0 : index
    %c0_53 = arith.constant 0 : index
    %83 = vector.load %arg8[%c2_51, %c0_52, %c0_53] : memref<4x8x128xbf16, #tpu.memory_space<vmem>>, vector<1x8x128xbf16>
    %84 = vector.shape_cast %83 : vector<1x8x128xbf16> to vector<8x128xbf16>
    %85 = vector.shape_cast %82 : vector<8x128xbf16> to vector<1x8x128xbf16>
    tpu.vector_store %arg8[%c2_51, %c0_52, %c0_53], %85 {strides = array<i32>} : memref<4x8x128xbf16, #tpu.memory_space<vmem>>, vector<1x8x128xbf16>,
    %c3 = arith.constant 3 : index
    %c0_54 = arith.constant 0 : index
    %c0_55 = arith.constant 0 : index
    %86 = vector.load %arg3[%c3, %c0_54, %c0_55] : memref<4x8x16xbf16, #tpu.memory_space<vmem>>, vector<1x8x16xbf16>
    %87 = vector.shape_cast %86 : vector<1x8x16xbf16> to vector<8x16xbf16>
    %cst_56 = arith.constant dense<0.000000e+00> : vector<8x128xf32>
    %88 = tpu.matmul %87, %0, %cst_56 {dimension_numbers = #tpu.dot_dimension_numbers<[1], [0], [0], [1], [0, 0, 1, 1], [], []>} : vector<8x16xbf16>, vector<16x128xbf16>, vector<8x128xf32> -> vector<8x128xf32>
    %89 = vector.broadcast %3 : vector<8x1xf32> to vector<8x128xf32>
    %90 = arith.addf %88, %89 : vector<8x128xf32>
    %cst_57 = arith.constant 0.000000e+00 : f32
    %91 = vector.broadcast %cst_57 : f32 to vector<8x128xf32>
    %92 = arith.cmpf oge, %90, %91 : vector<8x128xf32>
    %cst_58 = arith.constant 2.000000e-01 : f32
    %93 = vector.broadcast %cst_58 : f32 to vector<8x128xf32>
    %94 = arith.mulf %93, %90 : vector<8x128xf32>
    %95 = arith.select %92, %90, %94 : vector<8x128xi1>, vector<8x128xf32>
    %96 = arith.truncf %95 : vector<8x128xf32> to vector<8x128xbf16>
    %cst_59 = arith.constant dense<0.000000e+00> : vector<8x128xf32>
    %97 = tpu.matmul %1, %96, %cst_59 {dimension_numbers = #tpu.dot_dimension_numbers<[1], [0], [0], [1], [0, 0, 1, 1], [], []>} : vector<8x8xbf16>, vector<8x128xbf16>, vector<8x128xf32> -> vector<8x128xf32>
    %c3_60 = arith.constant 3 : index
    %c0_61 = arith.constant 0 : index
    %c0_62 = arith.constant 0 : index
    %98 = vector.load %arg2[%c3_60, %c0_61, %c0_62] : memref<4x8x128xbf16, #tpu.memory_space<vmem>>, vector<1x8x128xbf16>
    %99 = vector.shape_cast %98 : vector<1x8x128xbf16> to vector<8x128xbf16>
    %cst_63 = arith.constant dense<0.000000e+00> : vector<8x128xf32>
    %100 = tpu.matmul %2, %99, %cst_63 {dimension_numbers = #tpu.dot_dimension_numbers<[1], [0], [0], [1], [0, 0, 1, 1], [], []>} : vector<8x8xbf16>, vector<8x128xbf16>, vector<8x128xf32> -> vector<8x128xf32>
    %101 = arith.addf %97, %100 : vector<8x128xf32>
    %102 = vector.broadcast %4 : vector<8x1xf32> to vector<8x128xf32>
    %103 = arith.addf %101, %102 : vector<8x128xf32>
    %cst_64 = arith.constant 0.000000e+00 : f32
    %104 = vector.broadcast %cst_64 : f32 to vector<8x128xf32>
    %105 = arith.cmpf oge, %103, %104 : vector<8x128xf32>
    %cst_65 = arith.constant 2.000000e-01 : f32
    %106 = vector.broadcast %cst_65 : f32 to vector<8x128xf32>
    %107 = arith.mulf %106, %103 : vector<8x128xf32>
    %108 = arith.select %105, %103, %107 : vector<8x128xi1>, vector<8x128xf32>
    %109 = arith.truncf %108 : vector<8x128xf32> to vector<8x128xbf16>
    %c3_66 = arith.constant 3 : index
    %c0_67 = arith.constant 0 : index
    %c0_68 = arith.constant 0 : index
    %110 = vector.load %arg8[%c3_66, %c0_67, %c0_68] : memref<4x8x128xbf16, #tpu.memory_space<vmem>>, vector<1x8x128xbf16>
    %111 = vector.shape_cast %110 : vector<1x8x128xbf16> to vector<8x128xbf16>
    %112 = vector.shape_cast %109 : vector<8x128xbf16> to vector<1x8x128xbf16>
    tpu.vector_store %arg8[%c3_66, %c0_67, %c0_68], %112 {strides = array<i32>} : memref<4x8x128xbf16, #tpu.memory_space<vmem>>, vector<1x8x128xbf16>,
    return
  }
  func.func @transform_0(%arg0: i32) -> (i32, i32) {
    %c0_i32 = arith.constant 0 : i32
    %c0_i32_0 = arith.constant 0 : i32
    %c0_i32_1 = arith.constant 0 : i32
    return %c0_i32, %c0_i32_0 : i32, i32
  }
  func.func @transform_1(%arg0: i32) -> (i32, i32, i32) {
    %c0_i32 = arith.constant 0 : i32
    %c0_i32_0 = arith.constant 0 : i32
    %c0_i32_1 = arith.constant 0 : i32
    %c0_i32_2 = arith.constant 0 : i32
    return %c0_i32, %c0_i32_0, %c0_i32_1 : i32, i32, i32
  }
  func.func @transform_2(%arg0: i32) -> (i32, i32, i32) {
    %c0_i32 = arith.constant 0 : i32
    %c0_i32_0 = arith.constant 0 : i32
    %c0_i32_1 = arith.constant 0 : i32
    %c0_i32_2 = arith.constant 0 : i32
    return %c0_i32, %c0_i32_0, %c0_i32_1 : i32, i32, i32
  }
  func.func @transform_3(%arg0: i32) -> (i32, i32) {
    %c0_i32 = arith.constant 0 : i32
    %c0_i32_0 = arith.constant 0 : i32
    %c0_i32_1 = arith.constant 0 : i32
    return %c0_i32, %c0_i32_0 : i32, i32
  }
  func.func @transform_4(%arg0: i32) -> (i32, i32) {
    %c0_i32 = arith.constant 0 : i32
    %c0_i32_0 = arith.constant 0 : i32
    %c0_i32_1 = arith.constant 0 : i32
    return %c0_i32, %c0_i32_0 : i32, i32
  }
  func.func @transform_5(%arg0: i32) -> (i32, i32) {
    %c0_i32 = arith.constant 0 : i32
    %c0_i32_0 = arith.constant 0 : i32
    %c0_i32_1 = arith.constant 0 : i32
    return %c0_i32, %c0_i32_0 : i32, i32
  }
  func.func @transform_6(%arg0: i32) -> (i32, i32) {
    %c0_i32 = arith.constant 0 : i32
    %c0_i32_0 = arith.constant 0 : i32
    %c0_i32_1 = arith.constant 0 : i32
    return %c0_i32, %c0_i32_0 : i32, i32
  }
  func.func @transform_7(%arg0: i32) -> (i32, i32, i32) {
    %c0_i32 = arith.constant 0 : i32
    %c0_i32_0 = arith.constant 0 : i32
    %c0_i32_1 = arith.constant 0 : i32
    %c0_i32_2 = arith.constant 0 : i32
    return %c0_i32, %c0_i32_0, %c0_i32_1 : i32, i32, i32
  }
}

module attributes {stable_mosaic.version = 11 : i64} {
  func.func @_gemm_bias_lrelu_kernel(%arg0: i32, %arg1: memref<72x512xbf16, #tpu.memory_space<vmem>>, %arg2: memref<8x72xbf16, #tpu.memory_space<vmem>>, %arg3: memref<8x1xf32, #tpu.memory_space<vmem>>, %arg4: memref<8x512xbf16, #tpu.memory_space<vmem>>) attributes {dimension_semantics = [#tpu.dimension_semantics<arbitrary>], iteration_bounds = array<i64: 1>, scalar_prefetch = 0 : i64, scratch_operands = 0 : i64, tpu.core_type = #tpu.core_type<tc>, window_params = [{pipeline_mode = #tpu.pipeline_mode<synchronous>, transform_indices = @transform_0, window_bounds = array<i64: 72, 512>}, {pipeline_mode = #tpu.pipeline_mode<synchronous>, transform_indices = @transform_1, window_bounds = array<i64: 8, 72>}, {pipeline_mode = #tpu.pipeline_mode<synchronous>, transform_indices = @transform_2, window_bounds = array<i64: 8, 1>}, {pipeline_mode = #tpu.pipeline_mode<synchronous>, transform_indices = @transform_3, window_bounds = array<i64: 8, 512>}]} {
    %c0 = arith.constant 0 : index
    %c0_0 = arith.constant 0 : index
    %0 = vector.load %arg2[%c0, %c0_0] : memref<8x72xbf16, #tpu.memory_space<vmem>>, vector<8x72xbf16>
    %c0_1 = arith.constant 0 : index
    %c0_2 = arith.constant 0 : index
    %1 = vector.load %arg1[%c0_1, %c0_2] : memref<72x512xbf16, #tpu.memory_space<vmem>>, vector<72x512xbf16>
    %cst = arith.constant dense<0.000000e+00> : vector<8x512xf32>
    %2 = tpu.matmul %0, %1, %cst {dimension_numbers = #tpu.dot_dimension_numbers<[1], [0], [0], [1], [0, 0, 1, 1], [], []>} : vector<8x72xbf16>, vector<72x512xbf16>, vector<8x512xf32> -> vector<8x512xf32>
    %c0_3 = arith.constant 0 : index
    %c0_4 = arith.constant 0 : index
    %3 = vector.load %arg3[%c0_3, %c0_4] : memref<8x1xf32, #tpu.memory_space<vmem>>, vector<8x1xf32>
    %4 = vector.broadcast %3 : vector<8x1xf32> to vector<8x512xf32>
    %5 = arith.addf %2, %4 : vector<8x512xf32>
    %cst_5 = arith.constant 0.000000e+00 : f32
    %6 = vector.broadcast %cst_5 : f32 to vector<8x512xf32>
    %7 = arith.cmpf oge, %5, %6 : vector<8x512xf32>
    %cst_6 = arith.constant 2.000000e-01 : f32
    %8 = vector.broadcast %cst_6 : f32 to vector<8x512xf32>
    %9 = arith.mulf %8, %5 : vector<8x512xf32>
    %10 = arith.select %7, %5, %9 : vector<8x512xi1>, vector<8x512xf32>
    %11 = arith.truncf %10 : vector<8x512xf32> to vector<8x512xbf16>
    %c0_7 = arith.constant 0 : index
    %c0_8 = arith.constant 0 : index
    %12 = vector.load %arg4[%c0_7, %c0_8] : memref<8x512xbf16, #tpu.memory_space<vmem>>, vector<8x512xbf16>
    tpu.vector_store %arg4[%c0_7, %c0_8], %11 {strides = array<i32>} : memref<8x512xbf16, #tpu.memory_space<vmem>>, vector<8x512xbf16>,
    return
  }
  func.func @transform_0(%arg0: i32) -> (i32, i32) {
    %c0_i32 = arith.constant 0 : i32
    %c0_i32_0 = arith.constant 0 : i32
    %c0_i32_1 = arith.constant 0 : i32
    return %c0_i32, %c0_i32_0 : i32, i32
  }
  func.func @transform_1(%arg0: i32) -> (i32, i32) {
    %c0_i32 = arith.constant 0 : i32
    %c0_i32_0 = arith.constant 0 : i32
    %c0_i32_1 = arith.constant 0 : i32
    return %c0_i32, %c0_i32_0 : i32, i32
  }
  func.func @transform_2(%arg0: i32) -> (i32, i32) {
    %c0_i32 = arith.constant 0 : i32
    %c0_i32_0 = arith.constant 0 : i32
    %c0_i32_1 = arith.constant 0 : i32
    return %c0_i32, %c0_i32_0 : i32, i32
  }
  func.func @transform_3(%arg0: i32) -> (i32, i32) {
    %c0_i32 = arith.constant 0 : i32
    %c0_i32_0 = arith.constant 0 : i32
    %c0_i32_1 = arith.constant 0 : i32
    return %c0_i32, %c0_i32_0 : i32, i32
  }
}

</mosaic_0001>

<llo_original>
// kernel: feature_extractor_forward.23
$region0: #{feature_extractor_forward.23}
  #allocation0 [shape = 'u32[]', space=smem, size = 0x4, offset = 0x4, fixed_abs, tag = 'smem constant byte address 0x4 - core index']
  #allocation1 [shape = 'u32[144,128]{1,0:T(1,128)}', space=vmem, size = 0x12000, scoped, tag = 'internal scratch']
  %s0 = inlined_call_operand.vmem [shape: bf16[288,512], index: 0, kind: input, shape index: {}]
  %s1 = inlined_call_operand.vmem [shape: bf16[8,288], index: 1, kind: input, shape index: {}]
  %s2 = inlined_call_operand.vmem [shape: f32[8,1], index: 2, kind: input, shape index: {}]
  %s3 = inlined_call_operand.vmem [shape: bf16[8,512], index: 3, kind: output, shape index: {}]
  %s4 = sld [smem:[#allocation0]]
  $region22: #{feature_extractor_forward.23} parent=0
    _
  %s6 = ssub.s32 1, %s4
  %s7 = scalar_select 0, %s6, %s4
  // Predicated region
  $region2: #{feature_extractor_forward.23} parent=0 // pred_check
    _
  $region3: #{feature_extractor_forward.23} parent=0 // pred_check_branch
    %9 = sbr.rel (0) target = $region5
  $region4: #{feature_extractor_forward.23} parent=0 // pred_region
    _
  $region5: #{feature_extractor_forward.23} parent=0 // pred_fallthru
    _
  // Predicated region
  $region6: #{feature_extractor_forward.23} parent=0 // pred_check
    _
  $region7: #{feature_extractor_forward.23} parent=0 // pred_check_branch
    %11 = sbr.rel (0) target = $region9
  $region8: #{feature_extractor_forward.23} parent=0 // pred_region
    _
  $region9: #{feature_extractor_forward.23} parent=0 // pred_fallthru
    _
  // Predicated region
  $region10: #{feature_extractor_forward.23} parent=0 // pred_check
    _
  $region11: #{feature_extractor_forward.23} parent=0 // pred_check_branch
    %13 = sbr.rel (0) target = $region13
  $region12: #{feature_extractor_forward.23} parent=0 // pred_region
    _
  $region13: #{feature_extractor_forward.23} parent=0 // pred_fallthru
    _
  %v15 = vld [vmem:[%s1] sm:$0xff]
  %v16 = vld [vmem:[%s1 + $0x8] sm:$0xf]
  %v17 = vld [vmem:[%s0] sm:$0xff]
  %v18 = vld [vmem:[%s0 + $0x8] sm:$0xff]
  %v19 = vld [vmem:[%s0 + $0x10] sm:$0xff]
  %v20 = vld [vmem:[%s0 + $0x18] sm:$0xff]
  %v21 = vld [vmem:[%s0 + $0x20] sm:$0xff]
  %v22 = vld [vmem:[%s0 + $0x28] sm:$0xff]
  %v23 = vld [vmem:[%s0 + $0x30] sm:$0xff]
  %v24 = vld [vmem:[%s0 + $0x38] sm:$0xff]
  %v25 = vld [vmem:[%s0 + $0x40] sm:$0xff]
  %v26 = vld [vmem:[%s0 + $0x48] sm:$0xff]
  %v27 = vld [vmem:[%s0 + $0x50] sm:$0xff]
  %v28 = vld [vmem:[%s0 + $0x58] sm:$0xff]
  %v29 = vld [vmem:[%s0 + $0x60] sm:$0xff]
  %v30 = vld [vmem:[%s0 + $0x68] sm:$0xff]
  %v31 = vld [vmem:[%s0 + $0x70] sm:$0xff]
  %v32 = vld [vmem:[%s0 + $0x78] sm:$0xff]
  %v33 = vld [vmem:[%s0 + $0x80] sm:$0xff]
  %v34 = vld [vmem:[%s0 + $0x88] sm:$0xff]
  %v35 = vld [vmem:[%s0 + $0x90] sm:$0xff]
  %v36 = vld [vmem:[%s0 + $0x98] sm:$0xff]
  %v37 = vld [vmem:[%s0 + $0xa0] sm:$0xff]
  %v38 = vld [vmem:[%s0 + $0xa8] sm:$0xff]
  %v39 = vld [vmem:[%s0 + $0xb0] sm:$0xff]
  %v40 = vld [vmem:[%s0 + $0xb8] sm:$0xff]
  %v41 = vld [vmem:[%s0 + $0xc0] sm:$0xff]
  %v42 = vld [vmem:[%s0 + $0xc8] sm:$0xff]
  %v43 = vld [vmem:[%s0 + $0xd0] sm:$0xff]
  %v44 = vld [vmem:[%s0 + $0xd8] sm:$0xff]
  %v45 = vld [vmem:[%s0 + $0xe0] sm:$0xff]
  %v46 = vld [vmem:[%s0 + $0xe8] sm:$0xff]
  %v47 = vld [vmem:[%s0 + $0xf0] sm:$0xff]
  %v48 = vld [vmem:[%s0 + $0xf8] sm:$0xff]
  %v49 = vld [vmem:[%s0 + $0x100] sm:$0xff]
  %v50 = vld [vmem:[%s0 + $0x108] sm:$0xff]
  %v51 = vld [vmem:[%s0 + $0x110] sm:$0xff]
  %v52 = vld [vmem:[%s0 + $0x118] sm:$0xff]
  %v53 = vld [vmem:[%s0 + $0x120] sm:$0xff]
  %v54 = vld [vmem:[%s0 + $0x128] sm:$0xff]
  %v55 = vld [vmem:[%s0 + $0x130] sm:$0xff]
  %v56 = vld [vmem:[%s0 + $0x138] sm:$0xff]
  %v57 = vld [vmem:[%s0 + $0x140] sm:$0xff]
  %v58 = vld [vmem:[%s0 + $0x148] sm:$0xff]
  %v59 = vld [vmem:[%s0 + $0x150] sm:$0xff]
  %v60 = vld [vmem:[%s0 + $0x158] sm:$0xff]
  %v61 = vld [vmem:[%s0 + $0x160] sm:$0xff]
  %v62 = vld [vmem:[%s0 + $0x168] sm:$0xff]
  %v63 = vld [vmem:[%s0 + $0x170] sm:$0xff]
  %v64 = vld [vmem:[%s0 + $0x178] sm:$0xff]
  %v65 = vld [vmem:[%s0 + $0x180] sm:$0xff]
  %v66 = vld [vmem:[%s0 + $0x188] sm:$0xff]
  %v67 = vld [vmem:[%s0 + $0x190] sm:$0xff]
  %v68 = vld [vmem:[%s0 + $0x198] sm:$0xff]
  %v69 = vld [vmem:[%s0 + $0x1a0] sm:$0xff]
  %v70 = vld [vmem:[%s0 + $0x1a8] sm:$0xff]
  %v71 = vld [vmem:[%s0 + $0x1b0] sm:$0xff]
  %v72 = vld [vmem:[%s0 + $0x1b8] sm:$0xff]
  %v73 = vld [vmem:[%s0 + $0x1c0] sm:$0xff]
  %v74 = vld [vmem:[%s0 + $0x1c8] sm:$0xff]
  %v75 = vld [vmem:[%s0 + $0x1d0] sm:$0xff]
  %v76 = vld [vmem:[%s0 + $0x1d8] sm:$0xff]
  %v77 = vld [vmem:[%s0 + $0x1e0] sm:$0xff]
  %v78 = vld [vmem:[%s0 + $0x1e8] sm:$0xff]
  %v79 = vld [vmem:[%s0 + $0x1f0] sm:$0xff]
  %v80 = vld [vmem:[%s0 + $0x1f8] sm:$0xff]
  %v81 = vld [vmem:[%s0 + $0x200] sm:$0xff]
  %v82 = vld [vmem:[%s0 + $0x208] sm:$0xff]
  %v83 = vld [vmem:[%s0 + $0x210] sm:$0xff]
  %v84 = vld [vmem:[%s0 + $0x218] sm:$0xff]
  %v85 = vld [vmem:[%s0 + $0x220] sm:$0xff]
  %v86 = vld [vmem:[%s0 + $0x228] sm:$0xff]
  %v87 = vld [vmem:[%s0 + $0x230] sm:$0xff]
  %v88 = vld [vmem:[%s0 + $0x238] sm:$0xff]
  %v89 = vld [vmem:[%s2] sm:$0xff]
  %91 = vset.pattern.permute.xlu0 0
  %92 = vperm.xlu0 %91, %v89
  %v93 = vpop.permute.xlu0 %92
  %v97 = vunpack.c.l.b16 %v15
  %v98 = vunpack.c.h.b16 %v15
  %v99 = vunpack.c.l.b16 %v16
  %v100 = vpack.c.b16 %v97, %v97
  %v101 = vpack.c.b16 %v98, %v98
  %v102 = vpack.c.b16 %v99, %v99
  %v177 = vunpack.c.l.b16 %v17
  %v178 = vunpack.c.h.b16 %v17
  %v179 = vunpack.c.l.b16 %v18
  %v180 = vunpack.c.h.b16 %v18
  %v181 = vunpack.c.l.b16 %v19
  %v182 = vunpack.c.h.b16 %v19
  %v183 = vunpack.c.l.b16 %v20
  %v184 = vunpack.c.h.b16 %v20
  %v185 = vunpack.c.l.b16 %v21
  %v186 = vunpack.c.h.b16 %v21
  %v187 = vunpack.c.l.b16 %v22
  %v188 = vunpack.c.h.b16 %v22
  %v189 = vunpack.c.l.b16 %v23
  %v190 = vunpack.c.h.b16 %v23
  %v191 = vunpack.c.l.b16 %v24
  %v192 = vunpack.c.h.b16 %v24
  %v193 = vunpack.c.l.b16 %v25
  %v194 = vunpack.c.h.b16 %v25
  %v195 = vunpack.c.l.b16 %v26
  %v196 = vunpack.c.h.b16 %v26
  %v197 = vunpack.c.l.b16 %v27
  %v198 = vunpack.c.h.b16 %v27
  %v199 = vunpack.c.l.b16 %v28
  %v200 = vunpack.c.h.b16 %v28
  %v201 = vunpack.c.l.b16 %v29
  %v202 = vunpack.c.h.b16 %v29
  %v203 = vunpack.c.l.b16 %v30
  %v204 = vunpack.c.h.b16 %v30
  %v205 = vunpack.c.l.b16 %v31
  %v206 = vunpack.c.h.b16 %v31
  %v207 = vunpack.c.l.b16 %v32
  %v208 = vunpack.c.h.b16 %v32
  %v209 = vunpack.c.l.b16 %v33
  %v210 = vunpack.c.h.b16 %v33
  %v211 = vunpack.c.l.b16 %v34
  %v212 = vunpack.c.h.b16 %v34
  %v213 = vunpack.c.l.b16 %v35
  %v214 = vunpack.c.h.b16 %v35
  %v215 = vunpack.c.l.b16 %v36
  %v216 = vunpack.c.h.b16 %v36
  %v217 = vunpack.c.l.b16 %v37
  %v218 = vunpack.c.h.b16 %v37
  %v219 = vunpack.c.l.b16 %v38
  %v220 = vunpack.c.h.b16 %v38
  %v221 = vunpack.c.l.b16 %v39
  %v222 = vunpack.c.h.b16 %v39
  %v223 = vunpack.c.l.b16 %v40
  %v224 = vunpack.c.h.b16 %v40
  %v225 = vunpack.c.l.b16 %v41
  %v226 = vunpack.c.h.b16 %v41
  %v227 = vunpack.c.l.b16 %v42
  %v228 = vunpack.c.h.b16 %v42
  %v229 = vunpack.c.l.b16 %v43
  %v230 = vunpack.c.h.b16 %v43
  %v231 = vunpack.c.l.b16 %v44
  %v232 = vunpack.c.h.b16 %v44
  %v233 = vunpack.c.l.b16 %v45
  %v234 = vunpack.c.h.b16 %v45
  %v235 = vunpack.c.l.b16 %v46
  %v236 = vunpack.c.h.b16 %v46
  %v237 = vunpack.c.l.b16 %v47
  %v238 = vunpack.c.h.b16 %v47
  %v239 = vunpack.c.l.b16 %v48
  %v240 = vunpack.c.h.b16 %v48
  %v241 = vunpack.c.l.b16 %v49
  %v242 = vunpack.c.h.b16 %v49
  %v243 = vunpack.c.l.b16 %v50
  %v244 = vunpack.c.h.b16 %v50
  %v245 = vunpack.c.l.b16 %v51
  %v246 = vunpack.c.h.b16 %v51
  %v247 = vunpack.c.l.b16 %v52
  %v248 = vunpack.c.h.b16 %v52
  %v249 = vunpack.c.l.b16 %v53
  %v250 = vunpack.c.h.b16 %v53
  %v251 = vunpack.c.l.b16 %v54
  %v252 = vunpack.c.h.b16 %v54
  %v253 = vunpack.c.l.b16 %v55
  %v254 = vunpack.c.h.b16 %v55
  %v255 = vunpack.c.l.b16 %v56
  %v256 = vunpack.c.h.b16 %v56
  %v257 = vunpack.c.l.b16 %v57
  %v258 = vunpack.c.h.b16 %v57
  %v259 = vunpack.c.l.b16 %v58
  %v260 = vunpack.c.h.b16 %v58
  %v261 = vunpack.c.l.b16 %v59
  %v262 = vunpack.c.h.b16 %v59
  %v263 = vunpack.c.l.b16 %v60
  %v264 = vunpack.c.h.b16 %v60
  %v265 = vunpack.c.l.b16 %v61
  %v266 = vunpack.c.h.b16 %v61
  %v267 = vunpack.c.l.b16 %v62
  %v268 = vunpack.c.h.b16 %v62
  %v269 = vunpack.c.l.b16 %v63
  %v270 = vunpack.c.h.b16 %v63
  %v271 = vunpack.c.l.b16 %v64
  %v272 = vunpack.c.h.b16 %v64
  %v273 = vunpack.c.l.b16 %v65
  %v274 = vunpack.c.h.b16 %v65
  %v275 = vunpack.c.l.b16 %v66
  %v276 = vunpack.c.h.b16 %v66
  %v277 = vunpack.c.l.b16 %v67
  %v278 = vunpack.c.h.b16 %v67
  %v279 = vunpack.c.l.b16 %v68
  %v280 = vunpack.c.h.b16 %v68
  %v281 = vunpack.c.l.b16 %v69
  %v282 = vunpack.c.h.b16 %v69
  %v283 = vunpack.c.l.b16 %v70
  %v284 = vunpack.c.h.b16 %v70
  %v285 = vunpack.c.l.b16 %v71
  %v286 = vunpack.c.h.b16 %v71
  %v287 = vunpack.c.l.b16 %v72
  %v288 = vunpack.c.h.b16 %v72
  %v289 = vunpack.c.l.b16 %v73
  %v290 = vunpack.c.h.b16 %v73
  %v291 = vunpack.c.l.b16 %v74
  %v292 = vunpack.c.h.b16 %v74
  %v293 = vunpack.c.l.b16 %v75
  %v294 = vunpack.c.h.b16 %v75
  %v295 = vunpack.c.l.b16 %v76
  %v296 = vunpack.c.h.b16 %v76
  %v297 = vunpack.c.l.b16 %v77
  %v298 = vunpack.c.h.b16 %v77
  %v299 = vunpack.c.l.b16 %v78
  %v300 = vunpack.c.h.b16 %v78
  %v301 = vunpack.c.l.b16 %v79
  %v302 = vunpack.c.h.b16 %v79
  %v303 = vunpack.c.l.b16 %v80
  %v304 = vunpack.c.h.b16 %v80
  %v305 = vunpack.c.l.b16 %v81
  %v306 = vunpack.c.h.b16 %v81
  %v307 = vunpack.c.l.b16 %v82
  %v308 = vunpack.c.h.b16 %v82
  %v309 = vunpack.c.l.b16 %v83
  %v310 = vunpack.c.h.b16 %v83
  %v311 = vunpack.c.l.b16 %v84
  %v312 = vunpack.c.h.b16 %v84
  %v313 = vunpack.c.l.b16 %v85
  %v314 = vunpack.c.h.b16 %v85
  %v315 = vunpack.c.l.b16 %v86
  %v316 = vunpack.c.h.b16 %v86
  %v317 = vunpack.c.l.b16 %v87
  %v318 = vunpack.c.h.b16 %v87
  %v319 = vunpack.c.l.b16 %v88
  %v320 = vunpack.c.h.b16 %v88
  %v321 = vpack.c.b16 %v181, %v177
  %v322 = vpack.c.b16 %v182, %v178
  %v323 = vpack.c.b16 %v183, %v179
  %v324 = vpack.c.b16 %v184, %v180
  %v325 = vpack.c.b16 %v189, %v185
  %v326 = vpack.c.b16 %v190, %v186
  %v327 = vpack.c.b16 %v191, %v187
  %v328 = vpack.c.b16 %v192, %v188
  %v329 = vpack.c.b16 %v197, %v193
  %v330 = vpack.c.b16 %v198, %v194
  %v331 = vpack.c.b16 %v199, %v195
  %v332 = vpack.c.b16 %v200, %v196
  %v333 = vpack.c.b16 %v205, %v201
  %v334 = vpack.c.b16 %v206, %v202
  %v335 = vpack.c.b16 %v207, %v203
  %v336 = vpack.c.b16 %v208, %v204
  %v337 = vpack.c.b16 %v213, %v209
  %v338 = vpack.c.b16 %v214, %v210
  %v339 = vpack.c.b16 %v215, %v211
  %v340 = vpack.c.b16 %v216, %v212
  %v341 = vpack.c.b16 %v221, %v217
  %v342 = vpack.c.b16 %v222, %v218
  %v343 = vpack.c.b16 %v223, %v219
  %v344 = vpack.c.b16 %v224, %v220
  %v345 = vpack.c.b16 %v229, %v225
  %v346 = vpack.c.b16 %v230, %v226
  %v347 = vpack.c.b16 %v231, %v227
  %v348 = vpack.c.b16 %v232, %v228
  %v349 = vpack.c.b16 %v237, %v233
  %v350 = vpack.c.b16 %v238, %v234
  %v351 = vpack.c.b16 %v239, %v235
  %v352 = vpack.c.b16 %v240, %v236
  %v353 = vpack.c.b16 %v245, %v241
  %v354 = vpack.c.b16 %v246, %v242
  %v355 = vpack.c.b16 %v247, %v243
  %v356 = vpack.c.b16 %v248, %v244
  %v357 = vpack.c.b16 %v253, %v249
  %v358 = vpack.c.b16 %v254, %v250
  %v359 = vpack.c.b16 %v255, %v251
  %v360 = vpack.c.b16 %v256, %v252
  %v361 = vpack.c.b16 %v261, %v257
  %v362 = vpack.c.b16 %v262, %v258
  %v363 = vpack.c.b16 %v263, %v259
  %v364 = vpack.c.b16 %v264, %v260
  %v365 = vpack.c.b16 %v269, %v265
  %v366 = vpack.c.b16 %v270, %v266
  %v367 = vpack.c.b16 %v271, %v267
  %v368 = vpack.c.b16 %v272, %v268
  %v369 = vpack.c.b16 %v277, %v273
  %v370 = vpack.c.b16 %v278, %v274
  %v371 = vpack.c.b16 %v279, %v275
  %v372 = vpack.c.b16 %v280, %v276
  %v373 = vpack.c.b16 %v285, %v281
  %v374 = vpack.c.b16 %v286, %v282
  %v375 = vpack.c.b16 %v287, %v283
  %v376 = vpack.c.b16 %v288, %v284
  %v377 = vpack.c.b16 %v293, %v289
  %v378 = vpack.c.b16 %v294, %v290
  %v379 = vpack.c.b16 %v295, %v291
  %v380 = vpack.c.b16 %v296, %v292
  %v381 = vpack.c.b16 %v301, %v297
  %v382 = vpack.c.b16 %v302, %v298
  %v383 = vpack.c.b16 %v303, %v299
  %v384 = vpack.c.b16 %v304, %v300
  %v385 = vpack.c.b16 %v309, %v305
  %v386 = vpack.c.b16 %v310, %v306
  %v387 = vpack.c.b16 %v311, %v307
  %v388 = vpack.c.b16 %v312, %v308
  %v389 = vpack.c.b16 %v317, %v313
  %v390 = vpack.c.b16 %v318, %v314
  %v391 = vpack.c.b16 %v319, %v315
  %v392 = vpack.c.b16 %v320, %v316
  %vm465 = vcmask 261120
  %v467 = vsel %vm465, %v102, 0
  %469 = vmatprep.subr.bf16.mxu0 %v322
  %470 = vmatpush1.bf16.msra.mxu0 %v321
  %471 = vmatprep.subr.bf16.mxu0 %v326
  %472 = vmatpush1.bf16.msra.mxu0 %v325
  %473 = vmatprep.subr.bf16.mxu0 %v330
  %474 = vmatpush1.bf16.msra.mxu0 %v329
  %475 = vmatprep.subr.bf16.mxu0 %v334
  %476 = vmatpush1.bf16.msra.mxu0 %v333
  %477 = vmatprep.subr.bf16.mxu0 %v338
  %478 = vmatpush1.bf16.msra.mxu0 %v337
  %479 = vmatprep.subr.bf16.mxu0 %v342
  %480 = vmatpush1.bf16.msra.mxu0 %v341
  %481 = vmatprep.subr.bf16.mxu0 %v346
  %482 = vmatpush1.bf16.msra.mxu0 %v345
  %483 = vmatprep.subr.bf16.mxu0 %v350
  %484 = vmatpush1.bf16.msra.mxu0 %v349
  %485 = vmatprep.subr.bf16.mxu0 %v354
  %486 = vmatpush1.bf16.msra.mxu0 %v353
  %487 = vmatprep.subr.bf16.mxu0 %v358
  %488 = vmatpush1.bf16.msra.mxu0 %v357
  %489 = vmatprep.subr.bf16.mxu0 %v362
  %490 = vmatpush1.bf16.msra.mxu0 %v361
  %491 = vmatprep.subr.bf16.mxu0 %v366
  %492 = vmatpush1.bf16.msra.mxu0 %v365
  %493 = vmatprep.subr.bf16.mxu0 %v370
  %494 = vmatpush1.bf16.msra.mxu0 %v369
  %495 = vmatprep.subr.bf16.mxu0 %v374
  %496 = vmatpush1.bf16.msra.mxu0 %v373
  %497 = vmatprep.subr.bf16.mxu0 %v378
  %498 = vmatpush1.bf16.msra.mxu0 %v377
  %499 = vmatprep.subr.bf16.mxu0 %v382
  %500 = vmatpush1.bf16.msra.mxu0 %v381
  %501 = vmatprep.mubr.bf16.mxu0 %v101
  %502 = vmatmul.mubr.bf16.gmra.mrb[0].mxu0 %v100
  %v503 = vpop.f32.mrb[0].mxu0
  %v504 = vadd.f32 %v93, %v503
  %v505 = vpop.f32.mrb[0].mxu0
  %v506 = vadd.f32 %v93, %v505
  %v507 = vpop.f32.mrb[0].mxu0
  %v508 = vpop.f32.mrb[0].mxu0
  %509 = vdwg.mxu0
  %510 = vmatprep.subr.bf16.mxu0 %v386
  %511 = vmatpush1.bf16.msra.mxu0 %v385
  %512 = vmatprep.subr.bf16.mxu0 %v390
  %513 = vmatpush1.bf16.msra.mxu0 %v389
  %514 = vmatprep.subr.bf16.mxu0 0
  %515 = vmatpush1.bf16.msra.mxu0 0
  %516 = vmatprep.subr.bf16.mxu0 0
  %517 = vmatpush1.bf16.msra.mxu0 0
  %518 = vmatprep.subr.bf16.mxu0 0
  %519 = vmatpush1.bf16.msra.mxu0 0
  %520 = vmatprep.subr.bf16.mxu0 0
  %521 = vmatpush1.bf16.msra.mxu0 0
  %522 = vmatprep.subr.bf16.mxu0 0
  %523 = vmatpush1.bf16.msra.mxu0 0
  %524 = vmatprep.subr.bf16.mxu0 0
  %525 = vmatpush1.bf16.msra.mxu0 0
  %526 = vmatprep.subr.bf16.mxu0 0
  %527 = vmatpush1.bf16.msra.mxu0 0
  %528 = vmatprep.subr.bf16.mxu0 0
  %529 = vmatpush1.bf16.msra.mxu0 0
  %530 = vmatprep.subr.bf16.mxu0 0
  %531 = vmatpush1.bf16.msra.mxu0 0
  %532 = vmatprep.subr.bf16.mxu0 0
  %533 = vmatpush1.bf16.msra.mxu0 0
  %534 = vmatprep.subr.bf16.mxu0 0
  %535 = vmatpush1.bf16.msra.mxu0 0
  %536 = vmatprep.subr.bf16.mxu0 0
  %537 = vmatpush1.bf16.msra.mxu0 0
  %538 = vmatprep.subr.bf16.mxu0 0
  %539 = vmatpush1.bf16.msra.mxu0 0
  %540 = vmatprep.subr.bf16.mxu0 0
  %541 = vmatpush1.bf16.msra.mxu0 0
  %542 = vmatprep.mubr.bf16.mxu0 0
  %543 = vmatmul.mubr.bf16.gmra.mrb[0].mxu0 %v467
  %v544 = vpop.f32.mrb[0].mxu0
  %v545 = vadd.f32 %v504, %v544
  %v546 = vpop.f32.mrb[0].mxu0
  %v547 = vadd.f32 %v506, %v546
  %v548 = vpop.f32.mrb[0].mxu0
  %v549 = vpop.f32.mrb[0].mxu0
  %550 = vdwg.mxu0
  %551 = vmatprep.subr.bf16.mxu0 %v324
  %552 = vmatpush1.bf16.msra.mxu0 %v323
  %553 = vmatprep.subr.bf16.mxu0 %v328
  %554 = vmatpush1.bf16.msra.mxu0 %v327
  %555 = vmatprep.subr.bf16.mxu0 %v332
  %556 = vmatpush1.bf16.msra.mxu0 %v331
  %557 = vmatprep.subr.bf16.mxu0 %v336
  %558 = vmatpush1.bf16.msra.mxu0 %v335
  %559 = vmatprep.subr.bf16.mxu0 %v340
  %560 = vmatpush1.bf16.msra.mxu0 %v339
  %561 = vmatprep.subr.bf16.mxu0 %v344
  %562 = vmatpush1.bf16.msra.mxu0 %v343
  %563 = vmatprep.subr.bf16.mxu0 %v348
  %564 = vmatpush1.bf16.msra.mxu0 %v347
  %565 = vmatprep.subr.bf16.mxu0 %v352
  %566 = vmatpush1.bf16.msra.mxu0 %v351
  %567 = vmatprep.subr.bf16.mxu0 %v356
  %568 = vmatpush1.bf16.msra.mxu0 %v355
  %569 = vmatprep.subr.bf16.mxu0 %v360
  %570 = vmatpush1.bf16.msra.mxu0 %v359
  %571 = vmatprep.subr.bf16.mxu0 %v364
  %572 = vmatpush1.bf16.msra.mxu0 %v363
  %573 = vmatprep.subr.bf16.mxu0 %v368
  %574 = vmatpush1.bf16.msra.mxu0 %v367
  %575 = vmatprep.subr.bf16.mxu0 %v372
  %576 = vmatpush1.bf16.msra.mxu0 %v371
  %577 = vmatprep.subr.bf16.mxu0 %v376
  %578 = vmatpush1.bf16.msra.mxu0 %v375
  %579 = vmatprep.subr.bf16.mxu0 %v380
  %580 = vmatpush1.bf16.msra.mxu0 %v379
  %581 = vmatprep.subr.bf16.mxu0 %v384
  %582 = vmatpush1.bf16.msra.mxu0 %v383
  %583 = vmatprep.mubr.bf16.mxu0 %v101
  %584 = vmatmul.mubr.bf16.gmra.mrb[0].mxu0 %v100
  %v585 = vpop.f32.mrb[0].mxu0
  %v586 = vadd.f32 %v93, %v585
  %v587 = vpop.f32.mrb[0].mxu0
  %v588 = vadd.f32 %v93, %v587
  %v589 = vpop.f32.mrb[0].mxu0
  %v590 = vpop.f32.mrb[0].mxu0
  %591 = vdwg.mxu0
  %592 = vmatprep.subr.bf16.mxu0 %v388
  %593 = vmatpush1.bf16.msra.mxu0 %v387
  %594 = vmatprep.subr.bf16.mxu0 %v392
  %595 = vmatpush1.bf16.msra.mxu0 %v391
  %596 = vmatprep.subr.bf16.mxu0 0
  %597 = vmatpush1.bf16.msra.mxu0 0
  %598 = vmatprep.subr.bf16.mxu0 0
  %599 = vmatpush1.bf16.msra.mxu0 0
  %600 = vmatprep.subr.bf16.mxu0 0
  %601 = vmatpush1.bf16.msra.mxu0 0
  %602 = vmatprep.subr.bf16.mxu0 0
  %603 = vmatpush1.bf16.msra.mxu0 0
  %604 = vmatprep.subr.bf16.mxu0 0
  %605 = vmatpush1.bf16.msra.mxu0 0
  %606 = vmatprep.subr.bf16.mxu0 0
  %607 = vmatpush1.bf16.msra.mxu0 0
  %608 = vmatprep.subr.bf16.mxu0 0
  %609 = vmatpush1.bf16.msra.mxu0 0
  %610 = vmatprep.subr.bf16.mxu0 0
  %611 = vmatpush1.bf16.msra.mxu0 0
  %612 = vmatprep.subr.bf16.mxu0 0
  %613 = vmatpush1.bf16.msra.mxu0 0
  %614 = vmatprep.subr.bf16.mxu0 0
  %615 = vmatpush1.bf16.msra.mxu0 0
  %616 = vmatprep.subr.bf16.mxu0 0
  %617 = vmatpush1.bf16.msra.mxu0 0
  %618 = vmatprep.subr.bf16.mxu0 0
  %619 = vmatpush1.bf16.msra.mxu0 0
  %620 = vmatprep.subr.bf16.mxu0 0
  %621 = vmatpush1.bf16.msra.mxu0 0
  %622 = vmatprep.subr.bf16.mxu0 0
  %623 = vmatpush1.bf16.msra.mxu0 0
  %624 = vmatprep.mubr.bf16.mxu0 0
  %625 = vmatmul.mubr.bf16.gmra.mrb[0].mxu0 %v467
  %v626 = vpop.f32.mrb[0].mxu0
  %v627 = vadd.f32 %v586, %v626
  %v628 = vpop.f32.mrb[0].mxu0
  %v629 = vadd.f32 %v588, %v628
  %v630 = vpop.f32.mrb[0].mxu0
  %v631 = vpop.f32.mrb[0].mxu0
  %632 = vdwg.mxu0
  %vm633 = vcmp.ge.f32.partialorder %v545, 0.0
  %vm634 = vcmp.ge.f32.partialorder %v547, 0.0
  %vm635 = vcmp.ge.f32.partialorder %v627, 0.0
  %vm636 = vcmp.ge.f32.partialorder %v629, 0.0
  %v637 = vmul.f32 %v545, 0.2
  %v638 = vmul.f32 %v547, 0.2
  %v639 = vmul.f32 %v627, 0.2
  %v640 = vmul.f32 %v629, 0.2
  %v641 = vsel %vm633, %v545, %v637
  %v642 = vsel %vm634, %v547, %v638
  %v643 = vsel %vm635, %v627, %v639
  %v644 = vsel %vm636, %v629, %v640
  %v645 = vpack.c.bf16 %v641, %v641
  %v646 = vpack.c.bf16 %v642, %v642
  %v647 = vpack.c.bf16 %v643, %v643
  %v648 = vpack.c.bf16 %v644, %v644
  %v653 = vunpack.c.l.b16 %v645
  %v654 = vunpack.c.l.b16 %v646
  %v655 = vunpack.c.l.b16 %v647
  %v656 = vunpack.c.l.b16 %v648
  %v657 = vpack.c.b16 %v654, %v653
  %v658 = vpack.c.b16 %v656, %v655
  %661 = vst [vmem:[%s3] sm:$0xff] %v657
  %662 = vst [vmem:[%s3 + $0x8] sm:$0xff] %v658
  // Predicated region
  $region14: #{feature_extractor_forward.23} parent=0 // pred_check
    _
  $region15: #{feature_extractor_forward.23} parent=0 // pred_check_branch
    %664 = sbr.rel (0) target = $region17
  $region16: #{feature_extractor_forward.23} parent=0 // pred_region
    _
  $region17: #{feature_extractor_forward.23} parent=0 // pred_fallthru
    _
  // Predicated region
  $region18: #{feature_extractor_forward.23} parent=0 // pred_check
    _
  $region19: #{feature_extractor_forward.23} parent=0 // pred_check_branch
    %666 = sbr.rel (0) target = $region21
  $region20: #{feature_extractor_forward.23} parent=0 // pred_region
    _
  $region21: #{feature_extractor_forward.23} parent=0 // pred_fallthru
    _

// kernel: feature_extractor_forward.24
$region0: #{feature_extractor_forward.24}
  #allocation0 [shape = 'u32[]', space=smem, size = 0x4, offset = 0x4, fixed_abs, tag = 'smem constant byte address 0x4 - core index']
  #allocation1 [shape = 'u32[144,128]{1,0:T(1,128)}', space=vmem, size = 0x12000, scoped, tag = 'internal scratch']
  %s0 = inlined_call_operand.vmem [shape: bf16[128,128], index: 0, kind: input, shape index: {}]
  %s1 = inlined_call_operand.vmem [shape: bf16[16,128], index: 1, kind: input, shape index: {}]
  %s2 = inlined_call_operand.vmem [shape: f32[16,1], index: 2, kind: input, shape index: {}]
  %s3 = inlined_call_operand.vmem [shape: bf16[16,128], index: 3, kind: output, shape index: {}]
  %s4 = sld [smem:[#allocation0]]
  $region22: #{feature_extractor_forward.24} parent=0
    _
  %s6 = ssub.s32 1, %s4
  %s7 = scalar_select 0, %s6, %s4
  // Predicated region
  $region2: #{feature_extractor_forward.24} parent=0 // pred_check
    _
  $region3: #{feature_extractor_forward.24} parent=0 // pred_check_branch
    %9 = sbr.rel (0) target = $region5
  $region4: #{feature_extractor_forward.24} parent=0 // pred_region
    _
  $region5: #{feature_extractor_forward.24} parent=0 // pred_fallthru
    _
  // Predicated region
  $region6: #{feature_extractor_forward.24} parent=0 // pred_check
    _
  $region7: #{feature_extractor_forward.24} parent=0 // pred_check_branch
    %11 = sbr.rel (0) target = $region9
  $region8: #{feature_extractor_forward.24} parent=0 // pred_region
    _
  $region9: #{feature_extractor_forward.24} parent=0 // pred_fallthru
    _
  // Predicated region
  $region10: #{feature_extractor_forward.24} parent=0 // pred_check
    _
  $region11: #{feature_extractor_forward.24} parent=0 // pred_check_branch
    %13 = sbr.rel (0) target = $region13
  $region12: #{feature_extractor_forward.24} parent=0 // pred_region
    _
  $region13: #{feature_extractor_forward.24} parent=0 // pred_fallthru
    _
  %v15 = vld [vmem:[%s1] sm:$0xf]
  %v16 = vld [vmem:[%s1 + $0x4] sm:$0xf]
  %v17 = vld [vmem:[%s0] sm:$0xf]
  %v18 = vld [vmem:[%s0 + $0x4] sm:$0xf]
  %v19 = vld [vmem:[%s0 + $0x8] sm:$0xf]
  %v20 = vld [vmem:[%s0 + $0xc] sm:$0xf]
  %v21 = vld [vmem:[%s0 + $0x10] sm:$0xf]
  %v22 = vld [vmem:[%s0 + $0x14] sm:$0xf]
  %v23 = vld [vmem:[%s0 + $0x18] sm:$0xf]
  %v24 = vld [vmem:[%s0 + $0x1c] sm:$0xf]
  %v25 = vld [vmem:[%s0 + $0x20] sm:$0xf]
  %v26 = vld [vmem:[%s0 + $0x24] sm:$0xf]
  %v27 = vld [vmem:[%s0 + $0x28] sm:$0xf]
  %v28 = vld [vmem:[%s0 + $0x2c] sm:$0xf]
  %v29 = vld [vmem:[%s0 + $0x30] sm:$0xf]
  %v30 = vld [vmem:[%s0 + $0x34] sm:$0xf]
  %v31 = vld [vmem:[%s0 + $0x38] sm:$0xf]
  %v32 = vld [vmem:[%s0 + $0x3c] sm:$0xf]
  %v33 = vld [vmem:[%s2] sm:$0xff]
  %v34 = vld [vmem:[%s2 + $0x8] sm:$0xff]
  %36 = vset.pattern.permute.xlu0 0
  %37 = vperm.xlu0 %36, %v33
  %v38 = vpop.permute.xlu0 %37
  %41 = vset.pattern.permute.xlu0 0
  %42 = vperm.xlu0 %41, %v34
  %v43 = vpop.permute.xlu0 %42
  %v47 = vunpack.c.l.b16 %v15
  %v48 = vunpack.c.l.b16 %v16
  %v49 = vpack.c.b16 %v48, %v47
  %v67 = vunpack.c.l.b16 %v17
  %v68 = vunpack.c.l.b16 %v18
  %v69 = vunpack.c.l.b16 %v19
  %v70 = vunpack.c.l.b16 %v20
  %v71 = vunpack.c.l.b16 %v21
  %v72 = vunpack.c.l.b16 %v22
  %v73 = vunpack.c.l.b16 %v23
  %v74 = vunpack.c.l.b16 %v24
  %v75 = vunpack.c.l.b16 %v25
  %v76 = vunpack.c.l.b16 %v26
  %v77 = vunpack.c.l.b16 %v27
  %v78 = vunpack.c.l.b16 %v28
  %v79 = vunpack.c.l.b16 %v29
  %v80 = vunpack.c.l.b16 %v30
  %v81 = vunpack.c.l.b16 %v31
  %v82 = vunpack.c.l.b16 %v32
  %v83 = vpack.c.b16 %v68, %v67
  %v84 = vpack.c.b16 %v70, %v69
  %v85 = vpack.c.b16 %v72, %v71
  %v86 = vpack.c.b16 %v74, %v73
  %v87 = vpack.c.b16 %v76, %v75
  %v88 = vpack.c.b16 %v78, %v77
  %v89 = vpack.c.b16 %v80, %v79
  %v90 = vpack.c.b16 %v82, %v81
  %99 = vmatprep.subr.bf16.mxu0 0
  %100 = vmatpush1.bf16.msra.mxu0 %v83
  %101 = vmatprep.subr.bf16.mxu0 0
  %102 = vmatpush1.bf16.msra.mxu0 %v84
  %103 = vmatprep.subr.bf16.mxu0 0
  %104 = vmatpush1.bf16.msra.mxu0 %v85
  %105 = vmatprep.subr.bf16.mxu0 0
  %106 = vmatpush1.bf16.msra.mxu0 %v86
  %107 = vmatprep.subr.bf16.mxu0 0
  %108 = vmatpush1.bf16.msra.mxu0 %v87
  %109 = vmatprep.subr.bf16.mxu0 0
  %110 = vmatpush1.bf16.msra.mxu0 %v88
  %111 = vmatprep.subr.bf16.mxu0 0
  %112 = vmatpush1.bf16.msra.mxu0 %v89
  %113 = vmatprep.subr.bf16.mxu0 0
  %114 = vmatpush1.bf16.msra.mxu0 %v90
  %115 = vmatprep.subr.bf16.mxu0 0
  %116 = vmatpush1.bf16.msra.mxu0 0
  %117 = vmatprep.subr.bf16.mxu0 0
  %118 = vmatpush1.bf16.msra.mxu0 0
  %119 = vmatprep.subr.bf16.mxu0 0
  %120 = vmatpush1.bf16.msra.mxu0 0
  %121 = vmatprep.subr.bf16.mxu0 0
  %122 = vmatpush1.bf16.msra.mxu0 0
  %123 = vmatprep.subr.bf16.mxu0 0
  %124 = vmatpush1.bf16.msra.mxu0 0
  %125 = vmatprep.subr.bf16.mxu0 0
  %126 = vmatpush1.bf16.msra.mxu0 0
  %127 = vmatprep.subr.bf16.mxu0 0
  %128 = vmatpush1.bf16.msra.mxu0 0
  %129 = vmatprep.subr.bf16.mxu0 0
  %130 = vmatpush1.bf16.msra.mxu0 0
  %131 = vmatprep.mubr.bf16.mxu0 0
  %132 = vmatmul.mubr.bf16.gmra.mrb[0].mxu0 %v49
  %v133 = vpop.f32.mrb[0].mxu0
  %v134 = vadd.f32 %v38, %v133
  %v135 = vpop.f32.mrb[0].mxu0
  %v136 = vpop.f32.mrb[0].mxu0
  %v137 = vadd.f32 %v43, %v136
  %v138 = vpop.f32.mrb[0].mxu0
  %139 = vdwg.mxu0
  %vm140 = vcmp.ge.f32.partialorder %v134, 0.0
  %vm141 = vcmp.ge.f32.partialorder %v137, 0.0
  %v142 = vmul.f32 %v134, 0.2
  %v143 = vmul.f32 %v137, 0.2
  %v144 = vsel %vm140, %v134, %v142
  %v145 = vsel %vm141, %v137, %v143
  %v146 = vpack.c.bf16 %v145, %v144
  %v148 = vunpack.c.l.b16 %v146
  %v149 = vunpack.c.h.b16 %v146
  %v150 = vpack.c.b16 %v148, %v148
  %v151 = vpack.c.b16 %v149, %v149
  %154 = vst [vmem:[%s3] sm:$0xf] %v150
  %155 = vst [vmem:[%s3 + $0x4] sm:$0xf] %v151
  // Predicated region
  $region14: #{feature_extractor_forward.24} parent=0 // pred_check
    _
  $region15: #{feature_extractor_forward.24} parent=0 // pred_check_branch
    %157 = sbr.rel (0) target = $region17
  $region16: #{feature_extractor_forward.24} parent=0 // pred_region
    _
  $region17: #{feature_extractor_forward.24} parent=0 // pred_fallthru
    _
  // Predicated region
  $region18: #{feature_extractor_forward.24} parent=0 // pred_check
    _
  $region19: #{feature_extractor_forward.24} parent=0 // pred_check_branch
    %159 = sbr.rel (0) target = $region21
  $region20: #{feature_extractor_forward.24} parent=0 // pred_region
    _
  $region21: #{feature_extractor_forward.24} parent=0 // pred_fallthru
    _

// kernel: feature_extractor_forward.25
$region0: #{feature_extractor_forward.25}
  #allocation0 [shape = 'u32[]', space=smem, size = 0x4, offset = 0x4, fixed_abs, tag = 'smem constant byte address 0x4 - core index']
  #allocation1 [shape = 'u32[144,128]{1,0:T(1,128)}', space=vmem, size = 0x12000, scoped, tag = 'internal scratch']
  %s0 = inlined_call_operand.vmem [shape: bf16[144,128], index: 0, kind: input, shape index: {}]
  %s1 = inlined_call_operand.vmem [shape: bf16[16,144], index: 1, kind: input, shape index: {}]
  %s2 = inlined_call_operand.vmem [shape: f32[16,1], index: 2, kind: input, shape index: {}]
  %s3 = inlined_call_operand.vmem [shape: bf16[16,128], index: 3, kind: output, shape index: {}]
  %s4 = sld [smem:[#allocation0]]
  $region22: #{feature_extractor_forward.25} parent=0
    _
  %s6 = ssub.s32 1, %s4
  %s7 = scalar_select 0, %s6, %s4
  // Predicated region
  $region2: #{feature_extractor_forward.25} parent=0 // pred_check
    _
  $region3: #{feature_extractor_forward.25} parent=0 // pred_check_branch
    %9 = sbr.rel (0) target = $region5
  $region4: #{feature_extractor_forward.25} parent=0 // pred_region
    _
  $region5: #{feature_extractor_forward.25} parent=0 // pred_fallthru
    _
  // Predicated region
  $region6: #{feature_extractor_forward.25} parent=0 // pred_check
    _
  $region7: #{feature_extractor_forward.25} parent=0 // pred_check_branch
    %11 = sbr.rel (0) target = $region9
  $region8: #{feature_extractor_forward.25} parent=0 // pred_region
    _
  $region9: #{feature_extractor_forward.25} parent=0 // pred_fallthru
    _
  // Predicated region
  $region10: #{feature_extractor_forward.25} parent=0 // pred_check
    _
  $region11: #{feature_extractor_forward.25} parent=0 // pred_check_branch
    %13 = sbr.rel (0) target = $region13
  $region12: #{feature_extractor_forward.25} parent=0 // pred_region
    _
  $region13: #{feature_extractor_forward.25} parent=0 // pred_fallthru
    _
  %v15 = vld [vmem:[%s1] sm:$0xff]
  %v16 = vld [vmem:[%s1 + $0x8] sm:$0xff]
  %v17 = vld [vmem:[%s0] sm:$0xf]
  %v18 = vld [vmem:[%s0 + $0x4] sm:$0xf]
  %v19 = vld [vmem:[%s0 + $0x8] sm:$0xf]
  %v20 = vld [vmem:[%s0 + $0xc] sm:$0xf]
  %v21 = vld [vmem:[%s0 + $0x10] sm:$0xf]
  %v22 = vld [vmem:[%s0 + $0x14] sm:$0xf]
  %v23 = vld [vmem:[%s0 + $0x18] sm:$0xf]
  %v24 = vld [vmem:[%s0 + $0x1c] sm:$0xf]
  %v25 = vld [vmem:[%s0 + $0x20] sm:$0xf]
  %v26 = vld [vmem:[%s0 + $0x24] sm:$0xf]
  %v27 = vld [vmem:[%s0 + $0x28] sm:$0xf]
  %v28 = vld [vmem:[%s0 + $0x2c] sm:$0xf]
  %v29 = vld [vmem:[%s0 + $0x30] sm:$0xf]
  %v30 = vld [vmem:[%s0 + $0x34] sm:$0xf]
  %v31 = vld [vmem:[%s0 + $0x38] sm:$0xf]
  %v32 = vld [vmem:[%s0 + $0x3c] sm:$0xf]
  %v33 = vld [vmem:[%s0 + $0x40] sm:$0xf]
  %v34 = vld [vmem:[%s0 + $0x44] sm:$0xf]
  %v35 = vld [vmem:[%s2] sm:$0xff]
  %v36 = vld [vmem:[%s2 + $0x8] sm:$0xff]
  %38 = vset.pattern.permute.xlu0 0
  %39 = vperm.xlu0 %38, %v35
  %v40 = vpop.permute.xlu0 %39
  %43 = vset.pattern.permute.xlu0 0
  %44 = vperm.xlu0 %43, %v36
  %v45 = vpop.permute.xlu0 %44
  %v49 = vunpack.c.l.b16 %v15
  %v50 = vunpack.c.h.b16 %v15
  %v51 = vunpack.c.l.b16 %v16
  %v52 = vunpack.c.h.b16 %v16
  %v53 = vpack.c.b16 %v51, %v49
  %v54 = vpack.c.b16 %v52, %v50
  %v74 = vunpack.c.l.b16 %v17
  %v75 = vunpack.c.l.b16 %v18
  %v76 = vunpack.c.l.b16 %v19
  %v77 = vunpack.c.l.b16 %v20
  %v78 = vunpack.c.l.b16 %v21
  %v79 = vunpack.c.l.b16 %v22
  %v80 = vunpack.c.l.b16 %v23
  %v81 = vunpack.c.l.b16 %v24
  %v82 = vunpack.c.l.b16 %v25
  %v83 = vunpack.c.l.b16 %v26
  %v84 = vunpack.c.l.b16 %v27
  %v85 = vunpack.c.l.b16 %v28
  %v86 = vunpack.c.l.b16 %v29
  %v87 = vunpack.c.l.b16 %v30
  %v88 = vunpack.c.l.b16 %v31
  %v89 = vunpack.c.l.b16 %v32
  %v90 = vunpack.c.l.b16 %v33
  %v91 = vunpack.c.l.b16 %v34
  %v92 = vpack.c.b16 %v75, %v74
  %v93 = vpack.c.b16 %v77, %v76
  %v94 = vpack.c.b16 %v79, %v78
  %v95 = vpack.c.b16 %v81, %v80
  %v96 = vpack.c.b16 %v83, %v82
  %v97 = vpack.c.b16 %v85, %v84
  %v98 = vpack.c.b16 %v87, %v86
  %v99 = vpack.c.b16 %v89, %v88
  %v100 = vpack.c.b16 %v91, %v90
  %vm110 = vcmask 130048
  %v112 = vsel %vm110, %v54, 0
  %114 = vmatprep.subr.bf16.mxu0 0
  %115 = vmatpush1.bf16.msra.mxu0 %v92
  %116 = vmatprep.subr.bf16.mxu0 0
  %117 = vmatpush1.bf16.msra.mxu0 %v93
  %118 = vmatprep.subr.bf16.mxu0 0
  %119 = vmatpush1.bf16.msra.mxu0 %v94
  %120 = vmatprep.subr.bf16.mxu0 0
  %121 = vmatpush1.bf16.msra.mxu0 %v95
  %122 = vmatprep.subr.bf16.mxu0 0
  %123 = vmatpush1.bf16.msra.mxu0 %v96
  %124 = vmatprep.subr.bf16.mxu0 0
  %125 = vmatpush1.bf16.msra.mxu0 %v97
  %126 = vmatprep.subr.bf16.mxu0 0
  %127 = vmatpush1.bf16.msra.mxu0 %v98
  %128 = vmatprep.subr.bf16.mxu0 0
  %129 = vmatpush1.bf16.msra.mxu0 %v99
  %130 = vmatprep.subr.bf16.mxu0 0
  %131 = vmatpush1.bf16.msra.mxu0 %v100
  %132 = vmatprep.subr.bf16.mxu0 0
  %133 = vmatpush1.bf16.msra.mxu0 0
  %134 = vmatprep.subr.bf16.mxu0 0
  %135 = vmatpush1.bf16.msra.mxu0 0
  %136 = vmatprep.subr.bf16.mxu0 0
  %137 = vmatpush1.bf16.msra.mxu0 0
  %138 = vmatprep.subr.bf16.mxu0 0
  %139 = vmatpush1.bf16.msra.mxu0 0
  %140 = vmatprep.subr.bf16.mxu0 0
  %141 = vmatpush1.bf16.msra.mxu0 0
  %142 = vmatprep.subr.bf16.mxu0 0
  %143 = vmatpush1.bf16.msra.mxu0 0
  %144 = vmatprep.subr.bf16.mxu0 0
  %145 = vmatpush1.bf16.msra.mxu0 0
  %146 = vmatprep.mubr.bf16.mxu0 %v112
  %147 = vmatmul.mubr.bf16.gmra.mrb[0].mxu0 %v53
  %v148 = vpop.f32.mrb[0].mxu0
  %v149 = vadd.f32 %v40, %v148
  %v150 = vpop.f32.mrb[0].mxu0
  %v151 = vpop.f32.mrb[0].mxu0
  %v152 = vadd.f32 %v45, %v151
  %v153 = vpop.f32.mrb[0].mxu0
  %154 = vdwg.mxu0
  %vm155 = vcmp.ge.f32.partialorder %v149, 0.0
  %vm156 = vcmp.ge.f32.partialorder %v152, 0.0
  %v157 = vmul.f32 %v149, 0.2
  %v158 = vmul.f32 %v152, 0.2
  %v159 = vsel %vm155, %v149, %v157
  %v160 = vsel %vm156, %v152, %v158
  %v161 = vpack.c.bf16 %v160, %v159
  %v163 = vunpack.c.l.b16 %v161
  %v164 = vunpack.c.h.b16 %v161
  %v165 = vpack.c.b16 %v163, %v163
  %v166 = vpack.c.b16 %v164, %v164
  %169 = vst [vmem:[%s3] sm:$0xf] %v165
  %170 = vst [vmem:[%s3 + $0x4] sm:$0xf] %v166
  // Predicated region
  $region14: #{feature_extractor_forward.25} parent=0 // pred_check
    _
  $region15: #{feature_extractor_forward.25} parent=0 // pred_check_branch
    %172 = sbr.rel (0) target = $region17
  $region16: #{feature_extractor_forward.25} parent=0 // pred_region
    _
  $region17: #{feature_extractor_forward.25} parent=0 // pred_fallthru
    _
  // Predicated region
  $region18: #{feature_extractor_forward.25} parent=0 // pred_check
    _
  $region19: #{feature_extractor_forward.25} parent=0 // pred_check_branch
    %174 = sbr.rel (0) target = $region21
  $region20: #{feature_extractor_forward.25} parent=0 // pred_region
    _
  $region21: #{feature_extractor_forward.25} parent=0 // pred_fallthru
    _

// kernel: feature_extractor_forward.26
$region0: #{feature_extractor_forward.26}
  #allocation0 [shape = 'u32[]', space=smem, size = 0x4, offset = 0x4, fixed_abs, tag = 'smem constant byte address 0x4 - core index']
  #allocation1 [shape = 'u32[144,128]{1,0:T(1,128)}', space=vmem, size = 0x12000, scoped, tag = 'internal scratch']
  %s0 = inlined_call_operand.vmem [shape: bf16[256,32], index: 0, kind: input, shape index: {}]
  %s1 = inlined_call_operand.vmem [shape: bf16[16,256], index: 1, kind: input, shape index: {}]
  %s2 = inlined_call_operand.vmem [shape: f32[16,1], index: 2, kind: input, shape index: {}]
  %s3 = inlined_call_operand.vmem [shape: bf16[16,32], index: 3, kind: output, shape index: {}]
  %s4 = sld [smem:[#allocation0]]
  $region22: #{feature_extractor_forward.26} parent=0
    _
  %s6 = ssub.s32 1, %s4
  %s7 = scalar_select 0, %s6, %s4
  // Predicated region
  $region2: #{feature_extractor_forward.26} parent=0 // pred_check
    _
  $region3: #{feature_extractor_forward.26} parent=0 // pred_check_branch
    %9 = sbr.rel (0) target = $region5
  $region4: #{feature_extractor_forward.26} parent=0 // pred_region
    _
  $region5: #{feature_extractor_forward.26} parent=0 // pred_fallthru
    _
  // Predicated region
  $region6: #{feature_extractor_forward.26} parent=0 // pred_check
    _
  $region7: #{feature_extractor_forward.26} parent=0 // pred_check_branch
    %11 = sbr.rel (0) target = $region9
  $region8: #{feature_extractor_forward.26} parent=0 // pred_region
    _
  $region9: #{feature_extractor_forward.26} parent=0 // pred_fallthru
    _
  // Predicated region
  $region10: #{feature_extractor_forward.26} parent=0 // pred_check
    _
  $region11: #{feature_extractor_forward.26} parent=0 // pred_check_branch
    %13 = sbr.rel (0) target = $region13
  $region12: #{feature_extractor_forward.26} parent=0 // pred_region
    _
  $region13: #{feature_extractor_forward.26} parent=0 // pred_fallthru
    _
  %v15 = vld [vmem:[%s1] sm:$0xff]
  %v16 = vld [vmem:[%s1 + $0x8] sm:$0xff]
  %v17 = vld [vmem:[%s0] sm:$0xf]
  %v18 = vld [vmem:[%s0 + $0x4] sm:$0xf]
  %v19 = vld [vmem:[%s0 + $0x8] sm:$0xf]
  %v20 = vld [vmem:[%s0 + $0xc] sm:$0xf]
  %v21 = vld [vmem:[%s0 + $0x10] sm:$0xf]
  %v22 = vld [vmem:[%s0 + $0x14] sm:$0xf]
  %v23 = vld [vmem:[%s0 + $0x18] sm:$0xf]
  %v24 = vld [vmem:[%s0 + $0x1c] sm:$0xf]
  %v25 = vld [vmem:[%s0 + $0x20] sm:$0xf]
  %v26 = vld [vmem:[%s0 + $0x24] sm:$0xf]
  %v27 = vld [vmem:[%s0 + $0x28] sm:$0xf]
  %v28 = vld [vmem:[%s0 + $0x2c] sm:$0xf]
  %v29 = vld [vmem:[%s0 + $0x30] sm:$0xf]
  %v30 = vld [vmem:[%s0 + $0x34] sm:$0xf]
  %v31 = vld [vmem:[%s0 + $0x38] sm:$0xf]
  %v32 = vld [vmem:[%s0 + $0x3c] sm:$0xf]
  %v33 = vld [vmem:[%s0 + $0x40] sm:$0xf]
  %v34 = vld [vmem:[%s0 + $0x44] sm:$0xf]
  %v35 = vld [vmem:[%s0 + $0x48] sm:$0xf]
  %v36 = vld [vmem:[%s0 + $0x4c] sm:$0xf]
  %v37 = vld [vmem:[%s0 + $0x50] sm:$0xf]
  %v38 = vld [vmem:[%s0 + $0x54] sm:$0xf]
  %v39 = vld [vmem:[%s0 + $0x58] sm:$0xf]
  %v40 = vld [vmem:[%s0 + $0x5c] sm:$0xf]
  %v41 = vld [vmem:[%s0 + $0x60] sm:$0xf]
  %v42 = vld [vmem:[%s0 + $0x64] sm:$0xf]
  %v43 = vld [vmem:[%s0 + $0x68] sm:$0xf]
  %v44 = vld [vmem:[%s0 + $0x6c] sm:$0xf]
  %v45 = vld [vmem:[%s0 + $0x70] sm:$0xf]
  %v46 = vld [vmem:[%s0 + $0x74] sm:$0xf]
  %v47 = vld [vmem:[%s0 + $0x78] sm:$0xf]
  %v48 = vld [vmem:[%s0 + $0x7c] sm:$0xf]
  %v49 = vld [vmem:[%s2] sm:$0xff]
  %v50 = vld [vmem:[%s2 + $0x8] sm:$0xff]
  %52 = vset.pattern.permute.xlu0 0
  %53 = vperm.xlu0 %52, %v49
  %v54 = vpop.permute.xlu0 %53
  %57 = vset.pattern.permute.xlu0 0
  %58 = vperm.xlu0 %57, %v50
  %v59 = vpop.permute.xlu0 %58
  %v63 = vunpack.c.l.b16 %v15
  %v64 = vunpack.c.h.b16 %v15
  %v65 = vunpack.c.l.b16 %v16
  %v66 = vunpack.c.h.b16 %v16
  %v67 = vpack.c.b16 %v65, %v63
  %v68 = vpack.c.b16 %v66, %v64
  %v103 = vunpack.c.l.b16 %v17
  %v104 = vunpack.c.l.b16 %v18
  %v105 = vunpack.c.l.b16 %v19
  %v106 = vunpack.c.l.b16 %v20
  %v107 = vunpack.c.l.b16 %v21
  %v108 = vunpack.c.l.b16 %v22
  %v109 = vunpack.c.l.b16 %v23
  %v110 = vunpack.c.l.b16 %v24
  %v111 = vunpack.c.l.b16 %v25
  %v112 = vunpack.c.l.b16 %v26
  %v113 = vunpack.c.l.b16 %v27
  %v114 = vunpack.c.l.b16 %v28
  %v115 = vunpack.c.l.b16 %v29
  %v116 = vunpack.c.l.b16 %v30
  %v117 = vunpack.c.l.b16 %v31
  %v118 = vunpack.c.l.b16 %v32
  %v119 = vunpack.c.l.b16 %v33
  %v120 = vunpack.c.l.b16 %v34
  %v121 = vunpack.c.l.b16 %v35
  %v122 = vunpack.c.l.b16 %v36
  %v123 = vunpack.c.l.b16 %v37
  %v124 = vunpack.c.l.b16 %v38
  %v125 = vunpack.c.l.b16 %v39
  %v126 = vunpack.c.l.b16 %v40
  %v127 = vunpack.c.l.b16 %v41
  %v128 = vunpack.c.l.b16 %v42
  %v129 = vunpack.c.l.b16 %v43
  %v130 = vunpack.c.l.b16 %v44
  %v131 = vunpack.c.l.b16 %v45
  %v132 = vunpack.c.l.b16 %v46
  %v133 = vunpack.c.l.b16 %v47
  %v134 = vunpack.c.l.b16 %v48
  %v135 = vpack.c.b16 %v104, %v103
  %v136 = vpack.c.b16 %v106, %v105
  %v137 = vpack.c.b16 %v108, %v107
  %v138 = vpack.c.b16 %v110, %v109
  %v139 = vpack.c.b16 %v112, %v111
  %v140 = vpack.c.b16 %v114, %v113
  %v141 = vpack.c.b16 %v116, %v115
  %v142 = vpack.c.b16 %v118, %v117
  %v143 = vpack.c.b16 %v120, %v119
  %v144 = vpack.c.b16 %v122, %v121
  %v145 = vpack.c.b16 %v124, %v123
  %v146 = vpack.c.b16 %v126, %v125
  %v147 = vpack.c.b16 %v128, %v127
  %v148 = vpack.c.b16 %v130, %v129
  %v149 = vpack.c.b16 %v132, %v131
  %v150 = vpack.c.b16 %v134, %v133
  %167 = vmatprep.subr.bf16.mxu0 0
  %168 = vmatpush1.bf16.msra.mxu0 %v135
  %169 = vmatprep.subr.bf16.mxu0 0
  %170 = vmatpush1.bf16.msra.mxu0 %v136
  %171 = vmatprep.subr.bf16.mxu0 0
  %172 = vmatpush1.bf16.msra.mxu0 %v137
  %173 = vmatprep.subr.bf16.mxu0 0
  %174 = vmatpush1.bf16.msra.mxu0 %v138
  %175 = vmatprep.subr.bf16.mxu0 0
  %176 = vmatpush1.bf16.msra.mxu0 %v139
  %177 = vmatprep.subr.bf16.mxu0 0
  %178 = vmatpush1.bf16.msra.mxu0 %v140
  %179 = vmatprep.subr.bf16.mxu0 0
  %180 = vmatpush1.bf16.msra.mxu0 %v141
  %181 = vmatprep.subr.bf16.mxu0 0
  %182 = vmatpush1.bf16.msra.mxu0 %v142
  %183 = vmatprep.subr.bf16.mxu0 0
  %184 = vmatpush1.bf16.msra.mxu0 %v143
  %185 = vmatprep.subr.bf16.mxu0 0
  %186 = vmatpush1.bf16.msra.mxu0 %v144
  %187 = vmatprep.subr.bf16.mxu0 0
  %188 = vmatpush1.bf16.msra.mxu0 %v145
  %189 = vmatprep.subr.bf16.mxu0 0
  %190 = vmatpush1.bf16.msra.mxu0 %v146
  %191 = vmatprep.subr.bf16.mxu0 0
  %192 = vmatpush1.bf16.msra.mxu0 %v147
  %193 = vmatprep.subr.bf16.mxu0 0
  %194 = vmatpush1.bf16.msra.mxu0 %v148
  %195 = vmatprep.subr.bf16.mxu0 0
  %196 = vmatpush1.bf16.msra.mxu0 %v149
  %197 = vmatprep.subr.bf16.mxu0 0
  %198 = vmatpush1.bf16.msra.mxu0 %v150
  %199 = vmatprep.mubr.bf16.mxu0 %v68
  %200 = vmatmul.mubr.bf16.gmra.mrb[0].mxu0 %v67
  %v201 = vpop.f32.mrb[0].mxu0
  %v202 = vadd.f32 %v54, %v201
  %v203 = vpop.f32.mrb[0].mxu0
  %v204 = vpop.f32.mrb[0].mxu0
  %v205 = vadd.f32 %v59, %v204
  %v206 = vpop.f32.mrb[0].mxu0
  %207 = vdwg.mxu0
  %vm208 = vcmp.ge.f32.partialorder %v202, 0.0
  %vm209 = vcmp.ge.f32.partialorder %v205, 0.0
  %v210 = vmul.f32 %v202, 0.2
  %v211 = vmul.f32 %v205, 0.2
  %v212 = vsel %vm208, %v202, %v210
  %v213 = vsel %vm209, %v205, %v211
  %v214 = vpack.c.bf16 %v213, %v212
  %v216 = vunpack.c.l.b16 %v214
  %v217 = vunpack.c.h.b16 %v214
  %v218 = vpack.c.b16 %v216, %v216
  %v219 = vpack.c.b16 %v217, %v217
  %vm222 = vcmask 257024
  %223 = vst.msk [vmem:[%s3] sm:$0xf] %vm222, %v218
  %224 = vst.msk [vmem:[%s3 + $0x4] sm:$0xf] %vm222, %v219
  // Predicated region
  $region14: #{feature_extractor_forward.26} parent=0 // pred_check
    _
  $region15: #{feature_extractor_forward.26} parent=0 // pred_check_branch
    %226 = sbr.rel (0) target = $region17
  $region16: #{feature_extractor_forward.26} parent=0 // pred_region
    _
  $region17: #{feature_extractor_forward.26} parent=0 // pred_fallthru
    _
  // Predicated region
  $region18: #{feature_extractor_forward.26} parent=0 // pred_check
    _
  $region19: #{feature_extractor_forward.26} parent=0 // pred_check_branch
    %228 = sbr.rel (0) target = $region21
  $region20: #{feature_extractor_forward.26} parent=0 // pred_region
    _
  $region21: #{feature_extractor_forward.26} parent=0 // pred_fallthru
    _

// kernel: feature_extractor_forward.27
$region0: #{feature_extractor_forward.27}
  #allocation0 [shape = 'u32[]', space=smem, size = 0x4, offset = 0x4, fixed_abs, tag = 'smem constant byte address 0x4 - core index']
  #allocation1 [shape = 'u32[144,128]{1,0:T(1,128)}', space=vmem, size = 0x12000, scoped, tag = 'internal scratch']
  %s0 = inlined_call_operand.vmem [shape: bf16[144,32], index: 0, kind: input, shape index: {}]
  %s1 = inlined_call_operand.vmem [shape: bf16[16,144], index: 1, kind: input, shape index: {}]
  %s2 = inlined_call_operand.vmem [shape: f32[16,1], index: 2, kind: input, shape index: {}]
  %s3 = inlined_call_operand.vmem [shape: bf16[16,32], index: 3, kind: output, shape index: {}]
  %s4 = sld [smem:[#allocation0]]
  $region22: #{feature_extractor_forward.27} parent=0
    _
  %s6 = ssub.s32 1, %s4
  %s7 = scalar_select 0, %s6, %s4
  // Predicated region
  $region2: #{feature_extractor_forward.27} parent=0 // pred_check
    _
  $region3: #{feature_extractor_forward.27} parent=0 // pred_check_branch
    %9 = sbr.rel (0) target = $region5
  $region4: #{feature_extractor_forward.27} parent=0 // pred_region
    _
  $region5: #{feature_extractor_forward.27} parent=0 // pred_fallthru
    _
  // Predicated region
  $region6: #{feature_extractor_forward.27} parent=0 // pred_check
    _
  $region7: #{feature_extractor_forward.27} parent=0 // pred_check_branch
    %11 = sbr.rel (0) target = $region9
  $region8: #{feature_extractor_forward.27} parent=0 // pred_region
    _
  $region9: #{feature_extractor_forward.27} parent=0 // pred_fallthru
    _
  // Predicated region
  $region10: #{feature_extractor_forward.27} parent=0 // pred_check
    _
  $region11: #{feature_extractor_forward.27} parent=0 // pred_check_branch
    %13 = sbr.rel (0) target = $region13
  $region12: #{feature_extractor_forward.27} parent=0 // pred_region
    _
  $region13: #{feature_extractor_forward.27} parent=0 // pred_fallthru
    _
  %v15 = vld [vmem:[%s1] sm:$0xff]
  %v16 = vld [vmem:[%s1 + $0x8] sm:$0xff]
  %v17 = vld [vmem:[%s0] sm:$0xf]
  %v18 = vld [vmem:[%s0 + $0x4] sm:$0xf]
  %v19 = vld [vmem:[%s0 + $0x8] sm:$0xf]
  %v20 = vld [vmem:[%s0 + $0xc] sm:$0xf]
  %v21 = vld [vmem:[%s0 + $0x10] sm:$0xf]
  %v22 = vld [vmem:[%s0 + $0x14] sm:$0xf]
  %v23 = vld [vmem:[%s0 + $0x18] sm:$0xf]
  %v24 = vld [vmem:[%s0 + $0x1c] sm:$0xf]
  %v25 = vld [vmem:[%s0 + $0x20] sm:$0xf]
  %v26 = vld [vmem:[%s0 + $0x24] sm:$0xf]
  %v27 = vld [vmem:[%s0 + $0x28] sm:$0xf]
  %v28 = vld [vmem:[%s0 + $0x2c] sm:$0xf]
  %v29 = vld [vmem:[%s0 + $0x30] sm:$0xf]
  %v30 = vld [vmem:[%s0 + $0x34] sm:$0xf]
  %v31 = vld [vmem:[%s0 + $0x38] sm:$0xf]
  %v32 = vld [vmem:[%s0 + $0x3c] sm:$0xf]
  %v33 = vld [vmem:[%s0 + $0x40] sm:$0xf]
  %v34 = vld [vmem:[%s0 + $0x44] sm:$0xf]
  %v35 = vld [vmem:[%s2] sm:$0xff]
  %v36 = vld [vmem:[%s2 + $0x8] sm:$0xff]
  %38 = vset.pattern.permute.xlu0 0
  %39 = vperm.xlu0 %38, %v35
  %v40 = vpop.permute.xlu0 %39
  %43 = vset.pattern.permute.xlu0 0
  %44 = vperm.xlu0 %43, %v36
  %v45 = vpop.permute.xlu0 %44
  %v49 = vunpack.c.l.b16 %v15
  %v50 = vunpack.c.h.b16 %v15
  %v51 = vunpack.c.l.b16 %v16
  %v52 = vunpack.c.h.b16 %v16
  %v53 = vpack.c.b16 %v51, %v49
  %v54 = vpack.c.b16 %v52, %v50
  %v74 = vunpack.c.l.b16 %v17
  %v75 = vunpack.c.l.b16 %v18
  %v76 = vunpack.c.l.b16 %v19
  %v77 = vunpack.c.l.b16 %v20
  %v78 = vunpack.c.l.b16 %v21
  %v79 = vunpack.c.l.b16 %v22
  %v80 = vunpack.c.l.b16 %v23
  %v81 = vunpack.c.l.b16 %v24
  %v82 = vunpack.c.l.b16 %v25
  %v83 = vunpack.c.l.b16 %v26
  %v84 = vunpack.c.l.b16 %v27
  %v85 = vunpack.c.l.b16 %v28
  %v86 = vunpack.c.l.b16 %v29
  %v87 = vunpack.c.l.b16 %v30
  %v88 = vunpack.c.l.b16 %v31
  %v89 = vunpack.c.l.b16 %v32
  %v90 = vunpack.c.l.b16 %v33
  %v91 = vunpack.c.l.b16 %v34
  %v92 = vpack.c.b16 %v75, %v74
  %v93 = vpack.c.b16 %v77, %v76
  %v94 = vpack.c.b16 %v79, %v78
  %v95 = vpack.c.b16 %v81, %v80
  %v96 = vpack.c.b16 %v83, %v82
  %v97 = vpack.c.b16 %v85, %v84
  %v98 = vpack.c.b16 %v87, %v86
  %v99 = vpack.c.b16 %v89, %v88
  %v100 = vpack.c.b16 %v91, %v90
  %vm110 = vcmask 130048
  %v112 = vsel %vm110, %v54, 0
  %114 = vmatprep.subr.bf16.mxu0 0
  %115 = vmatpush1.bf16.msra.mxu0 %v92
  %116 = vmatprep.subr.bf16.mxu0 0
  %117 = vmatpush1.bf16.msra.mxu0 %v93
  %118 = vmatprep.subr.bf16.mxu0 0
  %119 = vmatpush1.bf16.msra.mxu0 %v94
  %120 = vmatprep.subr.bf16.mxu0 0
  %121 = vmatpush1.bf16.msra.mxu0 %v95
  %122 = vmatprep.subr.bf16.mxu0 0
  %123 = vmatpush1.bf16.msra.mxu0 %v96
  %124 = vmatprep.subr.bf16.mxu0 0
  %125 = vmatpush1.bf16.msra.mxu0 %v97
  %126 = vmatprep.subr.bf16.mxu0 0
  %127 = vmatpush1.bf16.msra.mxu0 %v98
  %128 = vmatprep.subr.bf16.mxu0 0
  %129 = vmatpush1.bf16.msra.mxu0 %v99
  %130 = vmatprep.subr.bf16.mxu0 0
  %131 = vmatpush1.bf16.msra.mxu0 %v100
  %132 = vmatprep.subr.bf16.mxu0 0
  %133 = vmatpush1.bf16.msra.mxu0 0
  %134 = vmatprep.subr.bf16.mxu0 0
  %135 = vmatpush1.bf16.msra.mxu0 0
  %136 = vmatprep.subr.bf16.mxu0 0
  %137 = vmatpush1.bf16.msra.mxu0 0
  %138 = vmatprep.subr.bf16.mxu0 0
  %139 = vmatpush1.bf16.msra.mxu0 0
  %140 = vmatprep.subr.bf16.mxu0 0
  %141 = vmatpush1.bf16.msra.mxu0 0
  %142 = vmatprep.subr.bf16.mxu0 0
  %143 = vmatpush1.bf16.msra.mxu0 0
  %144 = vmatprep.subr.bf16.mxu0 0
  %145 = vmatpush1.bf16.msra.mxu0 0
  %146 = vmatprep.mubr.bf16.mxu0 %v112
  %147 = vmatmul.mubr.bf16.gmra.mrb[0].mxu0 %v53
  %v148 = vpop.f32.mrb[0].mxu0
  %v149 = vadd.f32 %v40, %v148
  %v150 = vpop.f32.mrb[0].mxu0
  %v151 = vpop.f32.mrb[0].mxu0
  %v152 = vadd.f32 %v45, %v151
  %v153 = vpop.f32.mrb[0].mxu0
  %154 = vdwg.mxu0
  %vm155 = vcmp.ge.f32.partialorder %v149, 0.0
  %vm156 = vcmp.ge.f32.partialorder %v152, 0.0
  %v157 = vmul.f32 %v149, 0.2
  %v158 = vmul.f32 %v152, 0.2
  %v159 = vsel %vm155, %v149, %v157
  %v160 = vsel %vm156, %v152, %v158
  %v161 = vpack.c.bf16 %v160, %v159
  %v163 = vunpack.c.l.b16 %v161
  %v164 = vunpack.c.h.b16 %v161
  %v165 = vpack.c.b16 %v163, %v163
  %v166 = vpack.c.b16 %v164, %v164
  %vm169 = vcmask 257024
  %170 = vst.msk [vmem:[%s3] sm:$0xf] %vm169, %v165
  %171 = vst.msk [vmem:[%s3 + $0x4] sm:$0xf] %vm169, %v166
  // Predicated region
  $region14: #{feature_extractor_forward.27} parent=0 // pred_check
    _
  $region15: #{feature_extractor_forward.27} parent=0 // pred_check_branch
    %173 = sbr.rel (0) target = $region17
  $region16: #{feature_extractor_forward.27} parent=0 // pred_region
    _
  $region17: #{feature_extractor_forward.27} parent=0 // pred_fallthru
    _
  // Predicated region
  $region18: #{feature_extractor_forward.27} parent=0 // pred_check
    _
  $region19: #{feature_extractor_forward.27} parent=0 // pred_check_branch
    %175 = sbr.rel (0) target = $region21
  $region20: #{feature_extractor_forward.27} parent=0 // pred_region
    _
  $region21: #{feature_extractor_forward.27} parent=0 // pred_fallthru
    _

// kernel: feature_extractor_forward.28
$region0: #{feature_extractor_forward.28}
  #allocation0 [shape = 'u32[]', space=smem, size = 0x4, offset = 0x4, fixed_abs, tag = 'smem constant byte address 0x4 - core index']
  #allocation1 [shape = 'u32[144,128]{1,0:T(1,128)}', space=vmem, size = 0x12000, scoped, tag = 'internal scratch']
  %s0 = inlined_call_operand.vmem [shape: bf16[256,8], index: 0, kind: input, shape index: {}]
  %s1 = inlined_call_operand.vmem [shape: bf16[24,256], index: 1, kind: input, shape index: {}]
  %s2 = inlined_call_operand.vmem [shape: f32[24,1], index: 2, kind: input, shape index: {}]
  %s3 = inlined_call_operand.vmem [shape: bf16[24,8], index: 3, kind: output, shape index: {}]
  %s4 = sld [smem:[#allocation0]]
  $region22: #{feature_extractor_forward.28} parent=0
    _
  %s6 = ssub.s32 1, %s4
  %s7 = scalar_select 0, %s6, %s4
  // Predicated region
  $region2: #{feature_extractor_forward.28} parent=0 // pred_check
    _
  $region3: #{feature_extractor_forward.28} parent=0 // pred_check_branch
    %9 = sbr.rel (0) target = $region5
  $region4: #{feature_extractor_forward.28} parent=0 // pred_region
    _
  $region5: #{feature_extractor_forward.28} parent=0 // pred_fallthru
    _
  // Predicated region
  $region6: #{feature_extractor_forward.28} parent=0 // pred_check
    _
  $region7: #{feature_extractor_forward.28} parent=0 // pred_check_branch
    %11 = sbr.rel (0) target = $region9
  $region8: #{feature_extractor_forward.28} parent=0 // pred_region
    _
  $region9: #{feature_extractor_forward.28} parent=0 // pred_fallthru
    _
  // Predicated region
  $region10: #{feature_extractor_forward.28} parent=0 // pred_check
    _
  $region11: #{feature_extractor_forward.28} parent=0 // pred_check_branch
    %13 = sbr.rel (0) target = $region13
  $region12: #{feature_extractor_forward.28} parent=0 // pred_region
    _
  $region13: #{feature_extractor_forward.28} parent=0 // pred_fallthru
    _
  %v15 = vld [vmem:[%s1] sm:$0xff]
  %v16 = vld [vmem:[%s1 + $0x8] sm:$0xff]
  %v17 = vld [vmem:[%s1 + $0x10] sm:$0xff]
  %v18 = vld [vmem:[%s0] sm:$0xf]
  %v19 = vld [vmem:[%s0 + $0x4] sm:$0xf]
  %v20 = vld [vmem:[%s0 + $0x8] sm:$0xf]
  %v21 = vld [vmem:[%s0 + $0xc] sm:$0xf]
  %v22 = vld [vmem:[%s0 + $0x10] sm:$0xf]
  %v23 = vld [vmem:[%s0 + $0x14] sm:$0xf]
  %v24 = vld [vmem:[%s0 + $0x18] sm:$0xf]
  %v25 = vld [vmem:[%s0 + $0x1c] sm:$0xf]
  %v26 = vld [vmem:[%s0 + $0x20] sm:$0xf]
  %v27 = vld [vmem:[%s0 + $0x24] sm:$0xf]
  %v28 = vld [vmem:[%s0 + $0x28] sm:$0xf]
  %v29 = vld [vmem:[%s0 + $0x2c] sm:$0xf]
  %v30 = vld [vmem:[%s0 + $0x30] sm:$0xf]
  %v31 = vld [vmem:[%s0 + $0x34] sm:$0xf]
  %v32 = vld [vmem:[%s0 + $0x38] sm:$0xf]
  %v33 = vld [vmem:[%s0 + $0x3c] sm:$0xf]
  %v34 = vld [vmem:[%s0 + $0x40] sm:$0xf]
  %v35 = vld [vmem:[%s0 + $0x44] sm:$0xf]
  %v36 = vld [vmem:[%s0 + $0x48] sm:$0xf]
  %v37 = vld [vmem:[%s0 + $0x4c] sm:$0xf]
  %v38 = vld [vmem:[%s0 + $0x50] sm:$0xf]
  %v39 = vld [vmem:[%s0 + $0x54] sm:$0xf]
  %v40 = vld [vmem:[%s0 + $0x58] sm:$0xf]
  %v41 = vld [vmem:[%s0 + $0x5c] sm:$0xf]
  %v42 = vld [vmem:[%s0 + $0x60] sm:$0xf]
  %v43 = vld [vmem:[%s0 + $0x64] sm:$0xf]
  %v44 = vld [vmem:[%s0 + $0x68] sm:$0xf]
  %v45 = vld [vmem:[%s0 + $0x6c] sm:$0xf]
  %v46 = vld [vmem:[%s0 + $0x70] sm:$0xf]
  %v47 = vld [vmem:[%s0 + $0x74] sm:$0xf]
  %v48 = vld [vmem:[%s0 + $0x78] sm:$0xf]
  %v49 = vld [vmem:[%s0 + $0x7c] sm:$0xf]
  %v50 = vld [vmem:[%s2] sm:$0xff]
  %v51 = vld [vmem:[%s2 + $0x8] sm:$0xff]
  %v52 = vld [vmem:[%s2 + $0x10] sm:$0xff]
  %54 = vset.pattern.permute.xlu0 0
  %55 = vperm.xlu0 %54, %v50
  %v56 = vpop.permute.xlu0 %55
  %59 = vset.pattern.permute.xlu0 0
  %60 = vperm.xlu0 %59, %v51
  %v61 = vpop.permute.xlu0 %60
  %64 = vset.pattern.permute.xlu0 0
  %65 = vperm.xlu0 %64, %v52
  %v66 = vpop.permute.xlu0 %65
  %v71 = vunpack.c.l.b16 %v15
  %v72 = vunpack.c.h.b16 %v15
  %v73 = vunpack.c.l.b16 %v16
  %v74 = vunpack.c.h.b16 %v16
  %v75 = vunpack.c.l.b16 %v17
  %v76 = vunpack.c.h.b16 %v17
  %v77 = vpack.c.b16 %v73, %v71
  %v78 = vpack.c.b16 %v74, %v72
  %v79 = vpack.c.b16 %v75, %v75
  %v80 = vpack.c.b16 %v76, %v76
  %v117 = vunpack.c.l.b16 %v18
  %v118 = vunpack.c.l.b16 %v19
  %v119 = vunpack.c.l.b16 %v20
  %v120 = vunpack.c.l.b16 %v21
  %v121 = vunpack.c.l.b16 %v22
  %v122 = vunpack.c.l.b16 %v23
  %v123 = vunpack.c.l.b16 %v24
  %v124 = vunpack.c.l.b16 %v25
  %v125 = vunpack.c.l.b16 %v26
  %v126 = vunpack.c.l.b16 %v27
  %v127 = vunpack.c.l.b16 %v28
  %v128 = vunpack.c.l.b16 %v29
  %v129 = vunpack.c.l.b16 %v30
  %v130 = vunpack.c.l.b16 %v31
  %v131 = vunpack.c.l.b16 %v32
  %v132 = vunpack.c.l.b16 %v33
  %v133 = vunpack.c.l.b16 %v34
  %v134 = vunpack.c.l.b16 %v35
  %v135 = vunpack.c.l.b16 %v36
  %v136 = vunpack.c.l.b16 %v37
  %v137 = vunpack.c.l.b16 %v38
  %v138 = vunpack.c.l.b16 %v39
  %v139 = vunpack.c.l.b16 %v40
  %v140 = vunpack.c.l.b16 %v41
  %v141 = vunpack.c.l.b16 %v42
  %v142 = vunpack.c.l.b16 %v43
  %v143 = vunpack.c.l.b16 %v44
  %v144 = vunpack.c.l.b16 %v45
  %v145 = vunpack.c.l.b16 %v46
  %v146 = vunpack.c.l.b16 %v47
  %v147 = vunpack.c.l.b16 %v48
  %v148 = vunpack.c.l.b16 %v49
  %v149 = vpack.c.b16 %v118, %v117
  %v150 = vpack.c.b16 %v120, %v119
  %v151 = vpack.c.b16 %v122, %v121
  %v152 = vpack.c.b16 %v124, %v123
  %v153 = vpack.c.b16 %v126, %v125
  %v154 = vpack.c.b16 %v128, %v127
  %v155 = vpack.c.b16 %v130, %v129
  %v156 = vpack.c.b16 %v132, %v131
  %v157 = vpack.c.b16 %v134, %v133
  %v158 = vpack.c.b16 %v136, %v135
  %v159 = vpack.c.b16 %v138, %v137
  %v160 = vpack.c.b16 %v140, %v139
  %v161 = vpack.c.b16 %v142, %v141
  %v162 = vpack.c.b16 %v144, %v143
  %v163 = vpack.c.b16 %v146, %v145
  %v164 = vpack.c.b16 %v148, %v147
  %181 = vmatprep.subr.bf16.mxu0 0
  %182 = vmatpush1.bf16.msra.mxu0 %v149
  %183 = vmatprep.subr.bf16.mxu0 0
  %184 = vmatpush1.bf16.msra.mxu0 %v150
  %185 = vmatprep.subr.bf16.mxu0 0
  %186 = vmatpush1.bf16.msra.mxu0 %v151
  %187 = vmatprep.subr.bf16.mxu0 0
  %188 = vmatpush1.bf16.msra.mxu0 %v152
  %189 = vmatprep.subr.bf16.mxu0 0
  %190 = vmatpush1.bf16.msra.mxu0 %v153
  %191 = vmatprep.subr.bf16.mxu0 0
  %192 = vmatpush1.bf16.msra.mxu0 %v154
  %193 = vmatprep.subr.bf16.mxu0 0
  %194 = vmatpush1.bf16.msra.mxu0 %v155
  %195 = vmatprep.subr.bf16.mxu0 0
  %196 = vmatpush1.bf16.msra.mxu0 %v156
  %197 = vmatprep.subr.bf16.mxu0 0
  %198 = vmatpush1.bf16.msra.mxu0 %v157
  %199 = vmatprep.subr.bf16.mxu0 0
  %200 = vmatpush1.bf16.msra.mxu0 %v158
  %201 = vmatprep.subr.bf16.mxu0 0
  %202 = vmatpush1.bf16.msra.mxu0 %v159
  %203 = vmatprep.subr.bf16.mxu0 0
  %204 = vmatpush1.bf16.msra.mxu0 %v160
  %205 = vmatprep.subr.bf16.mxu0 0
  %206 = vmatpush1.bf16.msra.mxu0 %v161
  %207 = vmatprep.subr.bf16.mxu0 0
  %208 = vmatpush1.bf16.msra.mxu0 %v162
  %209 = vmatprep.subr.bf16.mxu0 0
  %210 = vmatpush1.bf16.msra.mxu0 %v163
  %211 = vmatprep.subr.bf16.mxu0 0
  %212 = vmatpush1.bf16.msra.mxu0 %v164
  %213 = vmatprep.mubr.bf16.mxu0 %v78
  %214 = vmatmul.mubr.bf16.gmra.mrb[0].mxu0 %v77
  %v215 = vpop.f32.mrb[0].mxu0
  %v216 = vadd.f32 %v56, %v215
  %v217 = vpop.f32.mrb[0].mxu0
  %v218 = vpop.f32.mrb[0].mxu0
  %v219 = vadd.f32 %v61, %v218
  %v220 = vpop.f32.mrb[0].mxu0
  %221 = vmatprep.mubr.bf16.mxu0 %v80
  %222 = vmatmul.mubr.bf16.gmra.mrb[0].mxu0 %v79
  %v223 = vpop.f32.mrb[0].mxu0
  %v224 = vadd.f32 %v66, %v223
  %v225 = vpop.f32.mrb[0].mxu0
  %v226 = vpop.f32.mrb[0].mxu0
  %v227 = vpop.f32.mrb[0].mxu0
  %228 = vdwg.mxu0
  %vm229 = vcmp.ge.f32.partialorder %v216, 0.0
  %vm230 = vcmp.ge.f32.partialorder %v219, 0.0
  %vm231 = vcmp.ge.f32.partialorder %v224, 0.0
  %v232 = vmul.f32 %v216, 0.2
  %v233 = vmul.f32 %v219, 0.2
  %v234 = vmul.f32 %v224, 0.2
  %v235 = vsel %vm229, %v216, %v232
  %v236 = vsel %vm230, %v219, %v233
  %v237 = vsel %vm231, %v224, %v234
  %v238 = vpack.c.bf16 %v236, %v235
  %v239 = vpack.c.bf16 %v237, %v237
  %v242 = vunpack.c.l.b16 %v238
  %v243 = vunpack.c.h.b16 %v238
  %v244 = vunpack.c.l.b16 %v239
  %v245 = vpack.c.b16 %v242, %v242
  %v246 = vpack.c.b16 %v243, %v243
  %v247 = vpack.c.b16 %v244, %v244
  %vm251 = vcmask 60416
  %252 = vst.msk [vmem:[%s3] sm:$0xf] %vm251, %v245
  %253 = vst.msk [vmem:[%s3 + $0x4] sm:$0xf] %vm251, %v246
  %254 = vst.msk [vmem:[%s3 + $0x8] sm:$0xf] %vm251, %v247
  // Predicated region
  $region14: #{feature_extractor_forward.28} parent=0 // pred_check
    _
  $region15: #{feature_extractor_forward.28} parent=0 // pred_check_branch
    %256 = sbr.rel (0) target = $region17
  $region16: #{feature_extractor_forward.28} parent=0 // pred_region
    _
  $region17: #{feature_extractor_forward.28} parent=0 // pred_fallthru
    _
  // Predicated region
  $region18: #{feature_extractor_forward.28} parent=0 // pred_check
    _
  $region19: #{feature_extractor_forward.28} parent=0 // pred_check_branch
    %258 = sbr.rel (0) target = $region21
  $region20: #{feature_extractor_forward.28} parent=0 // pred_region
    _
  $region21: #{feature_extractor_forward.28} parent=0 // pred_fallthru
    _

// kernel: feature_extractor_forward.29
$region0: #{feature_extractor_forward.29}
  #allocation0 [shape = 'u32[]', space=smem, size = 0x4, offset = 0x4, fixed_abs, tag = 'smem constant byte address 0x4 - core index']
  #allocation1 [shape = 'u32[144,128]{1,0:T(1,128)}', space=vmem, size = 0x12000, scoped, tag = 'internal scratch']
  %s0 = inlined_call_operand.vmem [shape: bf16[216,8], index: 0, kind: input, shape index: {}]
  %s1 = inlined_call_operand.vmem [shape: bf16[24,216], index: 1, kind: input, shape index: {}]
  %s2 = inlined_call_operand.vmem [shape: f32[24,1], index: 2, kind: input, shape index: {}]
  %s3 = inlined_call_operand.vmem [shape: bf16[24,8], index: 3, kind: output, shape index: {}]
  %s4 = sld [smem:[#allocation0]]
  $region22: #{feature_extractor_forward.29} parent=0
    _
  %s6 = ssub.s32 1, %s4
  %s7 = scalar_select 0, %s6, %s4
  // Predicated region
  $region2: #{feature_extractor_forward.29} parent=0 // pred_check
    _
  $region3: #{feature_extractor_forward.29} parent=0 // pred_check_branch
    %9 = sbr.rel (0) target = $region5
  $region4: #{feature_extractor_forward.29} parent=0 // pred_region
    _
  $region5: #{feature_extractor_forward.29} parent=0 // pred_fallthru
    _
  // Predicated region
  $region6: #{feature_extractor_forward.29} parent=0 // pred_check
    _
  $region7: #{feature_extractor_forward.29} parent=0 // pred_check_branch
    %11 = sbr.rel (0) target = $region9
  $region8: #{feature_extractor_forward.29} parent=0 // pred_region
    _
  $region9: #{feature_extractor_forward.29} parent=0 // pred_fallthru
    _
  // Predicated region
  $region10: #{feature_extractor_forward.29} parent=0 // pred_check
    _
  $region11: #{feature_extractor_forward.29} parent=0 // pred_check_branch
    %13 = sbr.rel (0) target = $region13
  $region12: #{feature_extractor_forward.29} parent=0 // pred_region
    _
  $region13: #{feature_extractor_forward.29} parent=0 // pred_fallthru
    _
  %v15 = vld [vmem:[%s1] sm:$0xff]
  %v16 = vld [vmem:[%s1 + $0x8] sm:$0xff]
  %v17 = vld [vmem:[%s1 + $0x10] sm:$0xff]
  %v18 = vld [vmem:[%s0] sm:$0xf]
  %v19 = vld [vmem:[%s0 + $0x4] sm:$0xf]
  %v20 = vld [vmem:[%s0 + $0x8] sm:$0xf]
  %v21 = vld [vmem:[%s0 + $0xc] sm:$0xf]
  %v22 = vld [vmem:[%s0 + $0x10] sm:$0xf]
  %v23 = vld [vmem:[%s0 + $0x14] sm:$0xf]
  %v24 = vld [vmem:[%s0 + $0x18] sm:$0xf]
  %v25 = vld [vmem:[%s0 + $0x1c] sm:$0xf]
  %v26 = vld [vmem:[%s0 + $0x20] sm:$0xf]
  %v27 = vld [vmem:[%s0 + $0x24] sm:$0xf]
  %v28 = vld [vmem:[%s0 + $0x28] sm:$0xf]
  %v29 = vld [vmem:[%s0 + $0x2c] sm:$0xf]
  %v30 = vld [vmem:[%s0 + $0x30] sm:$0xf]
  %v31 = vld [vmem:[%s0 + $0x34] sm:$0xf]
  %v32 = vld [vmem:[%s0 + $0x38] sm:$0xf]
  %v33 = vld [vmem:[%s0 + $0x3c] sm:$0xf]
  %v34 = vld [vmem:[%s0 + $0x40] sm:$0xf]
  %v35 = vld [vmem:[%s0 + $0x44] sm:$0xf]
  %v36 = vld [vmem:[%s0 + $0x48] sm:$0xf]
  %v37 = vld [vmem:[%s0 + $0x4c] sm:$0xf]
  %v38 = vld [vmem:[%s0 + $0x50] sm:$0xf]
  %v39 = vld [vmem:[%s0 + $0x54] sm:$0xf]
  %v40 = vld [vmem:[%s0 + $0x58] sm:$0xf]
  %v41 = vld [vmem:[%s0 + $0x5c] sm:$0xf]
  %v42 = vld [vmem:[%s0 + $0x60] sm:$0xf]
  %v43 = vld [vmem:[%s0 + $0x64] sm:$0xf]
  %v44 = vld [vmem:[%s0 + $0x68] sm:$0xf]
  %v45 = vld [vmem:[%s2] sm:$0xff]
  %v46 = vld [vmem:[%s2 + $0x8] sm:$0xff]
  %v47 = vld [vmem:[%s2 + $0x10] sm:$0xff]
  %49 = vset.pattern.permute.xlu0 0
  %50 = vperm.xlu0 %49, %v45
  %v51 = vpop.permute.xlu0 %50
  %54 = vset.pattern.permute.xlu0 0
  %55 = vperm.xlu0 %54, %v46
  %v56 = vpop.permute.xlu0 %55
  %59 = vset.pattern.permute.xlu0 0
  %60 = vperm.xlu0 %59, %v47
  %v61 = vpop.permute.xlu0 %60
  %v66 = vunpack.c.l.b16 %v15
  %v67 = vunpack.c.h.b16 %v15
  %v68 = vunpack.c.l.b16 %v16
  %v69 = vunpack.c.h.b16 %v16
  %v70 = vunpack.c.l.b16 %v17
  %v71 = vunpack.c.h.b16 %v17
  %v72 = vpack.c.b16 %v68, %v66
  %v73 = vpack.c.b16 %v69, %v67
  %v74 = vpack.c.b16 %v70, %v70
  %v75 = vpack.c.b16 %v71, %v71
  %v105 = vunpack.c.l.b16 %v18
  %v106 = vunpack.c.l.b16 %v19
  %v107 = vunpack.c.l.b16 %v20
  %v108 = vunpack.c.l.b16 %v21
  %v109 = vunpack.c.l.b16 %v22
  %v110 = vunpack.c.l.b16 %v23
  %v111 = vunpack.c.l.b16 %v24
  %v112 = vunpack.c.l.b16 %v25
  %v113 = vunpack.c.l.b16 %v26
  %v114 = vunpack.c.l.b16 %v27
  %v115 = vunpack.c.l.b16 %v28
  %v116 = vunpack.c.l.b16 %v29
  %v117 = vunpack.c.l.b16 %v30
  %v118 = vunpack.c.l.b16 %v31
  %v119 = vunpack.c.l.b16 %v32
  %v120 = vunpack.c.l.b16 %v33
  %v121 = vunpack.c.l.b16 %v34
  %v122 = vunpack.c.l.b16 %v35
  %v123 = vunpack.c.l.b16 %v36
  %v124 = vunpack.c.l.b16 %v37
  %v125 = vunpack.c.l.b16 %v38
  %v126 = vunpack.c.l.b16 %v39
  %v127 = vunpack.c.l.b16 %v40
  %v128 = vunpack.c.l.b16 %v41
  %v129 = vunpack.c.l.b16 %v42
  %v130 = vunpack.c.l.b16 %v43
  %v131 = vunpack.c.l.b16 %v44
  %v132 = vpack.c.b16 %v106, %v105
  %v133 = vpack.c.b16 %v108, %v107
  %v134 = vpack.c.b16 %v110, %v109
  %v135 = vpack.c.b16 %v112, %v111
  %v136 = vpack.c.b16 %v114, %v113
  %v137 = vpack.c.b16 %v116, %v115
  %v138 = vpack.c.b16 %v118, %v117
  %v139 = vpack.c.b16 %v120, %v119
  %v140 = vpack.c.b16 %v122, %v121
  %v141 = vpack.c.b16 %v124, %v123
  %v142 = vpack.c.b16 %v126, %v125
  %v143 = vpack.c.b16 %v128, %v127
  %v144 = vpack.c.b16 %v130, %v129
  %v145 = vpack.c.b16 %v131, %v131
  %vm159 = vcmask 719872
  %v161 = vsel %vm159, %v73, 0
  %v164 = vsel %vm159, %v75, 0
  %vm166 = vcmask 1043456
  %v168 = vsel %vm166, %v145, 0
  %170 = vmatprep.subr.bf16.mxu0 0
  %171 = vmatpush1.bf16.msra.mxu0 %v132
  %172 = vmatprep.subr.bf16.mxu0 0
  %173 = vmatpush1.bf16.msra.mxu0 %v133
  %174 = vmatprep.subr.bf16.mxu0 0
  %175 = vmatpush1.bf16.msra.mxu0 %v134
  %176 = vmatprep.subr.bf16.mxu0 0
  %177 = vmatpush1.bf16.msra.mxu0 %v135
  %178 = vmatprep.subr.bf16.mxu0 0
  %179 = vmatpush1.bf16.msra.mxu0 %v136
  %180 = vmatprep.subr.bf16.mxu0 0
  %181 = vmatpush1.bf16.msra.mxu0 %v137
  %182 = vmatprep.subr.bf16.mxu0 0
  %183 = vmatpush1.bf16.msra.mxu0 %v138
  %184 = vmatprep.subr.bf16.mxu0 0
  %185 = vmatpush1.bf16.msra.mxu0 %v139
  %186 = vmatprep.subr.bf16.mxu0 0
  %187 = vmatpush1.bf16.msra.mxu0 %v140
  %188 = vmatprep.subr.bf16.mxu0 0
  %189 = vmatpush1.bf16.msra.mxu0 %v141
  %190 = vmatprep.subr.bf16.mxu0 0
  %191 = vmatpush1.bf16.msra.mxu0 %v142
  %192 = vmatprep.subr.bf16.mxu0 0
  %193 = vmatpush1.bf16.msra.mxu0 %v143
  %194 = vmatprep.subr.bf16.mxu0 0
  %195 = vmatpush1.bf16.msra.mxu0 %v144
  %196 = vmatprep.subr.bf16.mxu0 0
  %197 = vmatpush1.bf16.msra.mxu0 %v168
  %198 = vmatprep.subr.bf16.mxu0 0
  %199 = vmatpush1.bf16.msra.mxu0 0
  %200 = vmatprep.subr.bf16.mxu0 0
  %201 = vmatpush1.bf16.msra.mxu0 0
  %202 = vmatprep.mubr.bf16.mxu0 %v161
  %203 = vmatmul.mubr.bf16.gmra.mrb[0].mxu0 %v72
  %v204 = vpop.f32.mrb[0].mxu0
  %v205 = vadd.f32 %v51, %v204
  %v206 = vpop.f32.mrb[0].mxu0
  %v207 = vpop.f32.mrb[0].mxu0
  %v208 = vadd.f32 %v56, %v207
  %v209 = vpop.f32.mrb[0].mxu0
  %210 = vmatprep.mubr.bf16.mxu0 %v164
  %211 = vmatmul.mubr.bf16.gmra.mrb[0].mxu0 %v74
  %v212 = vpop.f32.mrb[0].mxu0
  %v213 = vadd.f32 %v61, %v212
  %v214 = vpop.f32.mrb[0].mxu0
  %v215 = vpop.f32.mrb[0].mxu0
  %v216 = vpop.f32.mrb[0].mxu0
  %217 = vdwg.mxu0
  %vm218 = vcmp.ge.f32.partialorder %v205, 0.0
  %vm219 = vcmp.ge.f32.partialorder %v208, 0.0
  %vm220 = vcmp.ge.f32.partialorder %v213, 0.0
  %v221 = vmul.f32 %v205, 0.2
  %v222 = vmul.f32 %v208, 0.2
  %v223 = vmul.f32 %v213, 0.2
  %v224 = vsel %vm218, %v205, %v221
  %v225 = vsel %vm219, %v208, %v222
  %v226 = vsel %vm220, %v213, %v223
  %v227 = vpack.c.bf16 %v225, %v224
  %v228 = vpack.c.bf16 %v226, %v226
  %v231 = vunpack.c.l.b16 %v227
  %v232 = vunpack.c.h.b16 %v227
  %v233 = vunpack.c.l.b16 %v228
  %v234 = vpack.c.b16 %v231, %v231
  %v235 = vpack.c.b16 %v232, %v232
  %v236 = vpack.c.b16 %v233, %v233
  %vm240 = vcmask 60416
  %241 = vst.msk [vmem:[%s3] sm:$0xf] %vm240, %v234
  %242 = vst.msk [vmem:[%s3 + $0x4] sm:$0xf] %vm240, %v235
  %243 = vst.msk [vmem:[%s3 + $0x8] sm:$0xf] %vm240, %v236
  // Predicated region
  $region14: #{feature_extractor_forward.29} parent=0 // pred_check
    _
  $region15: #{feature_extractor_forward.29} parent=0 // pred_check_branch
    %245 = sbr.rel (0) target = $region17
  $region16: #{feature_extractor_forward.29} parent=0 // pred_region
    _
  $region17: #{feature_extractor_forward.29} parent=0 // pred_fallthru
    _
  // Predicated region
  $region18: #{feature_extractor_forward.29} parent=0 // pred_check
    _
  $region19: #{feature_extractor_forward.29} parent=0 // pred_check_branch
    %247 = sbr.rel (0) target = $region21
  $region20: #{feature_extractor_forward.29} parent=0 // pred_region
    _
  $region21: #{feature_extractor_forward.29} parent=0 // pred_fallthru
    _

// kernel: feature_extractor_forward.30
$region0: #{feature_extractor_forward.30}
  #allocation0 [shape = 'u32[]', space=smem, size = 0x4, offset = 0x4, fixed_abs, tag = 'smem constant byte address 0x4 - core index']
  #allocation1 [shape = 'u32[144,128]{1,0:T(1,128)}', space=vmem, size = 0x12000, scoped, tag = 'internal scratch']
  %s0 = inlined_call_operand.vmem [shape: bf16[384,2], index: 0, kind: input, shape index: {}]
  %s1 = inlined_call_operand.vmem [shape: bf16[32,384], index: 1, kind: input, shape index: {}]
  %s2 = inlined_call_operand.vmem [shape: f32[32,1], index: 2, kind: input, shape index: {}]
  %s3 = inlined_call_operand.vmem [shape: bf16[32,2], index: 3, kind: output, shape index: {}]
  %s4 = sld [smem:[#allocation0]]
  $region22: #{feature_extractor_forward.30} parent=0
    _
  %s6 = ssub.s32 1, %s4
  %s7 = scalar_select 0, %s6, %s4
  // Predicated region
  $region2: #{feature_extractor_forward.30} parent=0 // pred_check
    _
  $region3: #{feature_extractor_forward.30} parent=0 // pred_check_branch
    %9 = sbr.rel (0) target = $region5
  $region4: #{feature_extractor_forward.30} parent=0 // pred_region
    _
  $region5: #{feature_extractor_forward.30} parent=0 // pred_fallthru
    _
  // Predicated region
  $region6: #{feature_extractor_forward.30} parent=0 // pred_check
    _
  $region7: #{feature_extractor_forward.30} parent=0 // pred_check_branch
    %11 = sbr.rel (0) target = $region9
  $region8: #{feature_extractor_forward.30} parent=0 // pred_region
    _
  $region9: #{feature_extractor_forward.30} parent=0 // pred_fallthru
    _
  // Predicated region
  $region10: #{feature_extractor_forward.30} parent=0 // pred_check
    _
  $region11: #{feature_extractor_forward.30} parent=0 // pred_check_branch
    %13 = sbr.rel (0) target = $region13
  $region12: #{feature_extractor_forward.30} parent=0 // pred_region
    _
  $region13: #{feature_extractor_forward.30} parent=0 // pred_fallthru
    _
  %v15 = vld [vmem:[%s1] sm:$0xff]
  %v16 = vld [vmem:[%s1 + $0x8] sm:$0xf]
  %v17 = vld [vmem:[%s1 + $0xc] sm:$0xff]
  %v18 = vld [vmem:[%s1 + $0x14] sm:$0xf]
  %v19 = vld [vmem:[%s1 + $0x18] sm:$0xff]
  %v20 = vld [vmem:[%s1 + $0x20] sm:$0xf]
  %v21 = vld [vmem:[%s1 + $0x24] sm:$0xff]
  %v22 = vld [vmem:[%s1 + $0x2c] sm:$0xf]
  %v23 = vld [vmem:[%s0] sm:$0xf]
  %v24 = vld [vmem:[%s0 + $0x4] sm:$0xf]
  %v25 = vld [vmem:[%s0 + $0x8] sm:$0xf]
  %v26 = vld [vmem:[%s0 + $0xc] sm:$0xf]
  %v27 = vld [vmem:[%s0 + $0x10] sm:$0xf]
  %v28 = vld [vmem:[%s0 + $0x14] sm:$0xf]
  %v29 = vld [vmem:[%s0 + $0x18] sm:$0xf]
  %v30 = vld [vmem:[%s0 + $0x1c] sm:$0xf]
  %v31 = vld [vmem:[%s0 + $0x20] sm:$0xf]
  %v32 = vld [vmem:[%s0 + $0x24] sm:$0xf]
  %v33 = vld [vmem:[%s0 + $0x28] sm:$0xf]
  %v34 = vld [vmem:[%s0 + $0x2c] sm:$0xf]
  %v35 = vld [vmem:[%s0 + $0x30] sm:$0xf]
  %v36 = vld [vmem:[%s0 + $0x34] sm:$0xf]
  %v37 = vld [vmem:[%s0 + $0x38] sm:$0xf]
  %v38 = vld [vmem:[%s0 + $0x3c] sm:$0xf]
  %v39 = vld [vmem:[%s0 + $0x40] sm:$0xf]
  %v40 = vld [vmem:[%s0 + $0x44] sm:$0xf]
  %v41 = vld [vmem:[%s0 + $0x48] sm:$0xf]
  %v42 = vld [vmem:[%s0 + $0x4c] sm:$0xf]
  %v43 = vld [vmem:[%s0 + $0x50] sm:$0xf]
  %v44 = vld [vmem:[%s0 + $0x54] sm:$0xf]
  %v45 = vld [vmem:[%s0 + $0x58] sm:$0xf]
  %v46 = vld [vmem:[%s0 + $0x5c] sm:$0xf]
  %v47 = vld [vmem:[%s0 + $0x60] sm:$0xf]
  %v48 = vld [vmem:[%s0 + $0x64] sm:$0xf]
  %v49 = vld [vmem:[%s0 + $0x68] sm:$0xf]
  %v50 = vld [vmem:[%s0 + $0x6c] sm:$0xf]
  %v51 = vld [vmem:[%s0 + $0x70] sm:$0xf]
  %v52 = vld [vmem:[%s0 + $0x74] sm:$0xf]
  %v53 = vld [vmem:[%s0 + $0x78] sm:$0xf]
  %v54 = vld [vmem:[%s0 + $0x7c] sm:$0xf]
  %v55 = vld [vmem:[%s0 + $0x80] sm:$0xf]
  %v56 = vld [vmem:[%s0 + $0x84] sm:$0xf]
  %v57 = vld [vmem:[%s0 + $0x88] sm:$0xf]
  %v58 = vld [vmem:[%s0 + $0x8c] sm:$0xf]
  %v59 = vld [vmem:[%s0 + $0x90] sm:$0xf]
  %v60 = vld [vmem:[%s0 + $0x94] sm:$0xf]
  %v61 = vld [vmem:[%s0 + $0x98] sm:$0xf]
  %v62 = vld [vmem:[%s0 + $0x9c] sm:$0xf]
  %v63 = vld [vmem:[%s0 + $0xa0] sm:$0xf]
  %v64 = vld [vmem:[%s0 + $0xa4] sm:$0xf]
  %v65 = vld [vmem:[%s0 + $0xa8] sm:$0xf]
  %v66 = vld [vmem:[%s0 + $0xac] sm:$0xf]
  %v67 = vld [vmem:[%s0 + $0xb0] sm:$0xf]
  %v68 = vld [vmem:[%s0 + $0xb4] sm:$0xf]
  %v69 = vld [vmem:[%s0 + $0xb8] sm:$0xf]
  %v70 = vld [vmem:[%s0 + $0xbc] sm:$0xf]
  %v71 = vld [vmem:[%s2] sm:$0xff]
  %v72 = vld [vmem:[%s2 + $0x8] sm:$0xff]
  %v73 = vld [vmem:[%s2 + $0x10] sm:$0xff]
  %v74 = vld [vmem:[%s2 + $0x18] sm:$0xff]
  %76 = vset.pattern.permute.xlu0 0
  %77 = vperm.xlu0 %76, %v71
  %v78 = vpop.permute.xlu0 %77
  %81 = vset.pattern.permute.xlu0 0
  %82 = vperm.xlu0 %81, %v72
  %v83 = vpop.permute.xlu0 %82
  %86 = vset.pattern.permute.xlu0 0
  %87 = vperm.xlu0 %86, %v73
  %v88 = vpop.permute.xlu0 %87
  %91 = vset.pattern.permute.xlu0 0
  %92 = vperm.xlu0 %91, %v74
  %v93 = vpop.permute.xlu0 %92
  %v103 = vunpack.c.l.b16 %v15
  %v104 = vunpack.c.h.b16 %v15
  %v105 = vunpack.c.l.b16 %v16
  %v106 = vunpack.c.l.b16 %v17
  %v107 = vunpack.c.h.b16 %v17
  %v108 = vunpack.c.l.b16 %v18
  %v109 = vunpack.c.l.b16 %v19
  %v110 = vunpack.c.h.b16 %v19
  %v111 = vunpack.c.l.b16 %v20
  %v112 = vunpack.c.l.b16 %v21
  %v113 = vunpack.c.h.b16 %v21
  %v114 = vunpack.c.l.b16 %v22
  %v115 = vpack.c.b16 %v106, %v103
  %v116 = vpack.c.b16 %v107, %v104
  %v117 = vpack.c.b16 %v108, %v105
  %v118 = vpack.c.b16 %v112, %v109
  %v119 = vpack.c.b16 %v113, %v110
  %v120 = vpack.c.b16 %v114, %v111
  %v175 = vunpack.c.l.b16 %v23
  %v176 = vunpack.c.l.b16 %v24
  %v177 = vunpack.c.l.b16 %v25
  %v178 = vunpack.c.l.b16 %v26
  %v179 = vunpack.c.l.b16 %v27
  %v180 = vunpack.c.l.b16 %v28
  %v181 = vunpack.c.l.b16 %v29
  %v182 = vunpack.c.l.b16 %v30
  %v183 = vunpack.c.l.b16 %v31
  %v184 = vunpack.c.l.b16 %v32
  %v185 = vunpack.c.l.b16 %v33
  %v186 = vunpack.c.l.b16 %v34
  %v187 = vunpack.c.l.b16 %v35
  %v188 = vunpack.c.l.b16 %v36
  %v189 = vunpack.c.l.b16 %v37
  %v190 = vunpack.c.l.b16 %v38
  %v191 = vunpack.c.l.b16 %v39
  %v192 = vunpack.c.l.b16 %v40
  %v193 = vunpack.c.l.b16 %v41
  %v194 = vunpack.c.l.b16 %v42
  %v195 = vunpack.c.l.b16 %v43
  %v196 = vunpack.c.l.b16 %v44
  %v197 = vunpack.c.l.b16 %v45
  %v198 = vunpack.c.l.b16 %v46
  %v199 = vunpack.c.l.b16 %v47
  %v200 = vunpack.c.l.b16 %v48
  %v201 = vunpack.c.l.b16 %v49
  %v202 = vunpack.c.l.b16 %v50
  %v203 = vunpack.c.l.b16 %v51
  %v204 = vunpack.c.l.b16 %v52
  %v205 = vunpack.c.l.b16 %v53
  %v206 = vunpack.c.l.b16 %v54
  %v207 = vunpack.c.l.b16 %v55
  %v208 = vunpack.c.l.b16 %v56
  %v209 = vunpack.c.l.b16 %v57
  %v210 = vunpack.c.l.b16 %v58
  %v211 = vunpack.c.l.b16 %v59
  %v212 = vunpack.c.l.b16 %v60
  %v213 = vunpack.c.l.b16 %v61
  %v214 = vunpack.c.l.b16 %v62
  %v215 = vunpack.c.l.b16 %v63
  %v216 = vunpack.c.l.b16 %v64
  %v217 = vunpack.c.l.b16 %v65
  %v218 = vunpack.c.l.b16 %v66
  %v219 = vunpack.c.l.b16 %v67
  %v220 = vunpack.c.l.b16 %v68
  %v221 = vunpack.c.l.b16 %v69
  %v222 = vunpack.c.l.b16 %v70
  %v223 = vpack.c.b16 %v176, %v175
  %v224 = vpack.c.b16 %v178, %v177
  %v225 = vpack.c.b16 %v180, %v179
  %v226 = vpack.c.b16 %v182, %v181
  %v227 = vpack.c.b16 %v184, %v183
  %v228 = vpack.c.b16 %v186, %v185
  %v229 = vpack.c.b16 %v188, %v187
  %v230 = vpack.c.b16 %v190, %v189
  %v231 = vpack.c.b16 %v192, %v191
  %v232 = vpack.c.b16 %v194, %v193
  %v233 = vpack.c.b16 %v196, %v195
  %v234 = vpack.c.b16 %v198, %v197
  %v235 = vpack.c.b16 %v200, %v199
  %v236 = vpack.c.b16 %v202, %v201
  %v237 = vpack.c.b16 %v204, %v203
  %v238 = vpack.c.b16 %v206, %v205
  %v239 = vpack.c.b16 %v208, %v207
  %v240 = vpack.c.b16 %v210, %v209
  %v241 = vpack.c.b16 %v212, %v211
  %v242 = vpack.c.b16 %v214, %v213
  %v243 = vpack.c.b16 %v216, %v215
  %v244 = vpack.c.b16 %v218, %v217
  %v245 = vpack.c.b16 %v220, %v219
  %v246 = vpack.c.b16 %v222, %v221
  %271 = vmatprep.subr.bf16.mxu0 0
  %272 = vmatpush1.bf16.msra.mxu0 %v223
  %273 = vmatprep.subr.bf16.mxu0 0
  %274 = vmatpush1.bf16.msra.mxu0 %v224
  %275 = vmatprep.subr.bf16.mxu0 0
  %276 = vmatpush1.bf16.msra.mxu0 %v225
  %277 = vmatprep.subr.bf16.mxu0 0
  %278 = vmatpush1.bf16.msra.mxu0 %v226
  %279 = vmatprep.subr.bf16.mxu0 0
  %280 = vmatpush1.bf16.msra.mxu0 %v227
  %281 = vmatprep.subr.bf16.mxu0 0
  %282 = vmatpush1.bf16.msra.mxu0 %v228
  %283 = vmatprep.subr.bf16.mxu0 0
  %284 = vmatpush1.bf16.msra.mxu0 %v229
  %285 = vmatprep.subr.bf16.mxu0 0
  %286 = vmatpush1.bf16.msra.mxu0 %v230
  %287 = vmatprep.subr.bf16.mxu0 0
  %288 = vmatpush1.bf16.msra.mxu0 %v231
  %289 = vmatprep.subr.bf16.mxu0 0
  %290 = vmatpush1.bf16.msra.mxu0 %v232
  %291 = vmatprep.subr.bf16.mxu0 0
  %292 = vmatpush1.bf16.msra.mxu0 %v233
  %293 = vmatprep.subr.bf16.mxu0 0
  %294 = vmatpush1.bf16.msra.mxu0 %v234
  %295 = vmatprep.subr.bf16.mxu0 0
  %296 = vmatpush1.bf16.msra.mxu0 %v235
  %297 = vmatprep.subr.bf16.mxu0 0
  %298 = vmatpush1.bf16.msra.mxu0 %v236
  %299 = vmatprep.subr.bf16.mxu0 0
  %300 = vmatpush1.bf16.msra.mxu0 %v237
  %301 = vmatprep.subr.bf16.mxu0 0
  %302 = vmatpush1.bf16.msra.mxu0 %v238
  %303 = vmatprep.mubr.bf16.mxu0 %v116
  %304 = vmatmul.mubr.bf16.gmra.mrb[0].mxu0 %v115
  %v305 = vpop.f32.mrb[0].mxu0
  %v306 = vadd.f32 %v78, %v305
  %v307 = vpop.f32.mrb[0].mxu0
  %v308 = vpop.f32.mrb[0].mxu0
  %v309 = vadd.f32 %v83, %v308
  %v310 = vpop.f32.mrb[0].mxu0
  %311 = vmatprep.mubr.bf16.mxu0 %v119
  %312 = vmatmul.mubr.bf16.gmra.mrb[0].mxu0 %v118
  %v313 = vpop.f32.mrb[0].mxu0
  %v314 = vadd.f32 %v88, %v313
  %v315 = vpop.f32.mrb[0].mxu0
  %v316 = vpop.f32.mrb[0].mxu0
  %v317 = vadd.f32 %v93, %v316
  %v318 = vpop.f32.mrb[0].mxu0
  %319 = vdwg.mxu0
  %320 = vmatprep.subr.bf16.mxu0 0
  %321 = vmatpush1.bf16.msra.mxu0 %v239
  %322 = vmatprep.subr.bf16.mxu0 0
  %323 = vmatpush1.bf16.msra.mxu0 %v240
  %324 = vmatprep.subr.bf16.mxu0 0
  %325 = vmatpush1.bf16.msra.mxu0 %v241
  %326 = vmatprep.subr.bf16.mxu0 0
  %327 = vmatpush1.bf16.msra.mxu0 %v242
  %328 = vmatprep.subr.bf16.mxu0 0
  %329 = vmatpush1.bf16.msra.mxu0 %v243
  %330 = vmatprep.subr.bf16.mxu0 0
  %331 = vmatpush1.bf16.msra.mxu0 %v244
  %332 = vmatprep.subr.bf16.mxu0 0
  %333 = vmatpush1.bf16.msra.mxu0 %v245
  %334 = vmatprep.subr.bf16.mxu0 0
  %335 = vmatpush1.bf16.msra.mxu0 %v246
  %336 = vmatprep.subr.bf16.mxu0 0
  %337 = vmatpush1.bf16.msra.mxu0 0
  %338 = vmatprep.subr.bf16.mxu0 0
  %339 = vmatpush1.bf16.msra.mxu0 0
  %340 = vmatprep.subr.bf16.mxu0 0
  %341 = vmatpush1.bf16.msra.mxu0 0
  %342 = vmatprep.subr.bf16.mxu0 0
  %343 = vmatpush1.bf16.msra.mxu0 0
  %344 = vmatprep.subr.bf16.mxu0 0
  %345 = vmatpush1.bf16.msra.mxu0 0
  %346 = vmatprep.subr.bf16.mxu0 0
  %347 = vmatpush1.bf16.msra.mxu0 0
  %348 = vmatprep.subr.bf16.mxu0 0
  %349 = vmatpush1.bf16.msra.mxu0 0
  %350 = vmatprep.subr.bf16.mxu0 0
  %351 = vmatpush1.bf16.msra.mxu0 0
  %352 = vmatprep.mubr.bf16.mxu0 0
  %353 = vmatmul.mubr.bf16.gmra.mrb[0].mxu0 %v117
  %v354 = vpop.f32.mrb[0].mxu0
  %v355 = vadd.f32 %v306, %v354
  %v356 = vpop.f32.mrb[0].mxu0
  %v357 = vpop.f32.mrb[0].mxu0
  %v358 = vadd.f32 %v309, %v357
  %v359 = vpop.f32.mrb[0].mxu0
  %360 = vmatprep.mubr.bf16.mxu0 0
  %361 = vmatmul.mubr.bf16.gmra.mrb[0].mxu0 %v120
  %v362 = vpop.f32.mrb[0].mxu0
  %v363 = vadd.f32 %v314, %v362
  %v364 = vpop.f32.mrb[0].mxu0
  %v365 = vpop.f32.mrb[0].mxu0
  %v366 = vadd.f32 %v317, %v365
  %v367 = vpop.f32.mrb[0].mxu0
  %368 = vdwg.mxu0
  %vm369 = vcmp.ge.f32.partialorder %v355, 0.0
  %vm370 = vcmp.ge.f32.partialorder %v358, 0.0
  %vm371 = vcmp.ge.f32.partialorder %v363, 0.0
  %vm372 = vcmp.ge.f32.partialorder %v366, 0.0
  %v373 = vmul.f32 %v355, 0.2
  %v374 = vmul.f32 %v358, 0.2
  %v375 = vmul.f32 %v363, 0.2
  %v376 = vmul.f32 %v366, 0.2
  %v377 = vsel %vm369, %v355, %v373
  %v378 = vsel %vm370, %v358, %v374
  %v379 = vsel %vm371, %v363, %v375
  %v380 = vsel %vm372, %v366, %v376
  %v381 = vpack.c.bf16 %v378, %v377
  %v382 = vpack.c.bf16 %v380, %v379
  %v385 = vunpack.c.l.b16 %v381
  %v386 = vunpack.c.h.b16 %v381
  %v387 = vunpack.c.l.b16 %v382
  %v388 = vunpack.c.h.b16 %v382
  %v389 = vpack.c.b16 %v385, %v385
  %v390 = vpack.c.b16 %v386, %v386
  %v391 = vpack.c.b16 %v387, %v387
  %v392 = vpack.c.b16 %v388, %v388
  %vm397 = vcmask 11264
  %398 = vst.msk [vmem:[%s3] sm:$0xf] %vm397, %v389
  %399 = vst.msk [vmem:[%s3 + $0x4] sm:$0xf] %vm397, %v390
  %400 = vst.msk [vmem:[%s3 + $0x8] sm:$0xf] %vm397, %v391
  %401 = vst.msk [vmem:[%s3 + $0xc] sm:$0xf] %vm397, %v392
  // Predicated region
  $region14: #{feature_extractor_forward.30} parent=0 // pred_check
    _
  $region15: #{feature_extractor_forward.30} parent=0 // pred_check_branch
    %403 = sbr.rel (0) target = $region17
  $region16: #{feature_extractor_forward.30} parent=0 // pred_region
    _
  $region17: #{feature_extractor_forward.30} parent=0 // pred_fallthru
    _
  // Predicated region
  $region18: #{feature_extractor_forward.30} parent=0 // pred_check
    _
  $region19: #{feature_extractor_forward.30} parent=0 // pred_check_branch
    %405 = sbr.rel (0) target = $region21
  $region20: #{feature_extractor_forward.30} parent=0 // pred_region
    _
  $region21: #{feature_extractor_forward.30} parent=0 // pred_fallthru
    _

// kernel: feature_extractor_forward.31
$region0: #{feature_extractor_forward.31}
  #allocation0 [shape = 'u32[]', space=smem, size = 0x4, offset = 0x4, fixed_abs, tag = 'smem constant byte address 0x4 - core index']
  #allocation1 [shape = 'u32[144,128]{1,0:T(1,128)}', space=vmem, size = 0x12000, scoped, tag = 'internal scratch']
  %s0 = inlined_call_operand.vmem [shape: bf16[288,2], index: 0, kind: input, shape index: {}]
  %s1 = inlined_call_operand.vmem [shape: bf16[32,288], index: 1, kind: input, shape index: {}]
  %s2 = inlined_call_operand.vmem [shape: f32[32,1], index: 2, kind: input, shape index: {}]
  %s3 = inlined_call_operand.vmem [shape: bf16[32,2], index: 3, kind: output, shape index: {}]
  %s4 = sld [smem:[#allocation0]]
  $region22: #{feature_extractor_forward.31} parent=0
    _
  %s6 = ssub.s32 1, %s4
  %s7 = scalar_select 0, %s6, %s4
  // Predicated region
  $region2: #{feature_extractor_forward.31} parent=0 // pred_check
    _
  $region3: #{feature_extractor_forward.31} parent=0 // pred_check_branch
    %9 = sbr.rel (0) target = $region5
  $region4: #{feature_extractor_forward.31} parent=0 // pred_region
    _
  $region5: #{feature_extractor_forward.31} parent=0 // pred_fallthru
    _
  // Predicated region
  $region6: #{feature_extractor_forward.31} parent=0 // pred_check
    _
  $region7: #{feature_extractor_forward.31} parent=0 // pred_check_branch
    %11 = sbr.rel (0) target = $region9
  $region8: #{feature_extractor_forward.31} parent=0 // pred_region
    _
  $region9: #{feature_extractor_forward.31} parent=0 // pred_fallthru
    _
  // Predicated region
  $region10: #{feature_extractor_forward.31} parent=0 // pred_check
    _
  $region11: #{feature_extractor_forward.31} parent=0 // pred_check_branch
    %13 = sbr.rel (0) target = $region13
  $region12: #{feature_extractor_forward.31} parent=0 // pred_region
    _
  $region13: #{feature_extractor_forward.31} parent=0 // pred_fallthru
    _
  %v15 = vld [vmem:[%s1] sm:$0xff]
  %v16 = vld [vmem:[%s1 + $0x8] sm:$0xf]
  %v17 = vld [vmem:[%s1 + $0xc] sm:$0xff]
  %v18 = vld [vmem:[%s1 + $0x14] sm:$0xf]
  %v19 = vld [vmem:[%s1 + $0x18] sm:$0xff]
  %v20 = vld [vmem:[%s1 + $0x20] sm:$0xf]
  %v21 = vld [vmem:[%s1 + $0x24] sm:$0xff]
  %v22 = vld [vmem:[%s1 + $0x2c] sm:$0xf]
  %v23 = vld [vmem:[%s0] sm:$0xf]
  %v24 = vld [vmem:[%s0 + $0x4] sm:$0xf]
  %v25 = vld [vmem:[%s0 + $0x8] sm:$0xf]
  %v26 = vld [vmem:[%s0 + $0xc] sm:$0xf]
  %v27 = vld [vmem:[%s0 + $0x10] sm:$0xf]
  %v28 = vld [vmem:[%s0 + $0x14] sm:$0xf]
  %v29 = vld [vmem:[%s0 + $0x18] sm:$0xf]
  %v30 = vld [vmem:[%s0 + $0x1c] sm:$0xf]
  %v31 = vld [vmem:[%s0 + $0x20] sm:$0xf]
  %v32 = vld [vmem:[%s0 + $0x24] sm:$0xf]
  %v33 = vld [vmem:[%s0 + $0x28] sm:$0xf]
  %v34 = vld [vmem:[%s0 + $0x2c] sm:$0xf]
  %v35 = vld [vmem:[%s0 + $0x30] sm:$0xf]
  %v36 = vld [vmem:[%s0 + $0x34] sm:$0xf]
  %v37 = vld [vmem:[%s0 + $0x38] sm:$0xf]
  %v38 = vld [vmem:[%s0 + $0x3c] sm:$0xf]
  %v39 = vld [vmem:[%s0 + $0x40] sm:$0xf]
  %v40 = vld [vmem:[%s0 + $0x44] sm:$0xf]
  %v41 = vld [vmem:[%s0 + $0x48] sm:$0xf]
  %v42 = vld [vmem:[%s0 + $0x4c] sm:$0xf]
  %v43 = vld [vmem:[%s0 + $0x50] sm:$0xf]
  %v44 = vld [vmem:[%s0 + $0x54] sm:$0xf]
  %v45 = vld [vmem:[%s0 + $0x58] sm:$0xf]
  %v46 = vld [vmem:[%s0 + $0x5c] sm:$0xf]
  %v47 = vld [vmem:[%s0 + $0x60] sm:$0xf]
  %v48 = vld [vmem:[%s0 + $0x64] sm:$0xf]
  %v49 = vld [vmem:[%s0 + $0x68] sm:$0xf]
  %v50 = vld [vmem:[%s0 + $0x6c] sm:$0xf]
  %v51 = vld [vmem:[%s0 + $0x70] sm:$0xf]
  %v52 = vld [vmem:[%s0 + $0x74] sm:$0xf]
  %v53 = vld [vmem:[%s0 + $0x78] sm:$0xf]
  %v54 = vld [vmem:[%s0 + $0x7c] sm:$0xf]
  %v55 = vld [vmem:[%s0 + $0x80] sm:$0xf]
  %v56 = vld [vmem:[%s0 + $0x84] sm:$0xf]
  %v57 = vld [vmem:[%s0 + $0x88] sm:$0xf]
  %v58 = vld [vmem:[%s0 + $0x8c] sm:$0xf]
  %v59 = vld [vmem:[%s2] sm:$0xff]
  %v60 = vld [vmem:[%s2 + $0x8] sm:$0xff]
  %v61 = vld [vmem:[%s2 + $0x10] sm:$0xff]
  %v62 = vld [vmem:[%s2 + $0x18] sm:$0xff]
  %64 = vset.pattern.permute.xlu0 0
  %65 = vperm.xlu0 %64, %v59
  %v66 = vpop.permute.xlu0 %65
  %69 = vset.pattern.permute.xlu0 0
  %70 = vperm.xlu0 %69, %v60
  %v71 = vpop.permute.xlu0 %70
  %74 = vset.pattern.permute.xlu0 0
  %75 = vperm.xlu0 %74, %v61
  %v76 = vpop.permute.xlu0 %75
  %79 = vset.pattern.permute.xlu0 0
  %80 = vperm.xlu0 %79, %v62
  %v81 = vpop.permute.xlu0 %80
  %v91 = vunpack.c.l.b16 %v15
  %v92 = vunpack.c.h.b16 %v15
  %v93 = vunpack.c.l.b16 %v16
  %v94 = vunpack.c.l.b16 %v17
  %v95 = vunpack.c.h.b16 %v17
  %v96 = vunpack.c.l.b16 %v18
  %v97 = vunpack.c.l.b16 %v19
  %v98 = vunpack.c.h.b16 %v19
  %v99 = vunpack.c.l.b16 %v20
  %v100 = vunpack.c.l.b16 %v21
  %v101 = vunpack.c.h.b16 %v21
  %v102 = vunpack.c.l.b16 %v22
  %v103 = vpack.c.b16 %v94, %v91
  %v104 = vpack.c.b16 %v95, %v92
  %v105 = vpack.c.b16 %v96, %v93
  %v106 = vpack.c.b16 %v100, %v97
  %v107 = vpack.c.b16 %v101, %v98
  %v108 = vpack.c.b16 %v102, %v99
  %v149 = vunpack.c.l.b16 %v23
  %v150 = vunpack.c.l.b16 %v24
  %v151 = vunpack.c.l.b16 %v25
  %v152 = vunpack.c.l.b16 %v26
  %v153 = vunpack.c.l.b16 %v27
  %v154 = vunpack.c.l.b16 %v28
  %v155 = vunpack.c.l.b16 %v29
  %v156 = vunpack.c.l.b16 %v30
  %v157 = vunpack.c.l.b16 %v31
  %v158 = vunpack.c.l.b16 %v32
  %v159 = vunpack.c.l.b16 %v33
  %v160 = vunpack.c.l.b16 %v34
  %v161 = vunpack.c.l.b16 %v35
  %v162 = vunpack.c.l.b16 %v36
  %v163 = vunpack.c.l.b16 %v37
  %v164 = vunpack.c.l.b16 %v38
  %v165 = vunpack.c.l.b16 %v39
  %v166 = vunpack.c.l.b16 %v40
  %v167 = vunpack.c.l.b16 %v41
  %v168 = vunpack.c.l.b16 %v42
  %v169 = vunpack.c.l.b16 %v43
  %v170 = vunpack.c.l.b16 %v44
  %v171 = vunpack.c.l.b16 %v45
  %v172 = vunpack.c.l.b16 %v46
  %v173 = vunpack.c.l.b16 %v47
  %v174 = vunpack.c.l.b16 %v48
  %v175 = vunpack.c.l.b16 %v49
  %v176 = vunpack.c.l.b16 %v50
  %v177 = vunpack.c.l.b16 %v51
  %v178 = vunpack.c.l.b16 %v52
  %v179 = vunpack.c.l.b16 %v53
  %v180 = vunpack.c.l.b16 %v54
  %v181 = vunpack.c.l.b16 %v55
  %v182 = vunpack.c.l.b16 %v56
  %v183 = vunpack.c.l.b16 %v57
  %v184 = vunpack.c.l.b16 %v58
  %v185 = vpack.c.b16 %v150, %v149
  %v186 = vpack.c.b16 %v152, %v151
  %v187 = vpack.c.b16 %v154, %v153
  %v188 = vpack.c.b16 %v156, %v155
  %v189 = vpack.c.b16 %v158, %v157
  %v190 = vpack.c.b16 %v160, %v159
  %v191 = vpack.c.b16 %v162, %v161
  %v192 = vpack.c.b16 %v164, %v163
  %v193 = vpack.c.b16 %v166, %v165
  %v194 = vpack.c.b16 %v168, %v167
  %v195 = vpack.c.b16 %v170, %v169
  %v196 = vpack.c.b16 %v172, %v171
  %v197 = vpack.c.b16 %v174, %v173
  %v198 = vpack.c.b16 %v176, %v175
  %v199 = vpack.c.b16 %v178, %v177
  %v200 = vpack.c.b16 %v180, %v179
  %v201 = vpack.c.b16 %v182, %v181
  %v202 = vpack.c.b16 %v184, %v183
  %vm221 = vcmask 261120
  %v223 = vsel %vm221, %v105, 0
  %v226 = vsel %vm221, %v108, 0
  %228 = vmatprep.subr.bf16.mxu0 0
  %229 = vmatpush1.bf16.msra.mxu0 %v185
  %230 = vmatprep.subr.bf16.mxu0 0
  %231 = vmatpush1.bf16.msra.mxu0 %v186
  %232 = vmatprep.subr.bf16.mxu0 0
  %233 = vmatpush1.bf16.msra.mxu0 %v187
  %234 = vmatprep.subr.bf16.mxu0 0
  %235 = vmatpush1.bf16.msra.mxu0 %v188
  %236 = vmatprep.subr.bf16.mxu0 0
  %237 = vmatpush1.bf16.msra.mxu0 %v189
  %238 = vmatprep.subr.bf16.mxu0 0
  %239 = vmatpush1.bf16.msra.mxu0 %v190
  %240 = vmatprep.subr.bf16.mxu0 0
  %241 = vmatpush1.bf16.msra.mxu0 %v191
  %242 = vmatprep.subr.bf16.mxu0 0
  %243 = vmatpush1.bf16.msra.mxu0 %v192
  %244 = vmatprep.subr.bf16.mxu0 0
  %245 = vmatpush1.bf16.msra.mxu0 %v193
  %246 = vmatprep.subr.bf16.mxu0 0
  %247 = vmatpush1.bf16.msra.mxu0 %v194
  %248 = vmatprep.subr.bf16.mxu0 0
  %249 = vmatpush1.bf16.msra.mxu0 %v195
  %250 = vmatprep.subr.bf16.mxu0 0
  %251 = vmatpush1.bf16.msra.mxu0 %v196
  %252 = vmatprep.subr.bf16.mxu0 0
  %253 = vmatpush1.bf16.msra.mxu0 %v197
  %254 = vmatprep.subr.bf16.mxu0 0
  %255 = vmatpush1.bf16.msra.mxu0 %v198
  %256 = vmatprep.subr.bf16.mxu0 0
  %257 = vmatpush1.bf16.msra.mxu0 %v199
  %258 = vmatprep.subr.bf16.mxu0 0
  %259 = vmatpush1.bf16.msra.mxu0 %v200
  %260 = vmatprep.mubr.bf16.mxu0 %v104
  %261 = vmatmul.mubr.bf16.gmra.mrb[0].mxu0 %v103
  %v262 = vpop.f32.mrb[0].mxu0
  %v263 = vadd.f32 %v66, %v262
  %v264 = vpop.f32.mrb[0].mxu0
  %v265 = vpop.f32.mrb[0].mxu0
  %v266 = vadd.f32 %v71, %v265
  %v267 = vpop.f32.mrb[0].mxu0
  %268 = vmatprep.mubr.bf16.mxu0 %v107
  %269 = vmatmul.mubr.bf16.gmra.mrb[0].mxu0 %v106
  %v270 = vpop.f32.mrb[0].mxu0
  %v271 = vadd.f32 %v76, %v270
  %v272 = vpop.f32.mrb[0].mxu0
  %v273 = vpop.f32.mrb[0].mxu0
  %v274 = vadd.f32 %v81, %v273
  %v275 = vpop.f32.mrb[0].mxu0
  %276 = vdwg.mxu0
  %277 = vmatprep.subr.bf16.mxu0 0
  %278 = vmatpush1.bf16.msra.mxu0 %v201
  %279 = vmatprep.subr.bf16.mxu0 0
  %280 = vmatpush1.bf16.msra.mxu0 %v202
  %281 = vmatprep.subr.bf16.mxu0 0
  %282 = vmatpush1.bf16.msra.mxu0 0
  %283 = vmatprep.subr.bf16.mxu0 0
  %284 = vmatpush1.bf16.msra.mxu0 0
  %285 = vmatprep.subr.bf16.mxu0 0
  %286 = vmatpush1.bf16.msra.mxu0 0
  %287 = vmatprep.subr.bf16.mxu0 0
  %288 = vmatpush1.bf16.msra.mxu0 0
  %289 = vmatprep.subr.bf16.mxu0 0
  %290 = vmatpush1.bf16.msra.mxu0 0
  %291 = vmatprep.subr.bf16.mxu0 0
  %292 = vmatpush1.bf16.msra.mxu0 0
  %293 = vmatprep.subr.bf16.mxu0 0
  %294 = vmatpush1.bf16.msra.mxu0 0
  %295 = vmatprep.subr.bf16.mxu0 0
  %296 = vmatpush1.bf16.msra.mxu0 0
  %297 = vmatprep.subr.bf16.mxu0 0
  %298 = vmatpush1.bf16.msra.mxu0 0
  %299 = vmatprep.subr.bf16.mxu0 0
  %300 = vmatpush1.bf16.msra.mxu0 0
  %301 = vmatprep.subr.bf16.mxu0 0
  %302 = vmatpush1.bf16.msra.mxu0 0
  %303 = vmatprep.subr.bf16.mxu0 0
  %304 = vmatpush1.bf16.msra.mxu0 0
  %305 = vmatprep.subr.bf16.mxu0 0
  %306 = vmatpush1.bf16.msra.mxu0 0
  %307 = vmatprep.subr.bf16.mxu0 0
  %308 = vmatpush1.bf16.msra.mxu0 0
  %309 = vmatprep.mubr.bf16.mxu0 0
  %310 = vmatmul.mubr.bf16.gmra.mrb[0].mxu0 %v223
  %v311 = vpop.f32.mrb[0].mxu0
  %v312 = vadd.f32 %v263, %v311
  %v313 = vpop.f32.mrb[0].mxu0
  %v314 = vpop.f32.mrb[0].mxu0
  %v315 = vadd.f32 %v266, %v314
  %v316 = vpop.f32.mrb[0].mxu0
  %317 = vmatprep.mubr.bf16.mxu0 0
  %318 = vmatmul.mubr.bf16.gmra.mrb[0].mxu0 %v226
  %v319 = vpop.f32.mrb[0].mxu0
  %v320 = vadd.f32 %v271, %v319
  %v321 = vpop.f32.mrb[0].mxu0
  %v322 = vpop.f32.mrb[0].mxu0
  %v323 = vadd.f32 %v274, %v322
  %v324 = vpop.f32.mrb[0].mxu0
  %325 = vdwg.mxu0
  %vm326 = vcmp.ge.f32.partialorder %v312, 0.0
  %vm327 = vcmp.ge.f32.partialorder %v315, 0.0
  %vm328 = vcmp.ge.f32.partialorder %v320, 0.0
  %vm329 = vcmp.ge.f32.partialorder %v323, 0.0
  %v330 = vmul.f32 %v312, 0.2
  %v331 = vmul.f32 %v315, 0.2
  %v332 = vmul.f32 %v320, 0.2
  %v333 = vmul.f32 %v323, 0.2
  %v334 = vsel %vm326, %v312, %v330
  %v335 = vsel %vm327, %v315, %v331
  %v336 = vsel %vm328, %v320, %v332
  %v337 = vsel %vm329, %v323, %v333
  %v338 = vpack.c.bf16 %v335, %v334
  %v339 = vpack.c.bf16 %v337, %v336
  %v342 = vunpack.c.l.b16 %v338
  %v343 = vunpack.c.h.b16 %v338
  %v344 = vunpack.c.l.b16 %v339
  %v345 = vunpack.c.h.b16 %v339
  %v346 = vpack.c.b16 %v342, %v342
  %v347 = vpack.c.b16 %v343, %v343
  %v348 = vpack.c.b16 %v344, %v344
  %v349 = vpack.c.b16 %v345, %v345
  %vm354 = vcmask 11264
  %355 = vst.msk [vmem:[%s3] sm:$0xf] %vm354, %v346
  %356 = vst.msk [vmem:[%s3 + $0x4] sm:$0xf] %vm354, %v347
  %357 = vst.msk [vmem:[%s3 + $0x8] sm:$0xf] %vm354, %v348
  %358 = vst.msk [vmem:[%s3 + $0xc] sm:$0xf] %vm354, %v349
  // Predicated region
  $region14: #{feature_extractor_forward.31} parent=0 // pred_check
    _
  $region15: #{feature_extractor_forward.31} parent=0 // pred_check_branch
    %360 = sbr.rel (0) target = $region17
  $region16: #{feature_extractor_forward.31} parent=0 // pred_region
    _
  $region17: #{feature_extractor_forward.31} parent=0 // pred_fallthru
    _
  // Predicated region
  $region18: #{feature_extractor_forward.31} parent=0 // pred_check
    _
  $region19: #{feature_extractor_forward.31} parent=0 // pred_check_branch
    %362 = sbr.rel (0) target = $region21
  $region20: #{feature_extractor_forward.31} parent=0 // pred_region
    _
  $region21: #{feature_extractor_forward.31} parent=0 // pred_fallthru
    _

// kernel: feature_extractor_forward.34
$region0: #{feature_extractor_forward.34}
  #allocation0 [shape = 'u32[]', space=smem, size = 0x4, offset = 0x4, fixed_abs, tag = 'smem constant byte address 0x4 - core index']
  #allocation1 [shape = 'u32[144,128]{1,0:T(1,128)}', space=vmem, size = 0x12000, scoped, tag = 'internal scratch']
  %s0 = inlined_call_operand.vmem [shape: bf16[32,2], index: 0, kind: input, shape index: {}]
  %s1 = inlined_call_operand.vmem [shape: bf16[4,24,2], index: 1, kind: input, shape index: {}]
  %s2 = inlined_call_operand.vmem [shape: bf16[4,24,32], index: 2, kind: input, shape index: {}]
  %s3 = inlined_call_operand.vmem [shape: bf16[24,24], index: 3, kind: input, shape index: {}]
  %s4 = inlined_call_operand.vmem [shape: bf16[24,24], index: 4, kind: input, shape index: {}]
  %s5 = inlined_call_operand.vmem [shape: f32[24,1], index: 5, kind: input, shape index: {}]
  %s6 = inlined_call_operand.vmem [shape: f32[24,1], index: 6, kind: input, shape index: {}]
  %s7 = inlined_call_operand.vmem [shape: bf16[4,24,2], index: 7, kind: output, shape index: {}]
  %s8 = sld [smem:[#allocation0]]
  $region38: #{feature_extractor_forward.34} parent=0
    _
  %s10 = ssub.s32 1, %s8
  %s11 = scalar_select 0, %s10, %s8
  // Predicated region
  $region2: #{feature_extractor_forward.34} parent=0 // pred_check
    _
  $region3: #{feature_extractor_forward.34} parent=0 // pred_check_branch
    %13 = sbr.rel (0) target = $region5
  $region4: #{feature_extractor_forward.34} parent=0 // pred_region
    _
  $region5: #{feature_extractor_forward.34} parent=0 // pred_fallthru
    _
  // Predicated region
  $region6: #{feature_extractor_forward.34} parent=0 // pred_check
    _
  $region7: #{feature_extractor_forward.34} parent=0 // pred_check_branch
    %15 = sbr.rel (0) target = $region9
  $region8: #{feature_extractor_forward.34} parent=0 // pred_region
    _
  $region9: #{feature_extractor_forward.34} parent=0 // pred_fallthru
    _
  // Predicated region
  $region10: #{feature_extractor_forward.34} parent=0 // pred_check
    _
  $region11: #{feature_extractor_forward.34} parent=0 // pred_check_branch
    %17 = sbr.rel (0) target = $region13
  $region12: #{feature_extractor_forward.34} parent=0 // pred_region
    _
  $region13: #{feature_extractor_forward.34} parent=0 // pred_fallthru
    _
  // Predicated region
  $region14: #{feature_extractor_forward.34} parent=0 // pred_check
    _
  $region15: #{feature_extractor_forward.34} parent=0 // pred_check_branch
    %19 = sbr.rel (0) target = $region17
  $region16: #{feature_extractor_forward.34} parent=0 // pred_region
    _
  $region17: #{feature_extractor_forward.34} parent=0 // pred_fallthru
    _
  // Predicated region
  $region18: #{feature_extractor_forward.34} parent=0 // pred_check
    _
  $region19: #{feature_extractor_forward.34} parent=0 // pred_check_branch
    %21 = sbr.rel (0) target = $region21
  $region20: #{feature_extractor_forward.34} parent=0 // pred_region
    _
  $region21: #{feature_extractor_forward.34} parent=0 // pred_fallthru
    _
  // Predicated region
  $region22: #{feature_extractor_forward.34} parent=0 // pred_check
    _
  $region23: #{feature_extractor_forward.34} parent=0 // pred_check_branch
    %23 = sbr.rel (0) target = $region25
  $region24: #{feature_extractor_forward.34} parent=0 // pred_region
    _
  $region25: #{feature_extractor_forward.34} parent=0 // pred_fallthru
    _
  // Predicated region
  $region26: #{feature_extractor_forward.34} parent=0 // pred_check
    _
  $region27: #{feature_extractor_forward.34} parent=0 // pred_check_branch
    %25 = sbr.rel (0) target = $region29
  $region28: #{feature_extractor_forward.34} parent=0 // pred_region
    _
  $region29: #{feature_extractor_forward.34} parent=0 // pred_fallthru
    _
  %v27 = vld [vmem:[%s0] sm:$0xf]
  %v28 = vld [vmem:[%s0 + $0x4] sm:$0xf]
  %v29 = vld [vmem:[%s0 + $0x8] sm:$0xf]
  %v30 = vld [vmem:[%s0 + $0xc] sm:$0xf]
  %v31 = vld [vmem:[%s3] sm:$0xf]
  %v32 = vld [vmem:[%s3 + $0x4] sm:$0xf]
  %v33 = vld [vmem:[%s3 + $0x8] sm:$0xf]
  %v34 = vld [vmem:[%s4] sm:$0xf]
  %v35 = vld [vmem:[%s4 + $0x4] sm:$0xf]
  %v36 = vld [vmem:[%s4 + $0x8] sm:$0xf]
  %v37 = vld [vmem:[%s5] sm:$0xff]
  %v38 = vld [vmem:[%s5 + $0x8] sm:$0xff]
  %v39 = vld [vmem:[%s5 + $0x10] sm:$0xff]
  %v40 = vld [vmem:[%s6] sm:$0xff]
  %v41 = vld [vmem:[%s6 + $0x8] sm:$0xff]
  %v42 = vld [vmem:[%s6 + $0x10] sm:$0xff]
  %v43 = vld [vmem:[%s2] sm:$0xf]
  %v44 = vld [vmem:[%s2 + $0x4] sm:$0xf]
  %v45 = vld [vmem:[%s2 + $0x8] sm:$0xf]
  %47 = vset.pattern.permute.xlu0 0
  %48 = vperm.xlu0 %47, %v37
  %v49 = vpop.permute.xlu0 %48
  %52 = vset.pattern.permute.xlu0 0
  %53 = vperm.xlu0 %52, %v38
  %v54 = vpop.permute.xlu0 %53
  %57 = vset.pattern.permute.xlu0 0
  %58 = vperm.xlu0 %57, %v39
  %v59 = vpop.permute.xlu0 %58
  %v64 = vunpack.c.l.b16 %v43
  %v65 = vunpack.c.l.b16 %v44
  %v66 = vunpack.c.l.b16 %v45
  %v67 = vpack.c.b16 %v65, %v64
  %v68 = vpack.c.b16 %v66, %v66
  %v73 = vunpack.c.l.b16 %v27
  %v74 = vunpack.c.l.b16 %v28
  %v75 = vunpack.c.l.b16 %v29
  %v76 = vunpack.c.l.b16 %v30
  %v77 = vpack.c.b16 %v74, %v73
  %v78 = vpack.c.b16 %v76, %v75
  %vm81 = vcmask 261120
  %v83 = vsel %vm81, %v67, 0
  %v86 = vsel %vm81, %v68, 0
  %88 = vmatprep.subr.bf16.mxu0 0
  %89 = vmatpush1.bf16.msra.mxu0 %v77
  %90 = vmatprep.subr.bf16.mxu0 0
  %91 = vmatpush1.bf16.msra.mxu0 %v78
  %92 = vmatprep.subr.bf16.mxu0 0
  %93 = vmatpush1.bf16.msra.mxu0 0
  %94 = vmatprep.subr.bf16.mxu0 0
  %95 = vmatpush1.bf16.msra.mxu0 0
  %96 = vmatprep.subr.bf16.mxu0 0
  %97 = vmatpush1.bf16.msra.mxu0 0
  %98 = vmatprep.subr.bf16.mxu0 0
  %99 = vmatpush1.bf16.msra.mxu0 0
  %100 = vmatprep.subr.bf16.mxu0 0
  %101 = vmatpush1.bf16.msra.mxu0 0
  %102 = vmatprep.subr.bf16.mxu0 0
  %103 = vmatpush1.bf16.msra.mxu0 0
  %104 = vmatprep.subr.bf16.mxu0 0
  %105 = vmatpush1.bf16.msra.mxu0 0
  %106 = vmatprep.subr.bf16.mxu0 0
  %107 = vmatpush1.bf16.msra.mxu0 0
  %108 = vmatprep.subr.bf16.mxu0 0
  %109 = vmatpush1.bf16.msra.mxu0 0
  %110 = vmatprep.subr.bf16.mxu0 0
  %111 = vmatpush1.bf16.msra.mxu0 0
  %112 = vmatprep.subr.bf16.mxu0 0
  %113 = vmatpush1.bf16.msra.mxu0 0
  %114 = vmatprep.subr.bf16.mxu0 0
  %115 = vmatpush1.bf16.msra.mxu0 0
  %116 = vmatprep.subr.bf16.mxu0 0
  %117 = vmatpush1.bf16.msra.mxu0 0
  %118 = vmatprep.subr.bf16.mxu0 0
  %119 = vmatpush1.bf16.msra.mxu0 0
  %120 = vmatprep.mubr.bf16.mxu0 0
  %121 = vmatmul.mubr.bf16.gmra.mrb[0].mxu0 %v83
  %v122 = vpop.f32.mrb[0].mxu0
  %v123 = vadd.f32 %v49, %v122
  %v124 = vpop.f32.mrb[0].mxu0
  %v125 = vpop.f32.mrb[0].mxu0
  %v126 = vadd.f32 %v54, %v125
  %v127 = vpop.f32.mrb[0].mxu0
  %128 = vmatprep.mubr.bf16.mxu0 0
  %129 = vmatmul.mubr.bf16.gmra.mrb[0].mxu0 %v86
  %v130 = vpop.f32.mrb[0].mxu0
  %v131 = vadd.f32 %v59, %v130
  %v132 = vpop.f32.mrb[0].mxu0
  %v133 = vpop.f32.mrb[0].mxu0
  %v134 = vpop.f32.mrb[0].mxu0
  %135 = vdwg.mxu0
  %vm136 = vcmp.ge.f32.partialorder %v123, 0.0
  %vm137 = vcmp.ge.f32.partialorder %v126, 0.0
  %vm138 = vcmp.ge.f32.partialorder %v131, 0.0
  %v139 = vmul.f32 %v123, 0.2
  %v140 = vmul.f32 %v126, 0.2
  %v141 = vmul.f32 %v131, 0.2
  %v142 = vsel %vm136, %v123, %v139
  %v143 = vsel %vm137, %v126, %v140
  %v144 = vsel %vm138, %v131, %v141
  %v145 = vpack.c.bf16 %v143, %v142
  %v146 = vpack.c.bf16 %v144, %v144
  %v147 = vld [vmem:[%s1] sm:$0xf]
  %v148 = vld [vmem:[%s1 + $0x4] sm:$0xf]
  %v149 = vld [vmem:[%s1 + $0x8] sm:$0xf]
  %v153 = vunpack.c.l.b16 %v34
  %v154 = vunpack.c.l.b16 %v35
  %v155 = vunpack.c.l.b16 %v36
  %v156 = vpack.c.b16 %v154, %v153
  %v157 = vpack.c.b16 %v155, %v155
  %v161 = vunpack.c.l.b16 %v147
  %v162 = vunpack.c.l.b16 %v148
  %v163 = vunpack.c.l.b16 %v149
  %v164 = vpack.c.b16 %v162, %v161
  %v165 = vpack.c.b16 %v163, %v163
  %vm167 = vcmask 195584
  %v169 = vsel %vm167, %v156, 0
  %v172 = vsel %vm167, %v157, 0
  %vm174 = vcmask 1043456
  %v176 = vsel %vm174, %v165, 0
  %178 = vmatprep.subr.bf16.mxu0 0
  %179 = vmatpush1.bf16.msra.mxu0 %v164
  %180 = vmatprep.subr.bf16.mxu0 0
  %181 = vmatpush1.bf16.msra.mxu0 %v176
  %182 = vmatprep.subr.bf16.mxu0 0
  %183 = vmatpush1.bf16.msra.mxu0 0
  %184 = vmatprep.subr.bf16.mxu0 0
  %185 = vmatpush1.bf16.msra.mxu0 0
  %186 = vmatprep.subr.bf16.mxu0 0
  %187 = vmatpush1.bf16.msra.mxu0 0
  %188 = vmatprep.subr.bf16.mxu0 0
  %189 = vmatpush1.bf16.msra.mxu0 0
  %190 = vmatprep.subr.bf16.mxu0 0
  %191 = vmatpush1.bf16.msra.mxu0 0
  %192 = vmatprep.subr.bf16.mxu0 0
  %193 = vmatpush1.bf16.msra.mxu0 0
  %194 = vmatprep.subr.bf16.mxu0 0
  %195 = vmatpush1.bf16.msra.mxu0 0
  %196 = vmatprep.subr.bf16.mxu0 0
  %197 = vmatpush1.bf16.msra.mxu0 0
  %198 = vmatprep.subr.bf16.mxu0 0
  %199 = vmatpush1.bf16.msra.mxu0 0
  %200 = vmatprep.subr.bf16.mxu0 0
  %201 = vmatpush1.bf16.msra.mxu0 0
  %202 = vmatprep.subr.bf16.mxu0 0
  %203 = vmatpush1.bf16.msra.mxu0 0
  %204 = vmatprep.subr.bf16.mxu0 0
  %205 = vmatpush1.bf16.msra.mxu0 0
  %206 = vmatprep.subr.bf16.mxu0 0
  %207 = vmatpush1.bf16.msra.mxu0 0
  %208 = vmatprep.subr.bf16.mxu0 0
  %209 = vmatpush1.bf16.msra.mxu0 0
  %210 = vmatprep.mubr.bf16.mxu0 0
  %211 = vmatmul.mubr.bf16.gmra.mrb[0].mxu0 %v169
  %v212 = vpop.f32.mrb[0].mxu0
  %v213 = vadd.f32 0.0, %v212
  %v214 = vpop.f32.mrb[0].mxu0
  %v215 = vpop.f32.mrb[0].mxu0
  %v216 = vadd.f32 0.0, %v215
  %v217 = vpop.f32.mrb[0].mxu0
  %218 = vmatprep.mubr.bf16.mxu0 0
  %219 = vmatmul.mubr.bf16.gmra.mrb[0].mxu0 %v172
  %v220 = vpop.f32.mrb[0].mxu0
  %v221 = vadd.f32 0.0, %v220
  %v222 = vpop.f32.mrb[0].mxu0
  %v223 = vpop.f32.mrb[0].mxu0
  %v224 = vpop.f32.mrb[0].mxu0
  %225 = vdwg.mxu0
  %v229 = vunpack.c.l.b16 %v31
  %v230 = vunpack.c.l.b16 %v32
  %v231 = vunpack.c.l.b16 %v33
  %v232 = vpack.c.b16 %v230, %v229
  %v233 = vpack.c.b16 %v231, %v231
  %v235 = vsel %vm167, %v232, 0
  %v238 = vsel %vm167, %v233, 0
  %v241 = vsel %vm174, %v146, 0
  %243 = vmatprep.subr.bf16.mxu0 0
  %244 = vmatpush1.bf16.msra.mxu0 %v145
  %245 = vmatprep.subr.bf16.mxu0 0
  %246 = vmatpush1.bf16.msra.mxu0 %v241
  %247 = vmatprep.subr.bf16.mxu0 0
  %248 = vmatpush1.bf16.msra.mxu0 0
  %249 = vmatprep.subr.bf16.mxu0 0
  %250 = vmatpush1.bf16.msra.mxu0 0
  %251 = vmatprep.subr.bf16.mxu0 0
  %252 = vmatpush1.bf16.msra.mxu0 0
  %253 = vmatprep.subr.bf16.mxu0 0
  %254 = vmatpush1.bf16.msra.mxu0 0
  %255 = vmatprep.subr.bf16.mxu0 0
  %256 = vmatpush1.bf16.msra.mxu0 0
  %257 = vmatprep.subr.bf16.mxu0 0
  %258 = vmatpush1.bf16.msra.mxu0 0
  %259 = vmatprep.subr.bf16.mxu0 0
  %260 = vmatpush1.bf16.msra.mxu0 0
  %261 = vmatprep.subr.bf16.mxu0 0
  %262 = vmatpush1.bf16.msra.mxu0 0
  %263 = vmatprep.subr.bf16.mxu0 0
  %264 = vmatpush1.bf16.msra.mxu0 0
  %265 = vmatprep.subr.bf16.mxu0 0
  %266 = vmatpush1.bf16.msra.mxu0 0
  %267 = vmatprep.subr.bf16.mxu0 0
  %268 = vmatpush1.bf16.msra.mxu0 0
  %269 = vmatprep.subr.bf16.mxu0 0
  %270 = vmatpush1.bf16.msra.mxu0 0
  %271 = vmatprep.subr.bf16.mxu0 0
  %272 = vmatpush1.bf16.msra.mxu0 0
  %273 = vmatprep.subr.bf16.mxu0 0
  %274 = vmatpush1.bf16.msra.mxu0 0
  %275 = vmatprep.mubr.bf16.mxu0 0
  %276 = vmatmul.mubr.bf16.gmra.mrb[0].mxu0 %v235
  %v277 = vpop.f32.mrb[0].mxu0
  %v278 = vadd.f32 %v213, %v277
  %v279 = vpop.f32.mrb[0].mxu0
  %v280 = vpop.f32.mrb[0].mxu0
  %v281 = vadd.f32 %v216, %v280
  %v282 = vpop.f32.mrb[0].mxu0
  %283 = vmatprep.mubr.bf16.mxu0 0
  %284 = vmatmul.mubr.bf16.gmra.mrb[0].mxu0 %v238
  %v285 = vpop.f32.mrb[0].mxu0
  %v286 = vadd.f32 %v221, %v285
  %v287 = vpop.f32.mrb[0].mxu0
  %v288 = vpop.f32.mrb[0].mxu0
  %v289 = vpop.f32.mrb[0].mxu0
  %290 = vdwg.mxu0
  %292 = vset.pattern.permute.xlu0 0
  %293 = vperm.xlu0 %292, %v40
  %v294 = vpop.permute.xlu0 %293
  %297 = vset.pattern.permute.xlu0 0
  %298 = vperm.xlu0 %297, %v41
  %v299 = vpop.permute.xlu0 %298
  %302 = vset.pattern.permute.xlu0 0
  %303 = vperm.xlu0 %302, %v42
  %v304 = vpop.permute.xlu0 %303
  %v306 = vadd.f32 %v278, %v294
  %v307 = vadd.f32 %v281, %v299
  %v308 = vadd.f32 %v286, %v304
  %vm309 = vcmp.ge.f32.partialorder %v306, 0.0
  %vm310 = vcmp.ge.f32.partialorder %v307, 0.0
  %vm311 = vcmp.ge.f32.partialorder %v308, 0.0
  %v312 = vmul.f32 %v306, 0.2
  %v313 = vmul.f32 %v307, 0.2
  %v314 = vmul.f32 %v308, 0.2
  %v315 = vsel %vm309, %v306, %v312
  %v316 = vsel %vm310, %v307, %v313
  %v317 = vsel %vm311, %v308, %v314
  %v318 = vpack.c.bf16 %v316, %v315
  %v319 = vpack.c.bf16 %v317, %v317
  %v322 = vunpack.c.l.b16 %v318
  %v323 = vunpack.c.h.b16 %v318
  %v324 = vunpack.c.l.b16 %v319
  %v325 = vpack.c.b16 %v322, %v322
  %v326 = vpack.c.b16 %v323, %v323
  %v327 = vpack.c.b16 %v324, %v324
  %vm331 = vcmask 11264
  %332 = vst.msk [vmem:[%s7] sm:$0xf] %vm331, %v325
  %333 = vst.msk [vmem:[%s7 + $0x4] sm:$0xf] %vm331, %v326
  %334 = vst.msk [vmem:[%s7 + $0x8] sm:$0xf] %vm331, %v327
  %s335 = scalar_lea.vmem %s2, 12
  %v336 = vld [vmem:[%s335] sm:$0xf]
  %v337 = vld [vmem:[%s335 + $0x4] sm:$0xf]
  %v338 = vld [vmem:[%s335 + $0x8] sm:$0xf]
  %v342 = vunpack.c.l.b16 %v336
  %v343 = vunpack.c.l.b16 %v337
  %v344 = vunpack.c.l.b16 %v338
  %v345 = vpack.c.b16 %v343, %v342
  %v346 = vpack.c.b16 %v344, %v344
  %v348 = vsel %vm81, %v345, 0
  %v351 = vsel %vm81, %v346, 0
  %353 = vmatprep.subr.bf16.mxu0 0
  %354 = vmatpush1.bf16.msra.mxu0 %v77
  %355 = vmatprep.subr.bf16.mxu0 0
  %356 = vmatpush1.bf16.msra.mxu0 %v78
  %357 = vmatprep.subr.bf16.mxu0 0
  %358 = vmatpush1.bf16.msra.mxu0 0
  %359 = vmatprep.subr.bf16.mxu0 0
  %360 = vmatpush1.bf16.msra.mxu0 0
  %361 = vmatprep.subr.bf16.mxu0 0
  %362 = vmatpush1.bf16.msra.mxu0 0
  %363 = vmatprep.subr.bf16.mxu0 0
  %364 = vmatpush1.bf16.msra.mxu0 0
  %365 = vmatprep.subr.bf16.mxu0 0
  %366 = vmatpush1.bf16.msra.mxu0 0
  %367 = vmatprep.subr.bf16.mxu0 0
  %368 = vmatpush1.bf16.msra.mxu0 0
  %369 = vmatprep.subr.bf16.mxu0 0
  %370 = vmatpush1.bf16.msra.mxu0 0
  %371 = vmatprep.subr.bf16.mxu0 0
  %372 = vmatpush1.bf16.msra.mxu0 0
  %373 = vmatprep.subr.bf16.mxu0 0
  %374 = vmatpush1.bf16.msra.mxu0 0
  %375 = vmatprep.subr.bf16.mxu0 0
  %376 = vmatpush1.bf16.msra.mxu0 0
  %377 = vmatprep.subr.bf16.mxu0 0
  %378 = vmatpush1.bf16.msra.mxu0 0
  %379 = vmatprep.subr.bf16.mxu0 0
  %380 = vmatpush1.bf16.msra.mxu0 0
  %381 = vmatprep.subr.bf16.mxu0 0
  %382 = vmatpush1.bf16.msra.mxu0 0
  %383 = vmatprep.subr.bf16.mxu0 0
  %384 = vmatpush1.bf16.msra.mxu0 0
  %385 = vmatprep.mubr.bf16.mxu0 0
  %386 = vmatmul.mubr.bf16.gmra.mrb[0].mxu0 %v348
  %v387 = vpop.f32.mrb[0].mxu0
  %v388 = vadd.f32 %v49, %v387
  %v389 = vpop.f32.mrb[0].mxu0
  %v390 = vpop.f32.mrb[0].mxu0
  %v391 = vadd.f32 %v54, %v390
  %v392 = vpop.f32.mrb[0].mxu0
  %393 = vmatprep.mubr.bf16.mxu0 0
  %394 = vmatmul.mubr.bf16.gmra.mrb[0].mxu0 %v351
  %v395 = vpop.f32.mrb[0].mxu0
  %v396 = vadd.f32 %v59, %v395
  %v397 = vpop.f32.mrb[0].mxu0
  %v398 = vpop.f32.mrb[0].mxu0
  %v399 = vpop.f32.mrb[0].mxu0
  %400 = vdwg.mxu0
  %vm401 = vcmp.ge.f32.partialorder %v388, 0.0
  %vm402 = vcmp.ge.f32.partialorder %v391, 0.0
  %vm403 = vcmp.ge.f32.partialorder %v396, 0.0
  %v404 = vmul.f32 %v388, 0.2
  %v405 = vmul.f32 %v391, 0.2
  %v406 = vmul.f32 %v396, 0.2
  %v407 = vsel %vm401, %v388, %v404
  %v408 = vsel %vm402, %v391, %v405
  %v409 = vsel %vm403, %v396, %v406
  %v410 = vpack.c.bf16 %v408, %v407
  %v411 = vpack.c.bf16 %v409, %v409
  %s412 = scalar_lea.vmem %s1, 12
  %v413 = vld [vmem:[%s412] sm:$0xf]
  %v414 = vld [vmem:[%s412 + $0x4] sm:$0xf]
  %v415 = vld [vmem:[%s412 + $0x8] sm:$0xf]
  %v419 = vunpack.c.l.b16 %v413
  %v420 = vunpack.c.l.b16 %v414
  %v421 = vunpack.c.l.b16 %v415
  %v422 = vpack.c.b16 %v420, %v419
  %v423 = vpack.c.b16 %v421, %v421
  %v426 = vsel %vm174, %v423, 0
  %428 = vmatprep.subr.bf16.mxu0 0
  %429 = vmatpush1.bf16.msra.mxu0 %v422
  %430 = vmatprep.subr.bf16.mxu0 0
  %431 = vmatpush1.bf16.msra.mxu0 %v426
  %432 = vmatprep.subr.bf16.mxu0 0
  %433 = vmatpush1.bf16.msra.mxu0 0
  %434 = vmatprep.subr.bf16.mxu0 0
  %435 = vmatpush1.bf16.msra.mxu0 0
  %436 = vmatprep.subr.bf16.mxu0 0
  %437 = vmatpush1.bf16.msra.mxu0 0
  %438 = vmatprep.subr.bf16.mxu0 0
  %439 = vmatpush1.bf16.msra.mxu0 0
  %440 = vmatprep.subr.bf16.mxu0 0
  %441 = vmatpush1.bf16.msra.mxu0 0
  %442 = vmatprep.subr.bf16.mxu0 0
  %443 = vmatpush1.bf16.msra.mxu0 0
  %444 = vmatprep.subr.bf16.mxu0 0
  %445 = vmatpush1.bf16.msra.mxu0 0
  %446 = vmatprep.subr.bf16.mxu0 0
  %447 = vmatpush1.bf16.msra.mxu0 0
  %448 = vmatprep.subr.bf16.mxu0 0
  %449 = vmatpush1.bf16.msra.mxu0 0
  %450 = vmatprep.subr.bf16.mxu0 0
  %451 = vmatpush1.bf16.msra.mxu0 0
  %452 = vmatprep.subr.bf16.mxu0 0
  %453 = vmatpush1.bf16.msra.mxu0 0
  %454 = vmatprep.subr.bf16.mxu0 0
  %455 = vmatpush1.bf16.msra.mxu0 0
  %456 = vmatprep.subr.bf16.mxu0 0
  %457 = vmatpush1.bf16.msra.mxu0 0
  %458 = vmatprep.subr.bf16.mxu0 0
  %459 = vmatpush1.bf16.msra.mxu0 0
  %460 = vmatprep.mubr.bf16.mxu0 0
  %461 = vmatmul.mubr.bf16.gmra.mrb[0].mxu0 %v169
  %v462 = vpop.f32.mrb[0].mxu0
  %v463 = vadd.f32 0.0, %v462
  %v464 = vpop.f32.mrb[0].mxu0
  %v465 = vpop.f32.mrb[0].mxu0
  %v466 = vadd.f32 0.0, %v465
  %v467 = vpop.f32.mrb[0].mxu0
  %468 = vmatprep.mubr.bf16.mxu0 0
  %469 = vmatmul.mubr.bf16.gmra.mrb[0].mxu0 %v172
  %v470 = vpop.f32.mrb[0].mxu0
  %v471 = vadd.f32 0.0, %v470
  %v472 = vpop.f32.mrb[0].mxu0
  %v473 = vpop.f32.mrb[0].mxu0
  %v474 = vpop.f32.mrb[0].mxu0
  %475 = vdwg.mxu0
  %v477 = vsel %vm174, %v411, 0
  %479 = vmatprep.subr.bf16.mxu0 0
  %480 = vmatpush1.bf16.msra.mxu0 %v410
  %481 = vmatprep.subr.bf16.mxu0 0
  %482 = vmatpush1.bf16.msra.mxu0 %v477
  %483 = vmatprep.subr.bf16.mxu0 0
  %484 = vmatpush1.bf16.msra.mxu0 0
  %485 = vmatprep.subr.bf16.mxu0 0
  %486 = vmatpush1.bf16.msra.mxu0 0
  %487 = vmatprep.subr.bf16.mxu0 0
  %488 = vmatpush1.bf16.msra.mxu0 0
  %489 = vmatprep.subr.bf16.mxu0 0
  %490 = vmatpush1.bf16.msra.mxu0 0
  %491 = vmatprep.subr.bf16.mxu0 0
  %492 = vmatpush1.bf16.msra.mxu0 0
  %493 = vmatprep.subr.bf16.mxu0 0
  %494 = vmatpush1.bf16.msra.mxu0 0
  %495 = vmatprep.subr.bf16.mxu0 0
  %496 = vmatpush1.bf16.msra.mxu0 0
  %497 = vmatprep.subr.bf16.mxu0 0
  %498 = vmatpush1.bf16.msra.mxu0 0
  %499 = vmatprep.subr.bf16.mxu0 0
  %500 = vmatpush1.bf16.msra.mxu0 0
  %501 = vmatprep.subr.bf16.mxu0 0
  %502 = vmatpush1.bf16.msra.mxu0 0
  %503 = vmatprep.subr.bf16.mxu0 0
  %504 = vmatpush1.bf16.msra.mxu0 0
  %505 = vmatprep.subr.bf16.mxu0 0
  %506 = vmatpush1.bf16.msra.mxu0 0
  %507 = vmatprep.subr.bf16.mxu0 0
  %508 = vmatpush1.bf16.msra.mxu0 0
  %509 = vmatprep.subr.bf16.mxu0 0
  %510 = vmatpush1.bf16.msra.mxu0 0
  %511 = vmatprep.mubr.bf16.mxu0 0
  %512 = vmatmul.mubr.bf16.gmra.mrb[0].mxu0 %v235
  %v513 = vpop.f32.mrb[0].mxu0
  %v514 = vadd.f32 %v463, %v513
  %v515 = vpop.f32.mrb[0].mxu0
  %v516 = vpop.f32.mrb[0].mxu0
  %v517 = vadd.f32 %v466, %v516
  %v518 = vpop.f32.mrb[0].mxu0
  %519 = vmatprep.mubr.bf16.mxu0 0
  %520 = vmatmul.mubr.bf16.gmra.mrb[0].mxu0 %v238
  %v521 = vpop.f32.mrb[0].mxu0
  %v522 = vadd.f32 %v471, %v521
  %v523 = vpop.f32.mrb[0].mxu0
  %v524 = vpop.f32.mrb[0].mxu0
  %v525 = vpop.f32.mrb[0].mxu0
  %526 = vdwg.mxu0
  %v527 = vadd.f32 %v514, %v294
  %v528 = vadd.f32 %v517, %v299
  %v529 = vadd.f32 %v522, %v304
  %vm530 = vcmp.ge.f32.partialorder %v527, 0.0
  %vm531 = vcmp.ge.f32.partialorder %v528, 0.0
  %vm532 = vcmp.ge.f32.partialorder %v529, 0.0
  %v533 = vmul.f32 %v527, 0.2
  %v534 = vmul.f32 %v528, 0.2
  %v535 = vmul.f32 %v529, 0.2
  %v536 = vsel %vm530, %v527, %v533
  %v537 = vsel %vm531, %v528, %v534
  %v538 = vsel %vm532, %v529, %v535
  %v539 = vpack.c.bf16 %v537, %v536
  %v540 = vpack.c.bf16 %v538, %v538
  %v543 = vunpack.c.l.b16 %v539
  %v544 = vunpack.c.h.b16 %v539
  %v545 = vunpack.c.l.b16 %v540
  %v546 = vpack.c.b16 %v543, %v543
  %v547 = vpack.c.b16 %v544, %v544
  %v548 = vpack.c.b16 %v545, %v545
  %s552 = scalar_lea.vmem %s7, 12
  %553 = vst.msk [vmem:[%s552] sm:$0xf] %vm331, %v546
  %554 = vst.msk [vmem:[%s552 + $0x4] sm:$0xf] %vm331, %v547
  %555 = vst.msk [vmem:[%s552 + $0x8] sm:$0xf] %vm331, %v548
  %s556 = scalar_lea.vmem %s2, 24
  %v557 = vld [vmem:[%s556] sm:$0xf]
  %v558 = vld [vmem:[%s556 + $0x4] sm:$0xf]
  %v559 = vld [vmem:[%s556 + $0x8] sm:$0xf]
  %v563 = vunpack.c.l.b16 %v557
  %v564 = vunpack.c.l.b16 %v558
  %v565 = vunpack.c.l.b16 %v559
  %v566 = vpack.c.b16 %v564, %v563
  %v567 = vpack.c.b16 %v565, %v565
  %v569 = vsel %vm81, %v566, 0
  %v572 = vsel %vm81, %v567, 0
  %574 = vmatprep.subr.bf16.mxu0 0
  %575 = vmatpush1.bf16.msra.mxu0 %v77
  %576 = vmatprep.subr.bf16.mxu0 0
  %577 = vmatpush1.bf16.msra.mxu0 %v78
  %578 = vmatprep.subr.bf16.mxu0 0
  %579 = vmatpush1.bf16.msra.mxu0 0
  %580 = vmatprep.subr.bf16.mxu0 0
  %581 = vmatpush1.bf16.msra.mxu0 0
  %582 = vmatprep.subr.bf16.mxu0 0
  %583 = vmatpush1.bf16.msra.mxu0 0
  %584 = vmatprep.subr.bf16.mxu0 0
  %585 = vmatpush1.bf16.msra.mxu0 0
  %586 = vmatprep.subr.bf16.mxu0 0
  %587 = vmatpush1.bf16.msra.mxu0 0
  %588 = vmatprep.subr.bf16.mxu0 0
  %589 = vmatpush1.bf16.msra.mxu0 0
  %590 = vmatprep.subr.bf16.mxu0 0
  %591 = vmatpush1.bf16.msra.mxu0 0
  %592 = vmatprep.subr.bf16.mxu0 0
  %593 = vmatpush1.bf16.msra.mxu0 0
  %594 = vmatprep.subr.bf16.mxu0 0
  %595 = vmatpush1.bf16.msra.mxu0 0
  %596 = vmatprep.subr.bf16.mxu0 0
  %597 = vmatpush1.bf16.msra.mxu0 0
  %598 = vmatprep.subr.bf16.mxu0 0
  %599 = vmatpush1.bf16.msra.mxu0 0
  %600 = vmatprep.subr.bf16.mxu0 0
  %601 = vmatpush1.bf16.msra.mxu0 0
  %602 = vmatprep.subr.bf16.mxu0 0
  %603 = vmatpush1.bf16.msra.mxu0 0
  %604 = vmatprep.subr.bf16.mxu0 0
  %605 = vmatpush1.bf16.msra.mxu0 0
  %606 = vmatprep.mubr.bf16.mxu0 0
  %607 = vmatmul.mubr.bf16.gmra.mrb[0].mxu0 %v569
  %v608 = vpop.f32.mrb[0].mxu0
  %v609 = vadd.f32 %v49, %v608
  %v610 = vpop.f32.mrb[0].mxu0
  %v611 = vpop.f32.mrb[0].mxu0
  %v612 = vadd.f32 %v54, %v611
  %v613 = vpop.f32.mrb[0].mxu0
  %614 = vmatprep.mubr.bf16.mxu0 0
  %615 = vmatmul.mubr.bf16.gmra.mrb[0].mxu0 %v572
  %v616 = vpop.f32.mrb[0].mxu0
  %v617 = vadd.f32 %v59, %v616
  %v618 = vpop.f32.mrb[0].mxu0
  %v619 = vpop.f32.mrb[0].mxu0
  %v620 = vpop.f32.mrb[0].mxu0
  %621 = vdwg.mxu0
  %vm622 = vcmp.ge.f32.partialorder %v609, 0.0
  %vm623 = vcmp.ge.f32.partialorder %v612, 0.0
  %vm624 = vcmp.ge.f32.partialorder %v617, 0.0
  %v625 = vmul.f32 %v609, 0.2
  %v626 = vmul.f32 %v612, 0.2
  %v627 = vmul.f32 %v617, 0.2
  %v628 = vsel %vm622, %v609, %v625
  %v629 = vsel %vm623, %v612, %v626
  %v630 = vsel %vm624, %v617, %v627
  %v631 = vpack.c.bf16 %v629, %v628
  %v632 = vpack.c.bf16 %v630, %v630
  %s633 = scalar_lea.vmem %s1, 24
  %v634 = vld [vmem:[%s633] sm:$0xf]
  %v635 = vld [vmem:[%s633 + $0x4] sm:$0xf]
  %v636 = vld [vmem:[%s633 + $0x8] sm:$0xf]
  %v640 = vunpack.c.l.b16 %v634
  %v641 = vunpack.c.l.b16 %v635
  %v642 = vunpack.c.l.b16 %v636
  %v643 = vpack.c.b16 %v641, %v640
  %v644 = vpack.c.b16 %v642, %v642
  %v647 = vsel %vm174, %v644, 0
  %649 = vmatprep.subr.bf16.mxu0 0
  %650 = vmatpush1.bf16.msra.mxu0 %v643
  %651 = vmatprep.subr.bf16.mxu0 0
  %652 = vmatpush1.bf16.msra.mxu0 %v647
  %653 = vmatprep.subr.bf16.mxu0 0
  %654 = vmatpush1.bf16.msra.mxu0 0
  %655 = vmatprep.subr.bf16.mxu0 0
  %656 = vmatpush1.bf16.msra.mxu0 0
  %657 = vmatprep.subr.bf16.mxu0 0
  %658 = vmatpush1.bf16.msra.mxu0 0
  %659 = vmatprep.subr.bf16.mxu0 0
  %660 = vmatpush1.bf16.msra.mxu0 0
  %661 = vmatprep.subr.bf16.mxu0 0
  %662 = vmatpush1.bf16.msra.mxu0 0
  %663 = vmatprep.subr.bf16.mxu0 0
  %664 = vmatpush1.bf16.msra.mxu0 0
  %665 = vmatprep.subr.bf16.mxu0 0
  %666 = vmatpush1.bf16.msra.mxu0 0
  %667 = vmatprep.subr.bf16.mxu0 0
  %668 = vmatpush1.bf16.msra.mxu0 0
  %669 = vmatprep.subr.bf16.mxu0 0
  %670 = vmatpush1.bf16.msra.mxu0 0
  %671 = vmatprep.subr.bf16.mxu0 0
  %672 = vmatpush1.bf16.msra.mxu0 0
  %673 = vmatprep.subr.bf16.mxu0 0
  %674 = vmatpush1.bf16.msra.mxu0 0
  %675 = vmatprep.subr.bf16.mxu0 0
  %676 = vmatpush1.bf16.msra.mxu0 0
  %677 = vmatprep.subr.bf16.mxu0 0
  %678 = vmatpush1.bf16.msra.mxu0 0
  %679 = vmatprep.subr.bf16.mxu0 0
  %680 = vmatpush1.bf16.msra.mxu0 0
  %681 = vmatprep.mubr.bf16.mxu0 0
  %682 = vmatmul.mubr.bf16.gmra.mrb[0].mxu0 %v169
  %v683 = vpop.f32.mrb[0].mxu0
  %v684 = vadd.f32 0.0, %v683
  %v685 = vpop.f32.mrb[0].mxu0
  %v686 = vpop.f32.mrb[0].mxu0
  %v687 = vadd.f32 0.0, %v686
  %v688 = vpop.f32.mrb[0].mxu0
  %689 = vmatprep.mubr.bf16.mxu0 0
  %690 = vmatmul.mubr.bf16.gmra.mrb[0].mxu0 %v172
  %v691 = vpop.f32.mrb[0].mxu0
  %v692 = vadd.f32 0.0, %v691
  %v693 = vpop.f32.mrb[0].mxu0
  %v694 = vpop.f32.mrb[0].mxu0
  %v695 = vpop.f32.mrb[0].mxu0
  %696 = vdwg.mxu0
  %v698 = vsel %vm174, %v632, 0
  %700 = vmatprep.subr.bf16.mxu0 0
  %701 = vmatpush1.bf16.msra.mxu0 %v631
  %702 = vmatprep.subr.bf16.mxu0 0
  %703 = vmatpush1.bf16.msra.mxu0 %v698
  %704 = vmatprep.subr.bf16.mxu0 0
  %705 = vmatpush1.bf16.msra.mxu0 0
  %706 = vmatprep.subr.bf16.mxu0 0
  %707 = vmatpush1.bf16.msra.mxu0 0
  %708 = vmatprep.subr.bf16.mxu0 0
  %709 = vmatpush1.bf16.msra.mxu0 0
  %710 = vmatprep.subr.bf16.mxu0 0
  %711 = vmatpush1.bf16.msra.mxu0 0
  %712 = vmatprep.subr.bf16.mxu0 0
  %713 = vmatpush1.bf16.msra.mxu0 0
  %714 = vmatprep.subr.bf16.mxu0 0
  %715 = vmatpush1.bf16.msra.mxu0 0
  %716 = vmatprep.subr.bf16.mxu0 0
  %717 = vmatpush1.bf16.msra.mxu0 0
  %718 = vmatprep.subr.bf16.mxu0 0
  %719 = vmatpush1.bf16.msra.mxu0 0
  %720 = vmatprep.subr.bf16.mxu0 0
  %721 = vmatpush1.bf16.msra.mxu0 0
  %722 = vmatprep.subr.bf16.mxu0 0
  %723 = vmatpush1.bf16.msra.mxu0 0
  %724 = vmatprep.subr.bf16.mxu0 0
  %725 = vmatpush1.bf16.msra.mxu0 0
  %726 = vmatprep.subr.bf16.mxu0 0
  %727 = vmatpush1.bf16.msra.mxu0 0
  %728 = vmatprep.subr.bf16.mxu0 0
  %729 = vmatpush1.bf16.msra.mxu0 0
  %730 = vmatprep.subr.bf16.mxu0 0
  %731 = vmatpush1.bf16.msra.mxu0 0
  %732 = vmatprep.mubr.bf16.mxu0 0
  %733 = vmatmul.mubr.bf16.gmra.mrb[0].mxu0 %v235
  %v734 = vpop.f32.mrb[0].mxu0
  %v735 = vadd.f32 %v684, %v734
  %v736 = vpop.f32.mrb[0].mxu0
  %v737 = vpop.f32.mrb[0].mxu0
  %v738 = vadd.f32 %v687, %v737
  %v739 = vpop.f32.mrb[0].mxu0
  %740 = vmatprep.mubr.bf16.mxu0 0
  %741 = vmatmul.mubr.bf16.gmra.mrb[0].mxu0 %v238
  %v742 = vpop.f32.mrb[0].mxu0
  %v743 = vadd.f32 %v692, %v742
  %v744 = vpop.f32.mrb[0].mxu0
  %v745 = vpop.f32.mrb[0].mxu0
  %v746 = vpop.f32.mrb[0].mxu0
  %747 = vdwg.mxu0
  %v748 = vadd.f32 %v735, %v294
  %v749 = vadd.f32 %v738, %v299
  %v750 = vadd.f32 %v743, %v304
  %vm751 = vcmp.ge.f32.partialorder %v748, 0.0
  %vm752 = vcmp.ge.f32.partialorder %v749, 0.0
  %vm753 = vcmp.ge.f32.partialorder %v750, 0.0
  %v754 = vmul.f32 %v748, 0.2
  %v755 = vmul.f32 %v749, 0.2
  %v756 = vmul.f32 %v750, 0.2
  %v757 = vsel %vm751, %v748, %v754
  %v758 = vsel %vm752, %v749, %v755
  %v759 = vsel %vm753, %v750, %v756
  %v760 = vpack.c.bf16 %v758, %v757
  %v761 = vpack.c.bf16 %v759, %v759
  %v764 = vunpack.c.l.b16 %v760
  %v765 = vunpack.c.h.b16 %v760
  %v766 = vunpack.c.l.b16 %v761
  %v767 = vpack.c.b16 %v764, %v764
  %v768 = vpack.c.b16 %v765, %v765
  %v769 = vpack.c.b16 %v766, %v766
  %s773 = scalar_lea.vmem %s7, 24
  %774 = vst.msk [vmem:[%s773] sm:$0xf] %vm331, %v767
  %775 = vst.msk [vmem:[%s773 + $0x4] sm:$0xf] %vm331, %v768
  %776 = vst.msk [vmem:[%s773 + $0x8] sm:$0xf] %vm331, %v769
  %s777 = scalar_lea.vmem %s2, 36
  %v778 = vld [vmem:[%s777] sm:$0xf]
  %v779 = vld [vmem:[%s777 + $0x4] sm:$0xf]
  %v780 = vld [vmem:[%s777 + $0x8] sm:$0xf]
  %v784 = vunpack.c.l.b16 %v778
  %v785 = vunpack.c.l.b16 %v779
  %v786 = vunpack.c.l.b16 %v780
  %v787 = vpack.c.b16 %v785, %v784
  %v788 = vpack.c.b16 %v786, %v786
  %v790 = vsel %vm81, %v787, 0
  %v793 = vsel %vm81, %v788, 0
  %795 = vmatprep.subr.bf16.mxu0 0
  %796 = vmatpush1.bf16.msra.mxu0 %v77
  %797 = vmatprep.subr.bf16.mxu0 0
  %798 = vmatpush1.bf16.msra.mxu0 %v78
  %799 = vmatprep.subr.bf16.mxu0 0
  %800 = vmatpush1.bf16.msra.mxu0 0
  %801 = vmatprep.subr.bf16.mxu0 0
  %802 = vmatpush1.bf16.msra.mxu0 0
  %803 = vmatprep.subr.bf16.mxu0 0
  %804 = vmatpush1.bf16.msra.mxu0 0
  %805 = vmatprep.subr.bf16.mxu0 0
  %806 = vmatpush1.bf16.msra.mxu0 0
  %807 = vmatprep.subr.bf16.mxu0 0
  %808 = vmatpush1.bf16.msra.mxu0 0
  %809 = vmatprep.subr.bf16.mxu0 0
  %810 = vmatpush1.bf16.msra.mxu0 0
  %811 = vmatprep.subr.bf16.mxu0 0
  %812 = vmatpush1.bf16.msra.mxu0 0
  %813 = vmatprep.subr.bf16.mxu0 0
  %814 = vmatpush1.bf16.msra.mxu0 0
  %815 = vmatprep.subr.bf16.mxu0 0
  %816 = vmatpush1.bf16.msra.mxu0 0
  %817 = vmatprep.subr.bf16.mxu0 0
  %818 = vmatpush1.bf16.msra.mxu0 0
  %819 = vmatprep.subr.bf16.mxu0 0
  %820 = vmatpush1.bf16.msra.mxu0 0
  %821 = vmatprep.subr.bf16.mxu0 0
  %822 = vmatpush1.bf16.msra.mxu0 0
  %823 = vmatprep.subr.bf16.mxu0 0
  %824 = vmatpush1.bf16.msra.mxu0 0
  %825 = vmatprep.subr.bf16.mxu0 0
  %826 = vmatpush1.bf16.msra.mxu0 0
  %827 = vmatprep.mubr.bf16.mxu0 0
  %828 = vmatmul.mubr.bf16.gmra.mrb[0].mxu0 %v790
  %v829 = vpop.f32.mrb[0].mxu0
  %v830 = vadd.f32 %v49, %v829
  %v831 = vpop.f32.mrb[0].mxu0
  %v832 = vpop.f32.mrb[0].mxu0
  %v833 = vadd.f32 %v54, %v832
  %v834 = vpop.f32.mrb[0].mxu0
  %835 = vmatprep.mubr.bf16.mxu0 0
  %836 = vmatmul.mubr.bf16.gmra.mrb[0].mxu0 %v793
  %v837 = vpop.f32.mrb[0].mxu0
  %v838 = vadd.f32 %v59, %v837
  %v839 = vpop.f32.mrb[0].mxu0
  %v840 = vpop.f32.mrb[0].mxu0
  %v841 = vpop.f32.mrb[0].mxu0
  %842 = vdwg.mxu0
  %vm843 = vcmp.ge.f32.partialorder %v830, 0.0
  %vm844 = vcmp.ge.f32.partialorder %v833, 0.0
  %vm845 = vcmp.ge.f32.partialorder %v838, 0.0
  %v846 = vmul.f32 %v830, 0.2
  %v847 = vmul.f32 %v833, 0.2
  %v848 = vmul.f32 %v838, 0.2
  %v849 = vsel %vm843, %v830, %v846
  %v850 = vsel %vm844, %v833, %v847
  %v851 = vsel %vm845, %v838, %v848
  %v852 = vpack.c.bf16 %v850, %v849
  %v853 = vpack.c.bf16 %v851, %v851
  %s854 = scalar_lea.vmem %s1, 36
  %v855 = vld [vmem:[%s854] sm:$0xf]
  %v856 = vld [vmem:[%s854 + $0x4] sm:$0xf]
  %v857 = vld [vmem:[%s854 + $0x8] sm:$0xf]
  %v861 = vunpack.c.l.b16 %v855
  %v862 = vunpack.c.l.b16 %v856
  %v863 = vunpack.c.l.b16 %v857
  %v864 = vpack.c.b16 %v862, %v861
  %v865 = vpack.c.b16 %v863, %v863
  %v868 = vsel %vm174, %v865, 0
  %870 = vmatprep.subr.bf16.mxu0 0
  %871 = vmatpush1.bf16.msra.mxu0 %v864
  %872 = vmatprep.subr.bf16.mxu0 0
  %873 = vmatpush1.bf16.msra.mxu0 %v868
  %874 = vmatprep.subr.bf16.mxu0 0
  %875 = vmatpush1.bf16.msra.mxu0 0
  %876 = vmatprep.subr.bf16.mxu0 0
  %877 = vmatpush1.bf16.msra.mxu0 0
  %878 = vmatprep.subr.bf16.mxu0 0
  %879 = vmatpush1.bf16.msra.mxu0 0
  %880 = vmatprep.subr.bf16.mxu0 0
  %881 = vmatpush1.bf16.msra.mxu0 0
  %882 = vmatprep.subr.bf16.mxu0 0
  %883 = vmatpush1.bf16.msra.mxu0 0
  %884 = vmatprep.subr.bf16.mxu0 0
  %885 = vmatpush1.bf16.msra.mxu0 0
  %886 = vmatprep.subr.bf16.mxu0 0
  %887 = vmatpush1.bf16.msra.mxu0 0
  %888 = vmatprep.subr.bf16.mxu0 0
  %889 = vmatpush1.bf16.msra.mxu0 0
  %890 = vmatprep.subr.bf16.mxu0 0
  %891 = vmatpush1.bf16.msra.mxu0 0
  %892 = vmatprep.subr.bf16.mxu0 0
  %893 = vmatpush1.bf16.msra.mxu0 0
  %894 = vmatprep.subr.bf16.mxu0 0
  %895 = vmatpush1.bf16.msra.mxu0 0
  %896 = vmatprep.subr.bf16.mxu0 0
  %897 = vmatpush1.bf16.msra.mxu0 0
  %898 = vmatprep.subr.bf16.mxu0 0
  %899 = vmatpush1.bf16.msra.mxu0 0
  %900 = vmatprep.subr.bf16.mxu0 0
  %901 = vmatpush1.bf16.msra.mxu0 0
  %902 = vmatprep.mubr.bf16.mxu0 0
  %903 = vmatmul.mubr.bf16.gmra.mrb[0].mxu0 %v169
  %v904 = vpop.f32.mrb[0].mxu0
  %v905 = vadd.f32 0.0, %v904
  %v906 = vpop.f32.mrb[0].mxu0
  %v907 = vpop.f32.mrb[0].mxu0
  %v908 = vadd.f32 0.0, %v907
  %v909 = vpop.f32.mrb[0].mxu0
  %910 = vmatprep.mubr.bf16.mxu0 0
  %911 = vmatmul.mubr.bf16.gmra.mrb[0].mxu0 %v172
  %v912 = vpop.f32.mrb[0].mxu0
  %v913 = vadd.f32 0.0, %v912
  %v914 = vpop.f32.mrb[0].mxu0
  %v915 = vpop.f32.mrb[0].mxu0
  %v916 = vpop.f32.mrb[0].mxu0
  %917 = vdwg.mxu0
  %v919 = vsel %vm174, %v853, 0
  %921 = vmatprep.subr.bf16.mxu0 0
  %922 = vmatpush1.bf16.msra.mxu0 %v852
  %923 = vmatprep.subr.bf16.mxu0 0
  %924 = vmatpush1.bf16.msra.mxu0 %v919
  %925 = vmatprep.subr.bf16.mxu0 0
  %926 = vmatpush1.bf16.msra.mxu0 0
  %927 = vmatprep.subr.bf16.mxu0 0
  %928 = vmatpush1.bf16.msra.mxu0 0
  %929 = vmatprep.subr.bf16.mxu0 0
  %930 = vmatpush1.bf16.msra.mxu0 0
  %931 = vmatprep.subr.bf16.mxu0 0
  %932 = vmatpush1.bf16.msra.mxu0 0
  %933 = vmatprep.subr.bf16.mxu0 0
  %934 = vmatpush1.bf16.msra.mxu0 0
  %935 = vmatprep.subr.bf16.mxu0 0
  %936 = vmatpush1.bf16.msra.mxu0 0
  %937 = vmatprep.subr.bf16.mxu0 0
  %938 = vmatpush1.bf16.msra.mxu0 0
  %939 = vmatprep.subr.bf16.mxu0 0
  %940 = vmatpush1.bf16.msra.mxu0 0
  %941 = vmatprep.subr.bf16.mxu0 0
  %942 = vmatpush1.bf16.msra.mxu0 0
  %943 = vmatprep.subr.bf16.mxu0 0
  %944 = vmatpush1.bf16.msra.mxu0 0
  %945 = vmatprep.subr.bf16.mxu0 0
  %946 = vmatpush1.bf16.msra.mxu0 0
  %947 = vmatprep.subr.bf16.mxu0 0
  %948 = vmatpush1.bf16.msra.mxu0 0
  %949 = vmatprep.subr.bf16.mxu0 0
  %950 = vmatpush1.bf16.msra.mxu0 0
  %951 = vmatprep.subr.bf16.mxu0 0
  %952 = vmatpush1.bf16.msra.mxu0 0
  %953 = vmatprep.mubr.bf16.mxu0 0
  %954 = vmatmul.mubr.bf16.gmra.mrb[0].mxu0 %v235
  %v955 = vpop.f32.mrb[0].mxu0
  %v956 = vadd.f32 %v905, %v955
  %v957 = vpop.f32.mrb[0].mxu0
  %v958 = vpop.f32.mrb[0].mxu0
  %v959 = vadd.f32 %v908, %v958
  %v960 = vpop.f32.mrb[0].mxu0
  %961 = vmatprep.mubr.bf16.mxu0 0
  %962 = vmatmul.mubr.bf16.gmra.mrb[0].mxu0 %v238
  %v963 = vpop.f32.mrb[0].mxu0
  %v964 = vadd.f32 %v913, %v963
  %v965 = vpop.f32.mrb[0].mxu0
  %v966 = vpop.f32.mrb[0].mxu0
  %v967 = vpop.f32.mrb[0].mxu0
  %968 = vdwg.mxu0
  %v969 = vadd.f32 %v956, %v294
  %v970 = vadd.f32 %v959, %v299
  %v971 = vadd.f32 %v964, %v304
  %vm972 = vcmp.ge.f32.partialorder %v969, 0.0
  %vm973 = vcmp.ge.f32.partialorder %v970, 0.0
  %vm974 = vcmp.ge.f32.partialorder %v971, 0.0
  %v975 = vmul.f32 %v969, 0.2
  %v976 = vmul.f32 %v970, 0.2
  %v977 = vmul.f32 %v971, 0.2
  %v978 = vsel %vm972, %v969, %v975
  %v979 = vsel %vm973, %v970, %v976
  %v980 = vsel %vm974, %v971, %v977
  %v981 = vpack.c.bf16 %v979, %v978
  %v982 = vpack.c.bf16 %v980, %v980
  %v985 = vunpack.c.l.b16 %v981
  %v986 = vunpack.c.h.b16 %v981
  %v987 = vunpack.c.l.b16 %v982
  %v988 = vpack.c.b16 %v985, %v985
  %v989 = vpack.c.b16 %v986, %v986
  %v990 = vpack.c.b16 %v987, %v987
  %s994 = scalar_lea.vmem %s7, 36
  %995 = vst.msk [vmem:[%s994] sm:$0xf] %vm331, %v988
  %996 = vst.msk [vmem:[%s994 + $0x4] sm:$0xf] %vm331, %v989
  %997 = vst.msk [vmem:[%s994 + $0x8] sm:$0xf] %vm331, %v990
  // Predicated region
  $region30: #{feature_extractor_forward.34} parent=0 // pred_check
    _
  $region31: #{feature_extractor_forward.34} parent=0 // pred_check_branch
    %999 = sbr.rel (0) target = $region33
  $region32: #{feature_extractor_forward.34} parent=0 // pred_region
    _
  $region33: #{feature_extractor_forward.34} parent=0 // pred_fallthru
    _
  // Predicated region
  $region34: #{feature_extractor_forward.34} parent=0 // pred_check
    _
  $region35: #{feature_extractor_forward.34} parent=0 // pred_check_branch
    %1001 = sbr.rel (0) target = $region37
  $region36: #{feature_extractor_forward.34} parent=0 // pred_region
    _
  $region37: #{feature_extractor_forward.34} parent=0 // pred_fallthru
    _

// kernel: feature_extractor_forward.37
$region0: #{feature_extractor_forward.37}
  #allocation0 [shape = 'u32[]', space=smem, size = 0x4, offset = 0x4, fixed_abs, tag = 'smem constant byte address 0x4 - core index']
  #allocation1 [shape = 'u32[144,128]{1,0:T(1,128)}', space=vmem, size = 0x12000, scoped, tag = 'internal scratch']
  %s0 = inlined_call_operand.vmem [shape: bf16[24,8], index: 0, kind: input, shape index: {}]
  %s1 = inlined_call_operand.vmem [shape: bf16[4,16,8], index: 1, kind: input, shape index: {}]
  %s2 = inlined_call_operand.vmem [shape: bf16[4,16,24], index: 2, kind: input, shape index: {}]
  %s3 = inlined_call_operand.vmem [shape: bf16[16,16], index: 3, kind: input, shape index: {}]
  %s4 = inlined_call_operand.vmem [shape: bf16[16,16], index: 4, kind: input, shape index: {}]
  %s5 = inlined_call_operand.vmem [shape: f32[16,1], index: 5, kind: input, shape index: {}]
  %s6 = inlined_call_operand.vmem [shape: f32[16,1], index: 6, kind: input, shape index: {}]
  %s7 = inlined_call_operand.vmem [shape: bf16[4,16,8], index: 7, kind: output, shape index: {}]
  %s8 = sld [smem:[#allocation0]]
  $region38: #{feature_extractor_forward.37} parent=0
    _
  %s10 = ssub.s32 1, %s8
  %s11 = scalar_select 0, %s10, %s8
  // Predicated region
  $region2: #{feature_extractor_forward.37} parent=0 // pred_check
    _
  $region3: #{feature_extractor_forward.37} parent=0 // pred_check_branch
    %13 = sbr.rel (0) target = $region5
  $region4: #{feature_extractor_forward.37} parent=0 // pred_region
    _
  $region5: #{feature_extractor_forward.37} parent=0 // pred_fallthru
    _
  // Predicated region
  $region6: #{feature_extractor_forward.37} parent=0 // pred_check
    _
  $region7: #{feature_extractor_forward.37} parent=0 // pred_check_branch
    %15 = sbr.rel (0) target = $region9
  $region8: #{feature_extractor_forward.37} parent=0 // pred_region
    _
  $region9: #{feature_extractor_forward.37} parent=0 // pred_fallthru
    _
  // Predicated region
  $region10: #{feature_extractor_forward.37} parent=0 // pred_check
    _
  $region11: #{feature_extractor_forward.37} parent=0 // pred_check_branch
    %17 = sbr.rel (0) target = $region13
  $region12: #{feature_extractor_forward.37} parent=0 // pred_region
    _
  $region13: #{feature_extractor_forward.37} parent=0 // pred_fallthru
    _
  // Predicated region
  $region14: #{feature_extractor_forward.37} parent=0 // pred_check
    _
  $region15: #{feature_extractor_forward.37} parent=0 // pred_check_branch
    %19 = sbr.rel (0) target = $region17
  $region16: #{feature_extractor_forward.37} parent=0 // pred_region
    _
  $region17: #{feature_extractor_forward.37} parent=0 // pred_fallthru
    _
  // Predicated region
  $region18: #{feature_extractor_forward.37} parent=0 // pred_check
    _
  $region19: #{feature_extractor_forward.37} parent=0 // pred_check_branch
    %21 = sbr.rel (0) target = $region21
  $region20: #{feature_extractor_forward.37} parent=0 // pred_region
    _
  $region21: #{feature_extractor_forward.37} parent=0 // pred_fallthru
    _
  // Predicated region
  $region22: #{feature_extractor_forward.37} parent=0 // pred_check
    _
  $region23: #{feature_extractor_forward.37} parent=0 // pred_check_branch
    %23 = sbr.rel (0) target = $region25
  $region24: #{feature_extractor_forward.37} parent=0 // pred_region
    _
  $region25: #{feature_extractor_forward.37} parent=0 // pred_fallthru
    _
  // Predicated region
  $region26: #{feature_extractor_forward.37} parent=0 // pred_check
    _
  $region27: #{feature_extractor_forward.37} parent=0 // pred_check_branch
    %25 = sbr.rel (0) target = $region29
  $region28: #{feature_extractor_forward.37} parent=0 // pred_region
    _
  $region29: #{feature_extractor_forward.37} parent=0 // pred_fallthru
    _
  %v27 = vld [vmem:[%s0] sm:$0xf]
  %v28 = vld [vmem:[%s0 + $0x4] sm:$0xf]
  %v29 = vld [vmem:[%s0 + $0x8] sm:$0xf]
  %v30 = vld [vmem:[%s3] sm:$0xf]
  %v31 = vld [vmem:[%s3 + $0x4] sm:$0xf]
  %v32 = vld [vmem:[%s4] sm:$0xf]
  %v33 = vld [vmem:[%s4 + $0x4] sm:$0xf]
  %v34 = vld [vmem:[%s5] sm:$0xff]
  %v35 = vld [vmem:[%s5 + $0x8] sm:$0xff]
  %v36 = vld [vmem:[%s6] sm:$0xff]
  %v37 = vld [vmem:[%s6 + $0x8] sm:$0xff]
  %v38 = vld [vmem:[%s2] sm:$0xf]
  %v39 = vld [vmem:[%s2 + $0x4] sm:$0xf]
  %41 = vset.pattern.permute.xlu0 0
  %42 = vperm.xlu0 %41, %v34
  %v43 = vpop.permute.xlu0 %42
  %46 = vset.pattern.permute.xlu0 0
  %47 = vperm.xlu0 %46, %v35
  %v48 = vpop.permute.xlu0 %47
  %v52 = vunpack.c.l.b16 %v38
  %v53 = vunpack.c.l.b16 %v39
  %v54 = vpack.c.b16 %v53, %v52
  %v58 = vunpack.c.l.b16 %v27
  %v59 = vunpack.c.l.b16 %v28
  %v60 = vunpack.c.l.b16 %v29
  %v61 = vpack.c.b16 %v59, %v58
  %v62 = vpack.c.b16 %v60, %v60
  %vm64 = vcmask 195584
  %v66 = vsel %vm64, %v54, 0
  %vm68 = vcmask 1043456
  %v70 = vsel %vm68, %v62, 0
  %72 = vmatprep.subr.bf16.mxu0 0
  %73 = vmatpush1.bf16.msra.mxu0 %v61
  %74 = vmatprep.subr.bf16.mxu0 0
  %75 = vmatpush1.bf16.msra.mxu0 %v70
  %76 = vmatprep.subr.bf16.mxu0 0
  %77 = vmatpush1.bf16.msra.mxu0 0
  %78 = vmatprep.subr.bf16.mxu0 0
  %79 = vmatpush1.bf16.msra.mxu0 0
  %80 = vmatprep.subr.bf16.mxu0 0
  %81 = vmatpush1.bf16.msra.mxu0 0
  %82 = vmatprep.subr.bf16.mxu0 0
  %83 = vmatpush1.bf16.msra.mxu0 0
  %84 = vmatprep.subr.bf16.mxu0 0
  %85 = vmatpush1.bf16.msra.mxu0 0
  %86 = vmatprep.subr.bf16.mxu0 0
  %87 = vmatpush1.bf16.msra.mxu0 0
  %88 = vmatprep.subr.bf16.mxu0 0
  %89 = vmatpush1.bf16.msra.mxu0 0
  %90 = vmatprep.subr.bf16.mxu0 0
  %91 = vmatpush1.bf16.msra.mxu0 0
  %92 = vmatprep.subr.bf16.mxu0 0
  %93 = vmatpush1.bf16.msra.mxu0 0
  %94 = vmatprep.subr.bf16.mxu0 0
  %95 = vmatpush1.bf16.msra.mxu0 0
  %96 = vmatprep.subr.bf16.mxu0 0
  %97 = vmatpush1.bf16.msra.mxu0 0
  %98 = vmatprep.subr.bf16.mxu0 0
  %99 = vmatpush1.bf16.msra.mxu0 0
  %100 = vmatprep.subr.bf16.mxu0 0
  %101 = vmatpush1.bf16.msra.mxu0 0
  %102 = vmatprep.subr.bf16.mxu0 0
  %103 = vmatpush1.bf16.msra.mxu0 0
  %104 = vmatprep.mubr.bf16.mxu0 0
  %105 = vmatmul.mubr.bf16.gmra.mrb[0].mxu0 %v66
  %v106 = vpop.f32.mrb[0].mxu0
  %v107 = vadd.f32 %v43, %v106
  %v108 = vpop.f32.mrb[0].mxu0
  %v109 = vpop.f32.mrb[0].mxu0
  %v110 = vadd.f32 %v48, %v109
  %v111 = vpop.f32.mrb[0].mxu0
  %112 = vdwg.mxu0
  %vm113 = vcmp.ge.f32.partialorder %v107, 0.0
  %vm114 = vcmp.ge.f32.partialorder %v110, 0.0
  %v115 = vmul.f32 %v107, 0.2
  %v116 = vmul.f32 %v110, 0.2
  %v117 = vsel %vm113, %v107, %v115
  %v118 = vsel %vm114, %v110, %v116
  %v119 = vpack.c.bf16 %v118, %v117
  %v120 = vld [vmem:[%s1] sm:$0xf]
  %v121 = vld [vmem:[%s1 + $0x4] sm:$0xf]
  %v124 = vunpack.c.l.b16 %v32
  %v125 = vunpack.c.l.b16 %v33
  %v126 = vpack.c.b16 %v125, %v124
  %v129 = vunpack.c.l.b16 %v120
  %v130 = vunpack.c.l.b16 %v121
  %v131 = vpack.c.b16 %v130, %v129
  %vm133 = vcmask 130048
  %v135 = vsel %vm133, %v126, 0
  %137 = vmatprep.subr.bf16.mxu0 0
  %138 = vmatpush1.bf16.msra.mxu0 %v131
  %139 = vmatprep.subr.bf16.mxu0 0
  %140 = vmatpush1.bf16.msra.mxu0 0
  %141 = vmatprep.subr.bf16.mxu0 0
  %142 = vmatpush1.bf16.msra.mxu0 0
  %143 = vmatprep.subr.bf16.mxu0 0
  %144 = vmatpush1.bf16.msra.mxu0 0
  %145 = vmatprep.subr.bf16.mxu0 0
  %146 = vmatpush1.bf16.msra.mxu0 0
  %147 = vmatprep.subr.bf16.mxu0 0
  %148 = vmatpush1.bf16.msra.mxu0 0
  %149 = vmatprep.subr.bf16.mxu0 0
  %150 = vmatpush1.bf16.msra.mxu0 0
  %151 = vmatprep.subr.bf16.mxu0 0
  %152 = vmatpush1.bf16.msra.mxu0 0
  %153 = vmatprep.subr.bf16.mxu0 0
  %154 = vmatpush1.bf16.msra.mxu0 0
  %155 = vmatprep.subr.bf16.mxu0 0
  %156 = vmatpush1.bf16.msra.mxu0 0
  %157 = vmatprep.subr.bf16.mxu0 0
  %158 = vmatpush1.bf16.msra.mxu0 0
  %159 = vmatprep.subr.bf16.mxu0 0
  %160 = vmatpush1.bf16.msra.mxu0 0
  %161 = vmatprep.subr.bf16.mxu0 0
  %162 = vmatpush1.bf16.msra.mxu0 0
  %163 = vmatprep.subr.bf16.mxu0 0
  %164 = vmatpush1.bf16.msra.mxu0 0
  %165 = vmatprep.subr.bf16.mxu0 0
  %166 = vmatpush1.bf16.msra.mxu0 0
  %167 = vmatprep.subr.bf16.mxu0 0
  %168 = vmatpush1.bf16.msra.mxu0 0
  %169 = vmatprep.mubr.bf16.mxu0 0
  %170 = vmatmul.mubr.bf16.gmra.mrb[0].mxu0 %v135
  %v171 = vpop.f32.mrb[0].mxu0
  %v172 = vadd.f32 0.0, %v171
  %v173 = vpop.f32.mrb[0].mxu0
  %v174 = vpop.f32.mrb[0].mxu0
  %v175 = vadd.f32 0.0, %v174
  %v176 = vpop.f32.mrb[0].mxu0
  %177 = vdwg.mxu0
  %v180 = vunpack.c.l.b16 %v30
  %v181 = vunpack.c.l.b16 %v31
  %v182 = vpack.c.b16 %v181, %v180
  %v184 = vsel %vm133, %v182, 0
  %186 = vmatprep.subr.bf16.mxu0 0
  %187 = vmatpush1.bf16.msra.mxu0 %v119
  %188 = vmatprep.subr.bf16.mxu0 0
  %189 = vmatpush1.bf16.msra.mxu0 0
  %190 = vmatprep.subr.bf16.mxu0 0
  %191 = vmatpush1.bf16.msra.mxu0 0
  %192 = vmatprep.subr.bf16.mxu0 0
  %193 = vmatpush1.bf16.msra.mxu0 0
  %194 = vmatprep.subr.bf16.mxu0 0
  %195 = vmatpush1.bf16.msra.mxu0 0
  %196 = vmatprep.subr.bf16.mxu0 0
  %197 = vmatpush1.bf16.msra.mxu0 0
  %198 = vmatprep.subr.bf16.mxu0 0
  %199 = vmatpush1.bf16.msra.mxu0 0
  %200 = vmatprep.subr.bf16.mxu0 0
  %201 = vmatpush1.bf16.msra.mxu0 0
  %202 = vmatprep.subr.bf16.mxu0 0
  %203 = vmatpush1.bf16.msra.mxu0 0
  %204 = vmatprep.subr.bf16.mxu0 0
  %205 = vmatpush1.bf16.msra.mxu0 0
  %206 = vmatprep.subr.bf16.mxu0 0
  %207 = vmatpush1.bf16.msra.mxu0 0
  %208 = vmatprep.subr.bf16.mxu0 0
  %209 = vmatpush1.bf16.msra.mxu0 0
  %210 = vmatprep.subr.bf16.mxu0 0
  %211 = vmatpush1.bf16.msra.mxu0 0
  %212 = vmatprep.subr.bf16.mxu0 0
  %213 = vmatpush1.bf16.msra.mxu0 0
  %214 = vmatprep.subr.bf16.mxu0 0
  %215 = vmatpush1.bf16.msra.mxu0 0
  %216 = vmatprep.subr.bf16.mxu0 0
  %217 = vmatpush1.bf16.msra.mxu0 0
  %218 = vmatprep.mubr.bf16.mxu0 0
  %219 = vmatmul.mubr.bf16.gmra.mrb[0].mxu0 %v184
  %v220 = vpop.f32.mrb[0].mxu0
  %v221 = vadd.f32 %v172, %v220
  %v222 = vpop.f32.mrb[0].mxu0
  %v223 = vpop.f32.mrb[0].mxu0
  %v224 = vadd.f32 %v175, %v223
  %v225 = vpop.f32.mrb[0].mxu0
  %226 = vdwg.mxu0
  %228 = vset.pattern.permute.xlu0 0
  %229 = vperm.xlu0 %228, %v36
  %v230 = vpop.permute.xlu0 %229
  %233 = vset.pattern.permute.xlu0 0
  %234 = vperm.xlu0 %233, %v37
  %v235 = vpop.permute.xlu0 %234
  %v237 = vadd.f32 %v221, %v230
  %v238 = vadd.f32 %v224, %v235
  %vm239 = vcmp.ge.f32.partialorder %v237, 0.0
  %vm240 = vcmp.ge.f32.partialorder %v238, 0.0
  %v241 = vmul.f32 %v237, 0.2
  %v242 = vmul.f32 %v238, 0.2
  %v243 = vsel %vm239, %v237, %v241
  %v244 = vsel %vm240, %v238, %v242
  %v245 = vpack.c.bf16 %v244, %v243
  %v247 = vunpack.c.l.b16 %v245
  %v248 = vunpack.c.h.b16 %v245
  %v249 = vpack.c.b16 %v247, %v247
  %v250 = vpack.c.b16 %v248, %v248
  %vm253 = vcmask 60416
  %254 = vst.msk [vmem:[%s7] sm:$0xf] %vm253, %v249
  %255 = vst.msk [vmem:[%s7 + $0x4] sm:$0xf] %vm253, %v250
  %s256 = scalar_lea.vmem %s2, 8
  %v257 = vld [vmem:[%s256] sm:$0xf]
  %v258 = vld [vmem:[%s256 + $0x4] sm:$0xf]
  %v261 = vunpack.c.l.b16 %v257
  %v262 = vunpack.c.l.b16 %v258
  %v263 = vpack.c.b16 %v262, %v261
  %v265 = vsel %vm64, %v263, 0
  %267 = vmatprep.subr.bf16.mxu0 0
  %268 = vmatpush1.bf16.msra.mxu0 %v61
  %269 = vmatprep.subr.bf16.mxu0 0
  %270 = vmatpush1.bf16.msra.mxu0 %v70
  %271 = vmatprep.subr.bf16.mxu0 0
  %272 = vmatpush1.bf16.msra.mxu0 0
  %273 = vmatprep.subr.bf16.mxu0 0
  %274 = vmatpush1.bf16.msra.mxu0 0
  %275 = vmatprep.subr.bf16.mxu0 0
  %276 = vmatpush1.bf16.msra.mxu0 0
  %277 = vmatprep.subr.bf16.mxu0 0
  %278 = vmatpush1.bf16.msra.mxu0 0
  %279 = vmatprep.subr.bf16.mxu0 0
  %280 = vmatpush1.bf16.msra.mxu0 0
  %281 = vmatprep.subr.bf16.mxu0 0
  %282 = vmatpush1.bf16.msra.mxu0 0
  %283 = vmatprep.subr.bf16.mxu0 0
  %284 = vmatpush1.bf16.msra.mxu0 0
  %285 = vmatprep.subr.bf16.mxu0 0
  %286 = vmatpush1.bf16.msra.mxu0 0
  %287 = vmatprep.subr.bf16.mxu0 0
  %288 = vmatpush1.bf16.msra.mxu0 0
  %289 = vmatprep.subr.bf16.mxu0 0
  %290 = vmatpush1.bf16.msra.mxu0 0
  %291 = vmatprep.subr.bf16.mxu0 0
  %292 = vmatpush1.bf16.msra.mxu0 0
  %293 = vmatprep.subr.bf16.mxu0 0
  %294 = vmatpush1.bf16.msra.mxu0 0
  %295 = vmatprep.subr.bf16.mxu0 0
  %296 = vmatpush1.bf16.msra.mxu0 0
  %297 = vmatprep.subr.bf16.mxu0 0
  %298 = vmatpush1.bf16.msra.mxu0 0
  %299 = vmatprep.mubr.bf16.mxu0 0
  %300 = vmatmul.mubr.bf16.gmra.mrb[0].mxu0 %v265
  %v301 = vpop.f32.mrb[0].mxu0
  %v302 = vadd.f32 %v43, %v301
  %v303 = vpop.f32.mrb[0].mxu0
  %v304 = vpop.f32.mrb[0].mxu0
  %v305 = vadd.f32 %v48, %v304
  %v306 = vpop.f32.mrb[0].mxu0
  %307 = vdwg.mxu0
  %vm308 = vcmp.ge.f32.partialorder %v302, 0.0
  %vm309 = vcmp.ge.f32.partialorder %v305, 0.0
  %v310 = vmul.f32 %v302, 0.2
  %v311 = vmul.f32 %v305, 0.2
  %v312 = vsel %vm308, %v302, %v310
  %v313 = vsel %vm309, %v305, %v311
  %v314 = vpack.c.bf16 %v313, %v312
  %s315 = scalar_lea.vmem %s1, 8
  %v316 = vld [vmem:[%s315] sm:$0xf]
  %v317 = vld [vmem:[%s315 + $0x4] sm:$0xf]
  %v320 = vunpack.c.l.b16 %v316
  %v321 = vunpack.c.l.b16 %v317
  %v322 = vpack.c.b16 %v321, %v320
  %324 = vmatprep.subr.bf16.mxu0 0
  %325 = vmatpush1.bf16.msra.mxu0 %v322
  %326 = vmatprep.subr.bf16.mxu0 0
  %327 = vmatpush1.bf16.msra.mxu0 0
  %328 = vmatprep.subr.bf16.mxu0 0
  %329 = vmatpush1.bf16.msra.mxu0 0
  %330 = vmatprep.subr.bf16.mxu0 0
  %331 = vmatpush1.bf16.msra.mxu0 0
  %332 = vmatprep.subr.bf16.mxu0 0
  %333 = vmatpush1.bf16.msra.mxu0 0
  %334 = vmatprep.subr.bf16.mxu0 0
  %335 = vmatpush1.bf16.msra.mxu0 0
  %336 = vmatprep.subr.bf16.mxu0 0
  %337 = vmatpush1.bf16.msra.mxu0 0
  %338 = vmatprep.subr.bf16.mxu0 0
  %339 = vmatpush1.bf16.msra.mxu0 0
  %340 = vmatprep.subr.bf16.mxu0 0
  %341 = vmatpush1.bf16.msra.mxu0 0
  %342 = vmatprep.subr.bf16.mxu0 0
  %343 = vmatpush1.bf16.msra.mxu0 0
  %344 = vmatprep.subr.bf16.mxu0 0
  %345 = vmatpush1.bf16.msra.mxu0 0
  %346 = vmatprep.subr.bf16.mxu0 0
  %347 = vmatpush1.bf16.msra.mxu0 0
  %348 = vmatprep.subr.bf16.mxu0 0
  %349 = vmatpush1.bf16.msra.mxu0 0
  %350 = vmatprep.subr.bf16.mxu0 0
  %351 = vmatpush1.bf16.msra.mxu0 0
  %352 = vmatprep.subr.bf16.mxu0 0
  %353 = vmatpush1.bf16.msra.mxu0 0
  %354 = vmatprep.subr.bf16.mxu0 0
  %355 = vmatpush1.bf16.msra.mxu0 0
  %356 = vmatprep.mubr.bf16.mxu0 0
  %357 = vmatmul.mubr.bf16.gmra.mrb[0].mxu0 %v135
  %v358 = vpop.f32.mrb[0].mxu0
  %v359 = vadd.f32 0.0, %v358
  %v360 = vpop.f32.mrb[0].mxu0
  %v361 = vpop.f32.mrb[0].mxu0
  %v362 = vadd.f32 0.0, %v361
  %v363 = vpop.f32.mrb[0].mxu0
  %364 = vdwg.mxu0
  %365 = vmatprep.subr.bf16.mxu0 0
  %366 = vmatpush1.bf16.msra.mxu0 %v314
  %367 = vmatprep.subr.bf16.mxu0 0
  %368 = vmatpush1.bf16.msra.mxu0 0
  %369 = vmatprep.subr.bf16.mxu0 0
  %370 = vmatpush1.bf16.msra.mxu0 0
  %371 = vmatprep.subr.bf16.mxu0 0
  %372 = vmatpush1.bf16.msra.mxu0 0
  %373 = vmatprep.subr.bf16.mxu0 0
  %374 = vmatpush1.bf16.msra.mxu0 0
  %375 = vmatprep.subr.bf16.mxu0 0
  %376 = vmatpush1.bf16.msra.mxu0 0
  %377 = vmatprep.subr.bf16.mxu0 0
  %378 = vmatpush1.bf16.msra.mxu0 0
  %379 = vmatprep.subr.bf16.mxu0 0
  %380 = vmatpush1.bf16.msra.mxu0 0
  %381 = vmatprep.subr.bf16.mxu0 0
  %382 = vmatpush1.bf16.msra.mxu0 0
  %383 = vmatprep.subr.bf16.mxu0 0
  %384 = vmatpush1.bf16.msra.mxu0 0
  %385 = vmatprep.subr.bf16.mxu0 0
  %386 = vmatpush1.bf16.msra.mxu0 0
  %387 = vmatprep.subr.bf16.mxu0 0
  %388 = vmatpush1.bf16.msra.mxu0 0
  %389 = vmatprep.subr.bf16.mxu0 0
  %390 = vmatpush1.bf16.msra.mxu0 0
  %391 = vmatprep.subr.bf16.mxu0 0
  %392 = vmatpush1.bf16.msra.mxu0 0
  %393 = vmatprep.subr.bf16.mxu0 0
  %394 = vmatpush1.bf16.msra.mxu0 0
  %395 = vmatprep.subr.bf16.mxu0 0
  %396 = vmatpush1.bf16.msra.mxu0 0
  %397 = vmatprep.mubr.bf16.mxu0 0
  %398 = vmatmul.mubr.bf16.gmra.mrb[0].mxu0 %v184
  %v399 = vpop.f32.mrb[0].mxu0
  %v400 = vadd.f32 %v359, %v399
  %v401 = vpop.f32.mrb[0].mxu0
  %v402 = vpop.f32.mrb[0].mxu0
  %v403 = vadd.f32 %v362, %v402
  %v404 = vpop.f32.mrb[0].mxu0
  %405 = vdwg.mxu0
  %v406 = vadd.f32 %v400, %v230
  %v407 = vadd.f32 %v403, %v235
  %vm408 = vcmp.ge.f32.partialorder %v406, 0.0
  %vm409 = vcmp.ge.f32.partialorder %v407, 0.0
  %v410 = vmul.f32 %v406, 0.2
  %v411 = vmul.f32 %v407, 0.2
  %v412 = vsel %vm408, %v406, %v410
  %v413 = vsel %vm409, %v407, %v411
  %v414 = vpack.c.bf16 %v413, %v412
  %v416 = vunpack.c.l.b16 %v414
  %v417 = vunpack.c.h.b16 %v414
  %v418 = vpack.c.b16 %v416, %v416
  %v419 = vpack.c.b16 %v417, %v417
  %s422 = scalar_lea.vmem %s7, 8
  %423 = vst.msk [vmem:[%s422] sm:$0xf] %vm253, %v418
  %424 = vst.msk [vmem:[%s422 + $0x4] sm:$0xf] %vm253, %v419
  %s425 = scalar_lea.vmem %s2, 16
  %v426 = vld [vmem:[%s425] sm:$0xf]
  %v427 = vld [vmem:[%s425 + $0x4] sm:$0xf]
  %v430 = vunpack.c.l.b16 %v426
  %v431 = vunpack.c.l.b16 %v427
  %v432 = vpack.c.b16 %v431, %v430
  %v434 = vsel %vm64, %v432, 0
  %436 = vmatprep.subr.bf16.mxu0 0
  %437 = vmatpush1.bf16.msra.mxu0 %v61
  %438 = vmatprep.subr.bf16.mxu0 0
  %439 = vmatpush1.bf16.msra.mxu0 %v70
  %440 = vmatprep.subr.bf16.mxu0 0
  %441 = vmatpush1.bf16.msra.mxu0 0
  %442 = vmatprep.subr.bf16.mxu0 0
  %443 = vmatpush1.bf16.msra.mxu0 0
  %444 = vmatprep.subr.bf16.mxu0 0
  %445 = vmatpush1.bf16.msra.mxu0 0
  %446 = vmatprep.subr.bf16.mxu0 0
  %447 = vmatpush1.bf16.msra.mxu0 0
  %448 = vmatprep.subr.bf16.mxu0 0
  %449 = vmatpush1.bf16.msra.mxu0 0
  %450 = vmatprep.subr.bf16.mxu0 0
  %451 = vmatpush1.bf16.msra.mxu0 0
  %452 = vmatprep.subr.bf16.mxu0 0
  %453 = vmatpush1.bf16.msra.mxu0 0
  %454 = vmatprep.subr.bf16.mxu0 0
  %455 = vmatpush1.bf16.msra.mxu0 0
  %456 = vmatprep.subr.bf16.mxu0 0
  %457 = vmatpush1.bf16.msra.mxu0 0
  %458 = vmatprep.subr.bf16.mxu0 0
  %459 = vmatpush1.bf16.msra.mxu0 0
  %460 = vmatprep.subr.bf16.mxu0 0
  %461 = vmatpush1.bf16.msra.mxu0 0
  %462 = vmatprep.subr.bf16.mxu0 0
  %463 = vmatpush1.bf16.msra.mxu0 0
  %464 = vmatprep.subr.bf16.mxu0 0
  %465 = vmatpush1.bf16.msra.mxu0 0
  %466 = vmatprep.subr.bf16.mxu0 0
  %467 = vmatpush1.bf16.msra.mxu0 0
  %468 = vmatprep.mubr.bf16.mxu0 0
  %469 = vmatmul.mubr.bf16.gmra.mrb[0].mxu0 %v434
  %v470 = vpop.f32.mrb[0].mxu0
  %v471 = vadd.f32 %v43, %v470
  %v472 = vpop.f32.mrb[0].mxu0
  %v473 = vpop.f32.mrb[0].mxu0
  %v474 = vadd.f32 %v48, %v473
  %v475 = vpop.f32.mrb[0].mxu0
  %476 = vdwg.mxu0
  %vm477 = vcmp.ge.f32.partialorder %v471, 0.0
  %vm478 = vcmp.ge.f32.partialorder %v474, 0.0
  %v479 = vmul.f32 %v471, 0.2
  %v480 = vmul.f32 %v474, 0.2
  %v481 = vsel %vm477, %v471, %v479
  %v482 = vsel %vm478, %v474, %v480
  %v483 = vpack.c.bf16 %v482, %v481
  %s484 = scalar_lea.vmem %s1, 16
  %v485 = vld [vmem:[%s484] sm:$0xf]
  %v486 = vld [vmem:[%s484 + $0x4] sm:$0xf]
  %v489 = vunpack.c.l.b16 %v485
  %v490 = vunpack.c.l.b16 %v486
  %v491 = vpack.c.b16 %v490, %v489
  %493 = vmatprep.subr.bf16.mxu0 0
  %494 = vmatpush1.bf16.msra.mxu0 %v491
  %495 = vmatprep.subr.bf16.mxu0 0
  %496 = vmatpush1.bf16.msra.mxu0 0
  %497 = vmatprep.subr.bf16.mxu0 0
  %498 = vmatpush1.bf16.msra.mxu0 0
  %499 = vmatprep.subr.bf16.mxu0 0
  %500 = vmatpush1.bf16.msra.mxu0 0
  %501 = vmatprep.subr.bf16.mxu0 0
  %502 = vmatpush1.bf16.msra.mxu0 0
  %503 = vmatprep.subr.bf16.mxu0 0
  %504 = vmatpush1.bf16.msra.mxu0 0
  %505 = vmatprep.subr.bf16.mxu0 0
  %506 = vmatpush1.bf16.msra.mxu0 0
  %507 = vmatprep.subr.bf16.mxu0 0
  %508 = vmatpush1.bf16.msra.mxu0 0
  %509 = vmatprep.subr.bf16.mxu0 0
  %510 = vmatpush1.bf16.msra.mxu0 0
  %511 = vmatprep.subr.bf16.mxu0 0
  %512 = vmatpush1.bf16.msra.mxu0 0
  %513 = vmatprep.subr.bf16.mxu0 0
  %514 = vmatpush1.bf16.msra.mxu0 0
  %515 = vmatprep.subr.bf16.mxu0 0
  %516 = vmatpush1.bf16.msra.mxu0 0
  %517 = vmatprep.subr.bf16.mxu0 0
  %518 = vmatpush1.bf16.msra.mxu0 0
  %519 = vmatprep.subr.bf16.mxu0 0
  %520 = vmatpush1.bf16.msra.mxu0 0
  %521 = vmatprep.subr.bf16.mxu0 0
  %522 = vmatpush1.bf16.msra.mxu0 0
  %523 = vmatprep.subr.bf16.mxu0 0
  %524 = vmatpush1.bf16.msra.mxu0 0
  %525 = vmatprep.mubr.bf16.mxu0 0
  %526 = vmatmul.mubr.bf16.gmra.mrb[0].mxu0 %v135
  %v527 = vpop.f32.mrb[0].mxu0
  %v528 = vadd.f32 0.0, %v527
  %v529 = vpop.f32.mrb[0].mxu0
  %v530 = vpop.f32.mrb[0].mxu0
  %v531 = vadd.f32 0.0, %v530
  %v532 = vpop.f32.mrb[0].mxu0
  %533 = vdwg.mxu0
  %534 = vmatprep.subr.bf16.mxu0 0
  %535 = vmatpush1.bf16.msra.mxu0 %v483
  %536 = vmatprep.subr.bf16.mxu0 0
  %537 = vmatpush1.bf16.msra.mxu0 0
  %538 = vmatprep.subr.bf16.mxu0 0
  %539 = vmatpush1.bf16.msra.mxu0 0
  %540 = vmatprep.subr.bf16.mxu0 0
  %541 = vmatpush1.bf16.msra.mxu0 0
  %542 = vmatprep.subr.bf16.mxu0 0
  %543 = vmatpush1.bf16.msra.mxu0 0
  %544 = vmatprep.subr.bf16.mxu0 0
  %545 = vmatpush1.bf16.msra.mxu0 0
  %546 = vmatprep.subr.bf16.mxu0 0
  %547 = vmatpush1.bf16.msra.mxu0 0
  %548 = vmatprep.subr.bf16.mxu0 0
  %549 = vmatpush1.bf16.msra.mxu0 0
  %550 = vmatprep.subr.bf16.mxu0 0
  %551 = vmatpush1.bf16.msra.mxu0 0
  %552 = vmatprep.subr.bf16.mxu0 0
  %553 = vmatpush1.bf16.msra.mxu0 0
  %554 = vmatprep.subr.bf16.mxu0 0
  %555 = vmatpush1.bf16.msra.mxu0 0
  %556 = vmatprep.subr.bf16.mxu0 0
  %557 = vmatpush1.bf16.msra.mxu0 0
  %558 = vmatprep.subr.bf16.mxu0 0
  %559 = vmatpush1.bf16.msra.mxu0 0
  %560 = vmatprep.subr.bf16.mxu0 0
  %561 = vmatpush1.bf16.msra.mxu0 0
  %562 = vmatprep.subr.bf16.mxu0 0
  %563 = vmatpush1.bf16.msra.mxu0 0
  %564 = vmatprep.subr.bf16.mxu0 0
  %565 = vmatpush1.bf16.msra.mxu0 0
  %566 = vmatprep.mubr.bf16.mxu0 0
  %567 = vmatmul.mubr.bf16.gmra.mrb[0].mxu0 %v184
  %v568 = vpop.f32.mrb[0].mxu0
  %v569 = vadd.f32 %v528, %v568
  %v570 = vpop.f32.mrb[0].mxu0
  %v571 = vpop.f32.mrb[0].mxu0
  %v572 = vadd.f32 %v531, %v571
  %v573 = vpop.f32.mrb[0].mxu0
  %574 = vdwg.mxu0
  %v575 = vadd.f32 %v569, %v230
  %v576 = vadd.f32 %v572, %v235
  %vm577 = vcmp.ge.f32.partialorder %v575, 0.0
  %vm578 = vcmp.ge.f32.partialorder %v576, 0.0
  %v579 = vmul.f32 %v575, 0.2
  %v580 = vmul.f32 %v576, 0.2
  %v581 = vsel %vm577, %v575, %v579
  %v582 = vsel %vm578, %v576, %v580
  %v583 = vpack.c.bf16 %v582, %v581
  %v585 = vunpack.c.l.b16 %v583
  %v586 = vunpack.c.h.b16 %v583
  %v587 = vpack.c.b16 %v585, %v585
  %v588 = vpack.c.b16 %v586, %v586
  %s591 = scalar_lea.vmem %s7, 16
  %592 = vst.msk [vmem:[%s591] sm:$0xf] %vm253, %v587
  %593 = vst.msk [vmem:[%s591 + $0x4] sm:$0xf] %vm253, %v588
  %s594 = scalar_lea.vmem %s2, 24
  %v595 = vld [vmem:[%s594] sm:$0xf]
  %v596 = vld [vmem:[%s594 + $0x4] sm:$0xf]
  %v599 = vunpack.c.l.b16 %v595
  %v600 = vunpack.c.l.b16 %v596
  %v601 = vpack.c.b16 %v600, %v599
  %v603 = vsel %vm64, %v601, 0
  %605 = vmatprep.subr.bf16.mxu0 0
  %606 = vmatpush1.bf16.msra.mxu0 %v61
  %607 = vmatprep.subr.bf16.mxu0 0
  %608 = vmatpush1.bf16.msra.mxu0 %v70
  %609 = vmatprep.subr.bf16.mxu0 0
  %610 = vmatpush1.bf16.msra.mxu0 0
  %611 = vmatprep.subr.bf16.mxu0 0
  %612 = vmatpush1.bf16.msra.mxu0 0
  %613 = vmatprep.subr.bf16.mxu0 0
  %614 = vmatpush1.bf16.msra.mxu0 0
  %615 = vmatprep.subr.bf16.mxu0 0
  %616 = vmatpush1.bf16.msra.mxu0 0
  %617 = vmatprep.subr.bf16.mxu0 0
  %618 = vmatpush1.bf16.msra.mxu0 0
  %619 = vmatprep.subr.bf16.mxu0 0
  %620 = vmatpush1.bf16.msra.mxu0 0
  %621 = vmatprep.subr.bf16.mxu0 0
  %622 = vmatpush1.bf16.msra.mxu0 0
  %623 = vmatprep.subr.bf16.mxu0 0
  %624 = vmatpush1.bf16.msra.mxu0 0
  %625 = vmatprep.subr.bf16.mxu0 0
  %626 = vmatpush1.bf16.msra.mxu0 0
  %627 = vmatprep.subr.bf16.mxu0 0
  %628 = vmatpush1.bf16.msra.mxu0 0
  %629 = vmatprep.subr.bf16.mxu0 0
  %630 = vmatpush1.bf16.msra.mxu0 0
  %631 = vmatprep.subr.bf16.mxu0 0
  %632 = vmatpush1.bf16.msra.mxu0 0
  %633 = vmatprep.subr.bf16.mxu0 0
  %634 = vmatpush1.bf16.msra.mxu0 0
  %635 = vmatprep.subr.bf16.mxu0 0
  %636 = vmatpush1.bf16.msra.mxu0 0
  %637 = vmatprep.mubr.bf16.mxu0 0
  %638 = vmatmul.mubr.bf16.gmra.mrb[0].mxu0 %v603
  %v639 = vpop.f32.mrb[0].mxu0
  %v640 = vadd.f32 %v43, %v639
  %v641 = vpop.f32.mrb[0].mxu0
  %v642 = vpop.f32.mrb[0].mxu0
  %v643 = vadd.f32 %v48, %v642
  %v644 = vpop.f32.mrb[0].mxu0
  %645 = vdwg.mxu0
  %vm646 = vcmp.ge.f32.partialorder %v640, 0.0
  %vm647 = vcmp.ge.f32.partialorder %v643, 0.0
  %v648 = vmul.f32 %v640, 0.2
  %v649 = vmul.f32 %v643, 0.2
  %v650 = vsel %vm646, %v640, %v648
  %v651 = vsel %vm647, %v643, %v649
  %v652 = vpack.c.bf16 %v651, %v650
  %s653 = scalar_lea.vmem %s1, 24
  %v654 = vld [vmem:[%s653] sm:$0xf]
  %v655 = vld [vmem:[%s653 + $0x4] sm:$0xf]
  %v658 = vunpack.c.l.b16 %v654
  %v659 = vunpack.c.l.b16 %v655
  %v660 = vpack.c.b16 %v659, %v658
  %662 = vmatprep.subr.bf16.mxu0 0
  %663 = vmatpush1.bf16.msra.mxu0 %v660
  %664 = vmatprep.subr.bf16.mxu0 0
  %665 = vmatpush1.bf16.msra.mxu0 0
  %666 = vmatprep.subr.bf16.mxu0 0
  %667 = vmatpush1.bf16.msra.mxu0 0
  %668 = vmatprep.subr.bf16.mxu0 0
  %669 = vmatpush1.bf16.msra.mxu0 0
  %670 = vmatprep.subr.bf16.mxu0 0
  %671 = vmatpush1.bf16.msra.mxu0 0
  %672 = vmatprep.subr.bf16.mxu0 0
  %673 = vmatpush1.bf16.msra.mxu0 0
  %674 = vmatprep.subr.bf16.mxu0 0
  %675 = vmatpush1.bf16.msra.mxu0 0
  %676 = vmatprep.subr.bf16.mxu0 0
  %677 = vmatpush1.bf16.msra.mxu0 0
  %678 = vmatprep.subr.bf16.mxu0 0
  %679 = vmatpush1.bf16.msra.mxu0 0
  %680 = vmatprep.subr.bf16.mxu0 0
  %681 = vmatpush1.bf16.msra.mxu0 0
  %682 = vmatprep.subr.bf16.mxu0 0
  %683 = vmatpush1.bf16.msra.mxu0 0
  %684 = vmatprep.subr.bf16.mxu0 0
  %685 = vmatpush1.bf16.msra.mxu0 0
  %686 = vmatprep.subr.bf16.mxu0 0
  %687 = vmatpush1.bf16.msra.mxu0 0
  %688 = vmatprep.subr.bf16.mxu0 0
  %689 = vmatpush1.bf16.msra.mxu0 0
  %690 = vmatprep.subr.bf16.mxu0 0
  %691 = vmatpush1.bf16.msra.mxu0 0
  %692 = vmatprep.subr.bf16.mxu0 0
  %693 = vmatpush1.bf16.msra.mxu0 0
  %694 = vmatprep.mubr.bf16.mxu0 0
  %695 = vmatmul.mubr.bf16.gmra.mrb[0].mxu0 %v135
  %v696 = vpop.f32.mrb[0].mxu0
  %v697 = vadd.f32 0.0, %v696
  %v698 = vpop.f32.mrb[0].mxu0
  %v699 = vpop.f32.mrb[0].mxu0
  %v700 = vadd.f32 0.0, %v699
  %v701 = vpop.f32.mrb[0].mxu0
  %702 = vdwg.mxu0
  %703 = vmatprep.subr.bf16.mxu0 0
  %704 = vmatpush1.bf16.msra.mxu0 %v652
  %705 = vmatprep.subr.bf16.mxu0 0
  %706 = vmatpush1.bf16.msra.mxu0 0
  %707 = vmatprep.subr.bf16.mxu0 0
  %708 = vmatpush1.bf16.msra.mxu0 0
  %709 = vmatprep.subr.bf16.mxu0 0
  %710 = vmatpush1.bf16.msra.mxu0 0
  %711 = vmatprep.subr.bf16.mxu0 0
  %712 = vmatpush1.bf16.msra.mxu0 0
  %713 = vmatprep.subr.bf16.mxu0 0
  %714 = vmatpush1.bf16.msra.mxu0 0
  %715 = vmatprep.subr.bf16.mxu0 0
  %716 = vmatpush1.bf16.msra.mxu0 0
  %717 = vmatprep.subr.bf16.mxu0 0
  %718 = vmatpush1.bf16.msra.mxu0 0
  %719 = vmatprep.subr.bf16.mxu0 0
  %720 = vmatpush1.bf16.msra.mxu0 0
  %721 = vmatprep.subr.bf16.mxu0 0
  %722 = vmatpush1.bf16.msra.mxu0 0
  %723 = vmatprep.subr.bf16.mxu0 0
  %724 = vmatpush1.bf16.msra.mxu0 0
  %725 = vmatprep.subr.bf16.mxu0 0
  %726 = vmatpush1.bf16.msra.mxu0 0
  %727 = vmatprep.subr.bf16.mxu0 0
  %728 = vmatpush1.bf16.msra.mxu0 0
  %729 = vmatprep.subr.bf16.mxu0 0
  %730 = vmatpush1.bf16.msra.mxu0 0
  %731 = vmatprep.subr.bf16.mxu0 0
  %732 = vmatpush1.bf16.msra.mxu0 0
  %733 = vmatprep.subr.bf16.mxu0 0
  %734 = vmatpush1.bf16.msra.mxu0 0
  %735 = vmatprep.mubr.bf16.mxu0 0
  %736 = vmatmul.mubr.bf16.gmra.mrb[0].mxu0 %v184
  %v737 = vpop.f32.mrb[0].mxu0
  %v738 = vadd.f32 %v697, %v737
  %v739 = vpop.f32.mrb[0].mxu0
  %v740 = vpop.f32.mrb[0].mxu0
  %v741 = vadd.f32 %v700, %v740
  %v742 = vpop.f32.mrb[0].mxu0
  %743 = vdwg.mxu0
  %v744 = vadd.f32 %v738, %v230
  %v745 = vadd.f32 %v741, %v235
  %vm746 = vcmp.ge.f32.partialorder %v744, 0.0
  %vm747 = vcmp.ge.f32.partialorder %v745, 0.0
  %v748 = vmul.f32 %v744, 0.2
  %v749 = vmul.f32 %v745, 0.2
  %v750 = vsel %vm746, %v744, %v748
  %v751 = vsel %vm747, %v745, %v749
  %v752 = vpack.c.bf16 %v751, %v750
  %v754 = vunpack.c.l.b16 %v752
  %v755 = vunpack.c.h.b16 %v752
  %v756 = vpack.c.b16 %v754, %v754
  %v757 = vpack.c.b16 %v755, %v755
  %s760 = scalar_lea.vmem %s7, 24
  %761 = vst.msk [vmem:[%s760] sm:$0xf] %vm253, %v756
  %762 = vst.msk [vmem:[%s760 + $0x4] sm:$0xf] %vm253, %v757
  // Predicated region
  $region30: #{feature_extractor_forward.37} parent=0 // pred_check
    _
  $region31: #{feature_extractor_forward.37} parent=0 // pred_check_branch
    %764 = sbr.rel (0) target = $region33
  $region32: #{feature_extractor_forward.37} parent=0 // pred_region
    _
  $region33: #{feature_extractor_forward.37} parent=0 // pred_fallthru
    _
  // Predicated region
  $region34: #{feature_extractor_forward.37} parent=0 // pred_check
    _
  $region35: #{feature_extractor_forward.37} parent=0 // pred_check_branch
    %766 = sbr.rel (0) target = $region37
  $region36: #{feature_extractor_forward.37} parent=0 // pred_region
    _
  $region37: #{feature_extractor_forward.37} parent=0 // pred_fallthru
    _

// kernel: feature_extractor_forward.40
$region0: #{feature_extractor_forward.40}
  #allocation0 [shape = 'u32[]', space=smem, size = 0x4, offset = 0x4, fixed_abs, tag = 'smem constant byte address 0x4 - core index']
  #allocation1 [shape = 'u32[144,128]{1,0:T(1,128)}', space=vmem, size = 0x12000, scoped, tag = 'internal scratch']
  %s0 = inlined_call_operand.vmem [shape: bf16[16,32], index: 0, kind: input, shape index: {}]
  %s1 = inlined_call_operand.vmem [shape: bf16[4,16,32], index: 1, kind: input, shape index: {}]
  %s2 = inlined_call_operand.vmem [shape: bf16[4,16,16], index: 2, kind: input, shape index: {}]
  %s3 = inlined_call_operand.vmem [shape: bf16[16,16], index: 3, kind: input, shape index: {}]
  %s4 = inlined_call_operand.vmem [shape: bf16[16,16], index: 4, kind: input, shape index: {}]
  %s5 = inlined_call_operand.vmem [shape: f32[16,1], index: 5, kind: input, shape index: {}]
  %s6 = inlined_call_operand.vmem [shape: f32[16,1], index: 6, kind: input, shape index: {}]
  %s7 = inlined_call_operand.vmem [shape: bf16[4,16,32], index: 7, kind: output, shape index: {}]
  %s8 = sld [smem:[#allocation0]]
  $region38: #{feature_extractor_forward.40} parent=0
    _
  %s10 = ssub.s32 1, %s8
  %s11 = scalar_select 0, %s10, %s8
  // Predicated region
  $region2: #{feature_extractor_forward.40} parent=0 // pred_check
    _
  $region3: #{feature_extractor_forward.40} parent=0 // pred_check_branch
    %13 = sbr.rel (0) target = $region5
  $region4: #{feature_extractor_forward.40} parent=0 // pred_region
    _
  $region5: #{feature_extractor_forward.40} parent=0 // pred_fallthru
    _
  // Predicated region
  $region6: #{feature_extractor_forward.40} parent=0 // pred_check
    _
  $region7: #{feature_extractor_forward.40} parent=0 // pred_check_branch
    %15 = sbr.rel (0) target = $region9
  $region8: #{feature_extractor_forward.40} parent=0 // pred_region
    _
  $region9: #{feature_extractor_forward.40} parent=0 // pred_fallthru
    _
  // Predicated region
  $region10: #{feature_extractor_forward.40} parent=0 // pred_check
    _
  $region11: #{feature_extractor_forward.40} parent=0 // pred_check_branch
    %17 = sbr.rel (0) target = $region13
  $region12: #{feature_extractor_forward.40} parent=0 // pred_region
    _
  $region13: #{feature_extractor_forward.40} parent=0 // pred_fallthru
    _
  // Predicated region
  $region14: #{feature_extractor_forward.40} parent=0 // pred_check
    _
  $region15: #{feature_extractor_forward.40} parent=0 // pred_check_branch
    %19 = sbr.rel (0) target = $region17
  $region16: #{feature_extractor_forward.40} parent=0 // pred_region
    _
  $region17: #{feature_extractor_forward.40} parent=0 // pred_fallthru
    _
  // Predicated region
  $region18: #{feature_extractor_forward.40} parent=0 // pred_check
    _
  $region19: #{feature_extractor_forward.40} parent=0 // pred_check_branch
    %21 = sbr.rel (0) target = $region21
  $region20: #{feature_extractor_forward.40} parent=0 // pred_region
    _
  $region21: #{feature_extractor_forward.40} parent=0 // pred_fallthru
    _
  // Predicated region
  $region22: #{feature_extractor_forward.40} parent=0 // pred_check
    _
  $region23: #{feature_extractor_forward.40} parent=0 // pred_check_branch
    %23 = sbr.rel (0) target = $region25
  $region24: #{feature_extractor_forward.40} parent=0 // pred_region
    _
  $region25: #{feature_extractor_forward.40} parent=0 // pred_fallthru
    _
  // Predicated region
  $region26: #{feature_extractor_forward.40} parent=0 // pred_check
    _
  $region27: #{feature_extractor_forward.40} parent=0 // pred_check_branch
    %25 = sbr.rel (0) target = $region29
  $region28: #{feature_extractor_forward.40} parent=0 // pred_region
    _
  $region29: #{feature_extractor_forward.40} parent=0 // pred_fallthru
    _
  %v27 = vld [vmem:[%s0] sm:$0xf]
  %v28 = vld [vmem:[%s0 + $0x4] sm:$0xf]
  %v29 = vld [vmem:[%s3] sm:$0xf]
  %v30 = vld [vmem:[%s3 + $0x4] sm:$0xf]
  %v31 = vld [vmem:[%s4] sm:$0xf]
  %v32 = vld [vmem:[%s4 + $0x4] sm:$0xf]
  %v33 = vld [vmem:[%s5] sm:$0xff]
  %v34 = vld [vmem:[%s5 + $0x8] sm:$0xff]
  %v35 = vld [vmem:[%s6] sm:$0xff]
  %v36 = vld [vmem:[%s6 + $0x8] sm:$0xff]
  %v37 = vld [vmem:[%s2] sm:$0xf]
  %v38 = vld [vmem:[%s2 + $0x4] sm:$0xf]
  %40 = vset.pattern.permute.xlu0 0
  %41 = vperm.xlu0 %40, %v33
  %v42 = vpop.permute.xlu0 %41
  %45 = vset.pattern.permute.xlu0 0
  %46 = vperm.xlu0 %45, %v34
  %v47 = vpop.permute.xlu0 %46
  %v51 = vunpack.c.l.b16 %v37
  %v52 = vunpack.c.l.b16 %v38
  %v53 = vpack.c.b16 %v52, %v51
  %v56 = vunpack.c.l.b16 %v27
  %v57 = vunpack.c.l.b16 %v28
  %v58 = vpack.c.b16 %v57, %v56
  %vm60 = vcmask 130048
  %v62 = vsel %vm60, %v53, 0
  %64 = vmatprep.subr.bf16.mxu0 0
  %65 = vmatpush1.bf16.msra.mxu0 %v58
  %66 = vmatprep.subr.bf16.mxu0 0
  %67 = vmatpush1.bf16.msra.mxu0 0
  %68 = vmatprep.subr.bf16.mxu0 0
  %69 = vmatpush1.bf16.msra.mxu0 0
  %70 = vmatprep.subr.bf16.mxu0 0
  %71 = vmatpush1.bf16.msra.mxu0 0
  %72 = vmatprep.subr.bf16.mxu0 0
  %73 = vmatpush1.bf16.msra.mxu0 0
  %74 = vmatprep.subr.bf16.mxu0 0
  %75 = vmatpush1.bf16.msra.mxu0 0
  %76 = vmatprep.subr.bf16.mxu0 0
  %77 = vmatpush1.bf16.msra.mxu0 0
  %78 = vmatprep.subr.bf16.mxu0 0
  %79 = vmatpush1.bf16.msra.mxu0 0
  %80 = vmatprep.subr.bf16.mxu0 0
  %81 = vmatpush1.bf16.msra.mxu0 0
  %82 = vmatprep.subr.bf16.mxu0 0
  %83 = vmatpush1.bf16.msra.mxu0 0
  %84 = vmatprep.subr.bf16.mxu0 0
  %85 = vmatpush1.bf16.msra.mxu0 0
  %86 = vmatprep.subr.bf16.mxu0 0
  %87 = vmatpush1.bf16.msra.mxu0 0
  %88 = vmatprep.subr.bf16.mxu0 0
  %89 = vmatpush1.bf16.msra.mxu0 0
  %90 = vmatprep.subr.bf16.mxu0 0
  %91 = vmatpush1.bf16.msra.mxu0 0
  %92 = vmatprep.subr.bf16.mxu0 0
  %93 = vmatpush1.bf16.msra.mxu0 0
  %94 = vmatprep.subr.bf16.mxu0 0
  %95 = vmatpush1.bf16.msra.mxu0 0
  %96 = vmatprep.mubr.bf16.mxu0 0
  %97 = vmatmul.mubr.bf16.gmra.mrb[0].mxu0 %v62
  %v98 = vpop.f32.mrb[0].mxu0
  %v99 = vadd.f32 %v42, %v98
  %v100 = vpop.f32.mrb[0].mxu0
  %v101 = vpop.f32.mrb[0].mxu0
  %v102 = vadd.f32 %v47, %v101
  %v103 = vpop.f32.mrb[0].mxu0
  %104 = vdwg.mxu0
  %vm105 = vcmp.ge.f32.partialorder %v99, 0.0
  %vm106 = vcmp.ge.f32.partialorder %v102, 0.0
  %v107 = vmul.f32 %v99, 0.2
  %v108 = vmul.f32 %v102, 0.2
  %v109 = vsel %vm105, %v99, %v107
  %v110 = vsel %vm106, %v102, %v108
  %v111 = vpack.c.bf16 %v110, %v109
  %v112 = vld [vmem:[%s1] sm:$0xf]
  %v113 = vld [vmem:[%s1 + $0x4] sm:$0xf]
  %v116 = vunpack.c.l.b16 %v31
  %v117 = vunpack.c.l.b16 %v32
  %v118 = vpack.c.b16 %v117, %v116
  %v121 = vunpack.c.l.b16 %v112
  %v122 = vunpack.c.l.b16 %v113
  %v123 = vpack.c.b16 %v122, %v121
  %v126 = vsel %vm60, %v118, 0
  %128 = vmatprep.subr.bf16.mxu0 0
  %129 = vmatpush1.bf16.msra.mxu0 %v123
  %130 = vmatprep.subr.bf16.mxu0 0
  %131 = vmatpush1.bf16.msra.mxu0 0
  %132 = vmatprep.subr.bf16.mxu0 0
  %133 = vmatpush1.bf16.msra.mxu0 0
  %134 = vmatprep.subr.bf16.mxu0 0
  %135 = vmatpush1.bf16.msra.mxu0 0
  %136 = vmatprep.subr.bf16.mxu0 0
  %137 = vmatpush1.bf16.msra.mxu0 0
  %138 = vmatprep.subr.bf16.mxu0 0
  %139 = vmatpush1.bf16.msra.mxu0 0
  %140 = vmatprep.subr.bf16.mxu0 0
  %141 = vmatpush1.bf16.msra.mxu0 0
  %142 = vmatprep.subr.bf16.mxu0 0
  %143 = vmatpush1.bf16.msra.mxu0 0
  %144 = vmatprep.subr.bf16.mxu0 0
  %145 = vmatpush1.bf16.msra.mxu0 0
  %146 = vmatprep.subr.bf16.mxu0 0
  %147 = vmatpush1.bf16.msra.mxu0 0
  %148 = vmatprep.subr.bf16.mxu0 0
  %149 = vmatpush1.bf16.msra.mxu0 0
  %150 = vmatprep.subr.bf16.mxu0 0
  %151 = vmatpush1.bf16.msra.mxu0 0
  %152 = vmatprep.subr.bf16.mxu0 0
  %153 = vmatpush1.bf16.msra.mxu0 0
  %154 = vmatprep.subr.bf16.mxu0 0
  %155 = vmatpush1.bf16.msra.mxu0 0
  %156 = vmatprep.subr.bf16.mxu0 0
  %157 = vmatpush1.bf16.msra.mxu0 0
  %158 = vmatprep.subr.bf16.mxu0 0
  %159 = vmatpush1.bf16.msra.mxu0 0
  %160 = vmatprep.mubr.bf16.mxu0 0
  %161 = vmatmul.mubr.bf16.gmra.mrb[0].mxu0 %v126
  %v162 = vpop.f32.mrb[0].mxu0
  %v163 = vadd.f32 0.0, %v162
  %v164 = vpop.f32.mrb[0].mxu0
  %v165 = vpop.f32.mrb[0].mxu0
  %v166 = vadd.f32 0.0, %v165
  %v167 = vpop.f32.mrb[0].mxu0
  %168 = vdwg.mxu0
  %v171 = vunpack.c.l.b16 %v29
  %v172 = vunpack.c.l.b16 %v30
  %v173 = vpack.c.b16 %v172, %v171
  %v175 = vsel %vm60, %v173, 0
  %177 = vmatprep.subr.bf16.mxu0 0
  %178 = vmatpush1.bf16.msra.mxu0 %v111
  %179 = vmatprep.subr.bf16.mxu0 0
  %180 = vmatpush1.bf16.msra.mxu0 0
  %181 = vmatprep.subr.bf16.mxu0 0
  %182 = vmatpush1.bf16.msra.mxu0 0
  %183 = vmatprep.subr.bf16.mxu0 0
  %184 = vmatpush1.bf16.msra.mxu0 0
  %185 = vmatprep.subr.bf16.mxu0 0
  %186 = vmatpush1.bf16.msra.mxu0 0
  %187 = vmatprep.subr.bf16.mxu0 0
  %188 = vmatpush1.bf16.msra.mxu0 0
  %189 = vmatprep.subr.bf16.mxu0 0
  %190 = vmatpush1.bf16.msra.mxu0 0
  %191 = vmatprep.subr.bf16.mxu0 0
  %192 = vmatpush1.bf16.msra.mxu0 0
  %193 = vmatprep.subr.bf16.mxu0 0
  %194 = vmatpush1.bf16.msra.mxu0 0
  %195 = vmatprep.subr.bf16.mxu0 0
  %196 = vmatpush1.bf16.msra.mxu0 0
  %197 = vmatprep.subr.bf16.mxu0 0
  %198 = vmatpush1.bf16.msra.mxu0 0
  %199 = vmatprep.subr.bf16.mxu0 0
  %200 = vmatpush1.bf16.msra.mxu0 0
  %201 = vmatprep.subr.bf16.mxu0 0
  %202 = vmatpush1.bf16.msra.mxu0 0
  %203 = vmatprep.subr.bf16.mxu0 0
  %204 = vmatpush1.bf16.msra.mxu0 0
  %205 = vmatprep.subr.bf16.mxu0 0
  %206 = vmatpush1.bf16.msra.mxu0 0
  %207 = vmatprep.subr.bf16.mxu0 0
  %208 = vmatpush1.bf16.msra.mxu0 0
  %209 = vmatprep.mubr.bf16.mxu0 0
  %210 = vmatmul.mubr.bf16.gmra.mrb[0].mxu0 %v175
  %v211 = vpop.f32.mrb[0].mxu0
  %v212 = vadd.f32 %v163, %v211
  %v213 = vpop.f32.mrb[0].mxu0
  %v214 = vpop.f32.mrb[0].mxu0
  %v215 = vadd.f32 %v166, %v214
  %v216 = vpop.f32.mrb[0].mxu0
  %217 = vdwg.mxu0
  %219 = vset.pattern.permute.xlu0 0
  %220 = vperm.xlu0 %219, %v35
  %v221 = vpop.permute.xlu0 %220
  %224 = vset.pattern.permute.xlu0 0
  %225 = vperm.xlu0 %224, %v36
  %v226 = vpop.permute.xlu0 %225
  %v228 = vadd.f32 %v212, %v221
  %v229 = vadd.f32 %v215, %v226
  %vm230 = vcmp.ge.f32.partialorder %v228, 0.0
  %vm231 = vcmp.ge.f32.partialorder %v229, 0.0
  %v232 = vmul.f32 %v228, 0.2
  %v233 = vmul.f32 %v229, 0.2
  %v234 = vsel %vm230, %v228, %v232
  %v235 = vsel %vm231, %v229, %v233
  %v236 = vpack.c.bf16 %v235, %v234
  %v238 = vunpack.c.l.b16 %v236
  %v239 = vunpack.c.h.b16 %v236
  %v240 = vpack.c.b16 %v238, %v238
  %v241 = vpack.c.b16 %v239, %v239
  %vm244 = vcmask 257024
  %245 = vst.msk [vmem:[%s7] sm:$0xf] %vm244, %v240
  %246 = vst.msk [vmem:[%s7 + $0x4] sm:$0xf] %vm244, %v241
  %s247 = scalar_lea.vmem %s2, 8
  %v248 = vld [vmem:[%s247] sm:$0xf]
  %v249 = vld [vmem:[%s247 + $0x4] sm:$0xf]
  %v252 = vunpack.c.l.b16 %v248
  %v253 = vunpack.c.l.b16 %v249
  %v254 = vpack.c.b16 %v253, %v252
  %v256 = vsel %vm60, %v254, 0
  %258 = vmatprep.subr.bf16.mxu0 0
  %259 = vmatpush1.bf16.msra.mxu0 %v58
  %260 = vmatprep.subr.bf16.mxu0 0
  %261 = vmatpush1.bf16.msra.mxu0 0
  %262 = vmatprep.subr.bf16.mxu0 0
  %263 = vmatpush1.bf16.msra.mxu0 0
  %264 = vmatprep.subr.bf16.mxu0 0
  %265 = vmatpush1.bf16.msra.mxu0 0
  %266 = vmatprep.subr.bf16.mxu0 0
  %267 = vmatpush1.bf16.msra.mxu0 0
  %268 = vmatprep.subr.bf16.mxu0 0
  %269 = vmatpush1.bf16.msra.mxu0 0
  %270 = vmatprep.subr.bf16.mxu0 0
  %271 = vmatpush1.bf16.msra.mxu0 0
  %272 = vmatprep.subr.bf16.mxu0 0
  %273 = vmatpush1.bf16.msra.mxu0 0
  %274 = vmatprep.subr.bf16.mxu0 0
  %275 = vmatpush1.bf16.msra.mxu0 0
  %276 = vmatprep.subr.bf16.mxu0 0
  %277 = vmatpush1.bf16.msra.mxu0 0
  %278 = vmatprep.subr.bf16.mxu0 0
  %279 = vmatpush1.bf16.msra.mxu0 0
  %280 = vmatprep.subr.bf16.mxu0 0
  %281 = vmatpush1.bf16.msra.mxu0 0
  %282 = vmatprep.subr.bf16.mxu0 0
  %283 = vmatpush1.bf16.msra.mxu0 0
  %284 = vmatprep.subr.bf16.mxu0 0
  %285 = vmatpush1.bf16.msra.mxu0 0
  %286 = vmatprep.subr.bf16.mxu0 0
  %287 = vmatpush1.bf16.msra.mxu0 0
  %288 = vmatprep.subr.bf16.mxu0 0
  %289 = vmatpush1.bf16.msra.mxu0 0
  %290 = vmatprep.mubr.bf16.mxu0 0
  %291 = vmatmul.mubr.bf16.gmra.mrb[0].mxu0 %v256
  %v292 = vpop.f32.mrb[0].mxu0
  %v293 = vadd.f32 %v42, %v292
  %v294 = vpop.f32.mrb[0].mxu0
  %v295 = vpop.f32.mrb[0].mxu0
  %v296 = vadd.f32 %v47, %v295
  %v297 = vpop.f32.mrb[0].mxu0
  %298 = vdwg.mxu0
  %vm299 = vcmp.ge.f32.partialorder %v293, 0.0
  %vm300 = vcmp.ge.f32.partialorder %v296, 0.0
  %v301 = vmul.f32 %v293, 0.2
  %v302 = vmul.f32 %v296, 0.2
  %v303 = vsel %vm299, %v293, %v301
  %v304 = vsel %vm300, %v296, %v302
  %v305 = vpack.c.bf16 %v304, %v303
  %s306 = scalar_lea.vmem %s1, 8
  %v307 = vld [vmem:[%s306] sm:$0xf]
  %v308 = vld [vmem:[%s306 + $0x4] sm:$0xf]
  %v311 = vunpack.c.l.b16 %v307
  %v312 = vunpack.c.l.b16 %v308
  %v313 = vpack.c.b16 %v312, %v311
  %315 = vmatprep.subr.bf16.mxu0 0
  %316 = vmatpush1.bf16.msra.mxu0 %v313
  %317 = vmatprep.subr.bf16.mxu0 0
  %318 = vmatpush1.bf16.msra.mxu0 0
  %319 = vmatprep.subr.bf16.mxu0 0
  %320 = vmatpush1.bf16.msra.mxu0 0
  %321 = vmatprep.subr.bf16.mxu0 0
  %322 = vmatpush1.bf16.msra.mxu0 0
  %323 = vmatprep.subr.bf16.mxu0 0
  %324 = vmatpush1.bf16.msra.mxu0 0
  %325 = vmatprep.subr.bf16.mxu0 0
  %326 = vmatpush1.bf16.msra.mxu0 0
  %327 = vmatprep.subr.bf16.mxu0 0
  %328 = vmatpush1.bf16.msra.mxu0 0
  %329 = vmatprep.subr.bf16.mxu0 0
  %330 = vmatpush1.bf16.msra.mxu0 0
  %331 = vmatprep.subr.bf16.mxu0 0
  %332 = vmatpush1.bf16.msra.mxu0 0
  %333 = vmatprep.subr.bf16.mxu0 0
  %334 = vmatpush1.bf16.msra.mxu0 0
  %335 = vmatprep.subr.bf16.mxu0 0
  %336 = vmatpush1.bf16.msra.mxu0 0
  %337 = vmatprep.subr.bf16.mxu0 0
  %338 = vmatpush1.bf16.msra.mxu0 0
  %339 = vmatprep.subr.bf16.mxu0 0
  %340 = vmatpush1.bf16.msra.mxu0 0
  %341 = vmatprep.subr.bf16.mxu0 0
  %342 = vmatpush1.bf16.msra.mxu0 0
  %343 = vmatprep.subr.bf16.mxu0 0
  %344 = vmatpush1.bf16.msra.mxu0 0
  %345 = vmatprep.subr.bf16.mxu0 0
  %346 = vmatpush1.bf16.msra.mxu0 0
  %347 = vmatprep.mubr.bf16.mxu0 0
  %348 = vmatmul.mubr.bf16.gmra.mrb[0].mxu0 %v126
  %v349 = vpop.f32.mrb[0].mxu0
  %v350 = vadd.f32 0.0, %v349
  %v351 = vpop.f32.mrb[0].mxu0
  %v352 = vpop.f32.mrb[0].mxu0
  %v353 = vadd.f32 0.0, %v352
  %v354 = vpop.f32.mrb[0].mxu0
  %355 = vdwg.mxu0
  %356 = vmatprep.subr.bf16.mxu0 0
  %357 = vmatpush1.bf16.msra.mxu0 %v305
  %358 = vmatprep.subr.bf16.mxu0 0
  %359 = vmatpush1.bf16.msra.mxu0 0
  %360 = vmatprep.subr.bf16.mxu0 0
  %361 = vmatpush1.bf16.msra.mxu0 0
  %362 = vmatprep.subr.bf16.mxu0 0
  %363 = vmatpush1.bf16.msra.mxu0 0
  %364 = vmatprep.subr.bf16.mxu0 0
  %365 = vmatpush1.bf16.msra.mxu0 0
  %366 = vmatprep.subr.bf16.mxu0 0
  %367 = vmatpush1.bf16.msra.mxu0 0
  %368 = vmatprep.subr.bf16.mxu0 0
  %369 = vmatpush1.bf16.msra.mxu0 0
  %370 = vmatprep.subr.bf16.mxu0 0
  %371 = vmatpush1.bf16.msra.mxu0 0
  %372 = vmatprep.subr.bf16.mxu0 0
  %373 = vmatpush1.bf16.msra.mxu0 0
  %374 = vmatprep.subr.bf16.mxu0 0
  %375 = vmatpush1.bf16.msra.mxu0 0
  %376 = vmatprep.subr.bf16.mxu0 0
  %377 = vmatpush1.bf16.msra.mxu0 0
  %378 = vmatprep.subr.bf16.mxu0 0
  %379 = vmatpush1.bf16.msra.mxu0 0
  %380 = vmatprep.subr.bf16.mxu0 0
  %381 = vmatpush1.bf16.msra.mxu0 0
  %382 = vmatprep.subr.bf16.mxu0 0
  %383 = vmatpush1.bf16.msra.mxu0 0
  %384 = vmatprep.subr.bf16.mxu0 0
  %385 = vmatpush1.bf16.msra.mxu0 0
  %386 = vmatprep.subr.bf16.mxu0 0
  %387 = vmatpush1.bf16.msra.mxu0 0
  %388 = vmatprep.mubr.bf16.mxu0 0
  %389 = vmatmul.mubr.bf16.gmra.mrb[0].mxu0 %v175
  %v390 = vpop.f32.mrb[0].mxu0
  %v391 = vadd.f32 %v350, %v390
  %v392 = vpop.f32.mrb[0].mxu0
  %v393 = vpop.f32.mrb[0].mxu0
  %v394 = vadd.f32 %v353, %v393
  %v395 = vpop.f32.mrb[0].mxu0
  %396 = vdwg.mxu0
  %v397 = vadd.f32 %v391, %v221
  %v398 = vadd.f32 %v394, %v226
  %vm399 = vcmp.ge.f32.partialorder %v397, 0.0
  %vm400 = vcmp.ge.f32.partialorder %v398, 0.0
  %v401 = vmul.f32 %v397, 0.2
  %v402 = vmul.f32 %v398, 0.2
  %v403 = vsel %vm399, %v397, %v401
  %v404 = vsel %vm400, %v398, %v402
  %v405 = vpack.c.bf16 %v404, %v403
  %v407 = vunpack.c.l.b16 %v405
  %v408 = vunpack.c.h.b16 %v405
  %v409 = vpack.c.b16 %v407, %v407
  %v410 = vpack.c.b16 %v408, %v408
  %s413 = scalar_lea.vmem %s7, 8
  %414 = vst.msk [vmem:[%s413] sm:$0xf] %vm244, %v409
  %415 = vst.msk [vmem:[%s413 + $0x4] sm:$0xf] %vm244, %v410
  %s416 = scalar_lea.vmem %s2, 16
  %v417 = vld [vmem:[%s416] sm:$0xf]
  %v418 = vld [vmem:[%s416 + $0x4] sm:$0xf]
  %v421 = vunpack.c.l.b16 %v417
  %v422 = vunpack.c.l.b16 %v418
  %v423 = vpack.c.b16 %v422, %v421
  %v425 = vsel %vm60, %v423, 0
  %427 = vmatprep.subr.bf16.mxu0 0
  %428 = vmatpush1.bf16.msra.mxu0 %v58
  %429 = vmatprep.subr.bf16.mxu0 0
  %430 = vmatpush1.bf16.msra.mxu0 0
  %431 = vmatprep.subr.bf16.mxu0 0
  %432 = vmatpush1.bf16.msra.mxu0 0
  %433 = vmatprep.subr.bf16.mxu0 0
  %434 = vmatpush1.bf16.msra.mxu0 0
  %435 = vmatprep.subr.bf16.mxu0 0
  %436 = vmatpush1.bf16.msra.mxu0 0
  %437 = vmatprep.subr.bf16.mxu0 0
  %438 = vmatpush1.bf16.msra.mxu0 0
  %439 = vmatprep.subr.bf16.mxu0 0
  %440 = vmatpush1.bf16.msra.mxu0 0
  %441 = vmatprep.subr.bf16.mxu0 0
  %442 = vmatpush1.bf16.msra.mxu0 0
  %443 = vmatprep.subr.bf16.mxu0 0
  %444 = vmatpush1.bf16.msra.mxu0 0
  %445 = vmatprep.subr.bf16.mxu0 0
  %446 = vmatpush1.bf16.msra.mxu0 0
  %447 = vmatprep.subr.bf16.mxu0 0
  %448 = vmatpush1.bf16.msra.mxu0 0
  %449 = vmatprep.subr.bf16.mxu0 0
  %450 = vmatpush1.bf16.msra.mxu0 0
  %451 = vmatprep.subr.bf16.mxu0 0
  %452 = vmatpush1.bf16.msra.mxu0 0
  %453 = vmatprep.subr.bf16.mxu0 0
  %454 = vmatpush1.bf16.msra.mxu0 0
  %455 = vmatprep.subr.bf16.mxu0 0
  %456 = vmatpush1.bf16.msra.mxu0 0
  %457 = vmatprep.subr.bf16.mxu0 0
  %458 = vmatpush1.bf16.msra.mxu0 0
  %459 = vmatprep.mubr.bf16.mxu0 0
  %460 = vmatmul.mubr.bf16.gmra.mrb[0].mxu0 %v425
  %v461 = vpop.f32.mrb[0].mxu0
  %v462 = vadd.f32 %v42, %v461
  %v463 = vpop.f32.mrb[0].mxu0
  %v464 = vpop.f32.mrb[0].mxu0
  %v465 = vadd.f32 %v47, %v464
  %v466 = vpop.f32.mrb[0].mxu0
  %467 = vdwg.mxu0
  %vm468 = vcmp.ge.f32.partialorder %v462, 0.0
  %vm469 = vcmp.ge.f32.partialorder %v465, 0.0
  %v470 = vmul.f32 %v462, 0.2
  %v471 = vmul.f32 %v465, 0.2
  %v472 = vsel %vm468, %v462, %v470
  %v473 = vsel %vm469, %v465, %v471
  %v474 = vpack.c.bf16 %v473, %v472
  %s475 = scalar_lea.vmem %s1, 16
  %v476 = vld [vmem:[%s475] sm:$0xf]
  %v477 = vld [vmem:[%s475 + $0x4] sm:$0xf]
  %v480 = vunpack.c.l.b16 %v476
  %v481 = vunpack.c.l.b16 %v477
  %v482 = vpack.c.b16 %v481, %v480
  %484 = vmatprep.subr.bf16.mxu0 0
  %485 = vmatpush1.bf16.msra.mxu0 %v482
  %486 = vmatprep.subr.bf16.mxu0 0
  %487 = vmatpush1.bf16.msra.mxu0 0
  %488 = vmatprep.subr.bf16.mxu0 0
  %489 = vmatpush1.bf16.msra.mxu0 0
  %490 = vmatprep.subr.bf16.mxu0 0
  %491 = vmatpush1.bf16.msra.mxu0 0
  %492 = vmatprep.subr.bf16.mxu0 0
  %493 = vmatpush1.bf16.msra.mxu0 0
  %494 = vmatprep.subr.bf16.mxu0 0
  %495 = vmatpush1.bf16.msra.mxu0 0
  %496 = vmatprep.subr.bf16.mxu0 0
  %497 = vmatpush1.bf16.msra.mxu0 0
  %498 = vmatprep.subr.bf16.mxu0 0
  %499 = vmatpush1.bf16.msra.mxu0 0
  %500 = vmatprep.subr.bf16.mxu0 0
  %501 = vmatpush1.bf16.msra.mxu0 0
  %502 = vmatprep.subr.bf16.mxu0 0
  %503 = vmatpush1.bf16.msra.mxu0 0
  %504 = vmatprep.subr.bf16.mxu0 0
  %505 = vmatpush1.bf16.msra.mxu0 0
  %506 = vmatprep.subr.bf16.mxu0 0
  %507 = vmatpush1.bf16.msra.mxu0 0
  %508 = vmatprep.subr.bf16.mxu0 0
  %509 = vmatpush1.bf16.msra.mxu0 0
  %510 = vmatprep.subr.bf16.mxu0 0
  %511 = vmatpush1.bf16.msra.mxu0 0
  %512 = vmatprep.subr.bf16.mxu0 0
  %513 = vmatpush1.bf16.msra.mxu0 0
  %514 = vmatprep.subr.bf16.mxu0 0
  %515 = vmatpush1.bf16.msra.mxu0 0
  %516 = vmatprep.mubr.bf16.mxu0 0
  %517 = vmatmul.mubr.bf16.gmra.mrb[0].mxu0 %v126
  %v518 = vpop.f32.mrb[0].mxu0
  %v519 = vadd.f32 0.0, %v518
  %v520 = vpop.f32.mrb[0].mxu0
  %v521 = vpop.f32.mrb[0].mxu0
  %v522 = vadd.f32 0.0, %v521
  %v523 = vpop.f32.mrb[0].mxu0
  %524 = vdwg.mxu0
  %525 = vmatprep.subr.bf16.mxu0 0
  %526 = vmatpush1.bf16.msra.mxu0 %v474
  %527 = vmatprep.subr.bf16.mxu0 0
  %528 = vmatpush1.bf16.msra.mxu0 0
  %529 = vmatprep.subr.bf16.mxu0 0
  %530 = vmatpush1.bf16.msra.mxu0 0
  %531 = vmatprep.subr.bf16.mxu0 0
  %532 = vmatpush1.bf16.msra.mxu0 0
  %533 = vmatprep.subr.bf16.mxu0 0
  %534 = vmatpush1.bf16.msra.mxu0 0
  %535 = vmatprep.subr.bf16.mxu0 0
  %536 = vmatpush1.bf16.msra.mxu0 0
  %537 = vmatprep.subr.bf16.mxu0 0
  %538 = vmatpush1.bf16.msra.mxu0 0
  %539 = vmatprep.subr.bf16.mxu0 0
  %540 = vmatpush1.bf16.msra.mxu0 0
  %541 = vmatprep.subr.bf16.mxu0 0
  %542 = vmatpush1.bf16.msra.mxu0 0
  %543 = vmatprep.subr.bf16.mxu0 0
  %544 = vmatpush1.bf16.msra.mxu0 0
  %545 = vmatprep.subr.bf16.mxu0 0
  %546 = vmatpush1.bf16.msra.mxu0 0
  %547 = vmatprep.subr.bf16.mxu0 0
  %548 = vmatpush1.bf16.msra.mxu0 0
  %549 = vmatprep.subr.bf16.mxu0 0
  %550 = vmatpush1.bf16.msra.mxu0 0
  %551 = vmatprep.subr.bf16.mxu0 0
  %552 = vmatpush1.bf16.msra.mxu0 0
  %553 = vmatprep.subr.bf16.mxu0 0
  %554 = vmatpush1.bf16.msra.mxu0 0
  %555 = vmatprep.subr.bf16.mxu0 0
  %556 = vmatpush1.bf16.msra.mxu0 0
  %557 = vmatprep.mubr.bf16.mxu0 0
  %558 = vmatmul.mubr.bf16.gmra.mrb[0].mxu0 %v175
  %v559 = vpop.f32.mrb[0].mxu0
  %v560 = vadd.f32 %v519, %v559
  %v561 = vpop.f32.mrb[0].mxu0
  %v562 = vpop.f32.mrb[0].mxu0
  %v563 = vadd.f32 %v522, %v562
  %v564 = vpop.f32.mrb[0].mxu0
  %565 = vdwg.mxu0
  %v566 = vadd.f32 %v560, %v221
  %v567 = vadd.f32 %v563, %v226
  %vm568 = vcmp.ge.f32.partialorder %v566, 0.0
  %vm569 = vcmp.ge.f32.partialorder %v567, 0.0
  %v570 = vmul.f32 %v566, 0.2
  %v571 = vmul.f32 %v567, 0.2
  %v572 = vsel %vm568, %v566, %v570
  %v573 = vsel %vm569, %v567, %v571
  %v574 = vpack.c.bf16 %v573, %v572
  %v576 = vunpack.c.l.b16 %v574
  %v577 = vunpack.c.h.b16 %v574
  %v578 = vpack.c.b16 %v576, %v576
  %v579 = vpack.c.b16 %v577, %v577
  %s582 = scalar_lea.vmem %s7, 16
  %583 = vst.msk [vmem:[%s582] sm:$0xf] %vm244, %v578
  %584 = vst.msk [vmem:[%s582 + $0x4] sm:$0xf] %vm244, %v579
  %s585 = scalar_lea.vmem %s2, 24
  %v586 = vld [vmem:[%s585] sm:$0xf]
  %v587 = vld [vmem:[%s585 + $0x4] sm:$0xf]
  %v590 = vunpack.c.l.b16 %v586
  %v591 = vunpack.c.l.b16 %v587
  %v592 = vpack.c.b16 %v591, %v590
  %v594 = vsel %vm60, %v592, 0
  %596 = vmatprep.subr.bf16.mxu0 0
  %597 = vmatpush1.bf16.msra.mxu0 %v58
  %598 = vmatprep.subr.bf16.mxu0 0
  %599 = vmatpush1.bf16.msra.mxu0 0
  %600 = vmatprep.subr.bf16.mxu0 0
  %601 = vmatpush1.bf16.msra.mxu0 0
  %602 = vmatprep.subr.bf16.mxu0 0
  %603 = vmatpush1.bf16.msra.mxu0 0
  %604 = vmatprep.subr.bf16.mxu0 0
  %605 = vmatpush1.bf16.msra.mxu0 0
  %606 = vmatprep.subr.bf16.mxu0 0
  %607 = vmatpush1.bf16.msra.mxu0 0
  %608 = vmatprep.subr.bf16.mxu0 0
  %609 = vmatpush1.bf16.msra.mxu0 0
  %610 = vmatprep.subr.bf16.mxu0 0
  %611 = vmatpush1.bf16.msra.mxu0 0
  %612 = vmatprep.subr.bf16.mxu0 0
  %613 = vmatpush1.bf16.msra.mxu0 0
  %614 = vmatprep.subr.bf16.mxu0 0
  %615 = vmatpush1.bf16.msra.mxu0 0
  %616 = vmatprep.subr.bf16.mxu0 0
  %617 = vmatpush1.bf16.msra.mxu0 0
  %618 = vmatprep.subr.bf16.mxu0 0
  %619 = vmatpush1.bf16.msra.mxu0 0
  %620 = vmatprep.subr.bf16.mxu0 0
  %621 = vmatpush1.bf16.msra.mxu0 0
  %622 = vmatprep.subr.bf16.mxu0 0
  %623 = vmatpush1.bf16.msra.mxu0 0
  %624 = vmatprep.subr.bf16.mxu0 0
  %625 = vmatpush1.bf16.msra.mxu0 0
  %626 = vmatprep.subr.bf16.mxu0 0
  %627 = vmatpush1.bf16.msra.mxu0 0
  %628 = vmatprep.mubr.bf16.mxu0 0
  %629 = vmatmul.mubr.bf16.gmra.mrb[0].mxu0 %v594
  %v630 = vpop.f32.mrb[0].mxu0
  %v631 = vadd.f32 %v42, %v630
  %v632 = vpop.f32.mrb[0].mxu0
  %v633 = vpop.f32.mrb[0].mxu0
  %v634 = vadd.f32 %v47, %v633
  %v635 = vpop.f32.mrb[0].mxu0
  %636 = vdwg.mxu0
  %vm637 = vcmp.ge.f32.partialorder %v631, 0.0
  %vm638 = vcmp.ge.f32.partialorder %v634, 0.0
  %v639 = vmul.f32 %v631, 0.2
  %v640 = vmul.f32 %v634, 0.2
  %v641 = vsel %vm637, %v631, %v639
  %v642 = vsel %vm638, %v634, %v640
  %v643 = vpack.c.bf16 %v642, %v641
  %s644 = scalar_lea.vmem %s1, 24
  %v645 = vld [vmem:[%s644] sm:$0xf]
  %v646 = vld [vmem:[%s644 + $0x4] sm:$0xf]
  %v649 = vunpack.c.l.b16 %v645
  %v650 = vunpack.c.l.b16 %v646
  %v651 = vpack.c.b16 %v650, %v649
  %653 = vmatprep.subr.bf16.mxu0 0
  %654 = vmatpush1.bf16.msra.mxu0 %v651
  %655 = vmatprep.subr.bf16.mxu0 0
  %656 = vmatpush1.bf16.msra.mxu0 0
  %657 = vmatprep.subr.bf16.mxu0 0
  %658 = vmatpush1.bf16.msra.mxu0 0
  %659 = vmatprep.subr.bf16.mxu0 0
  %660 = vmatpush1.bf16.msra.mxu0 0
  %661 = vmatprep.subr.bf16.mxu0 0
  %662 = vmatpush1.bf16.msra.mxu0 0
  %663 = vmatprep.subr.bf16.mxu0 0
  %664 = vmatpush1.bf16.msra.mxu0 0
  %665 = vmatprep.subr.bf16.mxu0 0
  %666 = vmatpush1.bf16.msra.mxu0 0
  %667 = vmatprep.subr.bf16.mxu0 0
  %668 = vmatpush1.bf16.msra.mxu0 0
  %669 = vmatprep.subr.bf16.mxu0 0
  %670 = vmatpush1.bf16.msra.mxu0 0
  %671 = vmatprep.subr.bf16.mxu0 0
  %672 = vmatpush1.bf16.msra.mxu0 0
  %673 = vmatprep.subr.bf16.mxu0 0
  %674 = vmatpush1.bf16.msra.mxu0 0
  %675 = vmatprep.subr.bf16.mxu0 0
  %676 = vmatpush1.bf16.msra.mxu0 0
  %677 = vmatprep.subr.bf16.mxu0 0
  %678 = vmatpush1.bf16.msra.mxu0 0
  %679 = vmatprep.subr.bf16.mxu0 0
  %680 = vmatpush1.bf16.msra.mxu0 0
  %681 = vmatprep.subr.bf16.mxu0 0
  %682 = vmatpush1.bf16.msra.mxu0 0
  %683 = vmatprep.subr.bf16.mxu0 0
  %684 = vmatpush1.bf16.msra.mxu0 0
  %685 = vmatprep.mubr.bf16.mxu0 0
  %686 = vmatmul.mubr.bf16.gmra.mrb[0].mxu0 %v126
  %v687 = vpop.f32.mrb[0].mxu0
  %v688 = vadd.f32 0.0, %v687
  %v689 = vpop.f32.mrb[0].mxu0
  %v690 = vpop.f32.mrb[0].mxu0
  %v691 = vadd.f32 0.0, %v690
  %v692 = vpop.f32.mrb[0].mxu0
  %693 = vdwg.mxu0
  %694 = vmatprep.subr.bf16.mxu0 0
  %695 = vmatpush1.bf16.msra.mxu0 %v643
  %696 = vmatprep.subr.bf16.mxu0 0
  %697 = vmatpush1.bf16.msra.mxu0 0
  %698 = vmatprep.subr.bf16.mxu0 0
  %699 = vmatpush1.bf16.msra.mxu0 0
  %700 = vmatprep.subr.bf16.mxu0 0
  %701 = vmatpush1.bf16.msra.mxu0 0
  %702 = vmatprep.subr.bf16.mxu0 0
  %703 = vmatpush1.bf16.msra.mxu0 0
  %704 = vmatprep.subr.bf16.mxu0 0
  %705 = vmatpush1.bf16.msra.mxu0 0
  %706 = vmatprep.subr.bf16.mxu0 0
  %707 = vmatpush1.bf16.msra.mxu0 0
  %708 = vmatprep.subr.bf16.mxu0 0
  %709 = vmatpush1.bf16.msra.mxu0 0
  %710 = vmatprep.subr.bf16.mxu0 0
  %711 = vmatpush1.bf16.msra.mxu0 0
  %712 = vmatprep.subr.bf16.mxu0 0
  %713 = vmatpush1.bf16.msra.mxu0 0
  %714 = vmatprep.subr.bf16.mxu0 0
  %715 = vmatpush1.bf16.msra.mxu0 0
  %716 = vmatprep.subr.bf16.mxu0 0
  %717 = vmatpush1.bf16.msra.mxu0 0
  %718 = vmatprep.subr.bf16.mxu0 0
  %719 = vmatpush1.bf16.msra.mxu0 0
  %720 = vmatprep.subr.bf16.mxu0 0
  %721 = vmatpush1.bf16.msra.mxu0 0
  %722 = vmatprep.subr.bf16.mxu0 0
  %723 = vmatpush1.bf16.msra.mxu0 0
  %724 = vmatprep.subr.bf16.mxu0 0
  %725 = vmatpush1.bf16.msra.mxu0 0
  %726 = vmatprep.mubr.bf16.mxu0 0
  %727 = vmatmul.mubr.bf16.gmra.mrb[0].mxu0 %v175
  %v728 = vpop.f32.mrb[0].mxu0
  %v729 = vadd.f32 %v688, %v728
  %v730 = vpop.f32.mrb[0].mxu0
  %v731 = vpop.f32.mrb[0].mxu0
  %v732 = vadd.f32 %v691, %v731
  %v733 = vpop.f32.mrb[0].mxu0
  %734 = vdwg.mxu0
  %v735 = vadd.f32 %v729, %v221
  %v736 = vadd.f32 %v732, %v226
  %vm737 = vcmp.ge.f32.partialorder %v735, 0.0
  %vm738 = vcmp.ge.f32.partialorder %v736, 0.0
  %v739 = vmul.f32 %v735, 0.2
  %v740 = vmul.f32 %v736, 0.2
  %v741 = vsel %vm737, %v735, %v739
  %v742 = vsel %vm738, %v736, %v740
  %v743 = vpack.c.bf16 %v742, %v741
  %v745 = vunpack.c.l.b16 %v743
  %v746 = vunpack.c.h.b16 %v743
  %v747 = vpack.c.b16 %v745, %v745
  %v748 = vpack.c.b16 %v746, %v746
  %s751 = scalar_lea.vmem %s7, 24
  %752 = vst.msk [vmem:[%s751] sm:$0xf] %vm244, %v747
  %753 = vst.msk [vmem:[%s751 + $0x4] sm:$0xf] %vm244, %v748
  // Predicated region
  $region30: #{feature_extractor_forward.40} parent=0 // pred_check
    _
  $region31: #{feature_extractor_forward.40} parent=0 // pred_check_branch
    %755 = sbr.rel (0) target = $region33
  $region32: #{feature_extractor_forward.40} parent=0 // pred_region
    _
  $region33: #{feature_extractor_forward.40} parent=0 // pred_fallthru
    _
  // Predicated region
  $region34: #{feature_extractor_forward.40} parent=0 // pred_check
    _
  $region35: #{feature_extractor_forward.40} parent=0 // pred_check_branch
    %757 = sbr.rel (0) target = $region37
  $region36: #{feature_extractor_forward.40} parent=0 // pred_region
    _
  $region37: #{feature_extractor_forward.40} parent=0 // pred_fallthru
    _

// kernel: feature_extractor_forward.43
$region0: #{feature_extractor_forward.43}
  #allocation0 [shape = 'u32[]', space=smem, size = 0x4, offset = 0x4, fixed_abs, tag = 'smem constant byte address 0x4 - core index']
  #allocation1 [shape = 'u32[144,128]{1,0:T(1,128)}', space=vmem, size = 0x12000, scoped, tag = 'internal scratch']
  %s0 = inlined_call_operand.vmem [shape: bf16[16,128], index: 0, kind: input, shape index: {}]
  %s1 = inlined_call_operand.vmem [shape: bf16[4,8,128], index: 1, kind: input, shape index: {}]
  %s2 = inlined_call_operand.vmem [shape: bf16[4,8,16], index: 2, kind: input, shape index: {}]
  %s3 = inlined_call_operand.vmem [shape: bf16[8,8], index: 3, kind: input, shape index: {}]
  %s4 = inlined_call_operand.vmem [shape: bf16[8,8], index: 4, kind: input, shape index: {}]
  %s5 = inlined_call_operand.vmem [shape: f32[8,1], index: 5, kind: input, shape index: {}]
  %s6 = inlined_call_operand.vmem [shape: f32[8,1], index: 6, kind: input, shape index: {}]
  %s7 = inlined_call_operand.vmem [shape: bf16[4,8,128], index: 7, kind: output, shape index: {}]
  %s8 = sld [smem:[#allocation0]]
  $region38: #{feature_extractor_forward.43} parent=0
    _
  %s10 = ssub.s32 1, %s8
  %s11 = scalar_select 0, %s10, %s8
  // Predicated region
  $region2: #{feature_extractor_forward.43} parent=0 // pred_check
    _
  $region3: #{feature_extractor_forward.43} parent=0 // pred_check_branch
    %13 = sbr.rel (0) target = $region5
  $region4: #{feature_extractor_forward.43} parent=0 // pred_region
    _
  $region5: #{feature_extractor_forward.43} parent=0 // pred_fallthru
    _
  // Predicated region
  $region6: #{feature_extractor_forward.43} parent=0 // pred_check
    _
  $region7: #{feature_extractor_forward.43} parent=0 // pred_check_branch
    %15 = sbr.rel (0) target = $region9
  $region8: #{feature_extractor_forward.43} parent=0 // pred_region
    _
  $region9: #{feature_extractor_forward.43} parent=0 // pred_fallthru
    _
  // Predicated region
  $region10: #{feature_extractor_forward.43} parent=0 // pred_check
    _
  $region11: #{feature_extractor_forward.43} parent=0 // pred_check_branch
    %17 = sbr.rel (0) target = $region13
  $region12: #{feature_extractor_forward.43} parent=0 // pred_region
    _
  $region13: #{feature_extractor_forward.43} parent=0 // pred_fallthru
    _
  // Predicated region
  $region14: #{feature_extractor_forward.43} parent=0 // pred_check
    _
  $region15: #{feature_extractor_forward.43} parent=0 // pred_check_branch
    %19 = sbr.rel (0) target = $region17
  $region16: #{feature_extractor_forward.43} parent=0 // pred_region
    _
  $region17: #{feature_extractor_forward.43} parent=0 // pred_fallthru
    _
  // Predicated region
  $region18: #{feature_extractor_forward.43} parent=0 // pred_check
    _
  $region19: #{feature_extractor_forward.43} parent=0 // pred_check_branch
    %21 = sbr.rel (0) target = $region21
  $region20: #{feature_extractor_forward.43} parent=0 // pred_region
    _
  $region21: #{feature_extractor_forward.43} parent=0 // pred_fallthru
    _
  // Predicated region
  $region22: #{feature_extractor_forward.43} parent=0 // pred_check
    _
  $region23: #{feature_extractor_forward.43} parent=0 // pred_check_branch
    %23 = sbr.rel (0) target = $region25
  $region24: #{feature_extractor_forward.43} parent=0 // pred_region
    _
  $region25: #{feature_extractor_forward.43} parent=0 // pred_fallthru
    _
  // Predicated region
  $region26: #{feature_extractor_forward.43} parent=0 // pred_check
    _
  $region27: #{feature_extractor_forward.43} parent=0 // pred_check_branch
    %25 = sbr.rel (0) target = $region29
  $region28: #{feature_extractor_forward.43} parent=0 // pred_region
    _
  $region29: #{feature_extractor_forward.43} parent=0 // pred_fallthru
    _
  %v27 = vld [vmem:[%s0] sm:$0xf]
  %v28 = vld [vmem:[%s0 + $0x4] sm:$0xf]
  %v29 = vld [vmem:[%s3] sm:$0xf]
  %v30 = vld [vmem:[%s4] sm:$0xf]
  %v31 = vld [vmem:[%s5] sm:$0xff]
  %v32 = vld [vmem:[%s6] sm:$0xff]
  %v33 = vld [vmem:[%s2] sm:$0xf]
  %35 = vset.pattern.permute.xlu0 0
  %36 = vperm.xlu0 %35, %v31
  %v37 = vpop.permute.xlu0 %36
  %v41 = vunpack.c.l.b16 %v27
  %v42 = vunpack.c.l.b16 %v28
  %v43 = vpack.c.b16 %v42, %v41
  %vm45 = vcmask 130048
  %v47 = vsel %vm45, %v33, 0
  %49 = vmatprep.subr.bf16.mxu0 0
  %50 = vmatpush1.bf16.msra.mxu0 %v43
  %51 = vmatprep.subr.bf16.mxu0 0
  %52 = vmatpush1.bf16.msra.mxu0 0
  %53 = vmatprep.subr.bf16.mxu0 0
  %54 = vmatpush1.bf16.msra.mxu0 0
  %55 = vmatprep.subr.bf16.mxu0 0
  %56 = vmatpush1.bf16.msra.mxu0 0
  %57 = vmatprep.subr.bf16.mxu0 0
  %58 = vmatpush1.bf16.msra.mxu0 0
  %59 = vmatprep.subr.bf16.mxu0 0
  %60 = vmatpush1.bf16.msra.mxu0 0
  %61 = vmatprep.subr.bf16.mxu0 0
  %62 = vmatpush1.bf16.msra.mxu0 0
  %63 = vmatprep.subr.bf16.mxu0 0
  %64 = vmatpush1.bf16.msra.mxu0 0
  %65 = vmatprep.subr.bf16.mxu0 0
  %66 = vmatpush1.bf16.msra.mxu0 0
  %67 = vmatprep.subr.bf16.mxu0 0
  %68 = vmatpush1.bf16.msra.mxu0 0
  %69 = vmatprep.subr.bf16.mxu0 0
  %70 = vmatpush1.bf16.msra.mxu0 0
  %71 = vmatprep.subr.bf16.mxu0 0
  %72 = vmatpush1.bf16.msra.mxu0 0
  %73 = vmatprep.subr.bf16.mxu0 0
  %74 = vmatpush1.bf16.msra.mxu0 0
  %75 = vmatprep.subr.bf16.mxu0 0
  %76 = vmatpush1.bf16.msra.mxu0 0
  %77 = vmatprep.subr.bf16.mxu0 0
  %78 = vmatpush1.bf16.msra.mxu0 0
  %79 = vmatprep.subr.bf16.mxu0 0
  %80 = vmatpush1.bf16.msra.mxu0 0
  %81 = vmatprep.mubr.bf16.mxu0 0
  %82 = vmatmul.mubr.bf16.gmra.mrb[0].mxu0 %v47
  %v83 = vpop.f32.mrb[0].mxu0
  %v84 = vadd.f32 %v37, %v83
  %v85 = vpop.f32.mrb[0].mxu0
  %v86 = vpop.f32.mrb[0].mxu0
  %v87 = vpop.f32.mrb[0].mxu0
  %88 = vdwg.mxu0
  %vm89 = vcmp.ge.f32.partialorder %v84, 0.0
  %v90 = vmul.f32 %v84, 0.2
  %v91 = vsel %vm89, %v84, %v90
  %v92 = vpack.c.bf16 %v91, %v91
  %v93 = vld [vmem:[%s1] sm:$0xf]
  %vm94 = vcmask 64512
  %v96 = vsel %vm94, %v30, 0
  %vm98 = vcmask 1043456
  %v100 = vsel %vm98, %v93, 0
  %102 = vmatprep.subr.bf16.mxu0 0
  %103 = vmatpush1.bf16.msra.mxu0 %v100
  %104 = vmatprep.subr.bf16.mxu0 0
  %105 = vmatpush1.bf16.msra.mxu0 0
  %106 = vmatprep.subr.bf16.mxu0 0
  %107 = vmatpush1.bf16.msra.mxu0 0
  %108 = vmatprep.subr.bf16.mxu0 0
  %109 = vmatpush1.bf16.msra.mxu0 0
  %110 = vmatprep.subr.bf16.mxu0 0
  %111 = vmatpush1.bf16.msra.mxu0 0
  %112 = vmatprep.subr.bf16.mxu0 0
  %113 = vmatpush1.bf16.msra.mxu0 0
  %114 = vmatprep.subr.bf16.mxu0 0
  %115 = vmatpush1.bf16.msra.mxu0 0
  %116 = vmatprep.subr.bf16.mxu0 0
  %117 = vmatpush1.bf16.msra.mxu0 0
  %118 = vmatprep.subr.bf16.mxu0 0
  %119 = vmatpush1.bf16.msra.mxu0 0
  %120 = vmatprep.subr.bf16.mxu0 0
  %121 = vmatpush1.bf16.msra.mxu0 0
  %122 = vmatprep.subr.bf16.mxu0 0
  %123 = vmatpush1.bf16.msra.mxu0 0
  %124 = vmatprep.subr.bf16.mxu0 0
  %125 = vmatpush1.bf16.msra.mxu0 0
  %126 = vmatprep.subr.bf16.mxu0 0
  %127 = vmatpush1.bf16.msra.mxu0 0
  %128 = vmatprep.subr.bf16.mxu0 0
  %129 = vmatpush1.bf16.msra.mxu0 0
  %130 = vmatprep.subr.bf16.mxu0 0
  %131 = vmatpush1.bf16.msra.mxu0 0
  %132 = vmatprep.subr.bf16.mxu0 0
  %133 = vmatpush1.bf16.msra.mxu0 0
  %134 = vmatprep.mubr.bf16.mxu0 0
  %135 = vmatmul.mubr.bf16.gmra.mrb[0].mxu0 %v96
  %v136 = vpop.f32.mrb[0].mxu0
  %v137 = vadd.f32 0.0, %v136
  %v138 = vpop.f32.mrb[0].mxu0
  %v139 = vpop.f32.mrb[0].mxu0
  %v140 = vpop.f32.mrb[0].mxu0
  %141 = vdwg.mxu0
  %v143 = vsel %vm94, %v29, 0
  %v146 = vsel %vm98, %v92, 0
  %148 = vmatprep.subr.bf16.mxu0 0
  %149 = vmatpush1.bf16.msra.mxu0 %v146
  %150 = vmatprep.subr.bf16.mxu0 0
  %151 = vmatpush1.bf16.msra.mxu0 0
  %152 = vmatprep.subr.bf16.mxu0 0
  %153 = vmatpush1.bf16.msra.mxu0 0
  %154 = vmatprep.subr.bf16.mxu0 0
  %155 = vmatpush1.bf16.msra.mxu0 0
  %156 = vmatprep.subr.bf16.mxu0 0
  %157 = vmatpush1.bf16.msra.mxu0 0
  %158 = vmatprep.subr.bf16.mxu0 0
  %159 = vmatpush1.bf16.msra.mxu0 0
  %160 = vmatprep.subr.bf16.mxu0 0
  %161 = vmatpush1.bf16.msra.mxu0 0
  %162 = vmatprep.subr.bf16.mxu0 0
  %163 = vmatpush1.bf16.msra.mxu0 0
  %164 = vmatprep.subr.bf16.mxu0 0
  %165 = vmatpush1.bf16.msra.mxu0 0
  %166 = vmatprep.subr.bf16.mxu0 0
  %167 = vmatpush1.bf16.msra.mxu0 0
  %168 = vmatprep.subr.bf16.mxu0 0
  %169 = vmatpush1.bf16.msra.mxu0 0
  %170 = vmatprep.subr.bf16.mxu0 0
  %171 = vmatpush1.bf16.msra.mxu0 0
  %172 = vmatprep.subr.bf16.mxu0 0
  %173 = vmatpush1.bf16.msra.mxu0 0
  %174 = vmatprep.subr.bf16.mxu0 0
  %175 = vmatpush1.bf16.msra.mxu0 0
  %176 = vmatprep.subr.bf16.mxu0 0
  %177 = vmatpush1.bf16.msra.mxu0 0
  %178 = vmatprep.subr.bf16.mxu0 0
  %179 = vmatpush1.bf16.msra.mxu0 0
  %180 = vmatprep.mubr.bf16.mxu0 0
  %181 = vmatmul.mubr.bf16.gmra.mrb[0].mxu0 %v143
  %v182 = vpop.f32.mrb[0].mxu0
  %v183 = vadd.f32 %v137, %v182
  %v184 = vpop.f32.mrb[0].mxu0
  %v185 = vpop.f32.mrb[0].mxu0
  %v186 = vpop.f32.mrb[0].mxu0
  %187 = vdwg.mxu0
  %189 = vset.pattern.permute.xlu0 0
  %190 = vperm.xlu0 %189, %v32
  %v191 = vpop.permute.xlu0 %190
  %v193 = vadd.f32 %v183, %v191
  %vm194 = vcmp.ge.f32.partialorder %v193, 0.0
  %v195 = vmul.f32 %v193, 0.2
  %v196 = vsel %vm194, %v193, %v195
  %v197 = vpack.c.bf16 %v196, %v196
  %198 = vst [vmem:[%s7] sm:$0xf] %v197
  %s199 = scalar_lea.vmem %s2, 4
  %v200 = vld [vmem:[%s199] sm:$0xf]
  %v202 = vsel %vm45, %v200, 0
  %204 = vmatprep.subr.bf16.mxu0 0
  %205 = vmatpush1.bf16.msra.mxu0 %v43
  %206 = vmatprep.subr.bf16.mxu0 0
  %207 = vmatpush1.bf16.msra.mxu0 0
  %208 = vmatprep.subr.bf16.mxu0 0
  %209 = vmatpush1.bf16.msra.mxu0 0
  %210 = vmatprep.subr.bf16.mxu0 0
  %211 = vmatpush1.bf16.msra.mxu0 0
  %212 = vmatprep.subr.bf16.mxu0 0
  %213 = vmatpush1.bf16.msra.mxu0 0
  %214 = vmatprep.subr.bf16.mxu0 0
  %215 = vmatpush1.bf16.msra.mxu0 0
  %216 = vmatprep.subr.bf16.mxu0 0
  %217 = vmatpush1.bf16.msra.mxu0 0
  %218 = vmatprep.subr.bf16.mxu0 0
  %219 = vmatpush1.bf16.msra.mxu0 0
  %220 = vmatprep.subr.bf16.mxu0 0
  %221 = vmatpush1.bf16.msra.mxu0 0
  %222 = vmatprep.subr.bf16.mxu0 0
  %223 = vmatpush1.bf16.msra.mxu0 0
  %224 = vmatprep.subr.bf16.mxu0 0
  %225 = vmatpush1.bf16.msra.mxu0 0
  %226 = vmatprep.subr.bf16.mxu0 0
  %227 = vmatpush1.bf16.msra.mxu0 0
  %228 = vmatprep.subr.bf16.mxu0 0
  %229 = vmatpush1.bf16.msra.mxu0 0
  %230 = vmatprep.subr.bf16.mxu0 0
  %231 = vmatpush1.bf16.msra.mxu0 0
  %232 = vmatprep.subr.bf16.mxu0 0
  %233 = vmatpush1.bf16.msra.mxu0 0
  %234 = vmatprep.subr.bf16.mxu0 0
  %235 = vmatpush1.bf16.msra.mxu0 0
  %236 = vmatprep.mubr.bf16.mxu0 0
  %237 = vmatmul.mubr.bf16.gmra.mrb[0].mxu0 %v202
  %v238 = vpop.f32.mrb[0].mxu0
  %v239 = vadd.f32 %v37, %v238
  %v240 = vpop.f32.mrb[0].mxu0
  %v241 = vpop.f32.mrb[0].mxu0
  %v242 = vpop.f32.mrb[0].mxu0
  %243 = vdwg.mxu0
  %vm244 = vcmp.ge.f32.partialorder %v239, 0.0
  %v245 = vmul.f32 %v239, 0.2
  %v246 = vsel %vm244, %v239, %v245
  %v247 = vpack.c.bf16 %v246, %v246
  %s248 = scalar_lea.vmem %s1, 4
  %v249 = vld [vmem:[%s248] sm:$0xf]
  %v251 = vsel %vm98, %v249, 0
  %253 = vmatprep.subr.bf16.mxu0 0
  %254 = vmatpush1.bf16.msra.mxu0 %v251
  %255 = vmatprep.subr.bf16.mxu0 0
  %256 = vmatpush1.bf16.msra.mxu0 0
  %257 = vmatprep.subr.bf16.mxu0 0
  %258 = vmatpush1.bf16.msra.mxu0 0
  %259 = vmatprep.subr.bf16.mxu0 0
  %260 = vmatpush1.bf16.msra.mxu0 0
  %261 = vmatprep.subr.bf16.mxu0 0
  %262 = vmatpush1.bf16.msra.mxu0 0
  %263 = vmatprep.subr.bf16.mxu0 0
  %264 = vmatpush1.bf16.msra.mxu0 0
  %265 = vmatprep.subr.bf16.mxu0 0
  %266 = vmatpush1.bf16.msra.mxu0 0
  %267 = vmatprep.subr.bf16.mxu0 0
  %268 = vmatpush1.bf16.msra.mxu0 0
  %269 = vmatprep.subr.bf16.mxu0 0
  %270 = vmatpush1.bf16.msra.mxu0 0
  %271 = vmatprep.subr.bf16.mxu0 0
  %272 = vmatpush1.bf16.msra.mxu0 0
  %273 = vmatprep.subr.bf16.mxu0 0
  %274 = vmatpush1.bf16.msra.mxu0 0
  %275 = vmatprep.subr.bf16.mxu0 0
  %276 = vmatpush1.bf16.msra.mxu0 0
  %277 = vmatprep.subr.bf16.mxu0 0
  %278 = vmatpush1.bf16.msra.mxu0 0
  %279 = vmatprep.subr.bf16.mxu0 0
  %280 = vmatpush1.bf16.msra.mxu0 0
  %281 = vmatprep.subr.bf16.mxu0 0
  %282 = vmatpush1.bf16.msra.mxu0 0
  %283 = vmatprep.subr.bf16.mxu0 0
  %284 = vmatpush1.bf16.msra.mxu0 0
  %285 = vmatprep.mubr.bf16.mxu0 0
  %286 = vmatmul.mubr.bf16.gmra.mrb[0].mxu0 %v96
  %v287 = vpop.f32.mrb[0].mxu0
  %v288 = vadd.f32 0.0, %v287
  %v289 = vpop.f32.mrb[0].mxu0
  %v290 = vpop.f32.mrb[0].mxu0
  %v291 = vpop.f32.mrb[0].mxu0
  %292 = vdwg.mxu0
  %v294 = vsel %vm98, %v247, 0
  %296 = vmatprep.subr.bf16.mxu0 0
  %297 = vmatpush1.bf16.msra.mxu0 %v294
  %298 = vmatprep.subr.bf16.mxu0 0
  %299 = vmatpush1.bf16.msra.mxu0 0
  %300 = vmatprep.subr.bf16.mxu0 0
  %301 = vmatpush1.bf16.msra.mxu0 0
  %302 = vmatprep.subr.bf16.mxu0 0
  %303 = vmatpush1.bf16.msra.mxu0 0
  %304 = vmatprep.subr.bf16.mxu0 0
  %305 = vmatpush1.bf16.msra.mxu0 0
  %306 = vmatprep.subr.bf16.mxu0 0
  %307 = vmatpush1.bf16.msra.mxu0 0
  %308 = vmatprep.subr.bf16.mxu0 0
  %309 = vmatpush1.bf16.msra.mxu0 0
  %310 = vmatprep.subr.bf16.mxu0 0
  %311 = vmatpush1.bf16.msra.mxu0 0
  %312 = vmatprep.subr.bf16.mxu0 0
  %313 = vmatpush1.bf16.msra.mxu0 0
  %314 = vmatprep.subr.bf16.mxu0 0
  %315 = vmatpush1.bf16.msra.mxu0 0
  %316 = vmatprep.subr.bf16.mxu0 0
  %317 = vmatpush1.bf16.msra.mxu0 0
  %318 = vmatprep.subr.bf16.mxu0 0
  %319 = vmatpush1.bf16.msra.mxu0 0
  %320 = vmatprep.subr.bf16.mxu0 0
  %321 = vmatpush1.bf16.msra.mxu0 0
  %322 = vmatprep.subr.bf16.mxu0 0
  %323 = vmatpush1.bf16.msra.mxu0 0
  %324 = vmatprep.subr.bf16.mxu0 0
  %325 = vmatpush1.bf16.msra.mxu0 0
  %326 = vmatprep.subr.bf16.mxu0 0
  %327 = vmatpush1.bf16.msra.mxu0 0
  %328 = vmatprep.mubr.bf16.mxu0 0
  %329 = vmatmul.mubr.bf16.gmra.mrb[0].mxu0 %v143
  %v330 = vpop.f32.mrb[0].mxu0
  %v331 = vadd.f32 %v288, %v330
  %v332 = vpop.f32.mrb[0].mxu0
  %v333 = vpop.f32.mrb[0].mxu0
  %v334 = vpop.f32.mrb[0].mxu0
  %335 = vdwg.mxu0
  %v336 = vadd.f32 %v331, %v191
  %vm337 = vcmp.ge.f32.partialorder %v336, 0.0
  %v338 = vmul.f32 %v336, 0.2
  %v339 = vsel %vm337, %v336, %v338
  %v340 = vpack.c.bf16 %v339, %v339
  %s341 = scalar_lea.vmem %s7, 4
  %342 = vst [vmem:[%s341] sm:$0xf] %v340
  %s343 = scalar_lea.vmem %s2, 8
  %v344 = vld [vmem:[%s343] sm:$0xf]
  %v346 = vsel %vm45, %v344, 0
  %348 = vmatprep.subr.bf16.mxu0 0
  %349 = vmatpush1.bf16.msra.mxu0 %v43
  %350 = vmatprep.subr.bf16.mxu0 0
  %351 = vmatpush1.bf16.msra.mxu0 0
  %352 = vmatprep.subr.bf16.mxu0 0
  %353 = vmatpush1.bf16.msra.mxu0 0
  %354 = vmatprep.subr.bf16.mxu0 0
  %355 = vmatpush1.bf16.msra.mxu0 0
  %356 = vmatprep.subr.bf16.mxu0 0
  %357 = vmatpush1.bf16.msra.mxu0 0
  %358 = vmatprep.subr.bf16.mxu0 0
  %359 = vmatpush1.bf16.msra.mxu0 0
  %360 = vmatprep.subr.bf16.mxu0 0
  %361 = vmatpush1.bf16.msra.mxu0 0
  %362 = vmatprep.subr.bf16.mxu0 0
  %363 = vmatpush1.bf16.msra.mxu0 0
  %364 = vmatprep.subr.bf16.mxu0 0
  %365 = vmatpush1.bf16.msra.mxu0 0
  %366 = vmatprep.subr.bf16.mxu0 0
  %367 = vmatpush1.bf16.msra.mxu0 0
  %368 = vmatprep.subr.bf16.mxu0 0
  %369 = vmatpush1.bf16.msra.mxu0 0
  %370 = vmatprep.subr.bf16.mxu0 0
  %371 = vmatpush1.bf16.msra.mxu0 0
  %372 = vmatprep.subr.bf16.mxu0 0
  %373 = vmatpush1.bf16.msra.mxu0 0
  %374 = vmatprep.subr.bf16.mxu0 0
  %375 = vmatpush1.bf16.msra.mxu0 0
  %376 = vmatprep.subr.bf16.mxu0 0
  %377 = vmatpush1.bf16.msra.mxu0 0
  %378 = vmatprep.subr.bf16.mxu0 0
  %379 = vmatpush1.bf16.msra.mxu0 0
  %380 = vmatprep.mubr.bf16.mxu0 0
  %381 = vmatmul.mubr.bf16.gmra.mrb[0].mxu0 %v346
  %v382 = vpop.f32.mrb[0].mxu0
  %v383 = vadd.f32 %v37, %v382
  %v384 = vpop.f32.mrb[0].mxu0
  %v385 = vpop.f32.mrb[0].mxu0
  %v386 = vpop.f32.mrb[0].mxu0
  %387 = vdwg.mxu0
  %vm388 = vcmp.ge.f32.partialorder %v383, 0.0
  %v389 = vmul.f32 %v383, 0.2
  %v390 = vsel %vm388, %v383, %v389
  %v391 = vpack.c.bf16 %v390, %v390
  %s392 = scalar_lea.vmem %s1, 8
  %v393 = vld [vmem:[%s392] sm:$0xf]
  %v395 = vsel %vm98, %v393, 0
  %397 = vmatprep.subr.bf16.mxu0 0
  %398 = vmatpush1.bf16.msra.mxu0 %v395
  %399 = vmatprep.subr.bf16.mxu0 0
  %400 = vmatpush1.bf16.msra.mxu0 0
  %401 = vmatprep.subr.bf16.mxu0 0
  %402 = vmatpush1.bf16.msra.mxu0 0
  %403 = vmatprep.subr.bf16.mxu0 0
  %404 = vmatpush1.bf16.msra.mxu0 0
  %405 = vmatprep.subr.bf16.mxu0 0
  %406 = vmatpush1.bf16.msra.mxu0 0
  %407 = vmatprep.subr.bf16.mxu0 0
  %408 = vmatpush1.bf16.msra.mxu0 0
  %409 = vmatprep.subr.bf16.mxu0 0
  %410 = vmatpush1.bf16.msra.mxu0 0
  %411 = vmatprep.subr.bf16.mxu0 0
  %412 = vmatpush1.bf16.msra.mxu0 0
  %413 = vmatprep.subr.bf16.mxu0 0
  %414 = vmatpush1.bf16.msra.mxu0 0
  %415 = vmatprep.subr.bf16.mxu0 0
  %416 = vmatpush1.bf16.msra.mxu0 0
  %417 = vmatprep.subr.bf16.mxu0 0
  %418 = vmatpush1.bf16.msra.mxu0 0
  %419 = vmatprep.subr.bf16.mxu0 0
  %420 = vmatpush1.bf16.msra.mxu0 0
  %421 = vmatprep.subr.bf16.mxu0 0
  %422 = vmatpush1.bf16.msra.mxu0 0
  %423 = vmatprep.subr.bf16.mxu0 0
  %424 = vmatpush1.bf16.msra.mxu0 0
  %425 = vmatprep.subr.bf16.mxu0 0
  %426 = vmatpush1.bf16.msra.mxu0 0
  %427 = vmatprep.subr.bf16.mxu0 0
  %428 = vmatpush1.bf16.msra.mxu0 0
  %429 = vmatprep.mubr.bf16.mxu0 0
  %430 = vmatmul.mubr.bf16.gmra.mrb[0].mxu0 %v96
  %v431 = vpop.f32.mrb[0].mxu0
  %v432 = vadd.f32 0.0, %v431
  %v433 = vpop.f32.mrb[0].mxu0
  %v434 = vpop.f32.mrb[0].mxu0
  %v435 = vpop.f32.mrb[0].mxu0
  %436 = vdwg.mxu0
  %v438 = vsel %vm98, %v391, 0
  %440 = vmatprep.subr.bf16.mxu0 0
  %441 = vmatpush1.bf16.msra.mxu0 %v438
  %442 = vmatprep.subr.bf16.mxu0 0
  %443 = vmatpush1.bf16.msra.mxu0 0
  %444 = vmatprep.subr.bf16.mxu0 0
  %445 = vmatpush1.bf16.msra.mxu0 0
  %446 = vmatprep.subr.bf16.mxu0 0
  %447 = vmatpush1.bf16.msra.mxu0 0
  %448 = vmatprep.subr.bf16.mxu0 0
  %449 = vmatpush1.bf16.msra.mxu0 0
  %450 = vmatprep.subr.bf16.mxu0 0
  %451 = vmatpush1.bf16.msra.mxu0 0
  %452 = vmatprep.subr.bf16.mxu0 0
  %453 = vmatpush1.bf16.msra.mxu0 0
  %454 = vmatprep.subr.bf16.mxu0 0
  %455 = vmatpush1.bf16.msra.mxu0 0
  %456 = vmatprep.subr.bf16.mxu0 0
  %457 = vmatpush1.bf16.msra.mxu0 0
  %458 = vmatprep.subr.bf16.mxu0 0
  %459 = vmatpush1.bf16.msra.mxu0 0
  %460 = vmatprep.subr.bf16.mxu0 0
  %461 = vmatpush1.bf16.msra.mxu0 0
  %462 = vmatprep.subr.bf16.mxu0 0
  %463 = vmatpush1.bf16.msra.mxu0 0
  %464 = vmatprep.subr.bf16.mxu0 0
  %465 = vmatpush1.bf16.msra.mxu0 0
  %466 = vmatprep.subr.bf16.mxu0 0
  %467 = vmatpush1.bf16.msra.mxu0 0
  %468 = vmatprep.subr.bf16.mxu0 0
  %469 = vmatpush1.bf16.msra.mxu0 0
  %470 = vmatprep.subr.bf16.mxu0 0
  %471 = vmatpush1.bf16.msra.mxu0 0
  %472 = vmatprep.mubr.bf16.mxu0 0
  %473 = vmatmul.mubr.bf16.gmra.mrb[0].mxu0 %v143
  %v474 = vpop.f32.mrb[0].mxu0
  %v475 = vadd.f32 %v432, %v474
  %v476 = vpop.f32.mrb[0].mxu0
  %v477 = vpop.f32.mrb[0].mxu0
  %v478 = vpop.f32.mrb[0].mxu0
  %479 = vdwg.mxu0
  %v480 = vadd.f32 %v475, %v191
  %vm481 = vcmp.ge.f32.partialorder %v480, 0.0
  %v482 = vmul.f32 %v480, 0.2
  %v483 = vsel %vm481, %v480, %v482
  %v484 = vpack.c.bf16 %v483, %v483
  %s485 = scalar_lea.vmem %s7, 8
  %486 = vst [vmem:[%s485] sm:$0xf] %v484
  %s487 = scalar_lea.vmem %s2, 12
  %v488 = vld [vmem:[%s487] sm:$0xf]
  %v490 = vsel %vm45, %v488, 0
  %492 = vmatprep.subr.bf16.mxu0 0
  %493 = vmatpush1.bf16.msra.mxu0 %v43
  %494 = vmatprep.subr.bf16.mxu0 0
  %495 = vmatpush1.bf16.msra.mxu0 0
  %496 = vmatprep.subr.bf16.mxu0 0
  %497 = vmatpush1.bf16.msra.mxu0 0
  %498 = vmatprep.subr.bf16.mxu0 0
  %499 = vmatpush1.bf16.msra.mxu0 0
  %500 = vmatprep.subr.bf16.mxu0 0
  %501 = vmatpush1.bf16.msra.mxu0 0
  %502 = vmatprep.subr.bf16.mxu0 0
  %503 = vmatpush1.bf16.msra.mxu0 0
  %504 = vmatprep.subr.bf16.mxu0 0
  %505 = vmatpush1.bf16.msra.mxu0 0
  %506 = vmatprep.subr.bf16.mxu0 0
  %507 = vmatpush1.bf16.msra.mxu0 0
  %508 = vmatprep.subr.bf16.mxu0 0
  %509 = vmatpush1.bf16.msra.mxu0 0
  %510 = vmatprep.subr.bf16.mxu0 0
  %511 = vmatpush1.bf16.msra.mxu0 0
  %512 = vmatprep.subr.bf16.mxu0 0
  %513 = vmatpush1.bf16.msra.mxu0 0
  %514 = vmatprep.subr.bf16.mxu0 0
  %515 = vmatpush1.bf16.msra.mxu0 0
  %516 = vmatprep.subr.bf16.mxu0 0
  %517 = vmatpush1.bf16.msra.mxu0 0
  %518 = vmatprep.subr.bf16.mxu0 0
  %519 = vmatpush1.bf16.msra.mxu0 0
  %520 = vmatprep.subr.bf16.mxu0 0
  %521 = vmatpush1.bf16.msra.mxu0 0
  %522 = vmatprep.subr.bf16.mxu0 0
  %523 = vmatpush1.bf16.msra.mxu0 0
  %524 = vmatprep.mubr.bf16.mxu0 0
  %525 = vmatmul.mubr.bf16.gmra.mrb[0].mxu0 %v490
  %v526 = vpop.f32.mrb[0].mxu0
  %v527 = vadd.f32 %v37, %v526
  %v528 = vpop.f32.mrb[0].mxu0
  %v529 = vpop.f32.mrb[0].mxu0
  %v530 = vpop.f32.mrb[0].mxu0
  %531 = vdwg.mxu0
  %vm532 = vcmp.ge.f32.partialorder %v527, 0.0
  %v533 = vmul.f32 %v527, 0.2
  %v534 = vsel %vm532, %v527, %v533
  %v535 = vpack.c.bf16 %v534, %v534
  %s536 = scalar_lea.vmem %s1, 12
  %v537 = vld [vmem:[%s536] sm:$0xf]
  %v539 = vsel %vm98, %v537, 0
  %541 = vmatprep.subr.bf16.mxu0 0
  %542 = vmatpush1.bf16.msra.mxu0 %v539
  %543 = vmatprep.subr.bf16.mxu0 0
  %544 = vmatpush1.bf16.msra.mxu0 0
  %545 = vmatprep.subr.bf16.mxu0 0
  %546 = vmatpush1.bf16.msra.mxu0 0
  %547 = vmatprep.subr.bf16.mxu0 0
  %548 = vmatpush1.bf16.msra.mxu0 0
  %549 = vmatprep.subr.bf16.mxu0 0
  %550 = vmatpush1.bf16.msra.mxu0 0
  %551 = vmatprep.subr.bf16.mxu0 0
  %552 = vmatpush1.bf16.msra.mxu0 0
  %553 = vmatprep.subr.bf16.mxu0 0
  %554 = vmatpush1.bf16.msra.mxu0 0
  %555 = vmatprep.subr.bf16.mxu0 0
  %556 = vmatpush1.bf16.msra.mxu0 0
  %557 = vmatprep.subr.bf16.mxu0 0
  %558 = vmatpush1.bf16.msra.mxu0 0
  %559 = vmatprep.subr.bf16.mxu0 0
  %560 = vmatpush1.bf16.msra.mxu0 0
  %561 = vmatprep.subr.bf16.mxu0 0
  %562 = vmatpush1.bf16.msra.mxu0 0
  %563 = vmatprep.subr.bf16.mxu0 0
  %564 = vmatpush1.bf16.msra.mxu0 0
  %565 = vmatprep.subr.bf16.mxu0 0
  %566 = vmatpush1.bf16.msra.mxu0 0
  %567 = vmatprep.subr.bf16.mxu0 0
  %568 = vmatpush1.bf16.msra.mxu0 0
  %569 = vmatprep.subr.bf16.mxu0 0
  %570 = vmatpush1.bf16.msra.mxu0 0
  %571 = vmatprep.subr.bf16.mxu0 0
  %572 = vmatpush1.bf16.msra.mxu0 0
  %573 = vmatprep.mubr.bf16.mxu0 0
  %574 = vmatmul.mubr.bf16.gmra.mrb[0].mxu0 %v96
  %v575 = vpop.f32.mrb[0].mxu0
  %v576 = vadd.f32 0.0, %v575
  %v577 = vpop.f32.mrb[0].mxu0
  %v578 = vpop.f32.mrb[0].mxu0
  %v579 = vpop.f32.mrb[0].mxu0
  %580 = vdwg.mxu0
  %v582 = vsel %vm98, %v535, 0
  %584 = vmatprep.subr.bf16.mxu0 0
  %585 = vmatpush1.bf16.msra.mxu0 %v582
  %586 = vmatprep.subr.bf16.mxu0 0
  %587 = vmatpush1.bf16.msra.mxu0 0
  %588 = vmatprep.subr.bf16.mxu0 0
  %589 = vmatpush1.bf16.msra.mxu0 0
  %590 = vmatprep.subr.bf16.mxu0 0
  %591 = vmatpush1.bf16.msra.mxu0 0
  %592 = vmatprep.subr.bf16.mxu0 0
  %593 = vmatpush1.bf16.msra.mxu0 0
  %594 = vmatprep.subr.bf16.mxu0 0
  %595 = vmatpush1.bf16.msra.mxu0 0
  %596 = vmatprep.subr.bf16.mxu0 0
  %597 = vmatpush1.bf16.msra.mxu0 0
  %598 = vmatprep.subr.bf16.mxu0 0
  %599 = vmatpush1.bf16.msra.mxu0 0
  %600 = vmatprep.subr.bf16.mxu0 0
  %601 = vmatpush1.bf16.msra.mxu0 0
  %602 = vmatprep.subr.bf16.mxu0 0
  %603 = vmatpush1.bf16.msra.mxu0 0
  %604 = vmatprep.subr.bf16.mxu0 0
  %605 = vmatpush1.bf16.msra.mxu0 0
  %606 = vmatprep.subr.bf16.mxu0 0
  %607 = vmatpush1.bf16.msra.mxu0 0
  %608 = vmatprep.subr.bf16.mxu0 0
  %609 = vmatpush1.bf16.msra.mxu0 0
  %610 = vmatprep.subr.bf16.mxu0 0
  %611 = vmatpush1.bf16.msra.mxu0 0
  %612 = vmatprep.subr.bf16.mxu0 0
  %613 = vmatpush1.bf16.msra.mxu0 0
  %614 = vmatprep.subr.bf16.mxu0 0
  %615 = vmatpush1.bf16.msra.mxu0 0
  %616 = vmatprep.mubr.bf16.mxu0 0
  %617 = vmatmul.mubr.bf16.gmra.mrb[0].mxu0 %v143
  %v618 = vpop.f32.mrb[0].mxu0
  %v619 = vadd.f32 %v576, %v618
  %v620 = vpop.f32.mrb[0].mxu0
  %v621 = vpop.f32.mrb[0].mxu0
  %v622 = vpop.f32.mrb[0].mxu0
  %623 = vdwg.mxu0
  %v624 = vadd.f32 %v619, %v191
  %vm625 = vcmp.ge.f32.partialorder %v624, 0.0
  %v626 = vmul.f32 %v624, 0.2
  %v627 = vsel %vm625, %v624, %v626
  %v628 = vpack.c.bf16 %v627, %v627
  %s629 = scalar_lea.vmem %s7, 12
  %630 = vst [vmem:[%s629] sm:$0xf] %v628
  // Predicated region
  $region30: #{feature_extractor_forward.43} parent=0 // pred_check
    _
  $region31: #{feature_extractor_forward.43} parent=0 // pred_check_branch
    %632 = sbr.rel (0) target = $region33
  $region32: #{feature_extractor_forward.43} parent=0 // pred_region
    _
  $region33: #{feature_extractor_forward.43} parent=0 // pred_fallthru
    _
  // Predicated region
  $region34: #{feature_extractor_forward.43} parent=0 // pred_check
    _
  $region35: #{feature_extractor_forward.43} parent=0 // pred_check_branch
    %634 = sbr.rel (0) target = $region37
  $region36: #{feature_extractor_forward.43} parent=0 // pred_region
    _
  $region37: #{feature_extractor_forward.43} parent=0 // pred_fallthru
    _

// kernel: feature_extractor_forward.44
$region0: #{feature_extractor_forward.44}
  #allocation0 [shape = 'u32[]', space=smem, size = 0x4, offset = 0x4, fixed_abs, tag = 'smem constant byte address 0x4 - core index']
  #allocation1 [shape = 'u32[144,128]{1,0:T(1,128)}', space=vmem, size = 0x12000, scoped, tag = 'internal scratch']
  %s0 = inlined_call_operand.vmem [shape: bf16[72,512], index: 0, kind: input, shape index: {}]
  %s1 = inlined_call_operand.vmem [shape: bf16[8,72], index: 1, kind: input, shape index: {}]
  %s2 = inlined_call_operand.vmem [shape: f32[8,1], index: 2, kind: input, shape index: {}]
  %s3 = inlined_call_operand.vmem [shape: bf16[8,512], index: 3, kind: output, shape index: {}]
  %s4 = sld [smem:[#allocation0]]
  $region22: #{feature_extractor_forward.44} parent=0
    _
  %s6 = ssub.s32 1, %s4
  %s7 = scalar_select 0, %s6, %s4
  // Predicated region
  $region2: #{feature_extractor_forward.44} parent=0 // pred_check
    _
  $region3: #{feature_extractor_forward.44} parent=0 // pred_check_branch
    %9 = sbr.rel (0) target = $region5
  $region4: #{feature_extractor_forward.44} parent=0 // pred_region
    _
  $region5: #{feature_extractor_forward.44} parent=0 // pred_fallthru
    _
  // Predicated region
  $region6: #{feature_extractor_forward.44} parent=0 // pred_check
    _
  $region7: #{feature_extractor_forward.44} parent=0 // pred_check_branch
    %11 = sbr.rel (0) target = $region9
  $region8: #{feature_extractor_forward.44} parent=0 // pred_region
    _
  $region9: #{feature_extractor_forward.44} parent=0 // pred_fallthru
    _
  // Predicated region
  $region10: #{feature_extractor_forward.44} parent=0 // pred_check
    _
  $region11: #{feature_extractor_forward.44} parent=0 // pred_check_branch
    %13 = sbr.rel (0) target = $region13
  $region12: #{feature_extractor_forward.44} parent=0 // pred_region
    _
  $region13: #{feature_extractor_forward.44} parent=0 // pred_fallthru
    _
  %v15 = vld [vmem:[%s1] sm:$0xf]
  %v16 = vld [vmem:[%s0] sm:$0xff]
  %v17 = vld [vmem:[%s0 + $0x8] sm:$0xff]
  %v18 = vld [vmem:[%s0 + $0x10] sm:$0xff]
  %v19 = vld [vmem:[%s0 + $0x18] sm:$0xff]
  %v20 = vld [vmem:[%s0 + $0x20] sm:$0xff]
  %v21 = vld [vmem:[%s0 + $0x28] sm:$0xff]
  %v22 = vld [vmem:[%s0 + $0x30] sm:$0xff]
  %v23 = vld [vmem:[%s0 + $0x38] sm:$0xff]
  %v24 = vld [vmem:[%s0 + $0x40] sm:$0xff]
  %v25 = vld [vmem:[%s0 + $0x48] sm:$0xff]
  %v26 = vld [vmem:[%s0 + $0x50] sm:$0xff]
  %v27 = vld [vmem:[%s0 + $0x58] sm:$0xff]
  %v28 = vld [vmem:[%s0 + $0x60] sm:$0xff]
  %v29 = vld [vmem:[%s0 + $0x68] sm:$0xff]
  %v30 = vld [vmem:[%s0 + $0x70] sm:$0xff]
  %v31 = vld [vmem:[%s0 + $0x78] sm:$0xff]
  %v32 = vld [vmem:[%s0 + $0x80] sm:$0xff]
  %v33 = vld [vmem:[%s0 + $0x88] sm:$0xff]
  %v34 = vld [vmem:[%s2] sm:$0xff]
  %36 = vset.pattern.permute.xlu0 0
  %37 = vperm.xlu0 %36, %v34
  %v38 = vpop.permute.xlu0 %37
  %v58 = vunpack.c.l.b16 %v16
  %v59 = vunpack.c.h.b16 %v16
  %v60 = vunpack.c.l.b16 %v17
  %v61 = vunpack.c.h.b16 %v17
  %v62 = vunpack.c.l.b16 %v18
  %v63 = vunpack.c.h.b16 %v18
  %v64 = vunpack.c.l.b16 %v19
  %v65 = vunpack.c.h.b16 %v19
  %v66 = vunpack.c.l.b16 %v20
  %v67 = vunpack.c.h.b16 %v20
  %v68 = vunpack.c.l.b16 %v21
  %v69 = vunpack.c.h.b16 %v21
  %v70 = vunpack.c.l.b16 %v22
  %v71 = vunpack.c.h.b16 %v22
  %v72 = vunpack.c.l.b16 %v23
  %v73 = vunpack.c.h.b16 %v23
  %v74 = vunpack.c.l.b16 %v24
  %v75 = vunpack.c.h.b16 %v24
  %v76 = vunpack.c.l.b16 %v25
  %v77 = vunpack.c.h.b16 %v25
  %v78 = vunpack.c.l.b16 %v26
  %v79 = vunpack.c.h.b16 %v26
  %v80 = vunpack.c.l.b16 %v27
  %v81 = vunpack.c.h.b16 %v27
  %v82 = vunpack.c.l.b16 %v28
  %v83 = vunpack.c.h.b16 %v28
  %v84 = vunpack.c.l.b16 %v29
  %v85 = vunpack.c.h.b16 %v29
  %v86 = vunpack.c.l.b16 %v30
  %v87 = vunpack.c.h.b16 %v30
  %v88 = vunpack.c.l.b16 %v31
  %v89 = vunpack.c.h.b16 %v31
  %v90 = vunpack.c.l.b16 %v32
  %v91 = vunpack.c.h.b16 %v32
  %v92 = vunpack.c.l.b16 %v33
  %v93 = vunpack.c.h.b16 %v33
  %v94 = vpack.c.b16 %v62, %v58
  %v95 = vpack.c.b16 %v63, %v59
  %v96 = vpack.c.b16 %v64, %v60
  %v97 = vpack.c.b16 %v65, %v61
  %v98 = vpack.c.b16 %v70, %v66
  %v99 = vpack.c.b16 %v71, %v67
  %v100 = vpack.c.b16 %v72, %v68
  %v101 = vpack.c.b16 %v73, %v69
  %v102 = vpack.c.b16 %v78, %v74
  %v103 = vpack.c.b16 %v79, %v75
  %v104 = vpack.c.b16 %v80, %v76
  %v105 = vpack.c.b16 %v81, %v77
  %v106 = vpack.c.b16 %v86, %v82
  %v107 = vpack.c.b16 %v87, %v83
  %v108 = vpack.c.b16 %v88, %v84
  %v109 = vpack.c.b16 %v89, %v85
  %v110 = vpack.c.b16 %v90, %v90
  %v111 = vpack.c.b16 %v91, %v91
  %v112 = vpack.c.b16 %v92, %v92
  %v113 = vpack.c.b16 %v93, %v93
  %vm130 = vcmask 588800
  %v132 = vsel %vm130, %v15, 0
  %vm134 = vcmask 1043456
  %v136 = vsel %vm134, %v110, 0
  %v139 = vsel %vm134, %v111, 0
  %v142 = vsel %vm134, %v112, 0
  %v145 = vsel %vm134, %v113, 0
  %147 = vmatprep.subr.bf16.mxu0 %v95
  %148 = vmatpush1.bf16.msra.mxu0 %v94
  %149 = vmatprep.subr.bf16.mxu0 %v99
  %150 = vmatpush1.bf16.msra.mxu0 %v98
  %151 = vmatprep.subr.bf16.mxu0 %v103
  %152 = vmatpush1.bf16.msra.mxu0 %v102
  %153 = vmatprep.subr.bf16.mxu0 %v107
  %154 = vmatpush1.bf16.msra.mxu0 %v106
  %155 = vmatprep.subr.bf16.mxu0 %v139
  %156 = vmatpush1.bf16.msra.mxu0 %v136
  %157 = vmatprep.subr.bf16.mxu0 0
  %158 = vmatpush1.bf16.msra.mxu0 0
  %159 = vmatprep.subr.bf16.mxu0 0
  %160 = vmatpush1.bf16.msra.mxu0 0
  %161 = vmatprep.subr.bf16.mxu0 0
  %162 = vmatpush1.bf16.msra.mxu0 0
  %163 = vmatprep.subr.bf16.mxu0 0
  %164 = vmatpush1.bf16.msra.mxu0 0
  %165 = vmatprep.subr.bf16.mxu0 0
  %166 = vmatpush1.bf16.msra.mxu0 0
  %167 = vmatprep.subr.bf16.mxu0 0
  %168 = vmatpush1.bf16.msra.mxu0 0
  %169 = vmatprep.subr.bf16.mxu0 0
  %170 = vmatpush1.bf16.msra.mxu0 0
  %171 = vmatprep.subr.bf16.mxu0 0
  %172 = vmatpush1.bf16.msra.mxu0 0
  %173 = vmatprep.subr.bf16.mxu0 0
  %174 = vmatpush1.bf16.msra.mxu0 0
  %175 = vmatprep.subr.bf16.mxu0 0
  %176 = vmatpush1.bf16.msra.mxu0 0
  %177 = vmatprep.subr.bf16.mxu0 0
  %178 = vmatpush1.bf16.msra.mxu0 0
  %179 = vmatprep.mubr.bf16.mxu0 0
  %180 = vmatmul.mubr.bf16.gmra.mrb[0].mxu0 %v132
  %v181 = vpop.f32.mrb[0].mxu0
  %v182 = vadd.f32 %v38, %v181
  %v183 = vpop.f32.mrb[0].mxu0
  %v184 = vadd.f32 %v38, %v183
  %v185 = vpop.f32.mrb[0].mxu0
  %v186 = vpop.f32.mrb[0].mxu0
  %187 = vdwg.mxu0
  %188 = vmatprep.subr.bf16.mxu0 %v97
  %189 = vmatpush1.bf16.msra.mxu0 %v96
  %190 = vmatprep.subr.bf16.mxu0 %v101
  %191 = vmatpush1.bf16.msra.mxu0 %v100
  %192 = vmatprep.subr.bf16.mxu0 %v105
  %193 = vmatpush1.bf16.msra.mxu0 %v104
  %194 = vmatprep.subr.bf16.mxu0 %v109
  %195 = vmatpush1.bf16.msra.mxu0 %v108
  %196 = vmatprep.subr.bf16.mxu0 %v145
  %197 = vmatpush1.bf16.msra.mxu0 %v142
  %198 = vmatprep.subr.bf16.mxu0 0
  %199 = vmatpush1.bf16.msra.mxu0 0
  %200 = vmatprep.subr.bf16.mxu0 0
  %201 = vmatpush1.bf16.msra.mxu0 0
  %202 = vmatprep.subr.bf16.mxu0 0
  %203 = vmatpush1.bf16.msra.mxu0 0
  %204 = vmatprep.subr.bf16.mxu0 0
  %205 = vmatpush1.bf16.msra.mxu0 0
  %206 = vmatprep.subr.bf16.mxu0 0
  %207 = vmatpush1.bf16.msra.mxu0 0
  %208 = vmatprep.subr.bf16.mxu0 0
  %209 = vmatpush1.bf16.msra.mxu0 0
  %210 = vmatprep.subr.bf16.mxu0 0
  %211 = vmatpush1.bf16.msra.mxu0 0
  %212 = vmatprep.subr.bf16.mxu0 0
  %213 = vmatpush1.bf16.msra.mxu0 0
  %214 = vmatprep.subr.bf16.mxu0 0
  %215 = vmatpush1.bf16.msra.mxu0 0
  %216 = vmatprep.subr.bf16.mxu0 0
  %217 = vmatpush1.bf16.msra.mxu0 0
  %218 = vmatprep.subr.bf16.mxu0 0
  %219 = vmatpush1.bf16.msra.mxu0 0
  %220 = vmatprep.mubr.bf16.mxu0 0
  %221 = vmatmul.mubr.bf16.gmra.mrb[0].mxu0 %v132
  %v222 = vpop.f32.mrb[0].mxu0
  %v223 = vadd.f32 %v38, %v222
  %v224 = vpop.f32.mrb[0].mxu0
  %v225 = vadd.f32 %v38, %v224
  %v226 = vpop.f32.mrb[0].mxu0
  %v227 = vpop.f32.mrb[0].mxu0
  %228 = vdwg.mxu0
  %vm229 = vcmp.ge.f32.partialorder %v182, 0.0
  %vm230 = vcmp.ge.f32.partialorder %v184, 0.0
  %vm231 = vcmp.ge.f32.partialorder %v223, 0.0
  %vm232 = vcmp.ge.f32.partialorder %v225, 0.0
  %v233 = vmul.f32 %v182, 0.2
  %v234 = vmul.f32 %v184, 0.2
  %v235 = vmul.f32 %v223, 0.2
  %v236 = vmul.f32 %v225, 0.2
  %v237 = vsel %vm229, %v182, %v233
  %v238 = vsel %vm230, %v184, %v234
  %v239 = vsel %vm231, %v223, %v235
  %v240 = vsel %vm232, %v225, %v236
  %v241 = vpack.c.bf16 %v237, %v237
  %v242 = vpack.c.bf16 %v238, %v238
  %v243 = vpack.c.bf16 %v239, %v239
  %v244 = vpack.c.bf16 %v240, %v240
  %v249 = vunpack.c.l.b16 %v241
  %v250 = vunpack.c.l.b16 %v242
  %v251 = vunpack.c.l.b16 %v243
  %v252 = vunpack.c.l.b16 %v244
  %v253 = vpack.c.b16 %v250, %v249
  %v254 = vpack.c.b16 %v252, %v251
  %257 = vst [vmem:[%s3] sm:$0xff] %v253
  %258 = vst [vmem:[%s3 + $0x8] sm:$0xff] %v254
  // Predicated region
  $region14: #{feature_extractor_forward.44} parent=0 // pred_check
    _
  $region15: #{feature_extractor_forward.44} parent=0 // pred_check_branch
    %260 = sbr.rel (0) target = $region17
  $region16: #{feature_extractor_forward.44} parent=0 // pred_region
    _
  $region17: #{feature_extractor_forward.44} parent=0 // pred_fallthru
    _
  // Predicated region
  $region18: #{feature_extractor_forward.44} parent=0 // pred_check
    _
  $region19: #{feature_extractor_forward.44} parent=0 // pred_check_branch
    %262 = sbr.rel (0) target = $region21
  $region20: #{feature_extractor_forward.44} parent=0 // pred_region
    _
  $region21: #{feature_extractor_forward.44} parent=0 // pred_fallthru
    _

</llo_original>
